<compile_context>
chip_gen: v7x
topology: tpu7x:2x2x1
jax: 0.10.0
libtpu: 0.0.40
codegen_flags: <defaults>
</compile_context>

<pallas_src>
import functools

import jax
import jax.numpy as jnp
from jax.experimental import pallas as pl
from jax.experimental.pallas import tpu as pltpu

EPS = 1e-5     # nn.InstanceNorm2d default eps (affine=False, biased variance)
LANE = 128


def _round_up(x, m):
    return ((x + m - 1) // m) * m


def _pad_last(a, target):
    pad = target - a.shape[-1]
    if pad == 0:
        return a
    cfg = [(0, 0)] * (a.ndim - 1) + [(0, pad)]
    return jnp.pad(a, cfg)


def _pad2(a, rows, cols):
    return jnp.pad(a, ((0, rows - a.shape[0]), (0, cols - a.shape[1])))


def _vmem_limit_bytes():
    """Generation-aware scoped VMEM limit (v5e/v6e: 128 MiB, v7x: 64 MiB)."""
    try:
        cap = int(pltpu.get_tpu_info().vmem_capacity_bytes)
    except Exception:
        cap = 64 * 1024 * 1024
    # Leave headroom for double buffers / compiler temps.
    return int(min(cap * 5 // 8, 80 * 1024 * 1024))


# ---------------------------------------------------------------------------
# In-kernel helpers
# ---------------------------------------------------------------------------
def _instance_norm(y):
    """y: (HW, C) f32. Per-(sample, channel) stats over spatial, biased var.
    Two-pass (mean, then centered sum-of-squares) for better cancellation
    behavior; all-zero padded channels stay exactly 0."""
    inv_n = 1.0 / y.shape[0]
    mean = jnp.sum(y, axis=0, keepdims=True) * inv_n
    d = y - mean
    var = jnp.sum(d * d, axis=0, keepdims=True) * inv_n
    return d * jax.lax.rsqrt(var + EPS)


# ---------------------------------------------------------------------------
# Fused bottleneck kernel (one grid step == one sample)
# ---------------------------------------------------------------------------
def _bottleneck_kernel(x_ref, w1_ref, w2_ref, w3_ref, ws_ref, o_ref, hbuf_ref,
                       *, H, W, padr, use_shortcut):
    HW = H * W
    cmid = w1_ref.shape[1]            # padded mid channels (multiple of 128)
    bf16 = jnp.bfloat16

    def dot(a, b):                    # bf16 operands, f32 MXU accumulation
        return jnp.dot(a, b, preferred_element_type=jnp.float32)

    # ---- zero halo rows of the flat scratch (see NOTE in header) -----------
    zpad = jnp.zeros((padr, cmid), hbuf_ref.dtype)
    hbuf_ref[pl.ds(0, padr), :] = zpad
    hbuf_ref[pl.ds(padr + HW, padr), :] = zpad

    # ---- 1x1 conv + InstanceNorm + ReLU ------------------------------------
    h1 = dot(x_ref[0].astype(bf16), w1_ref[...])            # (HW, Cmid_p) f32
    h1 = jnp.maximum(_instance_norm(h1), 0.0)
    hbuf_ref[pl.ds(padr, HW), :] = h1

    # ---- 3x3 conv (stride 1, pad 1) as accumulating per-tap-pair dots ------
    # Tap (dy, dx) is a row shift of dy*W + dx into the zero-haloed flat
    # buffer; zero halo rows handle the top/bottom boundary, in-kernel column
    # masks handle the left/right wrap-around.  Taps are paired so each dot
    # has K = 2*Cmid_p = 256 (full contraction depth on v6e/v7x MXUs).
    col = jax.lax.broadcasted_iota(jnp.int32, (HW, 1), 0) % W
    mask_m1 = (col >= 1).astype(jnp.float32)                 # dx = -1 valid
    mask_p1 = (col <= W - 2).astype(jnp.float32)             # dx = +1 valid

    h2 = None
    for taps in ((0, 1), (2, 3), (4, 5), (6, 7), (8,)):
        pieces = []
        for t in taps:
            dy, dx = t // 3 - 1, t % 3 - 1
            piece = hbuf_ref[pl.ds(padr + dy * W + dx, HW), :]   # (HW, Cmid_p)
            if dx == -1:
                piece = piece * mask_m1
            elif dx == 1:
                piece = piece * mask_p1
            pieces.append(piece.astype(bf16))
        lhs = pieces[0] if len(pieces) == 1 else jnp.concatenate(pieces, axis=-1)
        rhs = w2_ref[pl.ds(taps[0] * cmid, len(taps) * cmid), :]
        part = dot(lhs, rhs)
        h2 = part if h2 is None else h2 + part
    h2 = jnp.maximum(_instance_norm(h2), 0.0)                 # (HW, Cmid_p)

    # ---- 1x1 conv + InstanceNorm + ReLU ------------------------------------
    h3 = dot(h2.astype(bf16), w3_ref[...])
    h3 = jnp.maximum(_instance_norm(h3), 0.0)                 # (HW, Cout_p)

    # ---- residual add + ReLU (fused epilogue) -------------------------------
    if use_shortcut:
        res = _instance_norm(dot(x_ref[0].astype(bf16), ws_ref[...]))
    else:
        res = x_ref[0]                                        # Cin_p == Cout_p
    o_ref[0] = jnp.maximum(h3 + res, 0.0).astype(o_ref.dtype)


# ---------------------------------------------------------------------------
# Wrapper: layout / padding glue + the single pallas_call
# ---------------------------------------------------------------------------
def bottleneck_block(x_nchw, params, in_c, out_c, kernel_size=3, stride=1):
    assert kernel_size == 3 and stride == 1   # module defaults; see header TODO
    N, C, H, W = x_nchw.shape
    assert C == in_c
    HW = H * W
    mid = out_c // 4

    cin_p = _round_up(in_c, LANE)
    cmid_p = _round_up(mid, LANE)
    cout_p = _round_up(out_c, LANE)
    padr = _round_up(W + 1, 8)                # zero-halo rows in the flat buffer
    use_shortcut = (in_c != out_c)
    if not use_shortcut:
        assert cin_p == cout_p

    # NCHW -> (N, HW, Cin_p): channels lane-dense, flat spatial on sublanes.
    # (Biases are dropped entirely: they cancel against the IN mean subtraction.)
    x = jnp.transpose(x_nchw, (0, 2, 3, 1)).astype(jnp.float32).reshape(N, HW, in_c)
    x_p = _pad_last(x, cin_p)

    # Weights: cast to bf16 FIRST, then zero-pad, so padded rows/cols are exact 0.
    w1 = _pad2(params["w1_hwio"][0, 0].astype(jnp.bfloat16), cin_p, cmid_p)
    w2 = jnp.pad(params["w2_hwio"].astype(jnp.bfloat16),
                 ((0, 0), (0, 0), (0, cmid_p - mid), (0, cmid_p - mid))
                 ).reshape(9 * cmid_p, cmid_p)                # tap-major rows
    w3 = _pad2(params["w3_hwio"][0, 0].astype(jnp.bfloat16), cmid_p, cout_p)
    if use_shortcut:
        ws = _pad2(params["ws_hwio"][0, 0].astype(jnp.bfloat16), cin_p, cout_p)
    else:
        ws = jnp.zeros((cin_p, cout_p), jnp.bfloat16)         # never read

    kernel = functools.partial(_bottleneck_kernel, H=H, W=W, padr=padr,
                               use_shortcut=use_shortcut)

    def _call(single_buffer_weights):
        wkw = {"pipeline_mode": pl.Buffered(1)} if single_buffer_weights else {}
        in_specs = [
            pl.BlockSpec((1, HW, cin_p), lambda n: (n, 0, 0)),              # x
            pl.BlockSpec((cin_p, cmid_p), lambda n: (0, 0), **wkw),         # w1
            pl.BlockSpec((9 * cmid_p, cmid_p), lambda n: (0, 0), **wkw),    # w2
            pl.BlockSpec((cmid_p, cout_p), lambda n: (0, 0), **wkw),        # w3
            pl.BlockSpec((cin_p, cout_p), lambda n: (0, 0), **wkw),         # ws
        ]
        return pl.pallas_call(
            kernel,
            out_shape=jax.ShapeDtypeStruct((N, HW, cout_p), jnp.float32),
            grid=(N,),
            in_specs=in_specs,
            out_specs=pl.BlockSpec((1, HW, cout_p), lambda n: (n, 0, 0)),
            scratch_shapes=[pltpu.VMEM((HW + 2 * padr, cmid_p), jnp.float32)],
            compiler_params=pltpu.CompilerParams(
                dimension_semantics=("parallel",),
                vmem_limit_bytes=_vmem_limit_bytes()),
        )(x_p, w1, w2, w3, ws)

    try:
        out_p = _call(True)
    except Exception:
        # pipeline_mode=pl.Buffered may be unsupported on this JAX version.
        out_p = _call(False)

    out = out_p[:, :, :out_c].reshape(N, H, W, out_c).transpose(0, 3, 1, 2)
    return out


# ---------------------------------------------------------------------------
# Parameter init (deterministic, synthetic; PyTorch conv shapes / fan-in init)
# ---------------------------------------------------------------------------
def init_params(key, in_c, out_c, kernel_size=3):
    mid = out_c // 4
    keys = jax.random.split(key, 8)

    def conv_hwio(k, cin, cout, ksize):
        fan_in = cin * ksize * ksize
        bound = 1.0 / (fan_in ** 0.5)
        return jax.random.uniform(k, (ksize, ksize, cin, cout),
                                  jnp.float32, -bound, bound)

    def conv_bias(k, cin, cout, ksize):
        fan_in = cin * ksize * ksize
        bound = 1.0 / (fan_in ** 0.5)
        return jax.random.uniform(k, (cout,), jnp.float32, -bound, bound)

    return {
        # identity_block
        "w1_hwio": conv_hwio(keys[0], in_c, mid, 1),
        "b1": conv_bias(keys[1], in_c, mid, 1),
        "w2_hwio": conv_hwio(keys[2], mid, mid, kernel_size),
        "b2": conv_bias(keys[3], mid, mid, kernel_size),
        "w3_hwio": conv_hwio(keys[4], mid, out_c, 1),
        "b3": conv_bias(keys[5], mid, out_c, 1),
        # shortcut
        "ws_hwio": conv_hwio(keys[6], in_c, out_c, 1),
        "bs": conv_bias(keys[7], in_c, out_c, 1),
    }


# ---------------------------------------------------------------------------
# Pure-JAX reference (keeps the conv biases; InstanceNorm cancels them, which
# the kernel exploits by dropping them — matching proves the cancellation).
# ---------------------------------------------------------------------------
def ref_bottleneck(x_nchw, params, in_c, out_c):
    x = jnp.transpose(x_nchw, (0, 2, 3, 1)).astype(jnp.float32)

    def conv(h, w_hwio, b):
        pad = w_hwio.shape[0] // 2
        y = jax.lax.conv_general_dilated(
            h, w_hwio, (1, 1), [(pad, pad), (pad, pad)],
            dimension_numbers=("NHWC", "HWIO", "NHWC"))
        return y + b.reshape(1, 1, 1, -1)

    def inorm(y):
        mean = jnp.mean(y, axis=(1, 2), keepdims=True)
        var = jnp.mean((y - mean) ** 2, axis=(1, 2), keepdims=True)
        return (y - mean) * jax.lax.rsqrt(var + EPS)

    relu = lambda t: jnp.maximum(t, 0.0)

    h = relu(inorm(conv(x, params["w1_hwio"], params["b1"])))
    h = relu(inorm(conv(h, params["w2_hwio"], params["b2"])))
    h = relu(inorm(conv(h, params["w3_hwio"], params["b3"])))
    res = x if in_c == out_c else inorm(conv(x, params["ws_hwio"], params["bs"]))
    out = relu(h + res)
    return jnp.transpose(out, (0, 3, 1, 2))


if __name__ == "__main__":
    key = jax.random.PRNGKey(0)
    H = W = 16
    # First config exercises the conv shortcut (in_c != out_c), second the
    # identity residual (in_c == out_c).
    for (N, in_c, out_c) in ((2, 8, 16), (2, 16, 16)):
        kx, kp, key = jax.random.split(key, 3)
        x = jax.random.normal(kx, (N, in_c, H, W), jnp.float32)   # NCHW like PyTorch
        params = init_params(kp, in_c, out_c)

        out = jax.block_until_ready(bottleneck_block(x, params, in_c, out_c))
        assert out.shape == (N, out_c, H, W), out.shape

        ref = ref_bottleneck(x, params, in_c, out_c)
        max_err = float(jnp.max(jnp.abs(out - ref)))
        # Kernel and reference both run the matmuls/convs at (b)f16 MXU
        # precision; tolerance sized for that, far below any tap/mask/IN bug.
        if max_err > 5e-2:
            raise AssertionError(
                f"mismatch vs reference (in_c={in_c}, out_c={out_c}): "
                f"max abs err = {max_err}")

    print("KERNEL_OK")
</pallas_src>

<mosaic_0001>
module attributes {stable_mosaic.version = 11 : i64} {
  func.func @_bottleneck_kernel(%arg0: i32, %arg1: memref<1x256x128xf32, #tpu.memory_space<vmem>>, %arg2: memref<128x128xbf16, #tpu.memory_space<vmem>>, %arg3: memref<1152x128xbf16, #tpu.memory_space<vmem>>, %arg4: memref<128x128xbf16, #tpu.memory_space<vmem>>, %arg5: memref<128x128xbf16, #tpu.memory_space<vmem>>, %arg6: memref<1x256x128xf32, #tpu.memory_space<vmem>>, %arg7: memref<304x128xf32, #tpu.memory_space<vmem>>) attributes {dimension_semantics = [#tpu.dimension_semantics<parallel>], iteration_bounds = array<i64: 2>, scalar_prefetch = 0 : i64, scratch_operands = 1 : i64, tpu.core_type = #tpu.core_type<tc>, window_params = [{transform_indices = @transform_0, window_bounds = array<i64: 1, 256, 128>}, {pipeline_mode = #tpu.pipeline_mode<synchronous>, transform_indices = @transform_1, window_bounds = array<i64: 128, 128>}, {pipeline_mode = #tpu.pipeline_mode<synchronous>, transform_indices = @transform_2, window_bounds = array<i64: 1152, 128>}, {pipeline_mode = #tpu.pipeline_mode<synchronous>, transform_indices = @transform_3, window_bounds = array<i64: 128, 128>}, {pipeline_mode = #tpu.pipeline_mode<synchronous>, transform_indices = @transform_4, window_bounds = array<i64: 128, 128>}, {transform_indices = @transform_5, window_bounds = array<i64: 1, 256, 128>}]} {
    %cst = arith.constant 0.000000e+00 : f32
    %0 = vector.broadcast %cst : f32 to vector<24x128xf32>
    %c0 = arith.constant 0 : index
    %c0_0 = arith.constant 0 : index
    %1 = vector.load %arg7[%c0, %c0_0] : memref<304x128xf32, #tpu.memory_space<vmem>>, vector<24x128xf32>
    tpu.vector_store %arg7[%c0, %c0_0], %0 {strides = array<i32>} : memref<304x128xf32, #tpu.memory_space<vmem>>, vector<24x128xf32>,
    %c280 = arith.constant 280 : index
    %c0_1 = arith.constant 0 : index
    %2 = vector.load %arg7[%c280, %c0_1] : memref<304x128xf32, #tpu.memory_space<vmem>>, vector<24x128xf32>
    tpu.vector_store %arg7[%c280, %c0_1], %0 {strides = array<i32>} : memref<304x128xf32, #tpu.memory_space<vmem>>, vector<24x128xf32>,
    %c0_2 = arith.constant 0 : index
    %c0_3 = arith.constant 0 : index
    %c0_4 = arith.constant 0 : index
    %3 = vector.load %arg1[%c0_2, %c0_3, %c0_4] : memref<1x256x128xf32, #tpu.memory_space<vmem>>, vector<1x256x128xf32>
    %4 = vector.shape_cast %3 : vector<1x256x128xf32> to vector<256x128xf32>
    %5 = arith.truncf %4 : vector<256x128xf32> to vector<256x128xbf16>
    %c0_5 = arith.constant 0 : index
    %c0_6 = arith.constant 0 : index
    %6 = vector.load %arg2[%c0_5, %c0_6] : memref<128x128xbf16, #tpu.memory_space<vmem>>, vector<128x128xbf16>
    %cst_7 = arith.constant dense<0.000000e+00> : vector<256x128xf32>
    %7 = tpu.matmul %5, %6, %cst_7 {dimension_numbers = #tpu.dot_dimension_numbers<[1], [0], [0], [1], [0, 0, 1, 1], [], []>} : vector<256x128xbf16>, vector<128x128xbf16>, vector<256x128xf32> -> vector<256x128xf32>
    %cst_8 = arith.constant dense<0.000000e+00> : vector<128xf32>
    %8 = vector.multi_reduction <add>, %7, %cst_8 [0] : vector<256x128xf32> to vector<128xf32>
    %9 = vector.shape_cast %8 : vector<128xf32> to vector<1x128xf32>
    %cst_9 = arith.constant 3.906250e-03 : f32
    %10 = vector.broadcast %cst_9 : f32 to vector<1x128xf32>
    %11 = arith.mulf %9, %10 : vector<1x128xf32>
    %12 = vector.broadcast %11 : vector<1x128xf32> to vector<256x128xf32>
    %13 = arith.subf %7, %12 : vector<256x128xf32>
    %14 = arith.mulf %13, %13 : vector<256x128xf32>
    %cst_10 = arith.constant dense<0.000000e+00> : vector<128xf32>
    %15 = vector.multi_reduction <add>, %14, %cst_10 [0] : vector<256x128xf32> to vector<128xf32>
    %16 = vector.shape_cast %15 : vector<128xf32> to vector<1x128xf32>
    %cst_11 = arith.constant 3.906250e-03 : f32
    %17 = vector.broadcast %cst_11 : f32 to vector<1x128xf32>
    %18 = arith.mulf %16, %17 : vector<1x128xf32>
    %cst_12 = arith.constant 9.99999974E-6 : f32
    %19 = vector.broadcast %cst_12 : f32 to vector<1x128xf32>
    %20 = arith.addf %18, %19 : vector<1x128xf32>
    %21 = math.rsqrt %20 : vector<1x128xf32>
    %22 = vector.broadcast %21 : vector<1x128xf32> to vector<256x128xf32>
    %23 = arith.mulf %13, %22 : vector<256x128xf32>
    %cst_13 = arith.constant 0.000000e+00 : f32
    %24 = vector.broadcast %cst_13 : f32 to vector<256x128xf32>
    %25 = arith.maximumf %23, %24 : vector<256x128xf32>
    %c24 = arith.constant 24 : index
    %c0_14 = arith.constant 0 : index
    %26 = vector.load %arg7[%c24, %c0_14] : memref<304x128xf32, #tpu.memory_space<vmem>>, vector<256x128xf32>
    tpu.vector_store %arg7[%c24, %c0_14], %25 {strides = array<i32>} : memref<304x128xf32, #tpu.memory_space<vmem>>, vector<256x128xf32>,
    %27 = tpu.iota {dimensions = array<i32: 0>} : vector<256x1xi32>
    %c16_i32 = arith.constant 16 : i32
    %c0_i32 = arith.constant 0 : i32
    %28 = arith.cmpi eq, %c16_i32, %c0_i32 : i32
    %c1_i32 = arith.constant 1 : i32
    %29 = arith.select %28, %c1_i32, %c16_i32 : i32
    %30 = vector.broadcast %29 : i32 to vector<256x1xi32>
    %31 = arith.remsi %27, %30 : vector<256x1xi32>
    %c0_i32_15 = arith.constant 0 : i32
    %32 = vector.broadcast %c0_i32_15 : i32 to vector<256x1xi32>
    %33 = arith.cmpi ne, %31, %32 : vector<256x1xi32>
    %c0_i32_16 = arith.constant 0 : i32
    %34 = vector.broadcast %c0_i32_16 : i32 to vector<256x1xi32>
    %35 = arith.cmpi slt, %31, %34 : vector<256x1xi32>
    %c0_i32_17 = arith.constant 0 : i32
    %36 = arith.cmpi slt, %29, %c0_i32_17 : i32
    %37 = vector.broadcast %36 : i1 to vector<256x1xi1>
    %38 = vector.broadcast %37 : vector<256x1xi1> to vector<256x1xi1>
    %39 = arith.xori %35, %38 : vector<256x1xi1>
    %40 = arith.andi %39, %33 : vector<256x1xi1>
    %41 = vector.broadcast %29 : i32 to vector<256x1xi32>
    %42 = arith.addi %31, %41 : vector<256x1xi32>
    %43 = arith.select %40, %42, %31 : vector<256x1xi1>, vector<256x1xi32>
    %c1_i32_18 = arith.constant 1 : i32
    %44 = vector.broadcast %c1_i32_18 : i32 to vector<256x1xi32>
    %45 = arith.cmpi sge, %43, %44 : vector<256x1xi32>
    %46 = arith.extui %45 : vector<256x1xi1> to vector<256x1xi32>
    %47 = arith.sitofp %46 : vector<256x1xi32> to vector<256x1xf32>
    %c14_i32 = arith.constant 14 : i32
    %48 = vector.broadcast %c14_i32 : i32 to vector<256x1xi32>
    %49 = arith.cmpi sle, %43, %48 : vector<256x1xi32>
    %50 = arith.extui %49 : vector<256x1xi1> to vector<256x1xi32>
    %51 = arith.sitofp %50 : vector<256x1xi32> to vector<256x1xf32>
    %c7 = arith.constant 7 : index
    %c0_19 = arith.constant 0 : index
    %52 = vector.load %arg7[%c7, %c0_19] : memref<304x128xf32, #tpu.memory_space<vmem>>, vector<256x128xf32>
    %53 = vector.broadcast %47 : vector<256x1xf32> to vector<256x128xf32>
    %54 = arith.mulf %52, %53 : vector<256x128xf32>
    %55 = arith.truncf %54 : vector<256x128xf32> to vector<256x128xbf16>
    %c8 = arith.constant 8 : index
    %c0_20 = arith.constant 0 : index
    %56 = vector.load %arg7[%c8, %c0_20] : memref<304x128xf32, #tpu.memory_space<vmem>>, vector<256x128xf32>
    %57 = arith.truncf %56 : vector<256x128xf32> to vector<256x128xbf16>
    %58 = tpu.concatenate %55, %57 in 1 : vector<256x128xbf16>, vector<256x128xbf16> -> vector<256x256xbf16>
    %c0_21 = arith.constant 0 : index
    %c0_22 = arith.constant 0 : index
    %59 = vector.load %arg3[%c0_21, %c0_22] : memref<1152x128xbf16, #tpu.memory_space<vmem>>, vector<256x128xbf16>
    %cst_23 = arith.constant dense<0.000000e+00> : vector<256x128xf32>
    %60 = tpu.matmul %58, %59, %cst_23 {dimension_numbers = #tpu.dot_dimension_numbers<[1], [0], [0], [1], [0, 0, 1, 1], [], []>} : vector<256x256xbf16>, vector<256x128xbf16>, vector<256x128xf32> -> vector<256x128xf32>
    %c9 = arith.constant 9 : index
    %c0_24 = arith.constant 0 : index
    %61 = vector.load %arg7[%c9, %c0_24] : memref<304x128xf32, #tpu.memory_space<vmem>>, vector<256x128xf32>
    %62 = vector.broadcast %51 : vector<256x1xf32> to vector<256x128xf32>
    %63 = arith.mulf %61, %62 : vector<256x128xf32>
    %64 = arith.truncf %63 : vector<256x128xf32> to vector<256x128xbf16>
    %c23 = arith.constant 23 : index
    %c0_25 = arith.constant 0 : index
    %65 = vector.load %arg7[%c23, %c0_25] : memref<304x128xf32, #tpu.memory_space<vmem>>, vector<256x128xf32>
    %66 = vector.broadcast %47 : vector<256x1xf32> to vector<256x128xf32>
    %67 = arith.mulf %65, %66 : vector<256x128xf32>
    %68 = arith.truncf %67 : vector<256x128xf32> to vector<256x128xbf16>
    %69 = tpu.concatenate %64, %68 in 1 : vector<256x128xbf16>, vector<256x128xbf16> -> vector<256x256xbf16>
    %c256 = arith.constant 256 : index
    %c0_26 = arith.constant 0 : index
    %70 = vector.load %arg3[%c256, %c0_26] : memref<1152x128xbf16, #tpu.memory_space<vmem>>, vector<256x128xbf16>
    %cst_27 = arith.constant dense<0.000000e+00> : vector<256x128xf32>
    %71 = tpu.matmul %69, %70, %cst_27 {dimension_numbers = #tpu.dot_dimension_numbers<[1], [0], [0], [1], [0, 0, 1, 1], [], []>} : vector<256x256xbf16>, vector<256x128xbf16>, vector<256x128xf32> -> vector<256x128xf32>
    %72 = arith.addf %60, %71 : vector<256x128xf32>
    %c24_28 = arith.constant 24 : index
    %c0_29 = arith.constant 0 : index
    %73 = vector.load %arg7[%c24_28, %c0_29] : memref<304x128xf32, #tpu.memory_space<vmem>>, vector<256x128xf32>
    %74 = arith.truncf %73 : vector<256x128xf32> to vector<256x128xbf16>
    %c25 = arith.constant 25 : index
    %c0_30 = arith.constant 0 : index
    %75 = vector.load %arg7[%c25, %c0_30] : memref<304x128xf32, #tpu.memory_space<vmem>>, vector<256x128xf32>
    %76 = vector.broadcast %51 : vector<256x1xf32> to vector<256x128xf32>
    %77 = arith.mulf %75, %76 : vector<256x128xf32>
    %78 = arith.truncf %77 : vector<256x128xf32> to vector<256x128xbf16>
    %79 = tpu.concatenate %74, %78 in 1 : vector<256x128xbf16>, vector<256x128xbf16> -> vector<256x256xbf16>
    %c512 = arith.constant 512 : index
    %c0_31 = arith.constant 0 : index
    %80 = vector.load %arg3[%c512, %c0_31] : memref<1152x128xbf16, #tpu.memory_space<vmem>>, vector<256x128xbf16>
    %cst_32 = arith.constant dense<0.000000e+00> : vector<256x128xf32>
    %81 = tpu.matmul %79, %80, %cst_32 {dimension_numbers = #tpu.dot_dimension_numbers<[1], [0], [0], [1], [0, 0, 1, 1], [], []>} : vector<256x256xbf16>, vector<256x128xbf16>, vector<256x128xf32> -> vector<256x128xf32>
    %82 = arith.addf %72, %81 : vector<256x128xf32>
    %c39 = arith.constant 39 : index
    %c0_33 = arith.constant 0 : index
    %83 = vector.load %arg7[%c39, %c0_33] : memref<304x128xf32, #tpu.memory_space<vmem>>, vector<256x128xf32>
    %84 = vector.broadcast %47 : vector<256x1xf32> to vector<256x128xf32>
    %85 = arith.mulf %83, %84 : vector<256x128xf32>
    %86 = arith.truncf %85 : vector<256x128xf32> to vector<256x128xbf16>
    %c40 = arith.constant 40 : index
    %c0_34 = arith.constant 0 : index
    %87 = vector.load %arg7[%c40, %c0_34] : memref<304x128xf32, #tpu.memory_space<vmem>>, vector<256x128xf32>
    %88 = arith.truncf %87 : vector<256x128xf32> to vector<256x128xbf16>
    %89 = tpu.concatenate %86, %88 in 1 : vector<256x128xbf16>, vector<256x128xbf16> -> vector<256x256xbf16>
    %c768 = arith.constant 768 : index
    %c0_35 = arith.constant 0 : index
    %90 = vector.load %arg3[%c768, %c0_35] : memref<1152x128xbf16, #tpu.memory_space<vmem>>, vector<256x128xbf16>
    %cst_36 = arith.constant dense<0.000000e+00> : vector<256x128xf32>
    %91 = tpu.matmul %89, %90, %cst_36 {dimension_numbers = #tpu.dot_dimension_numbers<[1], [0], [0], [1], [0, 0, 1, 1], [], []>} : vector<256x256xbf16>, vector<256x128xbf16>, vector<256x128xf32> -> vector<256x128xf32>
    %92 = arith.addf %82, %91 : vector<256x128xf32>
    %c41 = arith.constant 41 : index
    %c0_37 = arith.constant 0 : index
    %93 = vector.load %arg7[%c41, %c0_37] : memref<304x128xf32, #tpu.memory_space<vmem>>, vector<256x128xf32>
    %94 = vector.broadcast %51 : vector<256x1xf32> to vector<256x128xf32>
    %95 = arith.mulf %93, %94 : vector<256x128xf32>
    %96 = arith.truncf %95 : vector<256x128xf32> to vector<256x128xbf16>
    %c1024 = arith.constant 1024 : index
    %c0_38 = arith.constant 0 : index
    %97 = vector.load %arg3[%c1024, %c0_38] : memref<1152x128xbf16, #tpu.memory_space<vmem>>, vector<128x128xbf16>
    %cst_39 = arith.constant dense<0.000000e+00> : vector<256x128xf32>
    %98 = tpu.matmul %96, %97, %cst_39 {dimension_numbers = #tpu.dot_dimension_numbers<[1], [0], [0], [1], [0, 0, 1, 1], [], []>} : vector<256x128xbf16>, vector<128x128xbf16>, vector<256x128xf32> -> vector<256x128xf32>
    %99 = arith.addf %92, %98 : vector<256x128xf32>
    %cst_40 = arith.constant dense<0.000000e+00> : vector<128xf32>
    %100 = vector.multi_reduction <add>, %99, %cst_40 [0] : vector<256x128xf32> to vector<128xf32>
    %101 = vector.shape_cast %100 : vector<128xf32> to vector<1x128xf32>
    %cst_41 = arith.constant 3.906250e-03 : f32
    %102 = vector.broadcast %cst_41 : f32 to vector<1x128xf32>
    %103 = arith.mulf %101, %102 : vector<1x128xf32>
    %104 = vector.broadcast %103 : vector<1x128xf32> to vector<256x128xf32>
    %105 = arith.subf %99, %104 : vector<256x128xf32>
    %106 = arith.mulf %105, %105 : vector<256x128xf32>
    %cst_42 = arith.constant dense<0.000000e+00> : vector<128xf32>
    %107 = vector.multi_reduction <add>, %106, %cst_42 [0] : vector<256x128xf32> to vector<128xf32>
    %108 = vector.shape_cast %107 : vector<128xf32> to vector<1x128xf32>
    %cst_43 = arith.constant 3.906250e-03 : f32
    %109 = vector.broadcast %cst_43 : f32 to vector<1x128xf32>
    %110 = arith.mulf %108, %109 : vector<1x128xf32>
    %cst_44 = arith.constant 9.99999974E-6 : f32
    %111 = vector.broadcast %cst_44 : f32 to vector<1x128xf32>
    %112 = arith.addf %110, %111 : vector<1x128xf32>
    %113 = math.rsqrt %112 : vector<1x128xf32>
    %114 = vector.broadcast %113 : vector<1x128xf32> to vector<256x128xf32>
    %115 = arith.mulf %105, %114 : vector<256x128xf32>
    %cst_45 = arith.constant 0.000000e+00 : f32
    %116 = vector.broadcast %cst_45 : f32 to vector<256x128xf32>
    %117 = arith.maximumf %115, %116 : vector<256x128xf32>
    %118 = arith.truncf %117 : vector<256x128xf32> to vector<256x128xbf16>
    %c0_46 = arith.constant 0 : index
    %c0_47 = arith.constant 0 : index
    %119 = vector.load %arg4[%c0_46, %c0_47] : memref<128x128xbf16, #tpu.memory_space<vmem>>, vector<128x128xbf16>
    %cst_48 = arith.constant dense<0.000000e+00> : vector<256x128xf32>
    %120 = tpu.matmul %118, %119, %cst_48 {dimension_numbers = #tpu.dot_dimension_numbers<[1], [0], [0], [1], [0, 0, 1, 1], [], []>} : vector<256x128xbf16>, vector<128x128xbf16>, vector<256x128xf32> -> vector<256x128xf32>
    %cst_49 = arith.constant dense<0.000000e+00> : vector<128xf32>
    %121 = vector.multi_reduction <add>, %120, %cst_49 [0] : vector<256x128xf32> to vector<128xf32>
    %122 = vector.shape_cast %121 : vector<128xf32> to vector<1x128xf32>
    %cst_50 = arith.constant 3.906250e-03 : f32
    %123 = vector.broadcast %cst_50 : f32 to vector<1x128xf32>
    %124 = arith.mulf %122, %123 : vector<1x128xf32>
    %125 = vector.broadcast %124 : vector<1x128xf32> to vector<256x128xf32>
    %126 = arith.subf %120, %125 : vector<256x128xf32>
    %127 = arith.mulf %126, %126 : vector<256x128xf32>
    %cst_51 = arith.constant dense<0.000000e+00> : vector<128xf32>
    %128 = vector.multi_reduction <add>, %127, %cst_51 [0] : vector<256x128xf32> to vector<128xf32>
    %129 = vector.shape_cast %128 : vector<128xf32> to vector<1x128xf32>
    %cst_52 = arith.constant 3.906250e-03 : f32
    %130 = vector.broadcast %cst_52 : f32 to vector<1x128xf32>
    %131 = arith.mulf %129, %130 : vector<1x128xf32>
    %cst_53 = arith.constant 9.99999974E-6 : f32
    %132 = vector.broadcast %cst_53 : f32 to vector<1x128xf32>
    %133 = arith.addf %131, %132 : vector<1x128xf32>
    %134 = math.rsqrt %133 : vector<1x128xf32>
    %135 = vector.broadcast %134 : vector<1x128xf32> to vector<256x128xf32>
    %136 = arith.mulf %126, %135 : vector<256x128xf32>
    %cst_54 = arith.constant 0.000000e+00 : f32
    %137 = vector.broadcast %cst_54 : f32 to vector<256x128xf32>
    %138 = arith.maximumf %136, %137 : vector<256x128xf32>
    %c0_55 = arith.constant 0 : index
    %c0_56 = arith.constant 0 : index
    %c0_57 = arith.constant 0 : index
    %139 = vector.load %arg1[%c0_55, %c0_56, %c0_57] : memref<1x256x128xf32, #tpu.memory_space<vmem>>, vector<1x256x128xf32>
    %140 = vector.shape_cast %139 : vector<1x256x128xf32> to vector<256x128xf32>
    %141 = arith.truncf %140 : vector<256x128xf32> to vector<256x128xbf16>
    %c0_58 = arith.constant 0 : index
    %c0_59 = arith.constant 0 : index
    %142 = vector.load %arg5[%c0_58, %c0_59] : memref<128x128xbf16, #tpu.memory_space<vmem>>, vector<128x128xbf16>
    %cst_60 = arith.constant dense<0.000000e+00> : vector<256x128xf32>
    %143 = tpu.matmul %141, %142, %cst_60 {dimension_numbers = #tpu.dot_dimension_numbers<[1], [0], [0], [1], [0, 0, 1, 1], [], []>} : vector<256x128xbf16>, vector<128x128xbf16>, vector<256x128xf32> -> vector<256x128xf32>
    %cst_61 = arith.constant dense<0.000000e+00> : vector<128xf32>
    %144 = vector.multi_reduction <add>, %143, %cst_61 [0] : vector<256x128xf32> to vector<128xf32>
    %145 = vector.shape_cast %144 : vector<128xf32> to vector<1x128xf32>
    %cst_62 = arith.constant 3.906250e-03 : f32
    %146 = vector.broadcast %cst_62 : f32 to vector<1x128xf32>
    %147 = arith.mulf %145, %146 : vector<1x128xf32>
    %148 = vector.broadcast %147 : vector<1x128xf32> to vector<256x128xf32>
    %149 = arith.subf %143, %148 : vector<256x128xf32>
    %150 = arith.mulf %149, %149 : vector<256x128xf32>
    %cst_63 = arith.constant dense<0.000000e+00> : vector<128xf32>
    %151 = vector.multi_reduction <add>, %150, %cst_63 [0] : vector<256x128xf32> to vector<128xf32>
    %152 = vector.shape_cast %151 : vector<128xf32> to vector<1x128xf32>
    %cst_64 = arith.constant 3.906250e-03 : f32
    %153 = vector.broadcast %cst_64 : f32 to vector<1x128xf32>
    %154 = arith.mulf %152, %153 : vector<1x128xf32>
    %cst_65 = arith.constant 9.99999974E-6 : f32
    %155 = vector.broadcast %cst_65 : f32 to vector<1x128xf32>
    %156 = arith.addf %154, %155 : vector<1x128xf32>
    %157 = math.rsqrt %156 : vector<1x128xf32>
    %158 = vector.broadcast %157 : vector<1x128xf32> to vector<256x128xf32>
    %159 = arith.mulf %149, %158 : vector<256x128xf32>
    %160 = arith.addf %138, %159 : vector<256x128xf32>
    %cst_66 = arith.constant 0.000000e+00 : f32
    %161 = vector.broadcast %cst_66 : f32 to vector<256x128xf32>
    %162 = arith.maximumf %160, %161 : vector<256x128xf32>
    %c0_67 = arith.constant 0 : index
    %c0_68 = arith.constant 0 : index
    %c0_69 = arith.constant 0 : index
    %163 = vector.load %arg6[%c0_67, %c0_68, %c0_69] : memref<1x256x128xf32, #tpu.memory_space<vmem>>, vector<1x256x128xf32>
    %164 = vector.shape_cast %163 : vector<1x256x128xf32> to vector<256x128xf32>
    %165 = vector.shape_cast %162 : vector<256x128xf32> to vector<1x256x128xf32>
    tpu.vector_store %arg6[%c0_67, %c0_68, %c0_69], %165 {strides = array<i32>} : memref<1x256x128xf32, #tpu.memory_space<vmem>>, vector<1x256x128xf32>,
    return
  }
  func.func @transform_0(%arg0: i32) -> (i32, i32, i32) {
    %c0_i32 = arith.constant 0 : i32
    %c0_i32_0 = arith.constant 0 : i32
    %c0_i32_1 = arith.constant 0 : i32
    return %arg0, %c0_i32, %c0_i32_0 : i32, i32, i32
  }
  func.func @transform_1(%arg0: i32) -> (i32, i32) {
    %c0_i32 = arith.constant 0 : i32
    %c0_i32_0 = arith.constant 0 : i32
    %c0_i32_1 = arith.constant 0 : i32
    return %c0_i32, %c0_i32_0 : i32, i32
  }
  func.func @transform_2(%arg0: i32) -> (i32, i32) {
    %c0_i32 = arith.constant 0 : i32
    %c0_i32_0 = arith.constant 0 : i32
    %c0_i32_1 = arith.constant 0 : i32
    return %c0_i32, %c0_i32_0 : i32, i32
  }
  func.func @transform_3(%arg0: i32) -> (i32, i32) {
    %c0_i32 = arith.constant 0 : i32
    %c0_i32_0 = arith.constant 0 : i32
    %c0_i32_1 = arith.constant 0 : i32
    return %c0_i32, %c0_i32_0 : i32, i32
  }
  func.func @transform_4(%arg0: i32) -> (i32, i32) {
    %c0_i32 = arith.constant 0 : i32
    %c0_i32_0 = arith.constant 0 : i32
    %c0_i32_1 = arith.constant 0 : i32
    return %c0_i32, %c0_i32_0 : i32, i32
  }
  func.func @transform_5(%arg0: i32) -> (i32, i32, i32) {
    %c0_i32 = arith.constant 0 : i32
    %c0_i32_0 = arith.constant 0 : i32
    %c0_i32_1 = arith.constant 0 : i32
    return %arg0, %c0_i32, %c0_i32_0 : i32, i32, i32
  }
}

module attributes {stable_mosaic.version = 11 : i64} {
  func.func @_bottleneck_kernel(%arg0: i32, %arg1: memref<1x256x128xf32, #tpu.memory_space<vmem>>, %arg2: memref<128x128xbf16, #tpu.memory_space<vmem>>, %arg3: memref<1152x128xbf16, #tpu.memory_space<vmem>>, %arg4: memref<128x128xbf16, #tpu.memory_space<vmem>>, %arg5: memref<128x128xbf16, #tpu.memory_space<vmem>>, %arg6: memref<1x256x128xf32, #tpu.memory_space<vmem>>, %arg7: memref<304x128xf32, #tpu.memory_space<vmem>>) attributes {dimension_semantics = [#tpu.dimension_semantics<parallel>], iteration_bounds = array<i64: 2>, scalar_prefetch = 0 : i64, scratch_operands = 1 : i64, tpu.core_type = #tpu.core_type<tc>, window_params = [{transform_indices = @transform_0, window_bounds = array<i64: 1, 256, 128>}, {pipeline_mode = #tpu.pipeline_mode<synchronous>, transform_indices = @transform_1, window_bounds = array<i64: 128, 128>}, {pipeline_mode = #tpu.pipeline_mode<synchronous>, transform_indices = @transform_2, window_bounds = array<i64: 1152, 128>}, {pipeline_mode = #tpu.pipeline_mode<synchronous>, transform_indices = @transform_3, window_bounds = array<i64: 128, 128>}, {pipeline_mode = #tpu.pipeline_mode<synchronous>, transform_indices = @transform_4, window_bounds = array<i64: 128, 128>}, {transform_indices = @transform_5, window_bounds = array<i64: 1, 256, 128>}]} {
    %cst = arith.constant 0.000000e+00 : f32
    %0 = vector.broadcast %cst : f32 to vector<24x128xf32>
    %c0 = arith.constant 0 : index
    %c0_0 = arith.constant 0 : index
    %1 = vector.load %arg7[%c0, %c0_0] : memref<304x128xf32, #tpu.memory_space<vmem>>, vector<24x128xf32>
    tpu.vector_store %arg7[%c0, %c0_0], %0 {strides = array<i32>} : memref<304x128xf32, #tpu.memory_space<vmem>>, vector<24x128xf32>,
    %c280 = arith.constant 280 : index
    %c0_1 = arith.constant 0 : index
    %2 = vector.load %arg7[%c280, %c0_1] : memref<304x128xf32, #tpu.memory_space<vmem>>, vector<24x128xf32>
    tpu.vector_store %arg7[%c280, %c0_1], %0 {strides = array<i32>} : memref<304x128xf32, #tpu.memory_space<vmem>>, vector<24x128xf32>,
    %c0_2 = arith.constant 0 : index
    %c0_3 = arith.constant 0 : index
    %c0_4 = arith.constant 0 : index
    %3 = vector.load %arg1[%c0_2, %c0_3, %c0_4] : memref<1x256x128xf32, #tpu.memory_space<vmem>>, vector<1x256x128xf32>
    %4 = vector.shape_cast %3 : vector<1x256x128xf32> to vector<256x128xf32>
    %5 = arith.truncf %4 : vector<256x128xf32> to vector<256x128xbf16>
    %c0_5 = arith.constant 0 : index
    %c0_6 = arith.constant 0 : index
    %6 = vector.load %arg2[%c0_5, %c0_6] : memref<128x128xbf16, #tpu.memory_space<vmem>>, vector<128x128xbf16>
    %cst_7 = arith.constant dense<0.000000e+00> : vector<256x128xf32>
    %7 = tpu.matmul %5, %6, %cst_7 {dimension_numbers = #tpu.dot_dimension_numbers<[1], [0], [0], [1], [0, 0, 1, 1], [], []>} : vector<256x128xbf16>, vector<128x128xbf16>, vector<256x128xf32> -> vector<256x128xf32>
    %cst_8 = arith.constant dense<0.000000e+00> : vector<128xf32>
    %8 = vector.multi_reduction <add>, %7, %cst_8 [0] : vector<256x128xf32> to vector<128xf32>
    %9 = vector.shape_cast %8 : vector<128xf32> to vector<1x128xf32>
    %cst_9 = arith.constant 3.906250e-03 : f32
    %10 = vector.broadcast %cst_9 : f32 to vector<1x128xf32>
    %11 = arith.mulf %9, %10 : vector<1x128xf32>
    %12 = vector.broadcast %11 : vector<1x128xf32> to vector<256x128xf32>
    %13 = arith.subf %7, %12 : vector<256x128xf32>
    %14 = arith.mulf %13, %13 : vector<256x128xf32>
    %cst_10 = arith.constant dense<0.000000e+00> : vector<128xf32>
    %15 = vector.multi_reduction <add>, %14, %cst_10 [0] : vector<256x128xf32> to vector<128xf32>
    %16 = vector.shape_cast %15 : vector<128xf32> to vector<1x128xf32>
    %cst_11 = arith.constant 3.906250e-03 : f32
    %17 = vector.broadcast %cst_11 : f32 to vector<1x128xf32>
    %18 = arith.mulf %16, %17 : vector<1x128xf32>
    %cst_12 = arith.constant 9.99999974E-6 : f32
    %19 = vector.broadcast %cst_12 : f32 to vector<1x128xf32>
    %20 = arith.addf %18, %19 : vector<1x128xf32>
    %21 = math.rsqrt %20 : vector<1x128xf32>
    %22 = vector.broadcast %21 : vector<1x128xf32> to vector<256x128xf32>
    %23 = arith.mulf %13, %22 : vector<256x128xf32>
    %cst_13 = arith.constant 0.000000e+00 : f32
    %24 = vector.broadcast %cst_13 : f32 to vector<256x128xf32>
    %25 = arith.maximumf %23, %24 : vector<256x128xf32>
    %c24 = arith.constant 24 : index
    %c0_14 = arith.constant 0 : index
    %26 = vector.load %arg7[%c24, %c0_14] : memref<304x128xf32, #tpu.memory_space<vmem>>, vector<256x128xf32>
    tpu.vector_store %arg7[%c24, %c0_14], %25 {strides = array<i32>} : memref<304x128xf32, #tpu.memory_space<vmem>>, vector<256x128xf32>,
    %27 = tpu.iota {dimensions = array<i32: 0>} : vector<256x1xi32>
    %c16_i32 = arith.constant 16 : i32
    %c0_i32 = arith.constant 0 : i32
    %28 = arith.cmpi eq, %c16_i32, %c0_i32 : i32
    %c1_i32 = arith.constant 1 : i32
    %29 = arith.select %28, %c1_i32, %c16_i32 : i32
    %30 = vector.broadcast %29 : i32 to vector<256x1xi32>
    %31 = arith.remsi %27, %30 : vector<256x1xi32>
    %c0_i32_15 = arith.constant 0 : i32
    %32 = vector.broadcast %c0_i32_15 : i32 to vector<256x1xi32>
    %33 = arith.cmpi ne, %31, %32 : vector<256x1xi32>
    %c0_i32_16 = arith.constant 0 : i32
    %34 = vector.broadcast %c0_i32_16 : i32 to vector<256x1xi32>
    %35 = arith.cmpi slt, %31, %34 : vector<256x1xi32>
    %c0_i32_17 = arith.constant 0 : i32
    %36 = arith.cmpi slt, %29, %c0_i32_17 : i32
    %37 = vector.broadcast %36 : i1 to vector<256x1xi1>
    %38 = vector.broadcast %37 : vector<256x1xi1> to vector<256x1xi1>
    %39 = arith.xori %35, %38 : vector<256x1xi1>
    %40 = arith.andi %39, %33 : vector<256x1xi1>
    %41 = vector.broadcast %29 : i32 to vector<256x1xi32>
    %42 = arith.addi %31, %41 : vector<256x1xi32>
    %43 = arith.select %40, %42, %31 : vector<256x1xi1>, vector<256x1xi32>
    %c1_i32_18 = arith.constant 1 : i32
    %44 = vector.broadcast %c1_i32_18 : i32 to vector<256x1xi32>
    %45 = arith.cmpi sge, %43, %44 : vector<256x1xi32>
    %46 = arith.extui %45 : vector<256x1xi1> to vector<256x1xi32>
    %47 = arith.sitofp %46 : vector<256x1xi32> to vector<256x1xf32>
    %c14_i32 = arith.constant 14 : i32
    %48 = vector.broadcast %c14_i32 : i32 to vector<256x1xi32>
    %49 = arith.cmpi sle, %43, %48 : vector<256x1xi32>
    %50 = arith.extui %49 : vector<256x1xi1> to vector<256x1xi32>
    %51 = arith.sitofp %50 : vector<256x1xi32> to vector<256x1xf32>
    %c7 = arith.constant 7 : index
    %c0_19 = arith.constant 0 : index
    %52 = vector.load %arg7[%c7, %c0_19] : memref<304x128xf32, #tpu.memory_space<vmem>>, vector<256x128xf32>
    %53 = vector.broadcast %47 : vector<256x1xf32> to vector<256x128xf32>
    %54 = arith.mulf %52, %53 : vector<256x128xf32>
    %55 = arith.truncf %54 : vector<256x128xf32> to vector<256x128xbf16>
    %c8 = arith.constant 8 : index
    %c0_20 = arith.constant 0 : index
    %56 = vector.load %arg7[%c8, %c0_20] : memref<304x128xf32, #tpu.memory_space<vmem>>, vector<256x128xf32>
    %57 = arith.truncf %56 : vector<256x128xf32> to vector<256x128xbf16>
    %58 = tpu.concatenate %55, %57 in 1 : vector<256x128xbf16>, vector<256x128xbf16> -> vector<256x256xbf16>
    %c0_21 = arith.constant 0 : index
    %c0_22 = arith.constant 0 : index
    %59 = vector.load %arg3[%c0_21, %c0_22] : memref<1152x128xbf16, #tpu.memory_space<vmem>>, vector<256x128xbf16>
    %cst_23 = arith.constant dense<0.000000e+00> : vector<256x128xf32>
    %60 = tpu.matmul %58, %59, %cst_23 {dimension_numbers = #tpu.dot_dimension_numbers<[1], [0], [0], [1], [0, 0, 1, 1], [], []>} : vector<256x256xbf16>, vector<256x128xbf16>, vector<256x128xf32> -> vector<256x128xf32>
    %c9 = arith.constant 9 : index
    %c0_24 = arith.constant 0 : index
    %61 = vector.load %arg7[%c9, %c0_24] : memref<304x128xf32, #tpu.memory_space<vmem>>, vector<256x128xf32>
    %62 = vector.broadcast %51 : vector<256x1xf32> to vector<256x128xf32>
    %63 = arith.mulf %61, %62 : vector<256x128xf32>
    %64 = arith.truncf %63 : vector<256x128xf32> to vector<256x128xbf16>
    %c23 = arith.constant 23 : index
    %c0_25 = arith.constant 0 : index
    %65 = vector.load %arg7[%c23, %c0_25] : memref<304x128xf32, #tpu.memory_space<vmem>>, vector<256x128xf32>
    %66 = vector.broadcast %47 : vector<256x1xf32> to vector<256x128xf32>
    %67 = arith.mulf %65, %66 : vector<256x128xf32>
    %68 = arith.truncf %67 : vector<256x128xf32> to vector<256x128xbf16>
    %69 = tpu.concatenate %64, %68 in 1 : vector<256x128xbf16>, vector<256x128xbf16> -> vector<256x256xbf16>
    %c256 = arith.constant 256 : index
    %c0_26 = arith.constant 0 : index
    %70 = vector.load %arg3[%c256, %c0_26] : memref<1152x128xbf16, #tpu.memory_space<vmem>>, vector<256x128xbf16>
    %cst_27 = arith.constant dense<0.000000e+00> : vector<256x128xf32>
    %71 = tpu.matmul %69, %70, %cst_27 {dimension_numbers = #tpu.dot_dimension_numbers<[1], [0], [0], [1], [0, 0, 1, 1], [], []>} : vector<256x256xbf16>, vector<256x128xbf16>, vector<256x128xf32> -> vector<256x128xf32>
    %72 = arith.addf %60, %71 : vector<256x128xf32>
    %c24_28 = arith.constant 24 : index
    %c0_29 = arith.constant 0 : index
    %73 = vector.load %arg7[%c24_28, %c0_29] : memref<304x128xf32, #tpu.memory_space<vmem>>, vector<256x128xf32>
    %74 = arith.truncf %73 : vector<256x128xf32> to vector<256x128xbf16>
    %c25 = arith.constant 25 : index
    %c0_30 = arith.constant 0 : index
    %75 = vector.load %arg7[%c25, %c0_30] : memref<304x128xf32, #tpu.memory_space<vmem>>, vector<256x128xf32>
    %76 = vector.broadcast %51 : vector<256x1xf32> to vector<256x128xf32>
    %77 = arith.mulf %75, %76 : vector<256x128xf32>
    %78 = arith.truncf %77 : vector<256x128xf32> to vector<256x128xbf16>
    %79 = tpu.concatenate %74, %78 in 1 : vector<256x128xbf16>, vector<256x128xbf16> -> vector<256x256xbf16>
    %c512 = arith.constant 512 : index
    %c0_31 = arith.constant 0 : index
    %80 = vector.load %arg3[%c512, %c0_31] : memref<1152x128xbf16, #tpu.memory_space<vmem>>, vector<256x128xbf16>
    %cst_32 = arith.constant dense<0.000000e+00> : vector<256x128xf32>
    %81 = tpu.matmul %79, %80, %cst_32 {dimension_numbers = #tpu.dot_dimension_numbers<[1], [0], [0], [1], [0, 0, 1, 1], [], []>} : vector<256x256xbf16>, vector<256x128xbf16>, vector<256x128xf32> -> vector<256x128xf32>
    %82 = arith.addf %72, %81 : vector<256x128xf32>
    %c39 = arith.constant 39 : index
    %c0_33 = arith.constant 0 : index
    %83 = vector.load %arg7[%c39, %c0_33] : memref<304x128xf32, #tpu.memory_space<vmem>>, vector<256x128xf32>
    %84 = vector.broadcast %47 : vector<256x1xf32> to vector<256x128xf32>
    %85 = arith.mulf %83, %84 : vector<256x128xf32>
    %86 = arith.truncf %85 : vector<256x128xf32> to vector<256x128xbf16>
    %c40 = arith.constant 40 : index
    %c0_34 = arith.constant 0 : index
    %87 = vector.load %arg7[%c40, %c0_34] : memref<304x128xf32, #tpu.memory_space<vmem>>, vector<256x128xf32>
    %88 = arith.truncf %87 : vector<256x128xf32> to vector<256x128xbf16>
    %89 = tpu.concatenate %86, %88 in 1 : vector<256x128xbf16>, vector<256x128xbf16> -> vector<256x256xbf16>
    %c768 = arith.constant 768 : index
    %c0_35 = arith.constant 0 : index
    %90 = vector.load %arg3[%c768, %c0_35] : memref<1152x128xbf16, #tpu.memory_space<vmem>>, vector<256x128xbf16>
    %cst_36 = arith.constant dense<0.000000e+00> : vector<256x128xf32>
    %91 = tpu.matmul %89, %90, %cst_36 {dimension_numbers = #tpu.dot_dimension_numbers<[1], [0], [0], [1], [0, 0, 1, 1], [], []>} : vector<256x256xbf16>, vector<256x128xbf16>, vector<256x128xf32> -> vector<256x128xf32>
    %92 = arith.addf %82, %91 : vector<256x128xf32>
    %c41 = arith.constant 41 : index
    %c0_37 = arith.constant 0 : index
    %93 = vector.load %arg7[%c41, %c0_37] : memref<304x128xf32, #tpu.memory_space<vmem>>, vector<256x128xf32>
    %94 = vector.broadcast %51 : vector<256x1xf32> to vector<256x128xf32>
    %95 = arith.mulf %93, %94 : vector<256x128xf32>
    %96 = arith.truncf %95 : vector<256x128xf32> to vector<256x128xbf16>
    %c1024 = arith.constant 1024 : index
    %c0_38 = arith.constant 0 : index
    %97 = vector.load %arg3[%c1024, %c0_38] : memref<1152x128xbf16, #tpu.memory_space<vmem>>, vector<128x128xbf16>
    %cst_39 = arith.constant dense<0.000000e+00> : vector<256x128xf32>
    %98 = tpu.matmul %96, %97, %cst_39 {dimension_numbers = #tpu.dot_dimension_numbers<[1], [0], [0], [1], [0, 0, 1, 1], [], []>} : vector<256x128xbf16>, vector<128x128xbf16>, vector<256x128xf32> -> vector<256x128xf32>
    %99 = arith.addf %92, %98 : vector<256x128xf32>
    %cst_40 = arith.constant dense<0.000000e+00> : vector<128xf32>
    %100 = vector.multi_reduction <add>, %99, %cst_40 [0] : vector<256x128xf32> to vector<128xf32>
    %101 = vector.shape_cast %100 : vector<128xf32> to vector<1x128xf32>
    %cst_41 = arith.constant 3.906250e-03 : f32
    %102 = vector.broadcast %cst_41 : f32 to vector<1x128xf32>
    %103 = arith.mulf %101, %102 : vector<1x128xf32>
    %104 = vector.broadcast %103 : vector<1x128xf32> to vector<256x128xf32>
    %105 = arith.subf %99, %104 : vector<256x128xf32>
    %106 = arith.mulf %105, %105 : vector<256x128xf32>
    %cst_42 = arith.constant dense<0.000000e+00> : vector<128xf32>
    %107 = vector.multi_reduction <add>, %106, %cst_42 [0] : vector<256x128xf32> to vector<128xf32>
    %108 = vector.shape_cast %107 : vector<128xf32> to vector<1x128xf32>
    %cst_43 = arith.constant 3.906250e-03 : f32
    %109 = vector.broadcast %cst_43 : f32 to vector<1x128xf32>
    %110 = arith.mulf %108, %109 : vector<1x128xf32>
    %cst_44 = arith.constant 9.99999974E-6 : f32
    %111 = vector.broadcast %cst_44 : f32 to vector<1x128xf32>
    %112 = arith.addf %110, %111 : vector<1x128xf32>
    %113 = math.rsqrt %112 : vector<1x128xf32>
    %114 = vector.broadcast %113 : vector<1x128xf32> to vector<256x128xf32>
    %115 = arith.mulf %105, %114 : vector<256x128xf32>
    %cst_45 = arith.constant 0.000000e+00 : f32
    %116 = vector.broadcast %cst_45 : f32 to vector<256x128xf32>
    %117 = arith.maximumf %115, %116 : vector<256x128xf32>
    %118 = arith.truncf %117 : vector<256x128xf32> to vector<256x128xbf16>
    %c0_46 = arith.constant 0 : index
    %c0_47 = arith.constant 0 : index
    %119 = vector.load %arg4[%c0_46, %c0_47] : memref<128x128xbf16, #tpu.memory_space<vmem>>, vector<128x128xbf16>
    %cst_48 = arith.constant dense<0.000000e+00> : vector<256x128xf32>
    %120 = tpu.matmul %118, %119, %cst_48 {dimension_numbers = #tpu.dot_dimension_numbers<[1], [0], [0], [1], [0, 0, 1, 1], [], []>} : vector<256x128xbf16>, vector<128x128xbf16>, vector<256x128xf32> -> vector<256x128xf32>
    %cst_49 = arith.constant dense<0.000000e+00> : vector<128xf32>
    %121 = vector.multi_reduction <add>, %120, %cst_49 [0] : vector<256x128xf32> to vector<128xf32>
    %122 = vector.shape_cast %121 : vector<128xf32> to vector<1x128xf32>
    %cst_50 = arith.constant 3.906250e-03 : f32
    %123 = vector.broadcast %cst_50 : f32 to vector<1x128xf32>
    %124 = arith.mulf %122, %123 : vector<1x128xf32>
    %125 = vector.broadcast %124 : vector<1x128xf32> to vector<256x128xf32>
    %126 = arith.subf %120, %125 : vector<256x128xf32>
    %127 = arith.mulf %126, %126 : vector<256x128xf32>
    %cst_51 = arith.constant dense<0.000000e+00> : vector<128xf32>
    %128 = vector.multi_reduction <add>, %127, %cst_51 [0] : vector<256x128xf32> to vector<128xf32>
    %129 = vector.shape_cast %128 : vector<128xf32> to vector<1x128xf32>
    %cst_52 = arith.constant 3.906250e-03 : f32
    %130 = vector.broadcast %cst_52 : f32 to vector<1x128xf32>
    %131 = arith.mulf %129, %130 : vector<1x128xf32>
    %cst_53 = arith.constant 9.99999974E-6 : f32
    %132 = vector.broadcast %cst_53 : f32 to vector<1x128xf32>
    %133 = arith.addf %131, %132 : vector<1x128xf32>
    %134 = math.rsqrt %133 : vector<1x128xf32>
    %135 = vector.broadcast %134 : vector<1x128xf32> to vector<256x128xf32>
    %136 = arith.mulf %126, %135 : vector<256x128xf32>
    %cst_54 = arith.constant 0.000000e+00 : f32
    %137 = vector.broadcast %cst_54 : f32 to vector<256x128xf32>
    %138 = arith.maximumf %136, %137 : vector<256x128xf32>
    %c0_55 = arith.constant 0 : index
    %c0_56 = arith.constant 0 : index
    %c0_57 = arith.constant 0 : index
    %139 = vector.load %arg1[%c0_55, %c0_56, %c0_57] : memref<1x256x128xf32, #tpu.memory_space<vmem>>, vector<1x256x128xf32>
    %140 = vector.shape_cast %139 : vector<1x256x128xf32> to vector<256x128xf32>
    %141 = arith.truncf %140 : vector<256x128xf32> to vector<256x128xbf16>
    %c0_58 = arith.constant 0 : index
    %c0_59 = arith.constant 0 : index
    %142 = vector.load %arg5[%c0_58, %c0_59] : memref<128x128xbf16, #tpu.memory_space<vmem>>, vector<128x128xbf16>
    %cst_60 = arith.constant dense<0.000000e+00> : vector<256x128xf32>
    %143 = tpu.matmul %141, %142, %cst_60 {dimension_numbers = #tpu.dot_dimension_numbers<[1], [0], [0], [1], [0, 0, 1, 1], [], []>} : vector<256x128xbf16>, vector<128x128xbf16>, vector<256x128xf32> -> vector<256x128xf32>
    %cst_61 = arith.constant dense<0.000000e+00> : vector<128xf32>
    %144 = vector.multi_reduction <add>, %143, %cst_61 [0] : vector<256x128xf32> to vector<128xf32>
    %145 = vector.shape_cast %144 : vector<128xf32> to vector<1x128xf32>
    %cst_62 = arith.constant 3.906250e-03 : f32
    %146 = vector.broadcast %cst_62 : f32 to vector<1x128xf32>
    %147 = arith.mulf %145, %146 : vector<1x128xf32>
    %148 = vector.broadcast %147 : vector<1x128xf32> to vector<256x128xf32>
    %149 = arith.subf %143, %148 : vector<256x128xf32>
    %150 = arith.mulf %149, %149 : vector<256x128xf32>
    %cst_63 = arith.constant dense<0.000000e+00> : vector<128xf32>
    %151 = vector.multi_reduction <add>, %150, %cst_63 [0] : vector<256x128xf32> to vector<128xf32>
    %152 = vector.shape_cast %151 : vector<128xf32> to vector<1x128xf32>
    %cst_64 = arith.constant 3.906250e-03 : f32
    %153 = vector.broadcast %cst_64 : f32 to vector<1x128xf32>
    %154 = arith.mulf %152, %153 : vector<1x128xf32>
    %cst_65 = arith.constant 9.99999974E-6 : f32
    %155 = vector.broadcast %cst_65 : f32 to vector<1x128xf32>
    %156 = arith.addf %154, %155 : vector<1x128xf32>
    %157 = math.rsqrt %156 : vector<1x128xf32>
    %158 = vector.broadcast %157 : vector<1x128xf32> to vector<256x128xf32>
    %159 = arith.mulf %149, %158 : vector<256x128xf32>
    %160 = arith.addf %138, %159 : vector<256x128xf32>
    %cst_66 = arith.constant 0.000000e+00 : f32
    %161 = vector.broadcast %cst_66 : f32 to vector<256x128xf32>
    %162 = arith.maximumf %160, %161 : vector<256x128xf32>
    %c0_67 = arith.constant 0 : index
    %c0_68 = arith.constant 0 : index
    %c0_69 = arith.constant 0 : index
    %163 = vector.load %arg6[%c0_67, %c0_68, %c0_69] : memref<1x256x128xf32, #tpu.memory_space<vmem>>, vector<1x256x128xf32>
    %164 = vector.shape_cast %163 : vector<1x256x128xf32> to vector<256x128xf32>
    %165 = vector.shape_cast %162 : vector<256x128xf32> to vector<1x256x128xf32>
    tpu.vector_store %arg6[%c0_67, %c0_68, %c0_69], %165 {strides = array<i32>} : memref<1x256x128xf32, #tpu.memory_space<vmem>>, vector<1x256x128xf32>,
    return
  }
  func.func @transform_0(%arg0: i32) -> (i32, i32, i32) {
    %c0_i32 = arith.constant 0 : i32
    %c0_i32_0 = arith.constant 0 : i32
    %c0_i32_1 = arith.constant 0 : i32
    return %arg0, %c0_i32, %c0_i32_0 : i32, i32, i32
  }
  func.func @transform_1(%arg0: i32) -> (i32, i32) {
    %c0_i32 = arith.constant 0 : i32
    %c0_i32_0 = arith.constant 0 : i32
    %c0_i32_1 = arith.constant 0 : i32
    return %c0_i32, %c0_i32_0 : i32, i32
  }
  func.func @transform_2(%arg0: i32) -> (i32, i32) {
    %c0_i32 = arith.constant 0 : i32
    %c0_i32_0 = arith.constant 0 : i32
    %c0_i32_1 = arith.constant 0 : i32
    return %c0_i32, %c0_i32_0 : i32, i32
  }
  func.func @transform_3(%arg0: i32) -> (i32, i32) {
    %c0_i32 = arith.constant 0 : i32
    %c0_i32_0 = arith.constant 0 : i32
    %c0_i32_1 = arith.constant 0 : i32
    return %c0_i32, %c0_i32_0 : i32, i32
  }
  func.func @transform_4(%arg0: i32) -> (i32, i32) {
    %c0_i32 = arith.constant 0 : i32
    %c0_i32_0 = arith.constant 0 : i32
    %c0_i32_1 = arith.constant 0 : i32
    return %c0_i32, %c0_i32_0 : i32, i32
  }
  func.func @transform_5(%arg0: i32) -> (i32, i32, i32) {
    %c0_i32 = arith.constant 0 : i32
    %c0_i32_0 = arith.constant 0 : i32
    %c0_i32_1 = arith.constant 0 : i32
    return %arg0, %c0_i32, %c0_i32_0 : i32, i32, i32
  }
}

</mosaic_0001>

<llo_original>
// kernel: tpu_custom_call.1
$region0: #{tpu_custom_call.1}
  #allocation0 [shape = 'u32[]', space=smem, size = 0x4, offset = 0x4, fixed_abs, tag = 'smem constant byte address 0x4 - core index']
  #allocation1 [shape = 'u32[144,128]{1,0:T(1,128)}', space=vmem, size = 0x12000, scoped, tag = 'internal scratch']
  #allocation2 [shape = 'f32[304,128]{1,0:T(8,128)}', space=vmem, size = 0x26000, scoped, tag = 'scratch operand']
  %s0 = inlined_call_operand.hbm [shape: f32[2,256,128], index: 0, kind: input, shape index: {}]
  %s1 = inlined_call_operand.hbm [shape: bf16[128,128], index: 1, kind: input, shape index: {}]
  %s2 = inlined_call_operand.hbm [shape: bf16[1152,128], index: 2, kind: input, shape index: {}]
  %s3 = inlined_call_operand.hbm [shape: bf16[128,128], index: 3, kind: input, shape index: {}]
  %s4 = inlined_call_operand.hbm [shape: bf16[128,128], index: 4, kind: input, shape index: {}]
  %s5 = inlined_call_operand.hbm [shape: f32[2,256,128], index: 5, kind: output, shape index: {}]
  %s6 = sld [smem:[#allocation0]]
  $region73: #{tpu_custom_call.1} parent=0
    _
  %s8 = ssub.s32 1, %s6
  %s9 = scalar_select 0, %s8, %s6
  $region1: #{tpu_custom_call.1} parent=0
    #allocation3 [shape = 'u8[262144]{0}', space=vmem, size = 0x40000, scoped, tag = 'input window, operand 0']
    #allocation4 [shape = 's32[2]{0}', space=sflag, size = 0x8, scoped, tag = 'scoped memory for tpu_custom_call.1']
    #allocation5 [shape = 's32[2]{0}', space=sflag, size = 0x8, scoped, tag = 'scoped memory for tpu_custom_call.1']
    #allocation6 [shape = 'u8[32768]{0}', space=vmem, size = 0x8000, scoped, tag = 'input window, operand 1, single buffered']
    #allocation7 [shape = 's32[1]{0}', space=sflag, size = 0x4, scoped, tag = 'scoped memory for tpu_custom_call.1']
    #allocation8 [shape = 'u8[294912]{0}', space=vmem, size = 0x48000, scoped, tag = 'input window, operand 2, single buffered']
    #allocation9 [shape = 'u8[32768]{0}', space=vmem, size = 0x8000, scoped, tag = 'input window, operand 3, single buffered']
    #allocation10 [shape = 's32[1]{0}', space=sflag, size = 0x4, scoped, tag = 'scoped memory for tpu_custom_call.1']
    #allocation11 [shape = 'u8[32768]{0}', space=vmem, size = 0x8000, scoped, tag = 'input window, operand 4, single buffered']
    #allocation12 [shape = 'u8[262144]{0}', space=vmem, size = 0x40000, scoped, tag = 'output window, operand 0']
    %10 = vsyncpa [#allocation4], 0
    %s11 = scalar_lea.sflag [#allocation4], 1
    %12 = vsyncpa %s11, 0
    %13 = vsyncpa [#allocation7], 0
    %14 = vsyncpa [#allocation10], 0
    %15 = vsyncpa [#allocation5], 0
    %s16 = scalar_lea.sflag [#allocation5], 1
    %17 = vsyncpa %s16, 0
    loop: start=0, step=1, limit=4
    $region2: #{tpu_custom_call.1} parent=1 // loop_pre_header
      _
    $region3: #{tpu_custom_call.1} parent=1 // loop_header
      %s19 = sphi 0, %s23
      %p20 = scmp.ge.s32.totalorder %s19, 4
      %s29 = sphi 0, %s31
      %s32 = sphi 0, %s29
      %s33 = sphi 0, %s32
      %s49 = sphi 0, %s33
      %s53 = sphi 0, %s53
      %s55 = sphi 0, %s53
      %s56 = sphi 0, %s55
      %s70 = sphi 0, %s56
      %s74 = sphi 0, %s74
      %s76 = sphi 0, %s74
      %s77 = sphi 0, %s76
      %s91 = sphi 0, %s77
      %s95 = sphi 0, %s95
      %s97 = sphi 0, %s95
      %s98 = sphi 0, %s97
      %s112 = sphi 0, %s98
      %s116 = sphi 0, %s116
      %s118 = sphi 0, %s116
      %s119 = sphi 0, %s118
      %s133 = sphi 0, %s119
      %s139 = sphi 0, %s141
      %s142 = sphi 0, %s139
      %s143 = sphi 0, %s142
      %s159 = sphi 0, %s143
    $region4: #{tpu_custom_call.1} parent=1 // loop_header_branch
      %22 = sbr.rel (%p20) target = $region8
    $region5: #{tpu_custom_call.1} parent=1 // loop_body
      %s24 = ssub.s32 %s19, 1
      %s25 = ssub.s32 %s19, 2
      %s26 = sadd.s32 %s19, 1
      %s27 = ssub.s32 %s19, %s26
      %p28 = scmp.eq.s32.totalorder %s27, 0
      %s30 = sadd.s32 %s29, 1
      %s31 = scalar_select %p28, %s29, %s30
      %p34 = pneg %p28
      %p35 = scmp.eq.s32.totalorder %s19, 1
      %p36 = por %p34, %p35
      %p37 = scmp.ne.s32.totalorder %s29, %s32
      %p38 = scmp.eq.s32.totalorder %s19, 0
      %p39 = por %p37, %p38
      %p40 = scmp.ne.s32.totalorder %s29, %s32
      %p41 = scmp.eq.s32.totalorder %s24, 1
      %p42 = por %p40, %p41
      %p43 = scmp.ne.s32.totalorder %s32, %s33
      %p44 = scmp.eq.s32.totalorder %s24, 0
      %p45 = por %p43, %p44
      %p46 = scmp.ne.s32.totalorder %s32, %s33
      %p47 = scmp.eq.s32.totalorder %s25, 1
      %p48 = por %p46, %p47
      %p50 = scmp.ne.s32.totalorder %s33, %s49
      %p51 = scmp.eq.s32.totalorder %s25, 0
      %p52 = por %p50, %p51
      %s54 = sadd.s32 %s53, 1
      %p57 = scmp.eq.s32.totalorder %s19, 1
      %p58 = scmp.ne.s32.totalorder %s53, %s55
      %p59 = scmp.eq.s32.totalorder %s19, 0
      %p60 = por %p58, %p59
      %p61 = scmp.ne.s32.totalorder %s53, %s55
      %p62 = scmp.eq.s32.totalorder %s24, 1
      %p63 = por %p61, %p62
      %p64 = scmp.ne.s32.totalorder %s55, %s56
      %p65 = scmp.eq.s32.totalorder %s24, 0
      %p66 = por %p64, %p65
      %p67 = scmp.ne.s32.totalorder %s55, %s56
      %p68 = scmp.eq.s32.totalorder %s25, 1
      %p69 = por %p67, %p68
      %p71 = scmp.ne.s32.totalorder %s56, %s70
      %p72 = scmp.eq.s32.totalorder %s25, 0
      %p73 = por %p71, %p72
      %s75 = sadd.s32 %s74, 1
      %p78 = scmp.eq.s32.totalorder %s19, 1
      %p79 = scmp.ne.s32.totalorder %s74, %s76
      %p80 = scmp.eq.s32.totalorder %s19, 0
      %p81 = por %p79, %p80
      %p82 = scmp.ne.s32.totalorder %s74, %s76
      %p83 = scmp.eq.s32.totalorder %s24, 1
      %p84 = por %p82, %p83
      %p85 = scmp.ne.s32.totalorder %s76, %s77
      %p86 = scmp.eq.s32.totalorder %s24, 0
      %p87 = por %p85, %p86
      %p88 = scmp.ne.s32.totalorder %s76, %s77
      %p89 = scmp.eq.s32.totalorder %s25, 1
      %p90 = por %p88, %p89
      %p92 = scmp.ne.s32.totalorder %s77, %s91
      %p93 = scmp.eq.s32.totalorder %s25, 0
      %p94 = por %p92, %p93
      %s96 = sadd.s32 %s95, 1
      %p99 = scmp.eq.s32.totalorder %s19, 1
      %p100 = scmp.ne.s32.totalorder %s95, %s97
      %p101 = scmp.eq.s32.totalorder %s19, 0
      %p102 = por %p100, %p101
      %p103 = scmp.ne.s32.totalorder %s95, %s97
      %p104 = scmp.eq.s32.totalorder %s24, 1
      %p105 = por %p103, %p104
      %p106 = scmp.ne.s32.totalorder %s97, %s98
      %p107 = scmp.eq.s32.totalorder %s24, 0
      %p108 = por %p106, %p107
      %p109 = scmp.ne.s32.totalorder %s97, %s98
      %p110 = scmp.eq.s32.totalorder %s25, 1
      %p111 = por %p109, %p110
      %p113 = scmp.ne.s32.totalorder %s98, %s112
      %p114 = scmp.eq.s32.totalorder %s25, 0
      %p115 = por %p113, %p114
      %s117 = sadd.s32 %s116, 1
      %p120 = scmp.eq.s32.totalorder %s19, 1
      %p121 = scmp.ne.s32.totalorder %s116, %s118
      %p122 = scmp.eq.s32.totalorder %s19, 0
      %p123 = por %p121, %p122
      %p124 = scmp.ne.s32.totalorder %s116, %s118
      %p125 = scmp.eq.s32.totalorder %s24, 1
      %p126 = por %p124, %p125
      %p127 = scmp.ne.s32.totalorder %s118, %s119
      %p128 = scmp.eq.s32.totalorder %s24, 0
      %p129 = por %p127, %p128
      %p130 = scmp.ne.s32.totalorder %s118, %s119
      %p131 = scmp.eq.s32.totalorder %s25, 1
      %p132 = por %p130, %p131
      %p134 = scmp.ne.s32.totalorder %s119, %s133
      %p135 = scmp.eq.s32.totalorder %s25, 0
      %p136 = por %p134, %p135
      %s137 = ssub.s32 %s19, %s26
      %p138 = scmp.eq.s32.totalorder %s137, 0
      %s140 = sadd.s32 %s139, 1
      %s141 = scalar_select %p138, %s139, %s140
      %p144 = pneg %p138
      %p145 = scmp.eq.s32.totalorder %s19, 1
      %p146 = por %p144, %p145
      %p147 = scmp.ne.s32.totalorder %s139, %s142
      %p148 = scmp.eq.s32.totalorder %s19, 0
      %p149 = por %p147, %p148
      %p150 = scmp.ne.s32.totalorder %s139, %s142
      %p151 = scmp.eq.s32.totalorder %s24, 1
      %p152 = por %p150, %p151
      %p153 = scmp.ne.s32.totalorder %s142, %s143
      %p154 = scmp.eq.s32.totalorder %s24, 0
      %p155 = por %p153, %p154
      %p156 = scmp.ne.s32.totalorder %s142, %s143
      %p157 = scmp.eq.s32.totalorder %s25, 1
      %p158 = por %p156, %p157
      %p160 = scmp.ne.s32.totalorder %s143, %s159
      %p161 = scmp.eq.s32.totalorder %s25, 0
      %p162 = por %p160, %p161
      %p163 = scmp.le.s32.totalorder 1, %s19
      %p164 = scmp.lt.s32.totalorder %s19, 3
      %p165 = pnand %p163, %p164
      %p166 = pneg %p165
      // Predicated region
      $region9: #{tpu_custom_call.1} parent=5 // pred_check
        _
      $region10: #{tpu_custom_call.1} parent=5 // pred_check_branch
        %168 = sbr.rel (%p165) target = $region12
      $region11: #{tpu_custom_call.1} parent=5 // pred_region
        %s169 = ssub.s32 %s19, 1
        // Predicated region
        $region13: #{tpu_custom_call.1} parent=11 // pred_check
          %p170 = pneg %p66
        $region14: #{tpu_custom_call.1} parent=11 // pred_check_branch
          %172 = sbr.rel (%p170) target = $region16
        $region15: #{tpu_custom_call.1} parent=11 // pred_region
          %s174 = ssub.s32 1024, 1024
          %175 = vsyncadd [#allocation7], %s174
          %s176 = sshll.u32 [#allocation6], 4
          %s177 = int_to_ptr.vmem [resolvable:$true] %s176
          %182 = dma.hbm_to_vmem [thread:$0]  %s1, 1024, %s177, [#allocation7], 64, 64, 4
        $region16: #{tpu_custom_call.1} parent=11 // pred_fallthru
          _
        // Predicated region
        $region17: #{tpu_custom_call.1} parent=11 // pred_check
          %p183 = pneg %p87
        $region18: #{tpu_custom_call.1} parent=11 // pred_check_branch
          %185 = sbr.rel (%p183) target = $region20
        $region19: #{tpu_custom_call.1} parent=11 // pred_region
          %s187 = ssub.s32 9216, 9216
          %188 = vsyncadd [#allocation7], %s187
          %s189 = sshll.u32 [#allocation8], 4
          %s190 = int_to_ptr.vmem [resolvable:$true] %s189
          %195 = dma.hbm_to_vmem [thread:$0]  %s2, 9216, %s190, [#allocation7], 64, 64, 4
        $region20: #{tpu_custom_call.1} parent=11 // pred_fallthru
          _
        // Predicated region
        $region21: #{tpu_custom_call.1} parent=11 // pred_check
          %p196 = pneg %p108
        $region22: #{tpu_custom_call.1} parent=11 // pred_check_branch
          %198 = sbr.rel (%p196) target = $region24
        $region23: #{tpu_custom_call.1} parent=11 // pred_region
          %s200 = ssub.s32 1024, 1024
          %201 = vsyncadd [#allocation10], %s200
          %s202 = sshll.u32 [#allocation9], 4
          %s203 = int_to_ptr.vmem [resolvable:$true] %s202
          %208 = dma.hbm_to_vmem [thread:$0]  %s3, 1024, %s203, [#allocation10], 64, 64, 4
        $region24: #{tpu_custom_call.1} parent=11 // pred_fallthru
          _
        // Predicated region
        $region25: #{tpu_custom_call.1} parent=11 // pred_check
          %p209 = pneg %p129
        $region26: #{tpu_custom_call.1} parent=11 // pred_check_branch
          %211 = sbr.rel (%p209) target = $region28
        $region27: #{tpu_custom_call.1} parent=11 // pred_region
          %s213 = ssub.s32 1024, 1024
          %214 = vsyncadd [#allocation10], %s213
          %s215 = sshll.u32 [#allocation11], 4
          %s216 = int_to_ptr.vmem [resolvable:$true] %s215
          %221 = dma.hbm_to_vmem [thread:$0]  %s4, 1024, %s216, [#allocation10], 64, 64, 4
        $region28: #{tpu_custom_call.1} parent=11 // pred_fallthru
          _
      $region12: #{tpu_custom_call.1} parent=5 // pred_fallthru
        _
      %p222 = scmp.lt.s32.totalorder %s19, 2
      // Predicated region
      $region29: #{tpu_custom_call.1} parent=5 // pred_check
        %p223 = pneg %p222
      $region30: #{tpu_custom_call.1} parent=5 // pred_check_branch
        %225 = sbr.rel (%p223) target = $region32
      $region31: #{tpu_custom_call.1} parent=5 // pred_region
        // Predicated region
        $region33: #{tpu_custom_call.1} parent=31 // pred_check
          %p226 = pneg %p39
        $region34: #{tpu_custom_call.1} parent=31 // pred_check_branch
          %228 = sbr.rel (%p226) target = $region36
        $region35: #{tpu_custom_call.1} parent=31 // pred_region
          %s229 = sand.u32 %s29, 1
          %s230 = scalar_lea.sflag [#allocation4], %s229
          %s231 = sand.u32 %s29, 1
          %s232 = smul.addr %s231, 256
          %s233 = scalar_lea.vmem [#allocation3], %s232
          %s235 = ssub.s32 4096, 4096
          %236 = vsyncadd %s230, %s235
          %s237 = smul.addr %s19, 32
          %s238 = smul.addr %s237, 128
          %s239 = scalar_lea.hbm %s0, %s238
          %s240 = sshll.u32 %s233, 4
          %s241 = int_to_ptr.vmem [resolvable:$true] %s240
          %246 = dma.hbm_to_vmem [thread:$0]  %s239, 4096, %s241, %s230, 128, 128, 8
        $region36: #{tpu_custom_call.1} parent=31 // pred_fallthru
          _
      $region32: #{tpu_custom_call.1} parent=5 // pred_fallthru
        _
      %p247 = scmp.le.s32.totalorder 1, %s19
      %p248 = scmp.lt.s32.totalorder %s19, 3
      %p249 = pnand %p247, %p248
      %p250 = pneg %p249
      // Predicated region
      $region37: #{tpu_custom_call.1} parent=5 // pred_check
        _
      $region38: #{tpu_custom_call.1} parent=5 // pred_check_branch
        %252 = sbr.rel (%p249) target = $region40
      $region39: #{tpu_custom_call.1} parent=5 // pred_region
        %s253 = ssub.s32 %s19, 1
        %s254 = sand.u32 %s32, 1
        %s255 = scalar_lea.sflag [#allocation4], %s254
        %s256 = sand.u32 %s32, 1
        %s257 = smul.addr %s256, 256
        %s258 = scalar_lea.vmem [#allocation3], %s257
        // Predicated region
        $region41: #{tpu_custom_call.1} parent=39 // pred_check
          %p259 = pneg %p45
        $region42: #{tpu_custom_call.1} parent=39 // pred_check_branch
          %261 = sbr.rel (%p259) target = $region44
        $region43: #{tpu_custom_call.1} parent=39 // pred_region
          %262 = dma.done %s255, 4096
        $region44: #{tpu_custom_call.1} parent=39 // pred_fallthru
          _
        // Predicated region
        $region45: #{tpu_custom_call.1} parent=39 // pred_check
          %p263 = pneg %p66
        $region46: #{tpu_custom_call.1} parent=39 // pred_check_branch
          %265 = sbr.rel (%p263) target = $region48
        $region47: #{tpu_custom_call.1} parent=39 // pred_region
          %266 = dma.done [#allocation7], 1024
        $region48: #{tpu_custom_call.1} parent=39 // pred_fallthru
          _
        // Predicated region
        $region49: #{tpu_custom_call.1} parent=39 // pred_check
          %p267 = pneg %p87
        $region50: #{tpu_custom_call.1} parent=39 // pred_check_branch
          %269 = sbr.rel (%p267) target = $region52
        $region51: #{tpu_custom_call.1} parent=39 // pred_region
          %270 = dma.done [#allocation7], 9216
        $region52: #{tpu_custom_call.1} parent=39 // pred_fallthru
          _
        // Predicated region
        $region53: #{tpu_custom_call.1} parent=39 // pred_check
          %p271 = pneg %p108
        $region54: #{tpu_custom_call.1} parent=39 // pred_check_branch
          %273 = sbr.rel (%p271) target = $region56
        $region55: #{tpu_custom_call.1} parent=39 // pred_region
          %274 = dma.done [#allocation10], 1024
        $region56: #{tpu_custom_call.1} parent=39 // pred_fallthru
          _
        // Predicated region
        $region57: #{tpu_custom_call.1} parent=39 // pred_check
          %p275 = pneg %p129
        $region58: #{tpu_custom_call.1} parent=39 // pred_check_branch
          %277 = sbr.rel (%p275) target = $region60
        $region59: #{tpu_custom_call.1} parent=39 // pred_region
          %278 = dma.done [#allocation10], 1024
        $region60: #{tpu_custom_call.1} parent=39 // pred_fallthru
          _
        %s279 = sand.u32 %s32, 1
        %s280 = scalar_lea.sflag [#allocation4], %s279
        %s281 = sand.u32 %s32, 1
        %s282 = smul.addr %s281, 256
        %s283 = scalar_lea.vmem [#allocation3], %s282
        %p284 = pneg %p45
        %p285 = pneg %p42
        %p286 = pneg %p66
        %p287 = pneg %p63
        %p288 = pneg %p87
        %p289 = pneg %p84
        %p290 = pneg %p108
        %p291 = pneg %p105
        %p292 = pneg %p129
        %p293 = pneg %p126
        %p294 = pneg %p155
        %p295 = pneg %p152
        %s296 = sand.u32 %s142, 1
        %s297 = scalar_lea.sflag [#allocation5], %s296
        %s298 = sand.u32 %s142, 1
        %s299 = smul.addr %s298, 256
        %s300 = scalar_lea.vmem [#allocation12], %s299
        %302 = vst [vmem:[#allocation2] sm:$0xff] 0.0
        %303 = vst [vmem:[#allocation2 + $0x8] sm:$0xff] 0.0
        %304 = vst [vmem:[#allocation2 + $0x10] sm:$0xff] 0.0
        %305 = vst [vmem:[#allocation2 + $0x118] sm:$0xff] 0.0
        %306 = vst [vmem:[#allocation2 + $0x120] sm:$0xff] 0.0
        %307 = vst [vmem:[#allocation2 + $0x128] sm:$0xff] 0.0
        %v308 = vld [vmem:[%s258] sm:$0xff]
        %v309 = vld [vmem:[%s258 + $0x8] sm:$0xff]
        %v310 = vld [vmem:[%s258 + $0x10] sm:$0xff]
        %v311 = vld [vmem:[%s258 + $0x18] sm:$0xff]
        %v312 = vld [vmem:[%s258 + $0x20] sm:$0xff]
        %v313 = vld [vmem:[%s258 + $0x28] sm:$0xff]
        %v314 = vld [vmem:[%s258 + $0x30] sm:$0xff]
        %v315 = vld [vmem:[%s258 + $0x38] sm:$0xff]
        %v316 = vld [vmem:[%s258 + $0x40] sm:$0xff]
        %v317 = vld [vmem:[%s258 + $0x48] sm:$0xff]
        %v318 = vld [vmem:[%s258 + $0x50] sm:$0xff]
        %v319 = vld [vmem:[%s258 + $0x58] sm:$0xff]
        %v320 = vld [vmem:[%s258 + $0x60] sm:$0xff]
        %v321 = vld [vmem:[%s258 + $0x68] sm:$0xff]
        %v322 = vld [vmem:[%s258 + $0x70] sm:$0xff]
        %v323 = vld [vmem:[%s258 + $0x78] sm:$0xff]
        %v324 = vld [vmem:[%s258 + $0x80] sm:$0xff]
        %v325 = vld [vmem:[%s258 + $0x88] sm:$0xff]
        %v326 = vld [vmem:[%s258 + $0x90] sm:$0xff]
        %v327 = vld [vmem:[%s258 + $0x98] sm:$0xff]
        %v328 = vld [vmem:[%s258 + $0xa0] sm:$0xff]
        %v329 = vld [vmem:[%s258 + $0xa8] sm:$0xff]
        %v330 = vld [vmem:[%s258 + $0xb0] sm:$0xff]
        %v331 = vld [vmem:[%s258 + $0xb8] sm:$0xff]
        %v332 = vld [vmem:[%s258 + $0xc0] sm:$0xff]
        %v333 = vld [vmem:[%s258 + $0xc8] sm:$0xff]
        %v334 = vld [vmem:[%s258 + $0xd0] sm:$0xff]
        %v335 = vld [vmem:[%s258 + $0xd8] sm:$0xff]
        %v336 = vld [vmem:[%s258 + $0xe0] sm:$0xff]
        %v337 = vld [vmem:[%s258 + $0xe8] sm:$0xff]
        %v338 = vld [vmem:[%s258 + $0xf0] sm:$0xff]
        %v339 = vld [vmem:[%s258 + $0xf8] sm:$0xff]
        %v340 = vpack.c.bf16 %v309, %v308
        %v341 = vpack.c.bf16 %v311, %v310
        %v342 = vpack.c.bf16 %v313, %v312
        %v343 = vpack.c.bf16 %v315, %v314
        %v344 = vpack.c.bf16 %v317, %v316
        %v345 = vpack.c.bf16 %v319, %v318
        %v346 = vpack.c.bf16 %v321, %v320
        %v347 = vpack.c.bf16 %v323, %v322
        %v348 = vpack.c.bf16 %v325, %v324
        %v349 = vpack.c.bf16 %v327, %v326
        %v350 = vpack.c.bf16 %v329, %v328
        %v351 = vpack.c.bf16 %v331, %v330
        %v352 = vpack.c.bf16 %v333, %v332
        %v353 = vpack.c.bf16 %v335, %v334
        %v354 = vpack.c.bf16 %v337, %v336
        %v355 = vpack.c.bf16 %v339, %v338
        %v356 = vld [vmem:[#allocation6] sm:$0xf]
        %v357 = vld [vmem:[#allocation6 + $0x4] sm:$0xf]
        %v358 = vld [vmem:[#allocation6 + $0x8] sm:$0xf]
        %v359 = vld [vmem:[#allocation6 + $0xc] sm:$0xf]
        %v360 = vld [vmem:[#allocation6 + $0x10] sm:$0xf]
        %v361 = vld [vmem:[#allocation6 + $0x14] sm:$0xf]
        %v362 = vld [vmem:[#allocation6 + $0x18] sm:$0xf]
        %v363 = vld [vmem:[#allocation6 + $0x1c] sm:$0xf]
        %v364 = vld [vmem:[#allocation6 + $0x20] sm:$0xf]
        %v365 = vld [vmem:[#allocation6 + $0x24] sm:$0xf]
        %v366 = vld [vmem:[#allocation6 + $0x28] sm:$0xf]
        %v367 = vld [vmem:[#allocation6 + $0x2c] sm:$0xf]
        %v368 = vld [vmem:[#allocation6 + $0x30] sm:$0xf]
        %v369 = vld [vmem:[#allocation6 + $0x34] sm:$0xf]
        %v370 = vld [vmem:[#allocation6 + $0x38] sm:$0xf]
        %v371 = vld [vmem:[#allocation6 + $0x3c] sm:$0xf]
        %v388 = vunpack.c.l.b16 %v356
        %v389 = vunpack.c.l.b16 %v357
        %v390 = vunpack.c.l.b16 %v358
        %v391 = vunpack.c.l.b16 %v359
        %v392 = vunpack.c.l.b16 %v360
        %v393 = vunpack.c.l.b16 %v361
        %v394 = vunpack.c.l.b16 %v362
        %v395 = vunpack.c.l.b16 %v363
        %v396 = vunpack.c.l.b16 %v364
        %v397 = vunpack.c.l.b16 %v365
        %v398 = vunpack.c.l.b16 %v366
        %v399 = vunpack.c.l.b16 %v367
        %v400 = vunpack.c.l.b16 %v368
        %v401 = vunpack.c.l.b16 %v369
        %v402 = vunpack.c.l.b16 %v370
        %v403 = vunpack.c.l.b16 %v371
        %v404 = vpack.c.b16 %v389, %v388
        %v405 = vpack.c.b16 %v391, %v390
        %v406 = vpack.c.b16 %v393, %v392
        %v407 = vpack.c.b16 %v395, %v394
        %v408 = vpack.c.b16 %v397, %v396
        %v409 = vpack.c.b16 %v399, %v398
        %v410 = vpack.c.b16 %v401, %v400
        %v411 = vpack.c.b16 %v403, %v402
        %420 = vmatprep.subr.bf16.mxu0 0
        %421 = vmatpush1.bf16.msra.mxu0 %v404
        %422 = vmatprep.subr.bf16.mxu0 0
        %423 = vmatpush1.bf16.msra.mxu0 %v405
        %424 = vmatprep.subr.bf16.mxu0 0
        %425 = vmatpush1.bf16.msra.mxu0 %v406
        %426 = vmatprep.subr.bf16.mxu0 0
        %427 = vmatpush1.bf16.msra.mxu0 %v407
        %428 = vmatprep.subr.bf16.mxu0 0
        %429 = vmatpush1.bf16.msra.mxu0 %v408
        %430 = vmatprep.subr.bf16.mxu0 0
        %431 = vmatpush1.bf16.msra.mxu0 %v409
        %432 = vmatprep.subr.bf16.mxu0 0
        %433 = vmatpush1.bf16.msra.mxu0 %v410
        %434 = vmatprep.subr.bf16.mxu0 0
        %435 = vmatpush1.bf16.msra.mxu0 %v411
        %436 = vmatprep.subr.bf16.mxu0 0
        %437 = vmatpush1.bf16.msra.mxu0 0
        %438 = vmatprep.subr.bf16.mxu0 0
        %439 = vmatpush1.bf16.msra.mxu0 0
        %440 = vmatprep.subr.bf16.mxu0 0
        %441 = vmatpush1.bf16.msra.mxu0 0
        %442 = vmatprep.subr.bf16.mxu0 0
        %443 = vmatpush1.bf16.msra.mxu0 0
        %444 = vmatprep.subr.bf16.mxu0 0
        %445 = vmatpush1.bf16.msra.mxu0 0
        %446 = vmatprep.subr.bf16.mxu0 0
        %447 = vmatpush1.bf16.msra.mxu0 0
        %448 = vmatprep.subr.bf16.mxu0 0
        %449 = vmatpush1.bf16.msra.mxu0 0
        %450 = vmatprep.subr.bf16.mxu0 0
        %451 = vmatpush1.bf16.msra.mxu0 0
        %452 = vmatprep.mubr.bf16.mxu0 0
        %453 = vmatmul.mubr.bf16.gmra.mrb[0].mxu0 %v340
        %v454 = vpop.f32.mrb[0].mxu0
        %v455 = vadd.f32 0.0, %v454
        %v456 = vpop.f32.mrb[0].mxu0
        %v457 = vpop.f32.mrb[0].mxu0
        %v458 = vadd.f32 0.0, %v457
        %v459 = vpop.f32.mrb[0].mxu0
        %460 = vmatprep.mubr.bf16.mxu0 0
        %461 = vmatmul.mubr.bf16.gmra.mrb[0].mxu0 %v341
        %v462 = vpop.f32.mrb[0].mxu0
        %v463 = vadd.f32 0.0, %v462
        %v464 = vpop.f32.mrb[0].mxu0
        %v465 = vpop.f32.mrb[0].mxu0
        %v466 = vadd.f32 0.0, %v465
        %v467 = vpop.f32.mrb[0].mxu0
        %468 = vmatprep.mubr.bf16.mxu0 0
        %469 = vmatmul.mubr.bf16.gmra.mrb[0].mxu0 %v342
        %v470 = vpop.f32.mrb[0].mxu0
        %v471 = vadd.f32 0.0, %v470
        %v472 = vpop.f32.mrb[0].mxu0
        %v473 = vpop.f32.mrb[0].mxu0
        %v474 = vadd.f32 0.0, %v473
        %v475 = vpop.f32.mrb[0].mxu0
        %476 = vmatprep.mubr.bf16.mxu0 0
        %477 = vmatmul.mubr.bf16.gmra.mrb[0].mxu0 %v343
        %v478 = vpop.f32.mrb[0].mxu0
        %v479 = vadd.f32 0.0, %v478
        %v480 = vpop.f32.mrb[0].mxu0
        %v481 = vpop.f32.mrb[0].mxu0
        %v482 = vadd.f32 0.0, %v481
        %v483 = vpop.f32.mrb[0].mxu0
        %484 = vmatprep.mubr.bf16.mxu0 0
        %485 = vmatmul.mubr.bf16.gmra.mrb[0].mxu0 %v344
        %v486 = vpop.f32.mrb[0].mxu0
        %v487 = vadd.f32 0.0, %v486
        %v488 = vpop.f32.mrb[0].mxu0
        %v489 = vpop.f32.mrb[0].mxu0
        %v490 = vadd.f32 0.0, %v489
        %v491 = vpop.f32.mrb[0].mxu0
        %492 = vmatprep.mubr.bf16.mxu0 0
        %493 = vmatmul.mubr.bf16.gmra.mrb[0].mxu0 %v345
        %v494 = vpop.f32.mrb[0].mxu0
        %v495 = vadd.f32 0.0, %v494
        %v496 = vpop.f32.mrb[0].mxu0
        %v497 = vpop.f32.mrb[0].mxu0
        %v498 = vadd.f32 0.0, %v497
        %v499 = vpop.f32.mrb[0].mxu0
        %500 = vmatprep.mubr.bf16.mxu0 0
        %501 = vmatmul.mubr.bf16.gmra.mrb[0].mxu0 %v346
        %v502 = vpop.f32.mrb[0].mxu0
        %v503 = vadd.f32 0.0, %v502
        %v504 = vpop.f32.mrb[0].mxu0
        %v505 = vpop.f32.mrb[0].mxu0
        %v506 = vadd.f32 0.0, %v505
        %v507 = vpop.f32.mrb[0].mxu0
        %508 = vmatprep.mubr.bf16.mxu0 0
        %509 = vmatmul.mubr.bf16.gmra.mrb[0].mxu0 %v347
        %v510 = vpop.f32.mrb[0].mxu0
        %v511 = vadd.f32 0.0, %v510
        %v512 = vpop.f32.mrb[0].mxu0
        %v513 = vpop.f32.mrb[0].mxu0
        %v514 = vadd.f32 0.0, %v513
        %v515 = vpop.f32.mrb[0].mxu0
        %516 = vmatprep.mubr.bf16.mxu0 0
        %517 = vmatmul.mubr.bf16.gmra.mrb[0].mxu0 %v348
        %v518 = vpop.f32.mrb[0].mxu0
        %v519 = vadd.f32 0.0, %v518
        %v520 = vpop.f32.mrb[0].mxu0
        %v521 = vpop.f32.mrb[0].mxu0
        %v522 = vadd.f32 0.0, %v521
        %v523 = vpop.f32.mrb[0].mxu0
        %524 = vmatprep.mubr.bf16.mxu0 0
        %525 = vmatmul.mubr.bf16.gmra.mrb[0].mxu0 %v349
        %v526 = vpop.f32.mrb[0].mxu0
        %v527 = vadd.f32 0.0, %v526
        %v528 = vpop.f32.mrb[0].mxu0
        %v529 = vpop.f32.mrb[0].mxu0
        %v530 = vadd.f32 0.0, %v529
        %v531 = vpop.f32.mrb[0].mxu0
        %532 = vmatprep.mubr.bf16.mxu0 0
        %533 = vmatmul.mubr.bf16.gmra.mrb[0].mxu0 %v350
        %v534 = vpop.f32.mrb[0].mxu0
        %v535 = vadd.f32 0.0, %v534
        %v536 = vpop.f32.mrb[0].mxu0
        %v537 = vpop.f32.mrb[0].mxu0
        %v538 = vadd.f32 0.0, %v537
        %v539 = vpop.f32.mrb[0].mxu0
        %540 = vmatprep.mubr.bf16.mxu0 0
        %541 = vmatmul.mubr.bf16.gmra.mrb[0].mxu0 %v351
        %v542 = vpop.f32.mrb[0].mxu0
        %v543 = vadd.f32 0.0, %v542
        %v544 = vpop.f32.mrb[0].mxu0
        %v545 = vpop.f32.mrb[0].mxu0
        %v546 = vadd.f32 0.0, %v545
        %v547 = vpop.f32.mrb[0].mxu0
        %548 = vmatprep.mubr.bf16.mxu0 0
        %549 = vmatmul.mubr.bf16.gmra.mrb[0].mxu0 %v352
        %v550 = vpop.f32.mrb[0].mxu0
        %v551 = vadd.f32 0.0, %v550
        %v552 = vpop.f32.mrb[0].mxu0
        %v553 = vpop.f32.mrb[0].mxu0
        %v554 = vadd.f32 0.0, %v553
        %v555 = vpop.f32.mrb[0].mxu0
        %556 = vmatprep.mubr.bf16.mxu0 0
        %557 = vmatmul.mubr.bf16.gmra.mrb[0].mxu0 %v353
        %v558 = vpop.f32.mrb[0].mxu0
        %v559 = vadd.f32 0.0, %v558
        %v560 = vpop.f32.mrb[0].mxu0
        %v561 = vpop.f32.mrb[0].mxu0
        %v562 = vadd.f32 0.0, %v561
        %v563 = vpop.f32.mrb[0].mxu0
        %564 = vmatprep.mubr.bf16.mxu0 0
        %565 = vmatmul.mubr.bf16.gmra.mrb[0].mxu0 %v354
        %v566 = vpop.f32.mrb[0].mxu0
        %v567 = vadd.f32 0.0, %v566
        %v568 = vpop.f32.mrb[0].mxu0
        %v569 = vpop.f32.mrb[0].mxu0
        %v570 = vadd.f32 0.0, %v569
        %v571 = vpop.f32.mrb[0].mxu0
        %572 = vmatprep.mubr.bf16.mxu0 0
        %573 = vmatmul.mubr.bf16.gmra.mrb[0].mxu0 %v355
        %v574 = vpop.f32.mrb[0].mxu0
        %v575 = vadd.f32 0.0, %v574
        %v576 = vpop.f32.mrb[0].mxu0
        %v577 = vpop.f32.mrb[0].mxu0
        %v578 = vadd.f32 0.0, %v577
        %v579 = vpop.f32.mrb[0].mxu0
        %580 = vdwg.mxu0
        %v581 = vadd.f32 %v455, %v458
        %v582 = vadd.f32 %v581, %v463
        %v583 = vadd.f32 %v582, %v466
        %v584 = vadd.f32 %v583, %v471
        %v585 = vadd.f32 %v584, %v474
        %v586 = vadd.f32 %v585, %v479
        %v587 = vadd.f32 %v586, %v482
        %v588 = vadd.f32 %v587, %v487
        %v589 = vadd.f32 %v588, %v490
        %v590 = vadd.f32 %v589, %v495
        %v591 = vadd.f32 %v590, %v498
        %v592 = vadd.f32 %v591, %v503
        %v593 = vadd.f32 %v592, %v506
        %v594 = vadd.f32 %v593, %v511
        %v595 = vadd.f32 %v594, %v514
        %v596 = vadd.f32 %v595, %v519
        %v597 = vadd.f32 %v596, %v522
        %v598 = vadd.f32 %v597, %v527
        %v599 = vadd.f32 %v598, %v530
        %v600 = vadd.f32 %v599, %v535
        %v601 = vadd.f32 %v600, %v538
        %v602 = vadd.f32 %v601, %v543
        %v603 = vadd.f32 %v602, %v546
        %v604 = vadd.f32 %v603, %v551
        %v605 = vadd.f32 %v604, %v554
        %v606 = vadd.f32 %v605, %v559
        %v607 = vadd.f32 %v606, %v562
        %v608 = vadd.f32 %v607, %v567
        %v609 = vadd.f32 %v608, %v570
        %v610 = vadd.f32 %v609, %v575
        %v611 = vadd.f32 %v610, %v578
        %v612 = vrot.slane %v611, 4
        %v613 = vadd.f32 %v611, %v612
        %v614 = vrot.slane %v613, 2
        %v615 = vadd.f32 %v613, %v614
        %v616 = vrot.slane %v615, 1
        %v617 = vadd.f32 %v615, %v616
        %v618 = vmul.f32 %v617, 0.00390625
        %v619 = vsub.f32 %v455, %v618
        %v620 = vsub.f32 %v458, %v618
        %v621 = vsub.f32 %v463, %v618
        %v622 = vsub.f32 %v466, %v618
        %v623 = vsub.f32 %v471, %v618
        %v624 = vsub.f32 %v474, %v618
        %v625 = vsub.f32 %v479, %v618
        %v626 = vsub.f32 %v482, %v618
        %v627 = vsub.f32 %v487, %v618
        %v628 = vsub.f32 %v490, %v618
        %v629 = vsub.f32 %v495, %v618
        %v630 = vsub.f32 %v498, %v618
        %v631 = vsub.f32 %v503, %v618
        %v632 = vsub.f32 %v506, %v618
        %v633 = vsub.f32 %v511, %v618
        %v634 = vsub.f32 %v514, %v618
        %v635 = vsub.f32 %v519, %v618
        %v636 = vsub.f32 %v522, %v618
        %v637 = vsub.f32 %v527, %v618
        %v638 = vsub.f32 %v530, %v618
        %v639 = vsub.f32 %v535, %v618
        %v640 = vsub.f32 %v538, %v618
        %v641 = vsub.f32 %v543, %v618
        %v642 = vsub.f32 %v546, %v618
        %v643 = vsub.f32 %v551, %v618
        %v644 = vsub.f32 %v554, %v618
        %v645 = vsub.f32 %v559, %v618
        %v646 = vsub.f32 %v562, %v618
        %v647 = vsub.f32 %v567, %v618
        %v648 = vsub.f32 %v570, %v618
        %v649 = vsub.f32 %v575, %v618
        %v650 = vsub.f32 %v578, %v618
        %v651 = vmul.f32 %v619, %v619
        %v652 = vmul.f32 %v620, %v620
        %v653 = vmul.f32 %v621, %v621
        %v654 = vmul.f32 %v622, %v622
        %v655 = vmul.f32 %v623, %v623
        %v656 = vmul.f32 %v624, %v624
        %v657 = vmul.f32 %v625, %v625
        %v658 = vmul.f32 %v626, %v626
        %v659 = vmul.f32 %v627, %v627
        %v660 = vmul.f32 %v628, %v628
        %v661 = vmul.f32 %v629, %v629
        %v662 = vmul.f32 %v630, %v630
        %v663 = vmul.f32 %v631, %v631
        %v664 = vmul.f32 %v632, %v632
        %v665 = vmul.f32 %v633, %v633
        %v666 = vmul.f32 %v634, %v634
        %v667 = vmul.f32 %v635, %v635
        %v668 = vmul.f32 %v636, %v636
        %v669 = vmul.f32 %v637, %v637
        %v670 = vmul.f32 %v638, %v638
        %v671 = vmul.f32 %v639, %v639
        %v672 = vmul.f32 %v640, %v640
        %v673 = vmul.f32 %v641, %v641
        %v674 = vmul.f32 %v642, %v642
        %v675 = vmul.f32 %v643, %v643
        %v676 = vmul.f32 %v644, %v644
        %v677 = vmul.f32 %v645, %v645
        %v678 = vmul.f32 %v646, %v646
        %v679 = vmul.f32 %v647, %v647
        %v680 = vmul.f32 %v648, %v648
        %v681 = vmul.f32 %v649, %v649
        %v682 = vmul.f32 %v650, %v650
        %v683 = vadd.f32 %v651, %v652
        %v684 = vadd.f32 %v683, %v653
        %v685 = vadd.f32 %v684, %v654
        %v686 = vadd.f32 %v685, %v655
        %v687 = vadd.f32 %v686, %v656
        %v688 = vadd.f32 %v687, %v657
        %v689 = vadd.f32 %v688, %v658
        %v690 = vadd.f32 %v689, %v659
        %v691 = vadd.f32 %v690, %v660
        %v692 = vadd.f32 %v691, %v661
        %v693 = vadd.f32 %v692, %v662
        %v694 = vadd.f32 %v693, %v663
        %v695 = vadd.f32 %v694, %v664
        %v696 = vadd.f32 %v695, %v665
        %v697 = vadd.f32 %v696, %v666
        %v698 = vadd.f32 %v697, %v667
        %v699 = vadd.f32 %v698, %v668
        %v700 = vadd.f32 %v699, %v669
        %v701 = vadd.f32 %v700, %v670
        %v702 = vadd.f32 %v701, %v671
        %v703 = vadd.f32 %v702, %v672
        %v704 = vadd.f32 %v703, %v673
        %v705 = vadd.f32 %v704, %v674
        %v706 = vadd.f32 %v705, %v675
        %v707 = vadd.f32 %v706, %v676
        %v708 = vadd.f32 %v707, %v677
        %v709 = vadd.f32 %v708, %v678
        %v710 = vadd.f32 %v709, %v679
        %v711 = vadd.f32 %v710, %v680
        %v712 = vadd.f32 %v711, %v681
        %v713 = vadd.f32 %v712, %v682
        %v714 = vrot.slane %v713, 4
        %v715 = vadd.f32 %v713, %v714
        %v716 = vrot.slane %v715, 2
        %v717 = vadd.f32 %v715, %v716
        %v718 = vrot.slane %v717, 1
        %v719 = vadd.f32 %v717, %v718
        %v720 = vmul.f32 %v719, 0.00390625
        %v721 = vadd.f32 %v720, 1e-05
        %v722 = vrsqrt.pop %v721
        %v723 = vmul.f32 %v619, %v722
        %v724 = vmul.f32 %v620, %v722
        %v725 = vmul.f32 %v621, %v722
        %v726 = vmul.f32 %v622, %v722
        %v727 = vmul.f32 %v623, %v722
        %v728 = vmul.f32 %v624, %v722
        %v729 = vmul.f32 %v625, %v722
        %v730 = vmul.f32 %v626, %v722
        %v731 = vmul.f32 %v627, %v722
        %v732 = vmul.f32 %v628, %v722
        %v733 = vmul.f32 %v629, %v722
        %v734 = vmul.f32 %v630, %v722
        %v735 = vmul.f32 %v631, %v722
        %v736 = vmul.f32 %v632, %v722
        %v737 = vmul.f32 %v633, %v722
        %v738 = vmul.f32 %v634, %v722
        %v739 = vmul.f32 %v635, %v722
        %v740 = vmul.f32 %v636, %v722
        %v741 = vmul.f32 %v637, %v722
        %v742 = vmul.f32 %v638, %v722
        %v743 = vmul.f32 %v639, %v722
        %v744 = vmul.f32 %v640, %v722
        %v745 = vmul.f32 %v641, %v722
        %v746 = vmul.f32 %v642, %v722
        %v747 = vmul.f32 %v643, %v722
        %v748 = vmul.f32 %v644, %v722
        %v749 = vmul.f32 %v645, %v722
        %v750 = vmul.f32 %v646, %v722
        %v751 = vmul.f32 %v647, %v722
        %v752 = vmul.f32 %v648, %v722
        %v753 = vmul.f32 %v649, %v722
        %v754 = vmul.f32 %v650, %v722
        %v755 = vmax.f32 %v723, 0.0
        %v756 = vmax.f32 %v724, 0.0
        %v757 = vmax.f32 %v725, 0.0
        %v758 = vmax.f32 %v726, 0.0
        %v759 = vmax.f32 %v727, 0.0
        %v760 = vmax.f32 %v728, 0.0
        %v761 = vmax.f32 %v729, 0.0
        %v762 = vmax.f32 %v730, 0.0
        %v763 = vmax.f32 %v731, 0.0
        %v764 = vmax.f32 %v732, 0.0
        %v765 = vmax.f32 %v733, 0.0
        %v766 = vmax.f32 %v734, 0.0
        %v767 = vmax.f32 %v735, 0.0
        %v768 = vmax.f32 %v736, 0.0
        %v769 = vmax.f32 %v737, 0.0
        %v770 = vmax.f32 %v738, 0.0
        %v771 = vmax.f32 %v739, 0.0
        %v772 = vmax.f32 %v740, 0.0
        %v773 = vmax.f32 %v741, 0.0
        %v774 = vmax.f32 %v742, 0.0
        %v775 = vmax.f32 %v743, 0.0
        %v776 = vmax.f32 %v744, 0.0
        %v777 = vmax.f32 %v745, 0.0
        %v778 = vmax.f32 %v746, 0.0
        %v779 = vmax.f32 %v747, 0.0
        %v780 = vmax.f32 %v748, 0.0
        %v781 = vmax.f32 %v749, 0.0
        %v782 = vmax.f32 %v750, 0.0
        %v783 = vmax.f32 %v751, 0.0
        %v784 = vmax.f32 %v752, 0.0
        %v785 = vmax.f32 %v753, 0.0
        %v786 = vmax.f32 %v754, 0.0
        %787 = vst [vmem:[#allocation2 + $0x18] sm:$0xff] %v755
        %788 = vst [vmem:[#allocation2 + $0x20] sm:$0xff] %v756
        %789 = vst [vmem:[#allocation2 + $0x28] sm:$0xff] %v757
        %790 = vst [vmem:[#allocation2 + $0x30] sm:$0xff] %v758
        %791 = vst [vmem:[#allocation2 + $0x38] sm:$0xff] %v759
        %792 = vst [vmem:[#allocation2 + $0x40] sm:$0xff] %v760
        %793 = vst [vmem:[#allocation2 + $0x48] sm:$0xff] %v761
        %794 = vst [vmem:[#allocation2 + $0x50] sm:$0xff] %v762
        %795 = vst [vmem:[#allocation2 + $0x58] sm:$0xff] %v763
        %796 = vst [vmem:[#allocation2 + $0x60] sm:$0xff] %v764
        %797 = vst [vmem:[#allocation2 + $0x68] sm:$0xff] %v765
        %798 = vst [vmem:[#allocation2 + $0x70] sm:$0xff] %v766
        %799 = vst [vmem:[#allocation2 + $0x78] sm:$0xff] %v767
        %800 = vst [vmem:[#allocation2 + $0x80] sm:$0xff] %v768
        %801 = vst [vmem:[#allocation2 + $0x88] sm:$0xff] %v769
        %802 = vst [vmem:[#allocation2 + $0x90] sm:$0xff] %v770
        %803 = vst [vmem:[#allocation2 + $0x98] sm:$0xff] %v771
        %804 = vst [vmem:[#allocation2 + $0xa0] sm:$0xff] %v772
        %805 = vst [vmem:[#allocation2 + $0xa8] sm:$0xff] %v773
        %806 = vst [vmem:[#allocation2 + $0xb0] sm:$0xff] %v774
        %807 = vst [vmem:[#allocation2 + $0xb8] sm:$0xff] %v775
        %808 = vst [vmem:[#allocation2 + $0xc0] sm:$0xff] %v776
        %809 = vst [vmem:[#allocation2 + $0xc8] sm:$0xff] %v777
        %810 = vst [vmem:[#allocation2 + $0xd0] sm:$0xff] %v778
        %811 = vst [vmem:[#allocation2 + $0xd8] sm:$0xff] %v779
        %812 = vst [vmem:[#allocation2 + $0xe0] sm:$0xff] %v780
        %813 = vst [vmem:[#allocation2 + $0xe8] sm:$0xff] %v781
        %814 = vst [vmem:[#allocation2 + $0xf0] sm:$0xff] %v782
        %815 = vst [vmem:[#allocation2 + $0xf8] sm:$0xff] %v783
        %816 = vst [vmem:[#allocation2 + $0x100] sm:$0xff] %v784
        %817 = vst [vmem:[#allocation2 + $0x108] sm:$0xff] %v785
        %818 = vst [vmem:[#allocation2 + $0x110] sm:$0xff] %v786
        %v819 = vlaneseq
        %v820 = vshrl.u32 %v819, 7
        %v821 = vadd.s32 %v820, 8
        %v822 = vadd.s32 %v820, 16
        %v823 = vadd.s32 %v820, 24
        %v824 = vadd.s32 %v820, 32
        %v825 = vadd.s32 %v820, 40
        %v826 = vadd.s32 %v820, 48
        %v827 = vadd.s32 %v820, 56
        %v828 = vadd.s32 %v820, 64
        %v829 = vadd.s32 %v820, 72
        %v830 = vadd.s32 %v820, 80
        %v831 = vadd.s32 %v820, 88
        %v832 = vadd.s32 %v820, 96
        %v833 = vadd.s32 %v820, 104
        %v834 = vadd.s32 %v820, 112
        %v835 = vadd.s32 %v820, 120
        %v836 = vadd.s32 %v820, 128
        %v837 = vadd.s32 %v820, 136
        %v838 = vadd.s32 %v820, 144
        %v839 = vadd.s32 %v820, 152
        %v840 = vadd.s32 %v820, 160
        %v841 = vadd.s32 %v820, 168
        %v842 = vadd.s32 %v820, 176
        %v843 = vadd.s32 %v820, 184
        %v844 = vadd.s32 %v820, 192
        %v845 = vadd.s32 %v820, 200
        %v846 = vadd.s32 %v820, 208
        %v847 = vadd.s32 %v820, 216
        %v848 = vadd.s32 %v820, 224
        %v849 = vadd.s32 %v820, 232
        %v850 = vadd.s32 %v820, 240
        %v851 = vadd.s32 %v820, 248
        %vm852 = vcmp.lt.s32.totalorder %v820, 0
        %v853 = vsub.s32 0, %v820
        %v854 = vsel %vm852, %v853, %v820
        %v855 = vshrl.u32 %v854, 4
        %v856 = vand.u32 %v854, 15
        %v857 = vsub.s32 0, %v856
        %v858 = vsel %vm852, %v857, %v856
        %vm859 = vcmp.lt.s32.totalorder %v821, 0
        %v860 = vsub.s32 0, %v821
        %v861 = vsel %vm859, %v860, %v821
        %v862 = vshrl.u32 %v861, 4
        %v863 = vand.u32 %v861, 15
        %v864 = vsub.s32 0, %v863
        %v865 = vsel %vm859, %v864, %v863
        %vm866 = vcmp.lt.s32.totalorder %v822, 0
        %v867 = vsub.s32 0, %v822
        %v868 = vsel %vm866, %v867, %v822
        %v869 = vshrl.u32 %v868, 4
        %v870 = vand.u32 %v868, 15
        %v871 = vsub.s32 0, %v870
        %v872 = vsel %vm866, %v871, %v870
        %vm873 = vcmp.lt.s32.totalorder %v823, 0
        %v874 = vsub.s32 0, %v823
        %v875 = vsel %vm873, %v874, %v823
        %v876 = vshrl.u32 %v875, 4
        %v877 = vand.u32 %v875, 15
        %v878 = vsub.s32 0, %v877
        %v879 = vsel %vm873, %v878, %v877
        %vm880 = vcmp.lt.s32.totalorder %v824, 0
        %v881 = vsub.s32 0, %v824
        %v882 = vsel %vm880, %v881, %v824
        %v883 = vshrl.u32 %v882, 4
        %v884 = vand.u32 %v882, 15
        %v885 = vsub.s32 0, %v884
        %v886 = vsel %vm880, %v885, %v884
        %vm887 = vcmp.lt.s32.totalorder %v825, 0
        %v888 = vsub.s32 0, %v825
        %v889 = vsel %vm887, %v888, %v825
        %v890 = vshrl.u32 %v889, 4
        %v891 = vand.u32 %v889, 15
        %v892 = vsub.s32 0, %v891
        %v893 = vsel %vm887, %v892, %v891
        %vm894 = vcmp.lt.s32.totalorder %v826, 0
        %v895 = vsub.s32 0, %v826
        %v896 = vsel %vm894, %v895, %v826
        %v897 = vshrl.u32 %v896, 4
        %v898 = vand.u32 %v896, 15
        %v899 = vsub.s32 0, %v898
        %v900 = vsel %vm894, %v899, %v898
        %vm901 = vcmp.lt.s32.totalorder %v827, 0
        %v902 = vsub.s32 0, %v827
        %v903 = vsel %vm901, %v902, %v827
        %v904 = vshrl.u32 %v903, 4
        %v905 = vand.u32 %v903, 15
        %v906 = vsub.s32 0, %v905
        %v907 = vsel %vm901, %v906, %v905
        %vm908 = vcmp.lt.s32.totalorder %v828, 0
        %v909 = vsub.s32 0, %v828
        %v910 = vsel %vm908, %v909, %v828
        %v911 = vshrl.u32 %v910, 4
        %v912 = vand.u32 %v910, 15
        %v913 = vsub.s32 0, %v912
        %v914 = vsel %vm908, %v913, %v912
        %vm915 = vcmp.lt.s32.totalorder %v829, 0
        %v916 = vsub.s32 0, %v829
        %v917 = vsel %vm915, %v916, %v829
        %v918 = vshrl.u32 %v917, 4
        %v919 = vand.u32 %v917, 15
        %v920 = vsub.s32 0, %v919
        %v921 = vsel %vm915, %v920, %v919
        %vm922 = vcmp.lt.s32.totalorder %v830, 0
        %v923 = vsub.s32 0, %v830
        %v924 = vsel %vm922, %v923, %v830
        %v925 = vshrl.u32 %v924, 4
        %v926 = vand.u32 %v924, 15
        %v927 = vsub.s32 0, %v926
        %v928 = vsel %vm922, %v927, %v926
        %vm929 = vcmp.lt.s32.totalorder %v831, 0
        %v930 = vsub.s32 0, %v831
        %v931 = vsel %vm929, %v930, %v831
        %v932 = vshrl.u32 %v931, 4
        %v933 = vand.u32 %v931, 15
        %v934 = vsub.s32 0, %v933
        %v935 = vsel %vm929, %v934, %v933
        %vm936 = vcmp.lt.s32.totalorder %v832, 0
        %v937 = vsub.s32 0, %v832
        %v938 = vsel %vm936, %v937, %v832
        %v939 = vshrl.u32 %v938, 4
        %v940 = vand.u32 %v938, 15
        %v941 = vsub.s32 0, %v940
        %v942 = vsel %vm936, %v941, %v940
        %vm943 = vcmp.lt.s32.totalorder %v833, 0
        %v944 = vsub.s32 0, %v833
        %v945 = vsel %vm943, %v944, %v833
        %v946 = vshrl.u32 %v945, 4
        %v947 = vand.u32 %v945, 15
        %v948 = vsub.s32 0, %v947
        %v949 = vsel %vm943, %v948, %v947
        %vm950 = vcmp.lt.s32.totalorder %v834, 0
        %v951 = vsub.s32 0, %v834
        %v952 = vsel %vm950, %v951, %v834
        %v953 = vshrl.u32 %v952, 4
        %v954 = vand.u32 %v952, 15
        %v955 = vsub.s32 0, %v954
        %v956 = vsel %vm950, %v955, %v954
        %vm957 = vcmp.lt.s32.totalorder %v835, 0
        %v958 = vsub.s32 0, %v835
        %v959 = vsel %vm957, %v958, %v835
        %v960 = vshrl.u32 %v959, 4
        %v961 = vand.u32 %v959, 15
        %v962 = vsub.s32 0, %v961
        %v963 = vsel %vm957, %v962, %v961
        %vm964 = vcmp.lt.s32.totalorder %v836, 0
        %v965 = vsub.s32 0, %v836
        %v966 = vsel %vm964, %v965, %v836
        %v967 = vshrl.u32 %v966, 4
        %v968 = vand.u32 %v966, 15
        %v969 = vsub.s32 0, %v968
        %v970 = vsel %vm964, %v969, %v968
        %vm971 = vcmp.lt.s32.totalorder %v837, 0
        %v972 = vsub.s32 0, %v837
        %v973 = vsel %vm971, %v972, %v837
        %v974 = vshrl.u32 %v973, 4
        %v975 = vand.u32 %v973, 15
        %v976 = vsub.s32 0, %v975
        %v977 = vsel %vm971, %v976, %v975
        %vm978 = vcmp.lt.s32.totalorder %v838, 0
        %v979 = vsub.s32 0, %v838
        %v980 = vsel %vm978, %v979, %v838
        %v981 = vshrl.u32 %v980, 4
        %v982 = vand.u32 %v980, 15
        %v983 = vsub.s32 0, %v982
        %v984 = vsel %vm978, %v983, %v982
        %vm985 = vcmp.lt.s32.totalorder %v839, 0
        %v986 = vsub.s32 0, %v839
        %v987 = vsel %vm985, %v986, %v839
        %v988 = vshrl.u32 %v987, 4
        %v989 = vand.u32 %v987, 15
        %v990 = vsub.s32 0, %v989
        %v991 = vsel %vm985, %v990, %v989
        %vm992 = vcmp.lt.s32.totalorder %v840, 0
        %v993 = vsub.s32 0, %v840
        %v994 = vsel %vm992, %v993, %v840
        %v995 = vshrl.u32 %v994, 4
        %v996 = vand.u32 %v994, 15
        %v997 = vsub.s32 0, %v996
        %v998 = vsel %vm992, %v997, %v996
        %vm999 = vcmp.lt.s32.totalorder %v841, 0
        %v1000 = vsub.s32 0, %v841
        %v1001 = vsel %vm999, %v1000, %v841
        %v1002 = vshrl.u32 %v1001, 4
        %v1003 = vand.u32 %v1001, 15
        %v1004 = vsub.s32 0, %v1003
        %v1005 = vsel %vm999, %v1004, %v1003
        %vm1006 = vcmp.lt.s32.totalorder %v842, 0
        %v1007 = vsub.s32 0, %v842
        %v1008 = vsel %vm1006, %v1007, %v842
        %v1009 = vshrl.u32 %v1008, 4
        %v1010 = vand.u32 %v1008, 15
        %v1011 = vsub.s32 0, %v1010
        %v1012 = vsel %vm1006, %v1011, %v1010
        %vm1013 = vcmp.lt.s32.totalorder %v843, 0
        %v1014 = vsub.s32 0, %v843
        %v1015 = vsel %vm1013, %v1014, %v843
        %v1016 = vshrl.u32 %v1015, 4
        %v1017 = vand.u32 %v1015, 15
        %v1018 = vsub.s32 0, %v1017
        %v1019 = vsel %vm1013, %v1018, %v1017
        %vm1020 = vcmp.lt.s32.totalorder %v844, 0
        %v1021 = vsub.s32 0, %v844
        %v1022 = vsel %vm1020, %v1021, %v844
        %v1023 = vshrl.u32 %v1022, 4
        %v1024 = vand.u32 %v1022, 15
        %v1025 = vsub.s32 0, %v1024
        %v1026 = vsel %vm1020, %v1025, %v1024
        %vm1027 = vcmp.lt.s32.totalorder %v845, 0
        %v1028 = vsub.s32 0, %v845
        %v1029 = vsel %vm1027, %v1028, %v845
        %v1030 = vshrl.u32 %v1029, 4
        %v1031 = vand.u32 %v1029, 15
        %v1032 = vsub.s32 0, %v1031
        %v1033 = vsel %vm1027, %v1032, %v1031
        %vm1034 = vcmp.lt.s32.totalorder %v846, 0
        %v1035 = vsub.s32 0, %v846
        %v1036 = vsel %vm1034, %v1035, %v846
        %v1037 = vshrl.u32 %v1036, 4
        %v1038 = vand.u32 %v1036, 15
        %v1039 = vsub.s32 0, %v1038
        %v1040 = vsel %vm1034, %v1039, %v1038
        %vm1041 = vcmp.lt.s32.totalorder %v847, 0
        %v1042 = vsub.s32 0, %v847
        %v1043 = vsel %vm1041, %v1042, %v847
        %v1044 = vshrl.u32 %v1043, 4
        %v1045 = vand.u32 %v1043, 15
        %v1046 = vsub.s32 0, %v1045
        %v1047 = vsel %vm1041, %v1046, %v1045
        %vm1048 = vcmp.lt.s32.totalorder %v848, 0
        %v1049 = vsub.s32 0, %v848
        %v1050 = vsel %vm1048, %v1049, %v848
        %v1051 = vshrl.u32 %v1050, 4
        %v1052 = vand.u32 %v1050, 15
        %v1053 = vsub.s32 0, %v1052
        %v1054 = vsel %vm1048, %v1053, %v1052
        %vm1055 = vcmp.lt.s32.totalorder %v849, 0
        %v1056 = vsub.s32 0, %v849
        %v1057 = vsel %vm1055, %v1056, %v849
        %v1058 = vshrl.u32 %v1057, 4
        %v1059 = vand.u32 %v1057, 15
        %v1060 = vsub.s32 0, %v1059
        %v1061 = vsel %vm1055, %v1060, %v1059
        %vm1062 = vcmp.lt.s32.totalorder %v850, 0
        %v1063 = vsub.s32 0, %v850
        %v1064 = vsel %vm1062, %v1063, %v850
        %v1065 = vshrl.u32 %v1064, 4
        %v1066 = vand.u32 %v1064, 15
        %v1067 = vsub.s32 0, %v1066
        %v1068 = vsel %vm1062, %v1067, %v1066
        %vm1069 = vcmp.lt.s32.totalorder %v851, 0
        %v1070 = vsub.s32 0, %v851
        %v1071 = vsel %vm1069, %v1070, %v851
        %v1072 = vshrl.u32 %v1071, 4
        %v1073 = vand.u32 %v1071, 15
        %v1074 = vsub.s32 0, %v1073
        %v1075 = vsel %vm1069, %v1074, %v1073
        %vm1076 = vcmp.ne.s32.totalorder %v858, 0
        %vm1077 = vcmp.ne.s32.totalorder %v865, 0
        %vm1078 = vcmp.ne.s32.totalorder %v872, 0
        %vm1079 = vcmp.ne.s32.totalorder %v879, 0
        %vm1080 = vcmp.ne.s32.totalorder %v886, 0
        %vm1081 = vcmp.ne.s32.totalorder %v893, 0
        %vm1082 = vcmp.ne.s32.totalorder %v900, 0
        %vm1083 = vcmp.ne.s32.totalorder %v907, 0
        %vm1084 = vcmp.ne.s32.totalorder %v914, 0
        %vm1085 = vcmp.ne.s32.totalorder %v921, 0
        %vm1086 = vcmp.ne.s32.totalorder %v928, 0
        %vm1087 = vcmp.ne.s32.totalorder %v935, 0
        %vm1088 = vcmp.ne.s32.totalorder %v942, 0
        %vm1089 = vcmp.ne.s32.totalorder %v949, 0
        %vm1090 = vcmp.ne.s32.totalorder %v956, 0
        %vm1091 = vcmp.ne.s32.totalorder %v963, 0
        %vm1092 = vcmp.ne.s32.totalorder %v970, 0
        %vm1093 = vcmp.ne.s32.totalorder %v977, 0
        %vm1094 = vcmp.ne.s32.totalorder %v984, 0
        %vm1095 = vcmp.ne.s32.totalorder %v991, 0
        %vm1096 = vcmp.ne.s32.totalorder %v998, 0
        %vm1097 = vcmp.ne.s32.totalorder %v1005, 0
        %vm1098 = vcmp.ne.s32.totalorder %v1012, 0
        %vm1099 = vcmp.ne.s32.totalorder %v1019, 0
        %vm1100 = vcmp.ne.s32.totalorder %v1026, 0
        %vm1101 = vcmp.ne.s32.totalorder %v1033, 0
        %vm1102 = vcmp.ne.s32.totalorder %v1040, 0
        %vm1103 = vcmp.ne.s32.totalorder %v1047, 0
        %vm1104 = vcmp.ne.s32.totalorder %v1054, 0
        %vm1105 = vcmp.ne.s32.totalorder %v1061, 0
        %vm1106 = vcmp.ne.s32.totalorder %v1068, 0
        %vm1107 = vcmp.ne.s32.totalorder %v1075, 0
        %vm1108 = vcmp.lt.s32.totalorder %v858, 0
        %vm1109 = vcmp.lt.s32.totalorder %v865, 0
        %vm1110 = vcmp.lt.s32.totalorder %v872, 0
        %vm1111 = vcmp.lt.s32.totalorder %v879, 0
        %vm1112 = vcmp.lt.s32.totalorder %v886, 0
        %vm1113 = vcmp.lt.s32.totalorder %v893, 0
        %vm1114 = vcmp.lt.s32.totalorder %v900, 0
        %vm1115 = vcmp.lt.s32.totalorder %v907, 0
        %vm1116 = vcmp.lt.s32.totalorder %v914, 0
        %vm1117 = vcmp.lt.s32.totalorder %v921, 0
        %vm1118 = vcmp.lt.s32.totalorder %v928, 0
        %vm1119 = vcmp.lt.s32.totalorder %v935, 0
        %vm1120 = vcmp.lt.s32.totalorder %v942, 0
        %vm1121 = vcmp.lt.s32.totalorder %v949, 0
        %vm1122 = vcmp.lt.s32.totalorder %v956, 0
        %vm1123 = vcmp.lt.s32.totalorder %v963, 0
        %vm1124 = vcmp.lt.s32.totalorder %v970, 0
        %vm1125 = vcmp.lt.s32.totalorder %v977, 0
        %vm1126 = vcmp.lt.s32.totalorder %v984, 0
        %vm1127 = vcmp.lt.s32.totalorder %v991, 0
        %vm1128 = vcmp.lt.s32.totalorder %v998, 0
        %vm1129 = vcmp.lt.s32.totalorder %v1005, 0
        %vm1130 = vcmp.lt.s32.totalorder %v1012, 0
        %vm1131 = vcmp.lt.s32.totalorder %v1019, 0
        %vm1132 = vcmp.lt.s32.totalorder %v1026, 0
        %vm1133 = vcmp.lt.s32.totalorder %v1033, 0
        %vm1134 = vcmp.lt.s32.totalorder %v1040, 0
        %vm1135 = vcmp.lt.s32.totalorder %v1047, 0
        %vm1136 = vcmp.lt.s32.totalorder %v1054, 0
        %vm1137 = vcmp.lt.s32.totalorder %v1061, 0
        %vm1138 = vcmp.lt.s32.totalorder %v1068, 0
        %vm1139 = vcmp.lt.s32.totalorder %v1075, 0
        %vm1140 = vmand %vm1108, %vm1076
        %vm1141 = vmand %vm1109, %vm1077
        %vm1142 = vmand %vm1110, %vm1078
        %vm1143 = vmand %vm1111, %vm1079
        %vm1144 = vmand %vm1112, %vm1080
        %vm1145 = vmand %vm1113, %vm1081
        %vm1146 = vmand %vm1114, %vm1082
        %vm1147 = vmand %vm1115, %vm1083
        %vm1148 = vmand %vm1116, %vm1084
        %vm1149 = vmand %vm1117, %vm1085
        %vm1150 = vmand %vm1118, %vm1086
        %vm1151 = vmand %vm1119, %vm1087
        %vm1152 = vmand %vm1120, %vm1088
        %vm1153 = vmand %vm1121, %vm1089
        %vm1154 = vmand %vm1122, %vm1090
        %vm1155 = vmand %vm1123, %vm1091
        %vm1156 = vmand %vm1124, %vm1092
        %vm1157 = vmand %vm1125, %vm1093
        %vm1158 = vmand %vm1126, %vm1094
        %vm1159 = vmand %vm1127, %vm1095
        %vm1160 = vmand %vm1128, %vm1096
        %vm1161 = vmand %vm1129, %vm1097
        %vm1162 = vmand %vm1130, %vm1098
        %vm1163 = vmand %vm1131, %vm1099
        %vm1164 = vmand %vm1132, %vm1100
        %vm1165 = vmand %vm1133, %vm1101
        %vm1166 = vmand %vm1134, %vm1102
        %vm1167 = vmand %vm1135, %vm1103
        %vm1168 = vmand %vm1136, %vm1104
        %vm1169 = vmand %vm1137, %vm1105
        %vm1170 = vmand %vm1138, %vm1106
        %vm1171 = vmand %vm1139, %vm1107
        %v1172 = vadd.s32 %v858, 16
        %v1173 = vadd.s32 %v865, 16
        %v1174 = vadd.s32 %v872, 16
        %v1175 = vadd.s32 %v879, 16
        %v1176 = vadd.s32 %v886, 16
        %v1177 = vadd.s32 %v893, 16
        %v1178 = vadd.s32 %v900, 16
        %v1179 = vadd.s32 %v907, 16
        %v1180 = vadd.s32 %v914, 16
        %v1181 = vadd.s32 %v921, 16
        %v1182 = vadd.s32 %v928, 16
        %v1183 = vadd.s32 %v935, 16
        %v1184 = vadd.s32 %v942, 16
        %v1185 = vadd.s32 %v949, 16
        %v1186 = vadd.s32 %v956, 16
        %v1187 = vadd.s32 %v963, 16
        %v1188 = vadd.s32 %v970, 16
        %v1189 = vadd.s32 %v977, 16
        %v1190 = vadd.s32 %v984, 16
        %v1191 = vadd.s32 %v991, 16
        %v1192 = vadd.s32 %v998, 16
        %v1193 = vadd.s32 %v1005, 16
        %v1194 = vadd.s32 %v1012, 16
        %v1195 = vadd.s32 %v1019, 16
        %v1196 = vadd.s32 %v1026, 16
        %v1197 = vadd.s32 %v1033, 16
        %v1198 = vadd.s32 %v1040, 16
        %v1199 = vadd.s32 %v1047, 16
        %v1200 = vadd.s32 %v1054, 16
        %v1201 = vadd.s32 %v1061, 16
        %v1202 = vadd.s32 %v1068, 16
        %v1203 = vadd.s32 %v1075, 16
        %v1204 = vsel %vm1140, %v1172, %v858
        %v1205 = vsel %vm1141, %v1173, %v865
        %v1206 = vsel %vm1142, %v1174, %v872
        %v1207 = vsel %vm1143, %v1175, %v879
        %v1208 = vsel %vm1144, %v1176, %v886
        %v1209 = vsel %vm1145, %v1177, %v893
        %v1210 = vsel %vm1146, %v1178, %v900
        %v1211 = vsel %vm1147, %v1179, %v907
        %v1212 = vsel %vm1148, %v1180, %v914
        %v1213 = vsel %vm1149, %v1181, %v921
        %v1214 = vsel %vm1150, %v1182, %v928
        %v1215 = vsel %vm1151, %v1183, %v935
        %v1216 = vsel %vm1152, %v1184, %v942
        %v1217 = vsel %vm1153, %v1185, %v949
        %v1218 = vsel %vm1154, %v1186, %v956
        %v1219 = vsel %vm1155, %v1187, %v963
        %v1220 = vsel %vm1156, %v1188, %v970
        %v1221 = vsel %vm1157, %v1189, %v977
        %v1222 = vsel %vm1158, %v1190, %v984
        %v1223 = vsel %vm1159, %v1191, %v991
        %v1224 = vsel %vm1160, %v1192, %v998
        %v1225 = vsel %vm1161, %v1193, %v1005
        %v1226 = vsel %vm1162, %v1194, %v1012
        %v1227 = vsel %vm1163, %v1195, %v1019
        %v1228 = vsel %vm1164, %v1196, %v1026
        %v1229 = vsel %vm1165, %v1197, %v1033
        %v1230 = vsel %vm1166, %v1198, %v1040
        %v1231 = vsel %vm1167, %v1199, %v1047
        %v1232 = vsel %vm1168, %v1200, %v1054
        %v1233 = vsel %vm1169, %v1201, %v1061
        %v1234 = vsel %vm1170, %v1202, %v1068
        %v1235 = vsel %vm1171, %v1203, %v1075
        %vm1236 = vcmp.ge.s32.totalorder %v1204, 1
        %vm1237 = vcmp.ge.s32.totalorder %v1205, 1
        %vm1238 = vcmp.ge.s32.totalorder %v1206, 1
        %vm1239 = vcmp.ge.s32.totalorder %v1207, 1
        %vm1240 = vcmp.ge.s32.totalorder %v1208, 1
        %vm1241 = vcmp.ge.s32.totalorder %v1209, 1
        %vm1242 = vcmp.ge.s32.totalorder %v1210, 1
        %vm1243 = vcmp.ge.s32.totalorder %v1211, 1
        %vm1244 = vcmp.ge.s32.totalorder %v1212, 1
        %vm1245 = vcmp.ge.s32.totalorder %v1213, 1
        %vm1246 = vcmp.ge.s32.totalorder %v1214, 1
        %vm1247 = vcmp.ge.s32.totalorder %v1215, 1
        %vm1248 = vcmp.ge.s32.totalorder %v1216, 1
        %vm1249 = vcmp.ge.s32.totalorder %v1217, 1
        %vm1250 = vcmp.ge.s32.totalorder %v1218, 1
        %vm1251 = vcmp.ge.s32.totalorder %v1219, 1
        %vm1252 = vcmp.ge.s32.totalorder %v1220, 1
        %vm1253 = vcmp.ge.s32.totalorder %v1221, 1
        %vm1254 = vcmp.ge.s32.totalorder %v1222, 1
        %vm1255 = vcmp.ge.s32.totalorder %v1223, 1
        %vm1256 = vcmp.ge.s32.totalorder %v1224, 1
        %vm1257 = vcmp.ge.s32.totalorder %v1225, 1
        %vm1258 = vcmp.ge.s32.totalorder %v1226, 1
        %vm1259 = vcmp.ge.s32.totalorder %v1227, 1
        %vm1260 = vcmp.ge.s32.totalorder %v1228, 1
        %vm1261 = vcmp.ge.s32.totalorder %v1229, 1
        %vm1262 = vcmp.ge.s32.totalorder %v1230, 1
        %vm1263 = vcmp.ge.s32.totalorder %v1231, 1
        %vm1264 = vcmp.ge.s32.totalorder %v1232, 1
        %vm1265 = vcmp.ge.s32.totalorder %v1233, 1
        %vm1266 = vcmp.ge.s32.totalorder %v1234, 1
        %vm1267 = vcmp.ge.s32.totalorder %v1235, 1
        %v1268 = vsel %vm1236, 1, 0
        %v1269 = vsel %vm1237, 1, 0
        %v1270 = vsel %vm1238, 1, 0
        %v1271 = vsel %vm1239, 1, 0
        %v1272 = vsel %vm1240, 1, 0
        %v1273 = vsel %vm1241, 1, 0
        %v1274 = vsel %vm1242, 1, 0
        %v1275 = vsel %vm1243, 1, 0
        %v1276 = vsel %vm1244, 1, 0
        %v1277 = vsel %vm1245, 1, 0
        %v1278 = vsel %vm1246, 1, 0
        %v1279 = vsel %vm1247, 1, 0
        %v1280 = vsel %vm1248, 1, 0
        %v1281 = vsel %vm1249, 1, 0
        %v1282 = vsel %vm1250, 1, 0
        %v1283 = vsel %vm1251, 1, 0
        %v1284 = vsel %vm1252, 1, 0
        %v1285 = vsel %vm1253, 1, 0
        %v1286 = vsel %vm1254, 1, 0
        %v1287 = vsel %vm1255, 1, 0
        %v1288 = vsel %vm1256, 1, 0
        %v1289 = vsel %vm1257, 1, 0
        %v1290 = vsel %vm1258, 1, 0
        %v1291 = vsel %vm1259, 1, 0
        %v1292 = vsel %vm1260, 1, 0
        %v1293 = vsel %vm1261, 1, 0
        %v1294 = vsel %vm1262, 1, 0
        %v1295 = vsel %vm1263, 1, 0
        %v1296 = vsel %vm1264, 1, 0
        %v1297 = vsel %vm1265, 1, 0
        %v1298 = vsel %vm1266, 1, 0
        %v1299 = vsel %vm1267, 1, 0
        %v1300 = vcvt.s32.f32 %v1268
        %v1301 = vcvt.s32.f32 %v1269
        %v1302 = vcvt.s32.f32 %v1270
        %v1303 = vcvt.s32.f32 %v1271
        %v1304 = vcvt.s32.f32 %v1272
        %v1305 = vcvt.s32.f32 %v1273
        %v1306 = vcvt.s32.f32 %v1274
        %v1307 = vcvt.s32.f32 %v1275
        %v1308 = vcvt.s32.f32 %v1276
        %v1309 = vcvt.s32.f32 %v1277
        %v1310 = vcvt.s32.f32 %v1278
        %v1311 = vcvt.s32.f32 %v1279
        %v1312 = vcvt.s32.f32 %v1280
        %v1313 = vcvt.s32.f32 %v1281
        %v1314 = vcvt.s32.f32 %v1282
        %v1315 = vcvt.s32.f32 %v1283
        %v1316 = vcvt.s32.f32 %v1284
        %v1317 = vcvt.s32.f32 %v1285
        %v1318 = vcvt.s32.f32 %v1286
        %v1319 = vcvt.s32.f32 %v1287
        %v1320 = vcvt.s32.f32 %v1288
        %v1321 = vcvt.s32.f32 %v1289
        %v1322 = vcvt.s32.f32 %v1290
        %v1323 = vcvt.s32.f32 %v1291
        %v1324 = vcvt.s32.f32 %v1292
        %v1325 = vcvt.s32.f32 %v1293
        %v1326 = vcvt.s32.f32 %v1294
        %v1327 = vcvt.s32.f32 %v1295
        %v1328 = vcvt.s32.f32 %v1296
        %v1329 = vcvt.s32.f32 %v1297
        %v1330 = vcvt.s32.f32 %v1298
        %v1331 = vcvt.s32.f32 %v1299
        %vm1332 = vcmp.le.s32.totalorder %v1204, 14
        %vm1333 = vcmp.le.s32.totalorder %v1205, 14
        %vm1334 = vcmp.le.s32.totalorder %v1206, 14
        %vm1335 = vcmp.le.s32.totalorder %v1207, 14
        %vm1336 = vcmp.le.s32.totalorder %v1208, 14
        %vm1337 = vcmp.le.s32.totalorder %v1209, 14
        %vm1338 = vcmp.le.s32.totalorder %v1210, 14
        %vm1339 = vcmp.le.s32.totalorder %v1211, 14
        %vm1340 = vcmp.le.s32.totalorder %v1212, 14
        %vm1341 = vcmp.le.s32.totalorder %v1213, 14
        %vm1342 = vcmp.le.s32.totalorder %v1214, 14
        %vm1343 = vcmp.le.s32.totalorder %v1215, 14
        %vm1344 = vcmp.le.s32.totalorder %v1216, 14
        %vm1345 = vcmp.le.s32.totalorder %v1217, 14
        %vm1346 = vcmp.le.s32.totalorder %v1218, 14
        %vm1347 = vcmp.le.s32.totalorder %v1219, 14
        %vm1348 = vcmp.le.s32.totalorder %v1220, 14
        %vm1349 = vcmp.le.s32.totalorder %v1221, 14
        %vm1350 = vcmp.le.s32.totalorder %v1222, 14
        %vm1351 = vcmp.le.s32.totalorder %v1223, 14
        %vm1352 = vcmp.le.s32.totalorder %v1224, 14
        %vm1353 = vcmp.le.s32.totalorder %v1225, 14
        %vm1354 = vcmp.le.s32.totalorder %v1226, 14
        %vm1355 = vcmp.le.s32.totalorder %v1227, 14
        %vm1356 = vcmp.le.s32.totalorder %v1228, 14
        %vm1357 = vcmp.le.s32.totalorder %v1229, 14
        %vm1358 = vcmp.le.s32.totalorder %v1230, 14
        %vm1359 = vcmp.le.s32.totalorder %v1231, 14
        %vm1360 = vcmp.le.s32.totalorder %v1232, 14
        %vm1361 = vcmp.le.s32.totalorder %v1233, 14
        %vm1362 = vcmp.le.s32.totalorder %v1234, 14
        %vm1363 = vcmp.le.s32.totalorder %v1235, 14
        %v1364 = vsel %vm1332, 1, 0
        %v1365 = vsel %vm1333, 1, 0
        %v1366 = vsel %vm1334, 1, 0
        %v1367 = vsel %vm1335, 1, 0
        %v1368 = vsel %vm1336, 1, 0
        %v1369 = vsel %vm1337, 1, 0
        %v1370 = vsel %vm1338, 1, 0
        %v1371 = vsel %vm1339, 1, 0
        %v1372 = vsel %vm1340, 1, 0
        %v1373 = vsel %vm1341, 1, 0
        %v1374 = vsel %vm1342, 1, 0
        %v1375 = vsel %vm1343, 1, 0
        %v1376 = vsel %vm1344, 1, 0
        %v1377 = vsel %vm1345, 1, 0
        %v1378 = vsel %vm1346, 1, 0
        %v1379 = vsel %vm1347, 1, 0
        %v1380 = vsel %vm1348, 1, 0
        %v1381 = vsel %vm1349, 1, 0
        %v1382 = vsel %vm1350, 1, 0
        %v1383 = vsel %vm1351, 1, 0
        %v1384 = vsel %vm1352, 1, 0
        %v1385 = vsel %vm1353, 1, 0
        %v1386 = vsel %vm1354, 1, 0
        %v1387 = vsel %vm1355, 1, 0
        %v1388 = vsel %vm1356, 1, 0
        %v1389 = vsel %vm1357, 1, 0
        %v1390 = vsel %vm1358, 1, 0
        %v1391 = vsel %vm1359, 1, 0
        %v1392 = vsel %vm1360, 1, 0
        %v1393 = vsel %vm1361, 1, 0
        %v1394 = vsel %vm1362, 1, 0
        %v1395 = vsel %vm1363, 1, 0
        %v1396 = vcvt.s32.f32 %v1364
        %v1397 = vcvt.s32.f32 %v1365
        %v1398 = vcvt.s32.f32 %v1366
        %v1399 = vcvt.s32.f32 %v1367
        %v1400 = vcvt.s32.f32 %v1368
        %v1401 = vcvt.s32.f32 %v1369
        %v1402 = vcvt.s32.f32 %v1370
        %v1403 = vcvt.s32.f32 %v1371
        %v1404 = vcvt.s32.f32 %v1372
        %v1405 = vcvt.s32.f32 %v1373
        %v1406 = vcvt.s32.f32 %v1374
        %v1407 = vcvt.s32.f32 %v1375
        %v1408 = vcvt.s32.f32 %v1376
        %v1409 = vcvt.s32.f32 %v1377
        %v1410 = vcvt.s32.f32 %v1378
        %v1411 = vcvt.s32.f32 %v1379
        %v1412 = vcvt.s32.f32 %v1380
        %v1413 = vcvt.s32.f32 %v1381
        %v1414 = vcvt.s32.f32 %v1382
        %v1415 = vcvt.s32.f32 %v1383
        %v1416 = vcvt.s32.f32 %v1384
        %v1417 = vcvt.s32.f32 %v1385
        %v1418 = vcvt.s32.f32 %v1386
        %v1419 = vcvt.s32.f32 %v1387
        %v1420 = vcvt.s32.f32 %v1388
        %v1421 = vcvt.s32.f32 %v1389
        %v1422 = vcvt.s32.f32 %v1390
        %v1423 = vcvt.s32.f32 %v1391
        %v1424 = vcvt.s32.f32 %v1392
        %v1425 = vcvt.s32.f32 %v1393
        %v1426 = vcvt.s32.f32 %v1394
        %v1427 = vcvt.s32.f32 %v1395
        %v1428 = vld [vmem:[#allocation2 + $0x7] sm:$0xff]
        %v1429 = vld [vmem:[#allocation2 + $0xf] sm:$0xff]
        %v1430 = vld [vmem:[#allocation2 + $0x17] sm:$0xff]
        %v1431 = vld [vmem:[#allocation2 + $0x1f] sm:$0xff]
        %v1432 = vld [vmem:[#allocation2 + $0x27] sm:$0xff]
        %v1433 = vld [vmem:[#allocation2 + $0x2f] sm:$0xff]
        %v1434 = vld [vmem:[#allocation2 + $0x37] sm:$0xff]
        %v1435 = vld [vmem:[#allocation2 + $0x3f] sm:$0xff]
        %v1436 = vld [vmem:[#allocation2 + $0x47] sm:$0xff]
        %v1437 = vld [vmem:[#allocation2 + $0x4f] sm:$0xff]
        %v1438 = vld [vmem:[#allocation2 + $0x57] sm:$0xff]
        %v1439 = vld [vmem:[#allocation2 + $0x5f] sm:$0xff]
        %v1440 = vld [vmem:[#allocation2 + $0x67] sm:$0xff]
        %v1441 = vld [vmem:[#allocation2 + $0x6f] sm:$0xff]
        %v1442 = vld [vmem:[#allocation2 + $0x77] sm:$0xff]
        %v1443 = vld [vmem:[#allocation2 + $0x7f] sm:$0xff]
        %v1444 = vld [vmem:[#allocation2 + $0x87] sm:$0xff]
        %v1445 = vld [vmem:[#allocation2 + $0x8f] sm:$0xff]
        %v1446 = vld [vmem:[#allocation2 + $0x97] sm:$0xff]
        %v1447 = vld [vmem:[#allocation2 + $0x9f] sm:$0xff]
        %v1448 = vld [vmem:[#allocation2 + $0xa7] sm:$0xff]
        %v1449 = vld [vmem:[#allocation2 + $0xaf] sm:$0xff]
        %v1450 = vld [vmem:[#allocation2 + $0xb7] sm:$0xff]
        %v1451 = vld [vmem:[#allocation2 + $0xbf] sm:$0xff]
        %v1452 = vld [vmem:[#allocation2 + $0xc7] sm:$0xff]
        %v1453 = vld [vmem:[#allocation2 + $0xcf] sm:$0xff]
        %v1454 = vld [vmem:[#allocation2 + $0xd7] sm:$0xff]
        %v1455 = vld [vmem:[#allocation2 + $0xdf] sm:$0xff]
        %v1456 = vld [vmem:[#allocation2 + $0xe7] sm:$0xff]
        %v1457 = vld [vmem:[#allocation2 + $0xef] sm:$0xff]
        %v1458 = vld [vmem:[#allocation2 + $0xf7] sm:$0xff]
        %v1459 = vld [vmem:[#allocation2 + $0xff] sm:$0xff]
        %v1460 = vmul.f32 %v1428, %v1300
        %v1461 = vmul.f32 %v1429, %v1301
        %v1462 = vmul.f32 %v1430, %v1302
        %v1463 = vmul.f32 %v1431, %v1303
        %v1464 = vmul.f32 %v1432, %v1304
        %v1465 = vmul.f32 %v1433, %v1305
        %v1466 = vmul.f32 %v1434, %v1306
        %v1467 = vmul.f32 %v1435, %v1307
        %v1468 = vmul.f32 %v1436, %v1308
        %v1469 = vmul.f32 %v1437, %v1309
        %v1470 = vmul.f32 %v1438, %v1310
        %v1471 = vmul.f32 %v1439, %v1311
        %v1472 = vmul.f32 %v1440, %v1312
        %v1473 = vmul.f32 %v1441, %v1313
        %v1474 = vmul.f32 %v1442, %v1314
        %v1475 = vmul.f32 %v1443, %v1315
        %v1476 = vmul.f32 %v1444, %v1316
        %v1477 = vmul.f32 %v1445, %v1317
        %v1478 = vmul.f32 %v1446, %v1318
        %v1479 = vmul.f32 %v1447, %v1319
        %v1480 = vmul.f32 %v1448, %v1320
        %v1481 = vmul.f32 %v1449, %v1321
        %v1482 = vmul.f32 %v1450, %v1322
        %v1483 = vmul.f32 %v1451, %v1323
        %v1484 = vmul.f32 %v1452, %v1324
        %v1485 = vmul.f32 %v1453, %v1325
        %v1486 = vmul.f32 %v1454, %v1326
        %v1487 = vmul.f32 %v1455, %v1327
        %v1488 = vmul.f32 %v1456, %v1328
        %v1489 = vmul.f32 %v1457, %v1329
        %v1490 = vmul.f32 %v1458, %v1330
        %v1491 = vmul.f32 %v1459, %v1331
        %v1492 = vpack.c.bf16 %v1461, %v1460
        %v1493 = vpack.c.bf16 %v1463, %v1462
        %v1494 = vpack.c.bf16 %v1465, %v1464
        %v1495 = vpack.c.bf16 %v1467, %v1466
        %v1496 = vpack.c.bf16 %v1469, %v1468
        %v1497 = vpack.c.bf16 %v1471, %v1470
        %v1498 = vpack.c.bf16 %v1473, %v1472
        %v1499 = vpack.c.bf16 %v1475, %v1474
        %v1500 = vpack.c.bf16 %v1477, %v1476
        %v1501 = vpack.c.bf16 %v1479, %v1478
        %v1502 = vpack.c.bf16 %v1481, %v1480
        %v1503 = vpack.c.bf16 %v1483, %v1482
        %v1504 = vpack.c.bf16 %v1485, %v1484
        %v1505 = vpack.c.bf16 %v1487, %v1486
        %v1506 = vpack.c.bf16 %v1489, %v1488
        %v1507 = vpack.c.bf16 %v1491, %v1490
        %v1508 = vld [vmem:[#allocation2 + $0x8] sm:$0xff]
        %v1509 = vld [vmem:[#allocation2 + $0x10] sm:$0xff]
        %v1510 = vld [vmem:[#allocation2 + $0x18] sm:$0xff]
        %v1511 = vld [vmem:[#allocation2 + $0x20] sm:$0xff]
        %v1512 = vld [vmem:[#allocation2 + $0x28] sm:$0xff]
        %v1513 = vld [vmem:[#allocation2 + $0x30] sm:$0xff]
        %v1514 = vld [vmem:[#allocation2 + $0x38] sm:$0xff]
        %v1515 = vld [vmem:[#allocation2 + $0x40] sm:$0xff]
        %v1516 = vld [vmem:[#allocation2 + $0x48] sm:$0xff]
        %v1517 = vld [vmem:[#allocation2 + $0x50] sm:$0xff]
        %v1518 = vld [vmem:[#allocation2 + $0x58] sm:$0xff]
        %v1519 = vld [vmem:[#allocation2 + $0x60] sm:$0xff]
        %v1520 = vld [vmem:[#allocation2 + $0x68] sm:$0xff]
        %v1521 = vld [vmem:[#allocation2 + $0x70] sm:$0xff]
        %v1522 = vld [vmem:[#allocation2 + $0x78] sm:$0xff]
        %v1523 = vld [vmem:[#allocation2 + $0x80] sm:$0xff]
        %v1524 = vld [vmem:[#allocation2 + $0x88] sm:$0xff]
        %v1525 = vld [vmem:[#allocation2 + $0x90] sm:$0xff]
        %v1526 = vld [vmem:[#allocation2 + $0x98] sm:$0xff]
        %v1527 = vld [vmem:[#allocation2 + $0xa0] sm:$0xff]
        %v1528 = vld [vmem:[#allocation2 + $0xa8] sm:$0xff]
        %v1529 = vld [vmem:[#allocation2 + $0xb0] sm:$0xff]
        %v1530 = vld [vmem:[#allocation2 + $0xb8] sm:$0xff]
        %v1531 = vld [vmem:[#allocation2 + $0xc0] sm:$0xff]
        %v1532 = vld [vmem:[#allocation2 + $0xc8] sm:$0xff]
        %v1533 = vld [vmem:[#allocation2 + $0xd0] sm:$0xff]
        %v1534 = vld [vmem:[#allocation2 + $0xd8] sm:$0xff]
        %v1535 = vld [vmem:[#allocation2 + $0xe0] sm:$0xff]
        %v1536 = vld [vmem:[#allocation2 + $0xe8] sm:$0xff]
        %v1537 = vld [vmem:[#allocation2 + $0xf0] sm:$0xff]
        %v1538 = vld [vmem:[#allocation2 + $0xf8] sm:$0xff]
        %v1539 = vld [vmem:[#allocation2 + $0x100] sm:$0xff]
        %v1540 = vpack.c.bf16 %v1509, %v1508
        %v1541 = vpack.c.bf16 %v1511, %v1510
        %v1542 = vpack.c.bf16 %v1513, %v1512
        %v1543 = vpack.c.bf16 %v1515, %v1514
        %v1544 = vpack.c.bf16 %v1517, %v1516
        %v1545 = vpack.c.bf16 %v1519, %v1518
        %v1546 = vpack.c.bf16 %v1521, %v1520
        %v1547 = vpack.c.bf16 %v1523, %v1522
        %v1548 = vpack.c.bf16 %v1525, %v1524
        %v1549 = vpack.c.bf16 %v1527, %v1526
        %v1550 = vpack.c.bf16 %v1529, %v1528
        %v1551 = vpack.c.bf16 %v1531, %v1530
        %v1552 = vpack.c.bf16 %v1533, %v1532
        %v1553 = vpack.c.bf16 %v1535, %v1534
        %v1554 = vpack.c.bf16 %v1537, %v1536
        %v1555 = vpack.c.bf16 %v1539, %v1538
        %v1556 = vld [vmem:[#allocation8] sm:$0xf]
        %v1557 = vld [vmem:[#allocation8 + $0x4] sm:$0xf]
        %v1558 = vld [vmem:[#allocation8 + $0x8] sm:$0xf]
        %v1559 = vld [vmem:[#allocation8 + $0xc] sm:$0xf]
        %v1560 = vld [vmem:[#allocation8 + $0x10] sm:$0xf]
        %v1561 = vld [vmem:[#allocation8 + $0x14] sm:$0xf]
        %v1562 = vld [vmem:[#allocation8 + $0x18] sm:$0xf]
        %v1563 = vld [vmem:[#allocation8 + $0x1c] sm:$0xf]
        %v1564 = vld [vmem:[#allocation8 + $0x20] sm:$0xf]
        %v1565 = vld [vmem:[#allocation8 + $0x24] sm:$0xf]
        %v1566 = vld [vmem:[#allocation8 + $0x28] sm:$0xf]
        %v1567 = vld [vmem:[#allocation8 + $0x2c] sm:$0xf]
        %v1568 = vld [vmem:[#allocation8 + $0x30] sm:$0xf]
        %v1569 = vld [vmem:[#allocation8 + $0x34] sm:$0xf]
        %v1570 = vld [vmem:[#allocation8 + $0x38] sm:$0xf]
        %v1571 = vld [vmem:[#allocation8 + $0x3c] sm:$0xf]
        %v1572 = vld [vmem:[#allocation8 + $0x40] sm:$0xf]
        %v1573 = vld [vmem:[#allocation8 + $0x44] sm:$0xf]
        %v1574 = vld [vmem:[#allocation8 + $0x48] sm:$0xf]
        %v1575 = vld [vmem:[#allocation8 + $0x4c] sm:$0xf]
        %v1576 = vld [vmem:[#allocation8 + $0x50] sm:$0xf]
        %v1577 = vld [vmem:[#allocation8 + $0x54] sm:$0xf]
        %v1578 = vld [vmem:[#allocation8 + $0x58] sm:$0xf]
        %v1579 = vld [vmem:[#allocation8 + $0x5c] sm:$0xf]
        %v1580 = vld [vmem:[#allocation8 + $0x60] sm:$0xf]
        %v1581 = vld [vmem:[#allocation8 + $0x64] sm:$0xf]
        %v1582 = vld [vmem:[#allocation8 + $0x68] sm:$0xf]
        %v1583 = vld [vmem:[#allocation8 + $0x6c] sm:$0xf]
        %v1584 = vld [vmem:[#allocation8 + $0x70] sm:$0xf]
        %v1585 = vld [vmem:[#allocation8 + $0x74] sm:$0xf]
        %v1586 = vld [vmem:[#allocation8 + $0x78] sm:$0xf]
        %v1587 = vld [vmem:[#allocation8 + $0x7c] sm:$0xf]
        %v1588 = vld [vmem:[#allocation2 + $0x9] sm:$0xff]
        %v1589 = vld [vmem:[#allocation2 + $0x11] sm:$0xff]
        %v1590 = vld [vmem:[#allocation2 + $0x19] sm:$0xff]
        %v1591 = vld [vmem:[#allocation2 + $0x21] sm:$0xff]
        %v1592 = vld [vmem:[#allocation2 + $0x29] sm:$0xff]
        %v1593 = vld [vmem:[#allocation2 + $0x31] sm:$0xff]
        %v1594 = vld [vmem:[#allocation2 + $0x39] sm:$0xff]
        %v1595 = vld [vmem:[#allocation2 + $0x41] sm:$0xff]
        %v1596 = vld [vmem:[#allocation2 + $0x49] sm:$0xff]
        %v1597 = vld [vmem:[#allocation2 + $0x51] sm:$0xff]
        %v1598 = vld [vmem:[#allocation2 + $0x59] sm:$0xff]
        %v1599 = vld [vmem:[#allocation2 + $0x61] sm:$0xff]
        %v1600 = vld [vmem:[#allocation2 + $0x69] sm:$0xff]
        %v1601 = vld [vmem:[#allocation2 + $0x71] sm:$0xff]
        %v1602 = vld [vmem:[#allocation2 + $0x79] sm:$0xff]
        %v1603 = vld [vmem:[#allocation2 + $0x81] sm:$0xff]
        %v1604 = vld [vmem:[#allocation2 + $0x89] sm:$0xff]
        %v1605 = vld [vmem:[#allocation2 + $0x91] sm:$0xff]
        %v1606 = vld [vmem:[#allocation2 + $0x99] sm:$0xff]
        %v1607 = vld [vmem:[#allocation2 + $0xa1] sm:$0xff]
        %v1608 = vld [vmem:[#allocation2 + $0xa9] sm:$0xff]
        %v1609 = vld [vmem:[#allocation2 + $0xb1] sm:$0xff]
        %v1610 = vld [vmem:[#allocation2 + $0xb9] sm:$0xff]
        %v1611 = vld [vmem:[#allocation2 + $0xc1] sm:$0xff]
        %v1612 = vld [vmem:[#allocation2 + $0xc9] sm:$0xff]
        %v1613 = vld [vmem:[#allocation2 + $0xd1] sm:$0xff]
        %v1614 = vld [vmem:[#allocation2 + $0xd9] sm:$0xff]
        %v1615 = vld [vmem:[#allocation2 + $0xe1] sm:$0xff]
        %v1616 = vld [vmem:[#allocation2 + $0xe9] sm:$0xff]
        %v1617 = vld [vmem:[#allocation2 + $0xf1] sm:$0xff]
        %v1618 = vld [vmem:[#allocation2 + $0xf9] sm:$0xff]
        %v1619 = vld [vmem:[#allocation2 + $0x101] sm:$0xff]
        %v1620 = vmul.f32 %v1588, %v1396
        %v1621 = vmul.f32 %v1589, %v1397
        %v1622 = vmul.f32 %v1590, %v1398
        %v1623 = vmul.f32 %v1591, %v1399
        %v1624 = vmul.f32 %v1592, %v1400
        %v1625 = vmul.f32 %v1593, %v1401
        %v1626 = vmul.f32 %v1594, %v1402
        %v1627 = vmul.f32 %v1595, %v1403
        %v1628 = vmul.f32 %v1596, %v1404
        %v1629 = vmul.f32 %v1597, %v1405
        %v1630 = vmul.f32 %v1598, %v1406
        %v1631 = vmul.f32 %v1599, %v1407
        %v1632 = vmul.f32 %v1600, %v1408
        %v1633 = vmul.f32 %v1601, %v1409
        %v1634 = vmul.f32 %v1602, %v1410
        %v1635 = vmul.f32 %v1603, %v1411
        %v1636 = vmul.f32 %v1604, %v1412
        %v1637 = vmul.f32 %v1605, %v1413
        %v1638 = vmul.f32 %v1606, %v1414
        %v1639 = vmul.f32 %v1607, %v1415
        %v1640 = vmul.f32 %v1608, %v1416
        %v1641 = vmul.f32 %v1609, %v1417
        %v1642 = vmul.f32 %v1610, %v1418
        %v1643 = vmul.f32 %v1611, %v1419
        %v1644 = vmul.f32 %v1612, %v1420
        %v1645 = vmul.f32 %v1613, %v1421
        %v1646 = vmul.f32 %v1614, %v1422
        %v1647 = vmul.f32 %v1615, %v1423
        %v1648 = vmul.f32 %v1616, %v1424
        %v1649 = vmul.f32 %v1617, %v1425
        %v1650 = vmul.f32 %v1618, %v1426
        %v1651 = vmul.f32 %v1619, %v1427
        %v1652 = vpack.c.bf16 %v1621, %v1620
        %v1653 = vpack.c.bf16 %v1623, %v1622
        %v1654 = vpack.c.bf16 %v1625, %v1624
        %v1655 = vpack.c.bf16 %v1627, %v1626
        %v1656 = vpack.c.bf16 %v1629, %v1628
        %v1657 = vpack.c.bf16 %v1631, %v1630
        %v1658 = vpack.c.bf16 %v1633, %v1632
        %v1659 = vpack.c.bf16 %v1635, %v1634
        %v1660 = vpack.c.bf16 %v1637, %v1636
        %v1661 = vpack.c.bf16 %v1639, %v1638
        %v1662 = vpack.c.bf16 %v1641, %v1640
        %v1663 = vpack.c.bf16 %v1643, %v1642
        %v1664 = vpack.c.bf16 %v1645, %v1644
        %v1665 = vpack.c.bf16 %v1647, %v1646
        %v1666 = vpack.c.bf16 %v1649, %v1648
        %v1667 = vpack.c.bf16 %v1651, %v1650
        %v1668 = vld [vmem:[#allocation2 + $0x107] sm:$0xff]
        %v1669 = vld [vmem:[#allocation2 + $0x10f] sm:$0xff]
        %v1670 = vmul.f32 %v1430, %v1300
        %v1671 = vmul.f32 %v1431, %v1301
        %v1672 = vmul.f32 %v1432, %v1302
        %v1673 = vmul.f32 %v1433, %v1303
        %v1674 = vmul.f32 %v1434, %v1304
        %v1675 = vmul.f32 %v1435, %v1305
        %v1676 = vmul.f32 %v1436, %v1306
        %v1677 = vmul.f32 %v1437, %v1307
        %v1678 = vmul.f32 %v1438, %v1308
        %v1679 = vmul.f32 %v1439, %v1309
        %v1680 = vmul.f32 %v1440, %v1310
        %v1681 = vmul.f32 %v1441, %v1311
        %v1682 = vmul.f32 %v1442, %v1312
        %v1683 = vmul.f32 %v1443, %v1313
        %v1684 = vmul.f32 %v1444, %v1314
        %v1685 = vmul.f32 %v1445, %v1315
        %v1686 = vmul.f32 %v1446, %v1316
        %v1687 = vmul.f32 %v1447, %v1317
        %v1688 = vmul.f32 %v1448, %v1318
        %v1689 = vmul.f32 %v1449, %v1319
        %v1690 = vmul.f32 %v1450, %v1320
        %v1691 = vmul.f32 %v1451, %v1321
        %v1692 = vmul.f32 %v1452, %v1322
        %v1693 = vmul.f32 %v1453, %v1323
        %v1694 = vmul.f32 %v1454, %v1324
        %v1695 = vmul.f32 %v1455, %v1325
        %v1696 = vmul.f32 %v1456, %v1326
        %v1697 = vmul.f32 %v1457, %v1327
        %v1698 = vmul.f32 %v1458, %v1328
        %v1699 = vmul.f32 %v1459, %v1329
        %v1700 = vmul.f32 %v1668, %v1330
        %v1701 = vmul.f32 %v1669, %v1331
        %v1702 = vpack.c.bf16 %v1671, %v1670
        %v1703 = vpack.c.bf16 %v1673, %v1672
        %v1704 = vpack.c.bf16 %v1675, %v1674
        %v1705 = vpack.c.bf16 %v1677, %v1676
        %v1706 = vpack.c.bf16 %v1679, %v1678
        %v1707 = vpack.c.bf16 %v1681, %v1680
        %v1708 = vpack.c.bf16 %v1683, %v1682
        %v1709 = vpack.c.bf16 %v1685, %v1684
        %v1710 = vpack.c.bf16 %v1687, %v1686
        %v1711 = vpack.c.bf16 %v1689, %v1688
        %v1712 = vpack.c.bf16 %v1691, %v1690
        %v1713 = vpack.c.bf16 %v1693, %v1692
        %v1714 = vpack.c.bf16 %v1695, %v1694
        %v1715 = vpack.c.bf16 %v1697, %v1696
        %v1716 = vpack.c.bf16 %v1699, %v1698
        %v1717 = vpack.c.bf16 %v1701, %v1700
        %v1718 = vld [vmem:[#allocation8 + $0x80] sm:$0xf]
        %v1719 = vld [vmem:[#allocation8 + $0x84] sm:$0xf]
        %v1720 = vld [vmem:[#allocation8 + $0x88] sm:$0xf]
        %v1721 = vld [vmem:[#allocation8 + $0x8c] sm:$0xf]
        %v1722 = vld [vmem:[#allocation8 + $0x90] sm:$0xf]
        %v1723 = vld [vmem:[#allocation8 + $0x94] sm:$0xf]
        %v1724 = vld [vmem:[#allocation8 + $0x98] sm:$0xf]
        %v1725 = vld [vmem:[#allocation8 + $0x9c] sm:$0xf]
        %v1726 = vld [vmem:[#allocation8 + $0xa0] sm:$0xf]
        %v1727 = vld [vmem:[#allocation8 + $0xa4] sm:$0xf]
        %v1728 = vld [vmem:[#allocation8 + $0xa8] sm:$0xf]
        %v1729 = vld [vmem:[#allocation8 + $0xac] sm:$0xf]
        %v1730 = vld [vmem:[#allocation8 + $0xb0] sm:$0xf]
        %v1731 = vld [vmem:[#allocation8 + $0xb4] sm:$0xf]
        %v1732 = vld [vmem:[#allocation8 + $0xb8] sm:$0xf]
        %v1733 = vld [vmem:[#allocation8 + $0xbc] sm:$0xf]
        %v1734 = vld [vmem:[#allocation8 + $0xc0] sm:$0xf]
        %v1735 = vld [vmem:[#allocation8 + $0xc4] sm:$0xf]
        %v1736 = vld [vmem:[#allocation8 + $0xc8] sm:$0xf]
        %v1737 = vld [vmem:[#allocation8 + $0xcc] sm:$0xf]
        %v1738 = vld [vmem:[#allocation8 + $0xd0] sm:$0xf]
        %v1739 = vld [vmem:[#allocation8 + $0xd4] sm:$0xf]
        %v1740 = vld [vmem:[#allocation8 + $0xd8] sm:$0xf]
        %v1741 = vld [vmem:[#allocation8 + $0xdc] sm:$0xf]
        %v1742 = vld [vmem:[#allocation8 + $0xe0] sm:$0xf]
        %v1743 = vld [vmem:[#allocation8 + $0xe4] sm:$0xf]
        %v1744 = vld [vmem:[#allocation8 + $0xe8] sm:$0xf]
        %v1745 = vld [vmem:[#allocation8 + $0xec] sm:$0xf]
        %v1746 = vld [vmem:[#allocation8 + $0xf0] sm:$0xf]
        %v1747 = vld [vmem:[#allocation8 + $0xf4] sm:$0xf]
        %v1748 = vld [vmem:[#allocation8 + $0xf8] sm:$0xf]
        %v1749 = vld [vmem:[#allocation8 + $0xfc] sm:$0xf]
        %v1782 = vunpack.c.l.b16 %v1718
        %v1783 = vunpack.c.l.b16 %v1719
        %v1784 = vunpack.c.l.b16 %v1720
        %v1785 = vunpack.c.l.b16 %v1721
        %v1786 = vunpack.c.l.b16 %v1722
        %v1787 = vunpack.c.l.b16 %v1723
        %v1788 = vunpack.c.l.b16 %v1724
        %v1789 = vunpack.c.l.b16 %v1725
        %v1790 = vunpack.c.l.b16 %v1726
        %v1791 = vunpack.c.l.b16 %v1727
        %v1792 = vunpack.c.l.b16 %v1728
        %v1793 = vunpack.c.l.b16 %v1729
        %v1794 = vunpack.c.l.b16 %v1730
        %v1795 = vunpack.c.l.b16 %v1731
        %v1796 = vunpack.c.l.b16 %v1732
        %v1797 = vunpack.c.l.b16 %v1733
        %v1798 = vunpack.c.l.b16 %v1734
        %v1799 = vunpack.c.l.b16 %v1735
        %v1800 = vunpack.c.l.b16 %v1736
        %v1801 = vunpack.c.l.b16 %v1737
        %v1802 = vunpack.c.l.b16 %v1738
        %v1803 = vunpack.c.l.b16 %v1739
        %v1804 = vunpack.c.l.b16 %v1740
        %v1805 = vunpack.c.l.b16 %v1741
        %v1806 = vunpack.c.l.b16 %v1742
        %v1807 = vunpack.c.l.b16 %v1743
        %v1808 = vunpack.c.l.b16 %v1744
        %v1809 = vunpack.c.l.b16 %v1745
        %v1810 = vunpack.c.l.b16 %v1746
        %v1811 = vunpack.c.l.b16 %v1747
        %v1812 = vunpack.c.l.b16 %v1748
        %v1813 = vunpack.c.l.b16 %v1749
        %v1814 = vpack.c.b16 %v1783, %v1782
        %v1815 = vpack.c.b16 %v1785, %v1784
        %v1816 = vpack.c.b16 %v1787, %v1786
        %v1817 = vpack.c.b16 %v1789, %v1788
        %v1818 = vpack.c.b16 %v1791, %v1790
        %v1819 = vpack.c.b16 %v1793, %v1792
        %v1820 = vpack.c.b16 %v1795, %v1794
        %v1821 = vpack.c.b16 %v1797, %v1796
        %v1822 = vpack.c.b16 %v1799, %v1798
        %v1823 = vpack.c.b16 %v1801, %v1800
        %v1824 = vpack.c.b16 %v1803, %v1802
        %v1825 = vpack.c.b16 %v1805, %v1804
        %v1826 = vpack.c.b16 %v1807, %v1806
        %v1827 = vpack.c.b16 %v1809, %v1808
        %v1828 = vpack.c.b16 %v1811, %v1810
        %v1829 = vpack.c.b16 %v1813, %v1812
        %1846 = vmatprep.subr.bf16.mxu0 0
        %1847 = vmatpush1.bf16.msra.mxu0 %v1814
        %1848 = vmatprep.subr.bf16.mxu0 0
        %1849 = vmatpush1.bf16.msra.mxu0 %v1815
        %1850 = vmatprep.subr.bf16.mxu0 0
        %1851 = vmatpush1.bf16.msra.mxu0 %v1816
        %1852 = vmatprep.subr.bf16.mxu0 0
        %1853 = vmatpush1.bf16.msra.mxu0 %v1817
        %1854 = vmatprep.subr.bf16.mxu0 0
        %1855 = vmatpush1.bf16.msra.mxu0 %v1818
        %1856 = vmatprep.subr.bf16.mxu0 0
        %1857 = vmatpush1.bf16.msra.mxu0 %v1819
        %1858 = vmatprep.subr.bf16.mxu0 0
        %1859 = vmatpush1.bf16.msra.mxu0 %v1820
        %1860 = vmatprep.subr.bf16.mxu0 0
        %1861 = vmatpush1.bf16.msra.mxu0 %v1821
        %1862 = vmatprep.subr.bf16.mxu0 0
        %1863 = vmatpush1.bf16.msra.mxu0 %v1822
        %1864 = vmatprep.subr.bf16.mxu0 0
        %1865 = vmatpush1.bf16.msra.mxu0 %v1823
        %1866 = vmatprep.subr.bf16.mxu0 0
        %1867 = vmatpush1.bf16.msra.mxu0 %v1824
        %1868 = vmatprep.subr.bf16.mxu0 0
        %1869 = vmatpush1.bf16.msra.mxu0 %v1825
        %1870 = vmatprep.subr.bf16.mxu0 0
        %1871 = vmatpush1.bf16.msra.mxu0 %v1826
        %1872 = vmatprep.subr.bf16.mxu0 0
        %1873 = vmatpush1.bf16.msra.mxu0 %v1827
        %1874 = vmatprep.subr.bf16.mxu0 0
        %1875 = vmatpush1.bf16.msra.mxu0 %v1828
        %1876 = vmatprep.subr.bf16.mxu0 0
        %1877 = vmatpush1.bf16.msra.mxu0 %v1829
        %1878 = vmatprep.mubr.bf16.mxu0 %v1702
        %1879 = vmatmul.mubr.bf16.gmra.mrb[0].mxu0 %v1652
        %v1880 = vpop.f32.mrb[0].mxu0
        %v1881 = vadd.f32 0.0, %v1880
        %v1882 = vpop.f32.mrb[0].mxu0
        %v1883 = vpop.f32.mrb[0].mxu0
        %v1884 = vadd.f32 0.0, %v1883
        %v1885 = vpop.f32.mrb[0].mxu0
        %1886 = vmatprep.mubr.bf16.mxu0 %v1703
        %1887 = vmatmul.mubr.bf16.gmra.mrb[0].mxu0 %v1653
        %v1888 = vpop.f32.mrb[0].mxu0
        %v1889 = vadd.f32 0.0, %v1888
        %v1890 = vpop.f32.mrb[0].mxu0
        %v1891 = vpop.f32.mrb[0].mxu0
        %v1892 = vadd.f32 0.0, %v1891
        %v1893 = vpop.f32.mrb[0].mxu0
        %1894 = vmatprep.mubr.bf16.mxu0 %v1704
        %1895 = vmatmul.mubr.bf16.gmra.mrb[0].mxu0 %v1654
        %v1896 = vpop.f32.mrb[0].mxu0
        %v1897 = vadd.f32 0.0, %v1896
        %v1898 = vpop.f32.mrb[0].mxu0
        %v1899 = vpop.f32.mrb[0].mxu0
        %v1900 = vadd.f32 0.0, %v1899
        %v1901 = vpop.f32.mrb[0].mxu0
        %1902 = vmatprep.mubr.bf16.mxu0 %v1705
        %1903 = vmatmul.mubr.bf16.gmra.mrb[0].mxu0 %v1655
        %v1904 = vpop.f32.mrb[0].mxu0
        %v1905 = vadd.f32 0.0, %v1904
        %v1906 = vpop.f32.mrb[0].mxu0
        %v1907 = vpop.f32.mrb[0].mxu0
        %v1908 = vadd.f32 0.0, %v1907
        %v1909 = vpop.f32.mrb[0].mxu0
        %1910 = vmatprep.mubr.bf16.mxu0 %v1706
        %1911 = vmatmul.mubr.bf16.gmra.mrb[0].mxu0 %v1656
        %v1912 = vpop.f32.mrb[0].mxu0
        %v1913 = vadd.f32 0.0, %v1912
        %v1914 = vpop.f32.mrb[0].mxu0
        %v1915 = vpop.f32.mrb[0].mxu0
        %v1916 = vadd.f32 0.0, %v1915
        %v1917 = vpop.f32.mrb[0].mxu0
        %1918 = vmatprep.mubr.bf16.mxu0 %v1707
        %1919 = vmatmul.mubr.bf16.gmra.mrb[0].mxu0 %v1657
        %v1920 = vpop.f32.mrb[0].mxu0
        %v1921 = vadd.f32 0.0, %v1920
        %v1922 = vpop.f32.mrb[0].mxu0
        %v1923 = vpop.f32.mrb[0].mxu0
        %v1924 = vadd.f32 0.0, %v1923
        %v1925 = vpop.f32.mrb[0].mxu0
        %1926 = vmatprep.mubr.bf16.mxu0 %v1708
        %1927 = vmatmul.mubr.bf16.gmra.mrb[0].mxu0 %v1658
        %v1928 = vpop.f32.mrb[0].mxu0
        %v1929 = vadd.f32 0.0, %v1928
        %v1930 = vpop.f32.mrb[0].mxu0
        %v1931 = vpop.f32.mrb[0].mxu0
        %v1932 = vadd.f32 0.0, %v1931
        %v1933 = vpop.f32.mrb[0].mxu0
        %1934 = vmatprep.mubr.bf16.mxu0 %v1709
        %1935 = vmatmul.mubr.bf16.gmra.mrb[0].mxu0 %v1659
        %v1936 = vpop.f32.mrb[0].mxu0
        %v1937 = vadd.f32 0.0, %v1936
        %v1938 = vpop.f32.mrb[0].mxu0
        %v1939 = vpop.f32.mrb[0].mxu0
        %v1940 = vadd.f32 0.0, %v1939
        %v1941 = vpop.f32.mrb[0].mxu0
        %1942 = vmatprep.mubr.bf16.mxu0 %v1710
        %1943 = vmatmul.mubr.bf16.gmra.mrb[0].mxu0 %v1660
        %v1944 = vpop.f32.mrb[0].mxu0
        %v1945 = vadd.f32 0.0, %v1944
        %v1946 = vpop.f32.mrb[0].mxu0
        %v1947 = vpop.f32.mrb[0].mxu0
        %v1948 = vadd.f32 0.0, %v1947
        %v1949 = vpop.f32.mrb[0].mxu0
        %1950 = vmatprep.mubr.bf16.mxu0 %v1711
        %1951 = vmatmul.mubr.bf16.gmra.mrb[0].mxu0 %v1661
        %v1952 = vpop.f32.mrb[0].mxu0
        %v1953 = vadd.f32 0.0, %v1952
        %v1954 = vpop.f32.mrb[0].mxu0
        %v1955 = vpop.f32.mrb[0].mxu0
        %v1956 = vadd.f32 0.0, %v1955
        %v1957 = vpop.f32.mrb[0].mxu0
        %1958 = vmatprep.mubr.bf16.mxu0 %v1712
        %1959 = vmatmul.mubr.bf16.gmra.mrb[0].mxu0 %v1662
        %v1960 = vpop.f32.mrb[0].mxu0
        %v1961 = vadd.f32 0.0, %v1960
        %v1962 = vpop.f32.mrb[0].mxu0
        %v1963 = vpop.f32.mrb[0].mxu0
        %v1964 = vadd.f32 0.0, %v1963
        %v1965 = vpop.f32.mrb[0].mxu0
        %1966 = vmatprep.mubr.bf16.mxu0 %v1713
        %1967 = vmatmul.mubr.bf16.gmra.mrb[0].mxu0 %v1663
        %v1968 = vpop.f32.mrb[0].mxu0
        %v1969 = vadd.f32 0.0, %v1968
        %v1970 = vpop.f32.mrb[0].mxu0
        %v1971 = vpop.f32.mrb[0].mxu0
        %v1972 = vadd.f32 0.0, %v1971
        %v1973 = vpop.f32.mrb[0].mxu0
        %1974 = vmatprep.mubr.bf16.mxu0 %v1714
        %1975 = vmatmul.mubr.bf16.gmra.mrb[0].mxu0 %v1664
        %v1976 = vpop.f32.mrb[0].mxu0
        %v1977 = vadd.f32 0.0, %v1976
        %v1978 = vpop.f32.mrb[0].mxu0
        %v1979 = vpop.f32.mrb[0].mxu0
        %v1980 = vadd.f32 0.0, %v1979
        %v1981 = vpop.f32.mrb[0].mxu0
        %1982 = vmatprep.mubr.bf16.mxu0 %v1715
        %1983 = vmatmul.mubr.bf16.gmra.mrb[0].mxu0 %v1665
        %v1984 = vpop.f32.mrb[0].mxu0
        %v1985 = vadd.f32 0.0, %v1984
        %v1986 = vpop.f32.mrb[0].mxu0
        %v1987 = vpop.f32.mrb[0].mxu0
        %v1988 = vadd.f32 0.0, %v1987
        %v1989 = vpop.f32.mrb[0].mxu0
        %1990 = vmatprep.mubr.bf16.mxu0 %v1716
        %1991 = vmatmul.mubr.bf16.gmra.mrb[0].mxu0 %v1666
        %v1992 = vpop.f32.mrb[0].mxu0
        %v1993 = vadd.f32 0.0, %v1992
        %v1994 = vpop.f32.mrb[0].mxu0
        %v1995 = vpop.f32.mrb[0].mxu0
        %v1996 = vadd.f32 0.0, %v1995
        %v1997 = vpop.f32.mrb[0].mxu0
        %1998 = vmatprep.mubr.bf16.mxu0 %v1717
        %1999 = vmatmul.mubr.bf16.gmra.mrb[0].mxu0 %v1667
        %v2000 = vpop.f32.mrb[0].mxu0
        %v2001 = vadd.f32 0.0, %v2000
        %v2002 = vpop.f32.mrb[0].mxu0
        %v2003 = vpop.f32.mrb[0].mxu0
        %v2004 = vadd.f32 0.0, %v2003
        %v2005 = vpop.f32.mrb[0].mxu0
        %2006 = vdwg.mxu0
        %v2039 = vunpack.c.l.b16 %v1556
        %v2040 = vunpack.c.l.b16 %v1557
        %v2041 = vunpack.c.l.b16 %v1558
        %v2042 = vunpack.c.l.b16 %v1559
        %v2043 = vunpack.c.l.b16 %v1560
        %v2044 = vunpack.c.l.b16 %v1561
        %v2045 = vunpack.c.l.b16 %v1562
        %v2046 = vunpack.c.l.b16 %v1563
        %v2047 = vunpack.c.l.b16 %v1564
        %v2048 = vunpack.c.l.b16 %v1565
        %v2049 = vunpack.c.l.b16 %v1566
        %v2050 = vunpack.c.l.b16 %v1567
        %v2051 = vunpack.c.l.b16 %v1568
        %v2052 = vunpack.c.l.b16 %v1569
        %v2053 = vunpack.c.l.b16 %v1570
        %v2054 = vunpack.c.l.b16 %v1571
        %v2055 = vunpack.c.l.b16 %v1572
        %v2056 = vunpack.c.l.b16 %v1573
        %v2057 = vunpack.c.l.b16 %v1574
        %v2058 = vunpack.c.l.b16 %v1575
        %v2059 = vunpack.c.l.b16 %v1576
        %v2060 = vunpack.c.l.b16 %v1577
        %v2061 = vunpack.c.l.b16 %v1578
        %v2062 = vunpack.c.l.b16 %v1579
        %v2063 = vunpack.c.l.b16 %v1580
        %v2064 = vunpack.c.l.b16 %v1581
        %v2065 = vunpack.c.l.b16 %v1582
        %v2066 = vunpack.c.l.b16 %v1583
        %v2067 = vunpack.c.l.b16 %v1584
        %v2068 = vunpack.c.l.b16 %v1585
        %v2069 = vunpack.c.l.b16 %v1586
        %v2070 = vunpack.c.l.b16 %v1587
        %v2071 = vpack.c.b16 %v2040, %v2039
        %v2072 = vpack.c.b16 %v2042, %v2041
        %v2073 = vpack.c.b16 %v2044, %v2043
        %v2074 = vpack.c.b16 %v2046, %v2045
        %v2075 = vpack.c.b16 %v2048, %v2047
        %v2076 = vpack.c.b16 %v2050, %v2049
        %v2077 = vpack.c.b16 %v2052, %v2051
        %v2078 = vpack.c.b16 %v2054, %v2053
        %v2079 = vpack.c.b16 %v2056, %v2055
        %v2080 = vpack.c.b16 %v2058, %v2057
        %v2081 = vpack.c.b16 %v2060, %v2059
        %v2082 = vpack.c.b16 %v2062, %v2061
        %v2083 = vpack.c.b16 %v2064, %v2063
        %v2084 = vpack.c.b16 %v2066, %v2065
        %v2085 = vpack.c.b16 %v2068, %v2067
        %v2086 = vpack.c.b16 %v2070, %v2069
        %2103 = vmatprep.subr.bf16.mxu0 0
        %2104 = vmatpush1.bf16.msra.mxu0 %v2071
        %2105 = vmatprep.subr.bf16.mxu0 0
        %2106 = vmatpush1.bf16.msra.mxu0 %v2072
        %2107 = vmatprep.subr.bf16.mxu0 0
        %2108 = vmatpush1.bf16.msra.mxu0 %v2073
        %2109 = vmatprep.subr.bf16.mxu0 0
        %2110 = vmatpush1.bf16.msra.mxu0 %v2074
        %2111 = vmatprep.subr.bf16.mxu0 0
        %2112 = vmatpush1.bf16.msra.mxu0 %v2075
        %2113 = vmatprep.subr.bf16.mxu0 0
        %2114 = vmatpush1.bf16.msra.mxu0 %v2076
        %2115 = vmatprep.subr.bf16.mxu0 0
        %2116 = vmatpush1.bf16.msra.mxu0 %v2077
        %2117 = vmatprep.subr.bf16.mxu0 0
        %2118 = vmatpush1.bf16.msra.mxu0 %v2078
        %2119 = vmatprep.subr.bf16.mxu0 0
        %2120 = vmatpush1.bf16.msra.mxu0 %v2079
        %2121 = vmatprep.subr.bf16.mxu0 0
        %2122 = vmatpush1.bf16.msra.mxu0 %v2080
        %2123 = vmatprep.subr.bf16.mxu0 0
        %2124 = vmatpush1.bf16.msra.mxu0 %v2081
        %2125 = vmatprep.subr.bf16.mxu0 0
        %2126 = vmatpush1.bf16.msra.mxu0 %v2082
        %2127 = vmatprep.subr.bf16.mxu0 0
        %2128 = vmatpush1.bf16.msra.mxu0 %v2083
        %2129 = vmatprep.subr.bf16.mxu0 0
        %2130 = vmatpush1.bf16.msra.mxu0 %v2084
        %2131 = vmatprep.subr.bf16.mxu0 0
        %2132 = vmatpush1.bf16.msra.mxu0 %v2085
        %2133 = vmatprep.subr.bf16.mxu0 0
        %2134 = vmatpush1.bf16.msra.mxu0 %v2086
        %2135 = vmatprep.mubr.bf16.mxu0 %v1540
        %2136 = vmatmul.mubr.bf16.gmra.mrb[0].mxu0 %v1492
        %v2137 = vpop.f32.mrb[0].mxu0
        %v2138 = vadd.f32 %v1881, %v2137
        %v2139 = vpop.f32.mrb[0].mxu0
        %v2140 = vpop.f32.mrb[0].mxu0
        %v2141 = vadd.f32 %v1884, %v2140
        %v2142 = vpop.f32.mrb[0].mxu0
        %2143 = vmatprep.mubr.bf16.mxu0 %v1541
        %2144 = vmatmul.mubr.bf16.gmra.mrb[0].mxu0 %v1493
        %v2145 = vpop.f32.mrb[0].mxu0
        %v2146 = vadd.f32 %v1889, %v2145
        %v2147 = vpop.f32.mrb[0].mxu0
        %v2148 = vpop.f32.mrb[0].mxu0
        %v2149 = vadd.f32 %v1892, %v2148
        %v2150 = vpop.f32.mrb[0].mxu0
        %2151 = vmatprep.mubr.bf16.mxu0 %v1542
        %2152 = vmatmul.mubr.bf16.gmra.mrb[0].mxu0 %v1494
        %v2153 = vpop.f32.mrb[0].mxu0
        %v2154 = vadd.f32 %v1897, %v2153
        %v2155 = vpop.f32.mrb[0].mxu0
        %v2156 = vpop.f32.mrb[0].mxu0
        %v2157 = vadd.f32 %v1900, %v2156
        %v2158 = vpop.f32.mrb[0].mxu0
        %2159 = vmatprep.mubr.bf16.mxu0 %v1543
        %2160 = vmatmul.mubr.bf16.gmra.mrb[0].mxu0 %v1495
        %v2161 = vpop.f32.mrb[0].mxu0
        %v2162 = vadd.f32 %v1905, %v2161
        %v2163 = vpop.f32.mrb[0].mxu0
        %v2164 = vpop.f32.mrb[0].mxu0
        %v2165 = vadd.f32 %v1908, %v2164
        %v2166 = vpop.f32.mrb[0].mxu0
        %2167 = vmatprep.mubr.bf16.mxu0 %v1544
        %2168 = vmatmul.mubr.bf16.gmra.mrb[0].mxu0 %v1496
        %v2169 = vpop.f32.mrb[0].mxu0
        %v2170 = vadd.f32 %v1913, %v2169
        %v2171 = vpop.f32.mrb[0].mxu0
        %v2172 = vpop.f32.mrb[0].mxu0
        %v2173 = vadd.f32 %v1916, %v2172
        %v2174 = vpop.f32.mrb[0].mxu0
        %2175 = vmatprep.mubr.bf16.mxu0 %v1545
        %2176 = vmatmul.mubr.bf16.gmra.mrb[0].mxu0 %v1497
        %v2177 = vpop.f32.mrb[0].mxu0
        %v2178 = vadd.f32 %v1921, %v2177
        %v2179 = vpop.f32.mrb[0].mxu0
        %v2180 = vpop.f32.mrb[0].mxu0
        %v2181 = vadd.f32 %v1924, %v2180
        %v2182 = vpop.f32.mrb[0].mxu0
        %2183 = vmatprep.mubr.bf16.mxu0 %v1546
        %2184 = vmatmul.mubr.bf16.gmra.mrb[0].mxu0 %v1498
        %v2185 = vpop.f32.mrb[0].mxu0
        %v2186 = vadd.f32 %v1929, %v2185
        %v2187 = vpop.f32.mrb[0].mxu0
        %v2188 = vpop.f32.mrb[0].mxu0
        %v2189 = vadd.f32 %v1932, %v2188
        %v2190 = vpop.f32.mrb[0].mxu0
        %2191 = vmatprep.mubr.bf16.mxu0 %v1547
        %2192 = vmatmul.mubr.bf16.gmra.mrb[0].mxu0 %v1499
        %v2193 = vpop.f32.mrb[0].mxu0
        %v2194 = vadd.f32 %v1937, %v2193
        %v2195 = vpop.f32.mrb[0].mxu0
        %v2196 = vpop.f32.mrb[0].mxu0
        %v2197 = vadd.f32 %v1940, %v2196
        %v2198 = vpop.f32.mrb[0].mxu0
        %2199 = vmatprep.mubr.bf16.mxu0 %v1548
        %2200 = vmatmul.mubr.bf16.gmra.mrb[0].mxu0 %v1500
        %v2201 = vpop.f32.mrb[0].mxu0
        %v2202 = vadd.f32 %v1945, %v2201
        %v2203 = vpop.f32.mrb[0].mxu0
        %v2204 = vpop.f32.mrb[0].mxu0
        %v2205 = vadd.f32 %v1948, %v2204
        %v2206 = vpop.f32.mrb[0].mxu0
        %2207 = vmatprep.mubr.bf16.mxu0 %v1549
        %2208 = vmatmul.mubr.bf16.gmra.mrb[0].mxu0 %v1501
        %v2209 = vpop.f32.mrb[0].mxu0
        %v2210 = vadd.f32 %v1953, %v2209
        %v2211 = vpop.f32.mrb[0].mxu0
        %v2212 = vpop.f32.mrb[0].mxu0
        %v2213 = vadd.f32 %v1956, %v2212
        %v2214 = vpop.f32.mrb[0].mxu0
        %2215 = vmatprep.mubr.bf16.mxu0 %v1550
        %2216 = vmatmul.mubr.bf16.gmra.mrb[0].mxu0 %v1502
        %v2217 = vpop.f32.mrb[0].mxu0
        %v2218 = vadd.f32 %v1961, %v2217
        %v2219 = vpop.f32.mrb[0].mxu0
        %v2220 = vpop.f32.mrb[0].mxu0
        %v2221 = vadd.f32 %v1964, %v2220
        %v2222 = vpop.f32.mrb[0].mxu0
        %2223 = vmatprep.mubr.bf16.mxu0 %v1551
        %2224 = vmatmul.mubr.bf16.gmra.mrb[0].mxu0 %v1503
        %v2225 = vpop.f32.mrb[0].mxu0
        %v2226 = vadd.f32 %v1969, %v2225
        %v2227 = vpop.f32.mrb[0].mxu0
        %v2228 = vpop.f32.mrb[0].mxu0
        %v2229 = vadd.f32 %v1972, %v2228
        %v2230 = vpop.f32.mrb[0].mxu0
        %2231 = vmatprep.mubr.bf16.mxu0 %v1552
        %2232 = vmatmul.mubr.bf16.gmra.mrb[0].mxu0 %v1504
        %v2233 = vpop.f32.mrb[0].mxu0
        %v2234 = vadd.f32 %v1977, %v2233
        %v2235 = vpop.f32.mrb[0].mxu0
        %v2236 = vpop.f32.mrb[0].mxu0
        %v2237 = vadd.f32 %v1980, %v2236
        %v2238 = vpop.f32.mrb[0].mxu0
        %2239 = vmatprep.mubr.bf16.mxu0 %v1553
        %2240 = vmatmul.mubr.bf16.gmra.mrb[0].mxu0 %v1505
        %v2241 = vpop.f32.mrb[0].mxu0
        %v2242 = vadd.f32 %v1985, %v2241
        %v2243 = vpop.f32.mrb[0].mxu0
        %v2244 = vpop.f32.mrb[0].mxu0
        %v2245 = vadd.f32 %v1988, %v2244
        %v2246 = vpop.f32.mrb[0].mxu0
        %2247 = vmatprep.mubr.bf16.mxu0 %v1554
        %2248 = vmatmul.mubr.bf16.gmra.mrb[0].mxu0 %v1506
        %v2249 = vpop.f32.mrb[0].mxu0
        %v2250 = vadd.f32 %v1993, %v2249
        %v2251 = vpop.f32.mrb[0].mxu0
        %v2252 = vpop.f32.mrb[0].mxu0
        %v2253 = vadd.f32 %v1996, %v2252
        %v2254 = vpop.f32.mrb[0].mxu0
        %2255 = vmatprep.mubr.bf16.mxu0 %v1555
        %2256 = vmatmul.mubr.bf16.gmra.mrb[0].mxu0 %v1507
        %v2257 = vpop.f32.mrb[0].mxu0
        %v2258 = vadd.f32 %v2001, %v2257
        %v2259 = vpop.f32.mrb[0].mxu0
        %v2260 = vpop.f32.mrb[0].mxu0
        %v2261 = vadd.f32 %v2004, %v2260
        %v2262 = vpop.f32.mrb[0].mxu0
        %2263 = vdwg.mxu0
        %v2264 = vld [vmem:[#allocation2 + $0x18] sm:$0xff]
        %v2265 = vld [vmem:[#allocation2 + $0x20] sm:$0xff]
        %v2266 = vld [vmem:[#allocation2 + $0x28] sm:$0xff]
        %v2267 = vld [vmem:[#allocation2 + $0x30] sm:$0xff]
        %v2268 = vld [vmem:[#allocation2 + $0x38] sm:$0xff]
        %v2269 = vld [vmem:[#allocation2 + $0x40] sm:$0xff]
        %v2270 = vld [vmem:[#allocation2 + $0x48] sm:$0xff]
        %v2271 = vld [vmem:[#allocation2 + $0x50] sm:$0xff]
        %v2272 = vld [vmem:[#allocation2 + $0x58] sm:$0xff]
        %v2273 = vld [vmem:[#allocation2 + $0x60] sm:$0xff]
        %v2274 = vld [vmem:[#allocation2 + $0x68] sm:$0xff]
        %v2275 = vld [vmem:[#allocation2 + $0x70] sm:$0xff]
        %v2276 = vld [vmem:[#allocation2 + $0x78] sm:$0xff]
        %v2277 = vld [vmem:[#allocation2 + $0x80] sm:$0xff]
        %v2278 = vld [vmem:[#allocation2 + $0x88] sm:$0xff]
        %v2279 = vld [vmem:[#allocation2 + $0x90] sm:$0xff]
        %v2280 = vld [vmem:[#allocation2 + $0x98] sm:$0xff]
        %v2281 = vld [vmem:[#allocation2 + $0xa0] sm:$0xff]
        %v2282 = vld [vmem:[#allocation2 + $0xa8] sm:$0xff]
        %v2283 = vld [vmem:[#allocation2 + $0xb0] sm:$0xff]
        %v2284 = vld [vmem:[#allocation2 + $0xb8] sm:$0xff]
        %v2285 = vld [vmem:[#allocation2 + $0xc0] sm:$0xff]
        %v2286 = vld [vmem:[#allocation2 + $0xc8] sm:$0xff]
        %v2287 = vld [vmem:[#allocation2 + $0xd0] sm:$0xff]
        %v2288 = vld [vmem:[#allocation2 + $0xd8] sm:$0xff]
        %v2289 = vld [vmem:[#allocation2 + $0xe0] sm:$0xff]
        %v2290 = vld [vmem:[#allocation2 + $0xe8] sm:$0xff]
        %v2291 = vld [vmem:[#allocation2 + $0xf0] sm:$0xff]
        %v2292 = vld [vmem:[#allocation2 + $0xf8] sm:$0xff]
        %v2293 = vld [vmem:[#allocation2 + $0x100] sm:$0xff]
        %v2294 = vld [vmem:[#allocation2 + $0x108] sm:$0xff]
        %v2295 = vld [vmem:[#allocation2 + $0x110] sm:$0xff]
        %v2296 = vpack.c.bf16 %v2265, %v2264
        %v2297 = vpack.c.bf16 %v2267, %v2266
        %v2298 = vpack.c.bf16 %v2269, %v2268
        %v2299 = vpack.c.bf16 %v2271, %v2270
        %v2300 = vpack.c.bf16 %v2273, %v2272
        %v2301 = vpack.c.bf16 %v2275, %v2274
        %v2302 = vpack.c.bf16 %v2277, %v2276
        %v2303 = vpack.c.bf16 %v2279, %v2278
        %v2304 = vpack.c.bf16 %v2281, %v2280
        %v2305 = vpack.c.bf16 %v2283, %v2282
        %v2306 = vpack.c.bf16 %v2285, %v2284
        %v2307 = vpack.c.bf16 %v2287, %v2286
        %v2308 = vpack.c.bf16 %v2289, %v2288
        %v2309 = vpack.c.bf16 %v2291, %v2290
        %v2310 = vpack.c.bf16 %v2293, %v2292
        %v2311 = vpack.c.bf16 %v2295, %v2294
        %v2312 = vld [vmem:[#allocation2 + $0x19] sm:$0xff]
        %v2313 = vld [vmem:[#allocation2 + $0x21] sm:$0xff]
        %v2314 = vld [vmem:[#allocation2 + $0x29] sm:$0xff]
        %v2315 = vld [vmem:[#allocation2 + $0x31] sm:$0xff]
        %v2316 = vld [vmem:[#allocation2 + $0x39] sm:$0xff]
        %v2317 = vld [vmem:[#allocation2 + $0x41] sm:$0xff]
        %v2318 = vld [vmem:[#allocation2 + $0x49] sm:$0xff]
        %v2319 = vld [vmem:[#allocation2 + $0x51] sm:$0xff]
        %v2320 = vld [vmem:[#allocation2 + $0x59] sm:$0xff]
        %v2321 = vld [vmem:[#allocation2 + $0x61] sm:$0xff]
        %v2322 = vld [vmem:[#allocation2 + $0x69] sm:$0xff]
        %v2323 = vld [vmem:[#allocation2 + $0x71] sm:$0xff]
        %v2324 = vld [vmem:[#allocation2 + $0x79] sm:$0xff]
        %v2325 = vld [vmem:[#allocation2 + $0x81] sm:$0xff]
        %v2326 = vld [vmem:[#allocation2 + $0x89] sm:$0xff]
        %v2327 = vld [vmem:[#allocation2 + $0x91] sm:$0xff]
        %v2328 = vld [vmem:[#allocation2 + $0x99] sm:$0xff]
        %v2329 = vld [vmem:[#allocation2 + $0xa1] sm:$0xff]
        %v2330 = vld [vmem:[#allocation2 + $0xa9] sm:$0xff]
        %v2331 = vld [vmem:[#allocation2 + $0xb1] sm:$0xff]
        %v2332 = vld [vmem:[#allocation2 + $0xb9] sm:$0xff]
        %v2333 = vld [vmem:[#allocation2 + $0xc1] sm:$0xff]
        %v2334 = vld [vmem:[#allocation2 + $0xc9] sm:$0xff]
        %v2335 = vld [vmem:[#allocation2 + $0xd1] sm:$0xff]
        %v2336 = vld [vmem:[#allocation2 + $0xd9] sm:$0xff]
        %v2337 = vld [vmem:[#allocation2 + $0xe1] sm:$0xff]
        %v2338 = vld [vmem:[#allocation2 + $0xe9] sm:$0xff]
        %v2339 = vld [vmem:[#allocation2 + $0xf1] sm:$0xff]
        %v2340 = vld [vmem:[#allocation2 + $0xf9] sm:$0xff]
        %v2341 = vld [vmem:[#allocation2 + $0x101] sm:$0xff]
        %v2342 = vld [vmem:[#allocation2 + $0x109] sm:$0xff]
        %v2343 = vld [vmem:[#allocation2 + $0x111] sm:$0xff]
        %v2344 = vmul.f32 %v2312, %v1396
        %v2345 = vmul.f32 %v2313, %v1397
        %v2346 = vmul.f32 %v2314, %v1398
        %v2347 = vmul.f32 %v2315, %v1399
        %v2348 = vmul.f32 %v2316, %v1400
        %v2349 = vmul.f32 %v2317, %v1401
        %v2350 = vmul.f32 %v2318, %v1402
        %v2351 = vmul.f32 %v2319, %v1403
        %v2352 = vmul.f32 %v2320, %v1404
        %v2353 = vmul.f32 %v2321, %v1405
        %v2354 = vmul.f32 %v2322, %v1406
        %v2355 = vmul.f32 %v2323, %v1407
        %v2356 = vmul.f32 %v2324, %v1408
        %v2357 = vmul.f32 %v2325, %v1409
        %v2358 = vmul.f32 %v2326, %v1410
        %v2359 = vmul.f32 %v2327, %v1411
        %v2360 = vmul.f32 %v2328, %v1412
        %v2361 = vmul.f32 %v2329, %v1413
        %v2362 = vmul.f32 %v2330, %v1414
        %v2363 = vmul.f32 %v2331, %v1415
        %v2364 = vmul.f32 %v2332, %v1416
        %v2365 = vmul.f32 %v2333, %v1417
        %v2366 = vmul.f32 %v2334, %v1418
        %v2367 = vmul.f32 %v2335, %v1419
        %v2368 = vmul.f32 %v2336, %v1420
        %v2369 = vmul.f32 %v2337, %v1421
        %v2370 = vmul.f32 %v2338, %v1422
        %v2371 = vmul.f32 %v2339, %v1423
        %v2372 = vmul.f32 %v2340, %v1424
        %v2373 = vmul.f32 %v2341, %v1425
        %v2374 = vmul.f32 %v2342, %v1426
        %v2375 = vmul.f32 %v2343, %v1427
        %v2376 = vpack.c.bf16 %v2345, %v2344
        %v2377 = vpack.c.bf16 %v2347, %v2346
        %v2378 = vpack.c.bf16 %v2349, %v2348
        %v2379 = vpack.c.bf16 %v2351, %v2350
        %v2380 = vpack.c.bf16 %v2353, %v2352
        %v2381 = vpack.c.bf16 %v2355, %v2354
        %v2382 = vpack.c.bf16 %v2357, %v2356
        %v2383 = vpack.c.bf16 %v2359, %v2358
        %v2384 = vpack.c.bf16 %v2361, %v2360
        %v2385 = vpack.c.bf16 %v2363, %v2362
        %v2386 = vpack.c.bf16 %v2365, %v2364
        %v2387 = vpack.c.bf16 %v2367, %v2366
        %v2388 = vpack.c.bf16 %v2369, %v2368
        %v2389 = vpack.c.bf16 %v2371, %v2370
        %v2390 = vpack.c.bf16 %v2373, %v2372
        %v2391 = vpack.c.bf16 %v2375, %v2374
        %v2392 = vld [vmem:[#allocation8 + $0x100] sm:$0xf]
        %v2393 = vld [vmem:[#allocation8 + $0x104] sm:$0xf]
        %v2394 = vld [vmem:[#allocation8 + $0x108] sm:$0xf]
        %v2395 = vld [vmem:[#allocation8 + $0x10c] sm:$0xf]
        %v2396 = vld [vmem:[#allocation8 + $0x110] sm:$0xf]
        %v2397 = vld [vmem:[#allocation8 + $0x114] sm:$0xf]
        %v2398 = vld [vmem:[#allocation8 + $0x118] sm:$0xf]
        %v2399 = vld [vmem:[#allocation8 + $0x11c] sm:$0xf]
        %v2400 = vld [vmem:[#allocation8 + $0x120] sm:$0xf]
        %v2401 = vld [vmem:[#allocation8 + $0x124] sm:$0xf]
        %v2402 = vld [vmem:[#allocation8 + $0x128] sm:$0xf]
        %v2403 = vld [vmem:[#allocation8 + $0x12c] sm:$0xf]
        %v2404 = vld [vmem:[#allocation8 + $0x130] sm:$0xf]
        %v2405 = vld [vmem:[#allocation8 + $0x134] sm:$0xf]
        %v2406 = vld [vmem:[#allocation8 + $0x138] sm:$0xf]
        %v2407 = vld [vmem:[#allocation8 + $0x13c] sm:$0xf]
        %v2408 = vld [vmem:[#allocation8 + $0x140] sm:$0xf]
        %v2409 = vld [vmem:[#allocation8 + $0x144] sm:$0xf]
        %v2410 = vld [vmem:[#allocation8 + $0x148] sm:$0xf]
        %v2411 = vld [vmem:[#allocation8 + $0x14c] sm:$0xf]
        %v2412 = vld [vmem:[#allocation8 + $0x150] sm:$0xf]
        %v2413 = vld [vmem:[#allocation8 + $0x154] sm:$0xf]
        %v2414 = vld [vmem:[#allocation8 + $0x158] sm:$0xf]
        %v2415 = vld [vmem:[#allocation8 + $0x15c] sm:$0xf]
        %v2416 = vld [vmem:[#allocation8 + $0x160] sm:$0xf]
        %v2417 = vld [vmem:[#allocation8 + $0x164] sm:$0xf]
        %v2418 = vld [vmem:[#allocation8 + $0x168] sm:$0xf]
        %v2419 = vld [vmem:[#allocation8 + $0x16c] sm:$0xf]
        %v2420 = vld [vmem:[#allocation8 + $0x170] sm:$0xf]
        %v2421 = vld [vmem:[#allocation8 + $0x174] sm:$0xf]
        %v2422 = vld [vmem:[#allocation8 + $0x178] sm:$0xf]
        %v2423 = vld [vmem:[#allocation8 + $0x17c] sm:$0xf]
        %v2456 = vunpack.c.l.b16 %v2392
        %v2457 = vunpack.c.l.b16 %v2393
        %v2458 = vunpack.c.l.b16 %v2394
        %v2459 = vunpack.c.l.b16 %v2395
        %v2460 = vunpack.c.l.b16 %v2396
        %v2461 = vunpack.c.l.b16 %v2397
        %v2462 = vunpack.c.l.b16 %v2398
        %v2463 = vunpack.c.l.b16 %v2399
        %v2464 = vunpack.c.l.b16 %v2400
        %v2465 = vunpack.c.l.b16 %v2401
        %v2466 = vunpack.c.l.b16 %v2402
        %v2467 = vunpack.c.l.b16 %v2403
        %v2468 = vunpack.c.l.b16 %v2404
        %v2469 = vunpack.c.l.b16 %v2405
        %v2470 = vunpack.c.l.b16 %v2406
        %v2471 = vunpack.c.l.b16 %v2407
        %v2472 = vunpack.c.l.b16 %v2408
        %v2473 = vunpack.c.l.b16 %v2409
        %v2474 = vunpack.c.l.b16 %v2410
        %v2475 = vunpack.c.l.b16 %v2411
        %v2476 = vunpack.c.l.b16 %v2412
        %v2477 = vunpack.c.l.b16 %v2413
        %v2478 = vunpack.c.l.b16 %v2414
        %v2479 = vunpack.c.l.b16 %v2415
        %v2480 = vunpack.c.l.b16 %v2416
        %v2481 = vunpack.c.l.b16 %v2417
        %v2482 = vunpack.c.l.b16 %v2418
        %v2483 = vunpack.c.l.b16 %v2419
        %v2484 = vunpack.c.l.b16 %v2420
        %v2485 = vunpack.c.l.b16 %v2421
        %v2486 = vunpack.c.l.b16 %v2422
        %v2487 = vunpack.c.l.b16 %v2423
        %v2488 = vpack.c.b16 %v2457, %v2456
        %v2489 = vpack.c.b16 %v2459, %v2458
        %v2490 = vpack.c.b16 %v2461, %v2460
        %v2491 = vpack.c.b16 %v2463, %v2462
        %v2492 = vpack.c.b16 %v2465, %v2464
        %v2493 = vpack.c.b16 %v2467, %v2466
        %v2494 = vpack.c.b16 %v2469, %v2468
        %v2495 = vpack.c.b16 %v2471, %v2470
        %v2496 = vpack.c.b16 %v2473, %v2472
        %v2497 = vpack.c.b16 %v2475, %v2474
        %v2498 = vpack.c.b16 %v2477, %v2476
        %v2499 = vpack.c.b16 %v2479, %v2478
        %v2500 = vpack.c.b16 %v2481, %v2480
        %v2501 = vpack.c.b16 %v2483, %v2482
        %v2502 = vpack.c.b16 %v2485, %v2484
        %v2503 = vpack.c.b16 %v2487, %v2486
        %2520 = vmatprep.subr.bf16.mxu0 0
        %2521 = vmatpush1.bf16.msra.mxu0 %v2488
        %2522 = vmatprep.subr.bf16.mxu0 0
        %2523 = vmatpush1.bf16.msra.mxu0 %v2489
        %2524 = vmatprep.subr.bf16.mxu0 0
        %2525 = vmatpush1.bf16.msra.mxu0 %v2490
        %2526 = vmatprep.subr.bf16.mxu0 0
        %2527 = vmatpush1.bf16.msra.mxu0 %v2491
        %2528 = vmatprep.subr.bf16.mxu0 0
        %2529 = vmatpush1.bf16.msra.mxu0 %v2492
        %2530 = vmatprep.subr.bf16.mxu0 0
        %2531 = vmatpush1.bf16.msra.mxu0 %v2493
        %2532 = vmatprep.subr.bf16.mxu0 0
        %2533 = vmatpush1.bf16.msra.mxu0 %v2494
        %2534 = vmatprep.subr.bf16.mxu0 0
        %2535 = vmatpush1.bf16.msra.mxu0 %v2495
        %2536 = vmatprep.subr.bf16.mxu0 0
        %2537 = vmatpush1.bf16.msra.mxu0 %v2496
        %2538 = vmatprep.subr.bf16.mxu0 0
        %2539 = vmatpush1.bf16.msra.mxu0 %v2497
        %2540 = vmatprep.subr.bf16.mxu0 0
        %2541 = vmatpush1.bf16.msra.mxu0 %v2498
        %2542 = vmatprep.subr.bf16.mxu0 0
        %2543 = vmatpush1.bf16.msra.mxu0 %v2499
        %2544 = vmatprep.subr.bf16.mxu0 0
        %2545 = vmatpush1.bf16.msra.mxu0 %v2500
        %2546 = vmatprep.subr.bf16.mxu0 0
        %2547 = vmatpush1.bf16.msra.mxu0 %v2501
        %2548 = vmatprep.subr.bf16.mxu0 0
        %2549 = vmatpush1.bf16.msra.mxu0 %v2502
        %2550 = vmatprep.subr.bf16.mxu0 0
        %2551 = vmatpush1.bf16.msra.mxu0 %v2503
        %2552 = vmatprep.mubr.bf16.mxu0 %v2376
        %2553 = vmatmul.mubr.bf16.gmra.mrb[0].mxu0 %v2296
        %v2554 = vpop.f32.mrb[0].mxu0
        %v2555 = vadd.f32 0.0, %v2554
        %v2556 = vpop.f32.mrb[0].mxu0
        %v2557 = vpop.f32.mrb[0].mxu0
        %v2558 = vadd.f32 0.0, %v2557
        %v2559 = vpop.f32.mrb[0].mxu0
        %2560 = vmatprep.mubr.bf16.mxu0 %v2377
        %2561 = vmatmul.mubr.bf16.gmra.mrb[0].mxu0 %v2297
        %v2562 = vpop.f32.mrb[0].mxu0
        %v2563 = vadd.f32 0.0, %v2562
        %v2564 = vpop.f32.mrb[0].mxu0
        %v2565 = vpop.f32.mrb[0].mxu0
        %v2566 = vadd.f32 0.0, %v2565
        %v2567 = vpop.f32.mrb[0].mxu0
        %2568 = vmatprep.mubr.bf16.mxu0 %v2378
        %2569 = vmatmul.mubr.bf16.gmra.mrb[0].mxu0 %v2298
        %v2570 = vpop.f32.mrb[0].mxu0
        %v2571 = vadd.f32 0.0, %v2570
        %v2572 = vpop.f32.mrb[0].mxu0
        %v2573 = vpop.f32.mrb[0].mxu0
        %v2574 = vadd.f32 0.0, %v2573
        %v2575 = vpop.f32.mrb[0].mxu0
        %2576 = vmatprep.mubr.bf16.mxu0 %v2379
        %2577 = vmatmul.mubr.bf16.gmra.mrb[0].mxu0 %v2299
        %v2578 = vpop.f32.mrb[0].mxu0
        %v2579 = vadd.f32 0.0, %v2578
        %v2580 = vpop.f32.mrb[0].mxu0
        %v2581 = vpop.f32.mrb[0].mxu0
        %v2582 = vadd.f32 0.0, %v2581
        %v2583 = vpop.f32.mrb[0].mxu0
        %2584 = vmatprep.mubr.bf16.mxu0 %v2380
        %2585 = vmatmul.mubr.bf16.gmra.mrb[0].mxu0 %v2300
        %v2586 = vpop.f32.mrb[0].mxu0
        %v2587 = vadd.f32 0.0, %v2586
        %v2588 = vpop.f32.mrb[0].mxu0
        %v2589 = vpop.f32.mrb[0].mxu0
        %v2590 = vadd.f32 0.0, %v2589
        %v2591 = vpop.f32.mrb[0].mxu0
        %2592 = vmatprep.mubr.bf16.mxu0 %v2381
        %2593 = vmatmul.mubr.bf16.gmra.mrb[0].mxu0 %v2301
        %v2594 = vpop.f32.mrb[0].mxu0
        %v2595 = vadd.f32 0.0, %v2594
        %v2596 = vpop.f32.mrb[0].mxu0
        %v2597 = vpop.f32.mrb[0].mxu0
        %v2598 = vadd.f32 0.0, %v2597
        %v2599 = vpop.f32.mrb[0].mxu0
        %2600 = vmatprep.mubr.bf16.mxu0 %v2382
        %2601 = vmatmul.mubr.bf16.gmra.mrb[0].mxu0 %v2302
        %v2602 = vpop.f32.mrb[0].mxu0
        %v2603 = vadd.f32 0.0, %v2602
        %v2604 = vpop.f32.mrb[0].mxu0
        %v2605 = vpop.f32.mrb[0].mxu0
        %v2606 = vadd.f32 0.0, %v2605
        %v2607 = vpop.f32.mrb[0].mxu0
        %2608 = vmatprep.mubr.bf16.mxu0 %v2383
        %2609 = vmatmul.mubr.bf16.gmra.mrb[0].mxu0 %v2303
        %v2610 = vpop.f32.mrb[0].mxu0
        %v2611 = vadd.f32 0.0, %v2610
        %v2612 = vpop.f32.mrb[0].mxu0
        %v2613 = vpop.f32.mrb[0].mxu0
        %v2614 = vadd.f32 0.0, %v2613
        %v2615 = vpop.f32.mrb[0].mxu0
        %2616 = vmatprep.mubr.bf16.mxu0 %v2384
        %2617 = vmatmul.mubr.bf16.gmra.mrb[0].mxu0 %v2304
        %v2618 = vpop.f32.mrb[0].mxu0
        %v2619 = vadd.f32 0.0, %v2618
        %v2620 = vpop.f32.mrb[0].mxu0
        %v2621 = vpop.f32.mrb[0].mxu0
        %v2622 = vadd.f32 0.0, %v2621
        %v2623 = vpop.f32.mrb[0].mxu0
        %2624 = vmatprep.mubr.bf16.mxu0 %v2385
        %2625 = vmatmul.mubr.bf16.gmra.mrb[0].mxu0 %v2305
        %v2626 = vpop.f32.mrb[0].mxu0
        %v2627 = vadd.f32 0.0, %v2626
        %v2628 = vpop.f32.mrb[0].mxu0
        %v2629 = vpop.f32.mrb[0].mxu0
        %v2630 = vadd.f32 0.0, %v2629
        %v2631 = vpop.f32.mrb[0].mxu0
        %2632 = vmatprep.mubr.bf16.mxu0 %v2386
        %2633 = vmatmul.mubr.bf16.gmra.mrb[0].mxu0 %v2306
        %v2634 = vpop.f32.mrb[0].mxu0
        %v2635 = vadd.f32 0.0, %v2634
        %v2636 = vpop.f32.mrb[0].mxu0
        %v2637 = vpop.f32.mrb[0].mxu0
        %v2638 = vadd.f32 0.0, %v2637
        %v2639 = vpop.f32.mrb[0].mxu0
        %2640 = vmatprep.mubr.bf16.mxu0 %v2387
        %2641 = vmatmul.mubr.bf16.gmra.mrb[0].mxu0 %v2307
        %v2642 = vpop.f32.mrb[0].mxu0
        %v2643 = vadd.f32 0.0, %v2642
        %v2644 = vpop.f32.mrb[0].mxu0
        %v2645 = vpop.f32.mrb[0].mxu0
        %v2646 = vadd.f32 0.0, %v2645
        %v2647 = vpop.f32.mrb[0].mxu0
        %2648 = vmatprep.mubr.bf16.mxu0 %v2388
        %2649 = vmatmul.mubr.bf16.gmra.mrb[0].mxu0 %v2308
        %v2650 = vpop.f32.mrb[0].mxu0
        %v2651 = vadd.f32 0.0, %v2650
        %v2652 = vpop.f32.mrb[0].mxu0
        %v2653 = vpop.f32.mrb[0].mxu0
        %v2654 = vadd.f32 0.0, %v2653
        %v2655 = vpop.f32.mrb[0].mxu0
        %2656 = vmatprep.mubr.bf16.mxu0 %v2389
        %2657 = vmatmul.mubr.bf16.gmra.mrb[0].mxu0 %v2309
        %v2658 = vpop.f32.mrb[0].mxu0
        %v2659 = vadd.f32 0.0, %v2658
        %v2660 = vpop.f32.mrb[0].mxu0
        %v2661 = vpop.f32.mrb[0].mxu0
        %v2662 = vadd.f32 0.0, %v2661
        %v2663 = vpop.f32.mrb[0].mxu0
        %2664 = vmatprep.mubr.bf16.mxu0 %v2390
        %2665 = vmatmul.mubr.bf16.gmra.mrb[0].mxu0 %v2310
        %v2666 = vpop.f32.mrb[0].mxu0
        %v2667 = vadd.f32 0.0, %v2666
        %v2668 = vpop.f32.mrb[0].mxu0
        %v2669 = vpop.f32.mrb[0].mxu0
        %v2670 = vadd.f32 0.0, %v2669
        %v2671 = vpop.f32.mrb[0].mxu0
        %2672 = vmatprep.mubr.bf16.mxu0 %v2391
        %2673 = vmatmul.mubr.bf16.gmra.mrb[0].mxu0 %v2311
        %v2674 = vpop.f32.mrb[0].mxu0
        %v2675 = vadd.f32 0.0, %v2674
        %v2676 = vpop.f32.mrb[0].mxu0
        %v2677 = vpop.f32.mrb[0].mxu0
        %v2678 = vadd.f32 0.0, %v2677
        %v2679 = vpop.f32.mrb[0].mxu0
        %2680 = vdwg.mxu0
        %v2681 = vadd.f32 %v2138, %v2555
        %v2682 = vadd.f32 %v2141, %v2558
        %v2683 = vadd.f32 %v2146, %v2563
        %v2684 = vadd.f32 %v2149, %v2566
        %v2685 = vadd.f32 %v2154, %v2571
        %v2686 = vadd.f32 %v2157, %v2574
        %v2687 = vadd.f32 %v2162, %v2579
        %v2688 = vadd.f32 %v2165, %v2582
        %v2689 = vadd.f32 %v2170, %v2587
        %v2690 = vadd.f32 %v2173, %v2590
        %v2691 = vadd.f32 %v2178, %v2595
        %v2692 = vadd.f32 %v2181, %v2598
        %v2693 = vadd.f32 %v2186, %v2603
        %v2694 = vadd.f32 %v2189, %v2606
        %v2695 = vadd.f32 %v2194, %v2611
        %v2696 = vadd.f32 %v2197, %v2614
        %v2697 = vadd.f32 %v2202, %v2619
        %v2698 = vadd.f32 %v2205, %v2622
        %v2699 = vadd.f32 %v2210, %v2627
        %v2700 = vadd.f32 %v2213, %v2630
        %v2701 = vadd.f32 %v2218, %v2635
        %v2702 = vadd.f32 %v2221, %v2638
        %v2703 = vadd.f32 %v2226, %v2643
        %v2704 = vadd.f32 %v2229, %v2646
        %v2705 = vadd.f32 %v2234, %v2651
        %v2706 = vadd.f32 %v2237, %v2654
        %v2707 = vadd.f32 %v2242, %v2659
        %v2708 = vadd.f32 %v2245, %v2662
        %v2709 = vadd.f32 %v2250, %v2667
        %v2710 = vadd.f32 %v2253, %v2670
        %v2711 = vadd.f32 %v2258, %v2675
        %v2712 = vadd.f32 %v2261, %v2678
        %v2713 = vld [vmem:[#allocation2 + $0x27] sm:$0xff]
        %v2714 = vld [vmem:[#allocation2 + $0x2f] sm:$0xff]
        %v2715 = vld [vmem:[#allocation2 + $0x37] sm:$0xff]
        %v2716 = vld [vmem:[#allocation2 + $0x3f] sm:$0xff]
        %v2717 = vld [vmem:[#allocation2 + $0x47] sm:$0xff]
        %v2718 = vld [vmem:[#allocation2 + $0x4f] sm:$0xff]
        %v2719 = vld [vmem:[#allocation2 + $0x57] sm:$0xff]
        %v2720 = vld [vmem:[#allocation2 + $0x5f] sm:$0xff]
        %v2721 = vld [vmem:[#allocation2 + $0x67] sm:$0xff]
        %v2722 = vld [vmem:[#allocation2 + $0x6f] sm:$0xff]
        %v2723 = vld [vmem:[#allocation2 + $0x77] sm:$0xff]
        %v2724 = vld [vmem:[#allocation2 + $0x7f] sm:$0xff]
        %v2725 = vld [vmem:[#allocation2 + $0x87] sm:$0xff]
        %v2726 = vld [vmem:[#allocation2 + $0x8f] sm:$0xff]
        %v2727 = vld [vmem:[#allocation2 + $0x97] sm:$0xff]
        %v2728 = vld [vmem:[#allocation2 + $0x9f] sm:$0xff]
        %v2729 = vld [vmem:[#allocation2 + $0xa7] sm:$0xff]
        %v2730 = vld [vmem:[#allocation2 + $0xaf] sm:$0xff]
        %v2731 = vld [vmem:[#allocation2 + $0xb7] sm:$0xff]
        %v2732 = vld [vmem:[#allocation2 + $0xbf] sm:$0xff]
        %v2733 = vld [vmem:[#allocation2 + $0xc7] sm:$0xff]
        %v2734 = vld [vmem:[#allocation2 + $0xcf] sm:$0xff]
        %v2735 = vld [vmem:[#allocation2 + $0xd7] sm:$0xff]
        %v2736 = vld [vmem:[#allocation2 + $0xdf] sm:$0xff]
        %v2737 = vld [vmem:[#allocation2 + $0xe7] sm:$0xff]
        %v2738 = vld [vmem:[#allocation2 + $0xef] sm:$0xff]
        %v2739 = vld [vmem:[#allocation2 + $0xf7] sm:$0xff]
        %v2740 = vld [vmem:[#allocation2 + $0xff] sm:$0xff]
        %v2741 = vld [vmem:[#allocation2 + $0x107] sm:$0xff]
        %v2742 = vld [vmem:[#allocation2 + $0x10f] sm:$0xff]
        %v2743 = vld [vmem:[#allocation2 + $0x117] sm:$0xff]
        %v2744 = vld [vmem:[#allocation2 + $0x11f] sm:$0xff]
        %v2745 = vmul.f32 %v2713, %v1300
        %v2746 = vmul.f32 %v2714, %v1301
        %v2747 = vmul.f32 %v2715, %v1302
        %v2748 = vmul.f32 %v2716, %v1303
        %v2749 = vmul.f32 %v2717, %v1304
        %v2750 = vmul.f32 %v2718, %v1305
        %v2751 = vmul.f32 %v2719, %v1306
        %v2752 = vmul.f32 %v2720, %v1307
        %v2753 = vmul.f32 %v2721, %v1308
        %v2754 = vmul.f32 %v2722, %v1309
        %v2755 = vmul.f32 %v2723, %v1310
        %v2756 = vmul.f32 %v2724, %v1311
        %v2757 = vmul.f32 %v2725, %v1312
        %v2758 = vmul.f32 %v2726, %v1313
        %v2759 = vmul.f32 %v2727, %v1314
        %v2760 = vmul.f32 %v2728, %v1315
        %v2761 = vmul.f32 %v2729, %v1316
        %v2762 = vmul.f32 %v2730, %v1317
        %v2763 = vmul.f32 %v2731, %v1318
        %v2764 = vmul.f32 %v2732, %v1319
        %v2765 = vmul.f32 %v2733, %v1320
        %v2766 = vmul.f32 %v2734, %v1321
        %v2767 = vmul.f32 %v2735, %v1322
        %v2768 = vmul.f32 %v2736, %v1323
        %v2769 = vmul.f32 %v2737, %v1324
        %v2770 = vmul.f32 %v2738, %v1325
        %v2771 = vmul.f32 %v2739, %v1326
        %v2772 = vmul.f32 %v2740, %v1327
        %v2773 = vmul.f32 %v2741, %v1328
        %v2774 = vmul.f32 %v2742, %v1329
        %v2775 = vmul.f32 %v2743, %v1330
        %v2776 = vmul.f32 %v2744, %v1331
        %v2777 = vpack.c.bf16 %v2746, %v2745
        %v2778 = vpack.c.bf16 %v2748, %v2747
        %v2779 = vpack.c.bf16 %v2750, %v2749
        %v2780 = vpack.c.bf16 %v2752, %v2751
        %v2781 = vpack.c.bf16 %v2754, %v2753
        %v2782 = vpack.c.bf16 %v2756, %v2755
        %v2783 = vpack.c.bf16 %v2758, %v2757
        %v2784 = vpack.c.bf16 %v2760, %v2759
        %v2785 = vpack.c.bf16 %v2762, %v2761
        %v2786 = vpack.c.bf16 %v2764, %v2763
        %v2787 = vpack.c.bf16 %v2766, %v2765
        %v2788 = vpack.c.bf16 %v2768, %v2767
        %v2789 = vpack.c.bf16 %v2770, %v2769
        %v2790 = vpack.c.bf16 %v2772, %v2771
        %v2791 = vpack.c.bf16 %v2774, %v2773
        %v2792 = vpack.c.bf16 %v2776, %v2775
        %v2793 = vld [vmem:[#allocation2 + $0x28] sm:$0xff]
        %v2794 = vld [vmem:[#allocation2 + $0x30] sm:$0xff]
        %v2795 = vld [vmem:[#allocation2 + $0x38] sm:$0xff]
        %v2796 = vld [vmem:[#allocation2 + $0x40] sm:$0xff]
        %v2797 = vld [vmem:[#allocation2 + $0x48] sm:$0xff]
        %v2798 = vld [vmem:[#allocation2 + $0x50] sm:$0xff]
        %v2799 = vld [vmem:[#allocation2 + $0x58] sm:$0xff]
        %v2800 = vld [vmem:[#allocation2 + $0x60] sm:$0xff]
        %v2801 = vld [vmem:[#allocation2 + $0x68] sm:$0xff]
        %v2802 = vld [vmem:[#allocation2 + $0x70] sm:$0xff]
        %v2803 = vld [vmem:[#allocation2 + $0x78] sm:$0xff]
        %v2804 = vld [vmem:[#allocation2 + $0x80] sm:$0xff]
        %v2805 = vld [vmem:[#allocation2 + $0x88] sm:$0xff]
        %v2806 = vld [vmem:[#allocation2 + $0x90] sm:$0xff]
        %v2807 = vld [vmem:[#allocation2 + $0x98] sm:$0xff]
        %v2808 = vld [vmem:[#allocation2 + $0xa0] sm:$0xff]
        %v2809 = vld [vmem:[#allocation2 + $0xa8] sm:$0xff]
        %v2810 = vld [vmem:[#allocation2 + $0xb0] sm:$0xff]
        %v2811 = vld [vmem:[#allocation2 + $0xb8] sm:$0xff]
        %v2812 = vld [vmem:[#allocation2 + $0xc0] sm:$0xff]
        %v2813 = vld [vmem:[#allocation2 + $0xc8] sm:$0xff]
        %v2814 = vld [vmem:[#allocation2 + $0xd0] sm:$0xff]
        %v2815 = vld [vmem:[#allocation2 + $0xd8] sm:$0xff]
        %v2816 = vld [vmem:[#allocation2 + $0xe0] sm:$0xff]
        %v2817 = vld [vmem:[#allocation2 + $0xe8] sm:$0xff]
        %v2818 = vld [vmem:[#allocation2 + $0xf0] sm:$0xff]
        %v2819 = vld [vmem:[#allocation2 + $0xf8] sm:$0xff]
        %v2820 = vld [vmem:[#allocation2 + $0x100] sm:$0xff]
        %v2821 = vld [vmem:[#allocation2 + $0x108] sm:$0xff]
        %v2822 = vld [vmem:[#allocation2 + $0x110] sm:$0xff]
        %v2823 = vld [vmem:[#allocation2 + $0x118] sm:$0xff]
        %v2824 = vld [vmem:[#allocation2 + $0x120] sm:$0xff]
        %v2825 = vpack.c.bf16 %v2794, %v2793
        %v2826 = vpack.c.bf16 %v2796, %v2795
        %v2827 = vpack.c.bf16 %v2798, %v2797
        %v2828 = vpack.c.bf16 %v2800, %v2799
        %v2829 = vpack.c.bf16 %v2802, %v2801
        %v2830 = vpack.c.bf16 %v2804, %v2803
        %v2831 = vpack.c.bf16 %v2806, %v2805
        %v2832 = vpack.c.bf16 %v2808, %v2807
        %v2833 = vpack.c.bf16 %v2810, %v2809
        %v2834 = vpack.c.bf16 %v2812, %v2811
        %v2835 = vpack.c.bf16 %v2814, %v2813
        %v2836 = vpack.c.bf16 %v2816, %v2815
        %v2837 = vpack.c.bf16 %v2818, %v2817
        %v2838 = vpack.c.bf16 %v2820, %v2819
        %v2839 = vpack.c.bf16 %v2822, %v2821
        %v2840 = vpack.c.bf16 %v2824, %v2823
        %v2841 = vld [vmem:[#allocation8 + $0x180] sm:$0xf]
        %v2842 = vld [vmem:[#allocation8 + $0x184] sm:$0xf]
        %v2843 = vld [vmem:[#allocation8 + $0x188] sm:$0xf]
        %v2844 = vld [vmem:[#allocation8 + $0x18c] sm:$0xf]
        %v2845 = vld [vmem:[#allocation8 + $0x190] sm:$0xf]
        %v2846 = vld [vmem:[#allocation8 + $0x194] sm:$0xf]
        %v2847 = vld [vmem:[#allocation8 + $0x198] sm:$0xf]
        %v2848 = vld [vmem:[#allocation8 + $0x19c] sm:$0xf]
        %v2849 = vld [vmem:[#allocation8 + $0x1a0] sm:$0xf]
        %v2850 = vld [vmem:[#allocation8 + $0x1a4] sm:$0xf]
        %v2851 = vld [vmem:[#allocation8 + $0x1a8] sm:$0xf]
        %v2852 = vld [vmem:[#allocation8 + $0x1ac] sm:$0xf]
        %v2853 = vld [vmem:[#allocation8 + $0x1b0] sm:$0xf]
        %v2854 = vld [vmem:[#allocation8 + $0x1b4] sm:$0xf]
        %v2855 = vld [vmem:[#allocation8 + $0x1b8] sm:$0xf]
        %v2856 = vld [vmem:[#allocation8 + $0x1bc] sm:$0xf]
        %v2857 = vld [vmem:[#allocation8 + $0x1c0] sm:$0xf]
        %v2858 = vld [vmem:[#allocation8 + $0x1c4] sm:$0xf]
        %v2859 = vld [vmem:[#allocation8 + $0x1c8] sm:$0xf]
        %v2860 = vld [vmem:[#allocation8 + $0x1cc] sm:$0xf]
        %v2861 = vld [vmem:[#allocation8 + $0x1d0] sm:$0xf]
        %v2862 = vld [vmem:[#allocation8 + $0x1d4] sm:$0xf]
        %v2863 = vld [vmem:[#allocation8 + $0x1d8] sm:$0xf]
        %v2864 = vld [vmem:[#allocation8 + $0x1dc] sm:$0xf]
        %v2865 = vld [vmem:[#allocation8 + $0x1e0] sm:$0xf]
        %v2866 = vld [vmem:[#allocation8 + $0x1e4] sm:$0xf]
        %v2867 = vld [vmem:[#allocation8 + $0x1e8] sm:$0xf]
        %v2868 = vld [vmem:[#allocation8 + $0x1ec] sm:$0xf]
        %v2869 = vld [vmem:[#allocation8 + $0x1f0] sm:$0xf]
        %v2870 = vld [vmem:[#allocation8 + $0x1f4] sm:$0xf]
        %v2871 = vld [vmem:[#allocation8 + $0x1f8] sm:$0xf]
        %v2872 = vld [vmem:[#allocation8 + $0x1fc] sm:$0xf]
        %v2905 = vunpack.c.l.b16 %v2841
        %v2906 = vunpack.c.l.b16 %v2842
        %v2907 = vunpack.c.l.b16 %v2843
        %v2908 = vunpack.c.l.b16 %v2844
        %v2909 = vunpack.c.l.b16 %v2845
        %v2910 = vunpack.c.l.b16 %v2846
        %v2911 = vunpack.c.l.b16 %v2847
        %v2912 = vunpack.c.l.b16 %v2848
        %v2913 = vunpack.c.l.b16 %v2849
        %v2914 = vunpack.c.l.b16 %v2850
        %v2915 = vunpack.c.l.b16 %v2851
        %v2916 = vunpack.c.l.b16 %v2852
        %v2917 = vunpack.c.l.b16 %v2853
        %v2918 = vunpack.c.l.b16 %v2854
        %v2919 = vunpack.c.l.b16 %v2855
        %v2920 = vunpack.c.l.b16 %v2856
        %v2921 = vunpack.c.l.b16 %v2857
        %v2922 = vunpack.c.l.b16 %v2858
        %v2923 = vunpack.c.l.b16 %v2859
        %v2924 = vunpack.c.l.b16 %v2860
        %v2925 = vunpack.c.l.b16 %v2861
        %v2926 = vunpack.c.l.b16 %v2862
        %v2927 = vunpack.c.l.b16 %v2863
        %v2928 = vunpack.c.l.b16 %v2864
        %v2929 = vunpack.c.l.b16 %v2865
        %v2930 = vunpack.c.l.b16 %v2866
        %v2931 = vunpack.c.l.b16 %v2867
        %v2932 = vunpack.c.l.b16 %v2868
        %v2933 = vunpack.c.l.b16 %v2869
        %v2934 = vunpack.c.l.b16 %v2870
        %v2935 = vunpack.c.l.b16 %v2871
        %v2936 = vunpack.c.l.b16 %v2872
        %v2937 = vpack.c.b16 %v2906, %v2905
        %v2938 = vpack.c.b16 %v2908, %v2907
        %v2939 = vpack.c.b16 %v2910, %v2909
        %v2940 = vpack.c.b16 %v2912, %v2911
        %v2941 = vpack.c.b16 %v2914, %v2913
        %v2942 = vpack.c.b16 %v2916, %v2915
        %v2943 = vpack.c.b16 %v2918, %v2917
        %v2944 = vpack.c.b16 %v2920, %v2919
        %v2945 = vpack.c.b16 %v2922, %v2921
        %v2946 = vpack.c.b16 %v2924, %v2923
        %v2947 = vpack.c.b16 %v2926, %v2925
        %v2948 = vpack.c.b16 %v2928, %v2927
        %v2949 = vpack.c.b16 %v2930, %v2929
        %v2950 = vpack.c.b16 %v2932, %v2931
        %v2951 = vpack.c.b16 %v2934, %v2933
        %v2952 = vpack.c.b16 %v2936, %v2935
        %2969 = vmatprep.subr.bf16.mxu0 0
        %2970 = vmatpush1.bf16.msra.mxu0 %v2937
        %2971 = vmatprep.subr.bf16.mxu0 0
        %2972 = vmatpush1.bf16.msra.mxu0 %v2938
        %2973 = vmatprep.subr.bf16.mxu0 0
        %2974 = vmatpush1.bf16.msra.mxu0 %v2939
        %2975 = vmatprep.subr.bf16.mxu0 0
        %2976 = vmatpush1.bf16.msra.mxu0 %v2940
        %2977 = vmatprep.subr.bf16.mxu0 0
        %2978 = vmatpush1.bf16.msra.mxu0 %v2941
        %2979 = vmatprep.subr.bf16.mxu0 0
        %2980 = vmatpush1.bf16.msra.mxu0 %v2942
        %2981 = vmatprep.subr.bf16.mxu0 0
        %2982 = vmatpush1.bf16.msra.mxu0 %v2943
        %2983 = vmatprep.subr.bf16.mxu0 0
        %2984 = vmatpush1.bf16.msra.mxu0 %v2944
        %2985 = vmatprep.subr.bf16.mxu0 0
        %2986 = vmatpush1.bf16.msra.mxu0 %v2945
        %2987 = vmatprep.subr.bf16.mxu0 0
        %2988 = vmatpush1.bf16.msra.mxu0 %v2946
        %2989 = vmatprep.subr.bf16.mxu0 0
        %2990 = vmatpush1.bf16.msra.mxu0 %v2947
        %2991 = vmatprep.subr.bf16.mxu0 0
        %2992 = vmatpush1.bf16.msra.mxu0 %v2948
        %2993 = vmatprep.subr.bf16.mxu0 0
        %2994 = vmatpush1.bf16.msra.mxu0 %v2949
        %2995 = vmatprep.subr.bf16.mxu0 0
        %2996 = vmatpush1.bf16.msra.mxu0 %v2950
        %2997 = vmatprep.subr.bf16.mxu0 0
        %2998 = vmatpush1.bf16.msra.mxu0 %v2951
        %2999 = vmatprep.subr.bf16.mxu0 0
        %3000 = vmatpush1.bf16.msra.mxu0 %v2952
        %3001 = vmatprep.mubr.bf16.mxu0 %v2825
        %3002 = vmatmul.mubr.bf16.gmra.mrb[0].mxu0 %v2777
        %v3003 = vpop.f32.mrb[0].mxu0
        %v3004 = vadd.f32 0.0, %v3003
        %v3005 = vpop.f32.mrb[0].mxu0
        %v3006 = vpop.f32.mrb[0].mxu0
        %v3007 = vadd.f32 0.0, %v3006
        %v3008 = vpop.f32.mrb[0].mxu0
        %3009 = vmatprep.mubr.bf16.mxu0 %v2826
        %3010 = vmatmul.mubr.bf16.gmra.mrb[0].mxu0 %v2778
        %v3011 = vpop.f32.mrb[0].mxu0
        %v3012 = vadd.f32 0.0, %v3011
        %v3013 = vpop.f32.mrb[0].mxu0
        %v3014 = vpop.f32.mrb[0].mxu0
        %v3015 = vadd.f32 0.0, %v3014
        %v3016 = vpop.f32.mrb[0].mxu0
        %3017 = vmatprep.mubr.bf16.mxu0 %v2827
        %3018 = vmatmul.mubr.bf16.gmra.mrb[0].mxu0 %v2779
        %v3019 = vpop.f32.mrb[0].mxu0
        %v3020 = vadd.f32 0.0, %v3019
        %v3021 = vpop.f32.mrb[0].mxu0
        %v3022 = vpop.f32.mrb[0].mxu0
        %v3023 = vadd.f32 0.0, %v3022
        %v3024 = vpop.f32.mrb[0].mxu0
        %3025 = vmatprep.mubr.bf16.mxu0 %v2828
        %3026 = vmatmul.mubr.bf16.gmra.mrb[0].mxu0 %v2780
        %v3027 = vpop.f32.mrb[0].mxu0
        %v3028 = vadd.f32 0.0, %v3027
        %v3029 = vpop.f32.mrb[0].mxu0
        %v3030 = vpop.f32.mrb[0].mxu0
        %v3031 = vadd.f32 0.0, %v3030
        %v3032 = vpop.f32.mrb[0].mxu0
        %3033 = vmatprep.mubr.bf16.mxu0 %v2829
        %3034 = vmatmul.mubr.bf16.gmra.mrb[0].mxu0 %v2781
        %v3035 = vpop.f32.mrb[0].mxu0
        %v3036 = vadd.f32 0.0, %v3035
        %v3037 = vpop.f32.mrb[0].mxu0
        %v3038 = vpop.f32.mrb[0].mxu0
        %v3039 = vadd.f32 0.0, %v3038
        %v3040 = vpop.f32.mrb[0].mxu0
        %3041 = vmatprep.mubr.bf16.mxu0 %v2830
        %3042 = vmatmul.mubr.bf16.gmra.mrb[0].mxu0 %v2782
        %v3043 = vpop.f32.mrb[0].mxu0
        %v3044 = vadd.f32 0.0, %v3043
        %v3045 = vpop.f32.mrb[0].mxu0
        %v3046 = vpop.f32.mrb[0].mxu0
        %v3047 = vadd.f32 0.0, %v3046
        %v3048 = vpop.f32.mrb[0].mxu0
        %3049 = vmatprep.mubr.bf16.mxu0 %v2831
        %3050 = vmatmul.mubr.bf16.gmra.mrb[0].mxu0 %v2783
        %v3051 = vpop.f32.mrb[0].mxu0
        %v3052 = vadd.f32 0.0, %v3051
        %v3053 = vpop.f32.mrb[0].mxu0
        %v3054 = vpop.f32.mrb[0].mxu0
        %v3055 = vadd.f32 0.0, %v3054
        %v3056 = vpop.f32.mrb[0].mxu0
        %3057 = vmatprep.mubr.bf16.mxu0 %v2832
        %3058 = vmatmul.mubr.bf16.gmra.mrb[0].mxu0 %v2784
        %v3059 = vpop.f32.mrb[0].mxu0
        %v3060 = vadd.f32 0.0, %v3059
        %v3061 = vpop.f32.mrb[0].mxu0
        %v3062 = vpop.f32.mrb[0].mxu0
        %v3063 = vadd.f32 0.0, %v3062
        %v3064 = vpop.f32.mrb[0].mxu0
        %3065 = vmatprep.mubr.bf16.mxu0 %v2833
        %3066 = vmatmul.mubr.bf16.gmra.mrb[0].mxu0 %v2785
        %v3067 = vpop.f32.mrb[0].mxu0
        %v3068 = vadd.f32 0.0, %v3067
        %v3069 = vpop.f32.mrb[0].mxu0
        %v3070 = vpop.f32.mrb[0].mxu0
        %v3071 = vadd.f32 0.0, %v3070
        %v3072 = vpop.f32.mrb[0].mxu0
        %3073 = vmatprep.mubr.bf16.mxu0 %v2834
        %3074 = vmatmul.mubr.bf16.gmra.mrb[0].mxu0 %v2786
        %v3075 = vpop.f32.mrb[0].mxu0
        %v3076 = vadd.f32 0.0, %v3075
        %v3077 = vpop.f32.mrb[0].mxu0
        %v3078 = vpop.f32.mrb[0].mxu0
        %v3079 = vadd.f32 0.0, %v3078
        %v3080 = vpop.f32.mrb[0].mxu0
        %3081 = vmatprep.mubr.bf16.mxu0 %v2835
        %3082 = vmatmul.mubr.bf16.gmra.mrb[0].mxu0 %v2787
        %v3083 = vpop.f32.mrb[0].mxu0
        %v3084 = vadd.f32 0.0, %v3083
        %v3085 = vpop.f32.mrb[0].mxu0
        %v3086 = vpop.f32.mrb[0].mxu0
        %v3087 = vadd.f32 0.0, %v3086
        %v3088 = vpop.f32.mrb[0].mxu0
        %3089 = vmatprep.mubr.bf16.mxu0 %v2836
        %3090 = vmatmul.mubr.bf16.gmra.mrb[0].mxu0 %v2788
        %v3091 = vpop.f32.mrb[0].mxu0
        %v3092 = vadd.f32 0.0, %v3091
        %v3093 = vpop.f32.mrb[0].mxu0
        %v3094 = vpop.f32.mrb[0].mxu0
        %v3095 = vadd.f32 0.0, %v3094
        %v3096 = vpop.f32.mrb[0].mxu0
        %3097 = vmatprep.mubr.bf16.mxu0 %v2837
        %3098 = vmatmul.mubr.bf16.gmra.mrb[0].mxu0 %v2789
        %v3099 = vpop.f32.mrb[0].mxu0
        %v3100 = vadd.f32 0.0, %v3099
        %v3101 = vpop.f32.mrb[0].mxu0
        %v3102 = vpop.f32.mrb[0].mxu0
        %v3103 = vadd.f32 0.0, %v3102
        %v3104 = vpop.f32.mrb[0].mxu0
        %3105 = vmatprep.mubr.bf16.mxu0 %v2838
        %3106 = vmatmul.mubr.bf16.gmra.mrb[0].mxu0 %v2790
        %v3107 = vpop.f32.mrb[0].mxu0
        %v3108 = vadd.f32 0.0, %v3107
        %v3109 = vpop.f32.mrb[0].mxu0
        %v3110 = vpop.f32.mrb[0].mxu0
        %v3111 = vadd.f32 0.0, %v3110
        %v3112 = vpop.f32.mrb[0].mxu0
        %3113 = vmatprep.mubr.bf16.mxu0 %v2839
        %3114 = vmatmul.mubr.bf16.gmra.mrb[0].mxu0 %v2791
        %v3115 = vpop.f32.mrb[0].mxu0
        %v3116 = vadd.f32 0.0, %v3115
        %v3117 = vpop.f32.mrb[0].mxu0
        %v3118 = vpop.f32.mrb[0].mxu0
        %v3119 = vadd.f32 0.0, %v3118
        %v3120 = vpop.f32.mrb[0].mxu0
        %3121 = vmatprep.mubr.bf16.mxu0 %v2840
        %3122 = vmatmul.mubr.bf16.gmra.mrb[0].mxu0 %v2792
        %v3123 = vpop.f32.mrb[0].mxu0
        %v3124 = vadd.f32 0.0, %v3123
        %v3125 = vpop.f32.mrb[0].mxu0
        %v3126 = vpop.f32.mrb[0].mxu0
        %v3127 = vadd.f32 0.0, %v3126
        %v3128 = vpop.f32.mrb[0].mxu0
        %3129 = vdwg.mxu0
        %v3130 = vadd.f32 %v2681, %v3004
        %v3131 = vadd.f32 %v2682, %v3007
        %v3132 = vadd.f32 %v2683, %v3012
        %v3133 = vadd.f32 %v2684, %v3015
        %v3134 = vadd.f32 %v2685, %v3020
        %v3135 = vadd.f32 %v2686, %v3023
        %v3136 = vadd.f32 %v2687, %v3028
        %v3137 = vadd.f32 %v2688, %v3031
        %v3138 = vadd.f32 %v2689, %v3036
        %v3139 = vadd.f32 %v2690, %v3039
        %v3140 = vadd.f32 %v2691, %v3044
        %v3141 = vadd.f32 %v2692, %v3047
        %v3142 = vadd.f32 %v2693, %v3052
        %v3143 = vadd.f32 %v2694, %v3055
        %v3144 = vadd.f32 %v2695, %v3060
        %v3145 = vadd.f32 %v2696, %v3063
        %v3146 = vadd.f32 %v2697, %v3068
        %v3147 = vadd.f32 %v2698, %v3071
        %v3148 = vadd.f32 %v2699, %v3076
        %v3149 = vadd.f32 %v2700, %v3079
        %v3150 = vadd.f32 %v2701, %v3084
        %v3151 = vadd.f32 %v2702, %v3087
        %v3152 = vadd.f32 %v2703, %v3092
        %v3153 = vadd.f32 %v2704, %v3095
        %v3154 = vadd.f32 %v2705, %v3100
        %v3155 = vadd.f32 %v2706, %v3103
        %v3156 = vadd.f32 %v2707, %v3108
        %v3157 = vadd.f32 %v2708, %v3111
        %v3158 = vadd.f32 %v2709, %v3116
        %v3159 = vadd.f32 %v2710, %v3119
        %v3160 = vadd.f32 %v2711, %v3124
        %v3161 = vadd.f32 %v2712, %v3127
        %v3162 = vld [vmem:[#allocation2 + $0x29] sm:$0xff]
        %v3163 = vld [vmem:[#allocation2 + $0x31] sm:$0xff]
        %v3164 = vld [vmem:[#allocation2 + $0x39] sm:$0xff]
        %v3165 = vld [vmem:[#allocation2 + $0x41] sm:$0xff]
        %v3166 = vld [vmem:[#allocation2 + $0x49] sm:$0xff]
        %v3167 = vld [vmem:[#allocation2 + $0x51] sm:$0xff]
        %v3168 = vld [vmem:[#allocation2 + $0x59] sm:$0xff]
        %v3169 = vld [vmem:[#allocation2 + $0x61] sm:$0xff]
        %v3170 = vld [vmem:[#allocation2 + $0x69] sm:$0xff]
        %v3171 = vld [vmem:[#allocation2 + $0x71] sm:$0xff]
        %v3172 = vld [vmem:[#allocation2 + $0x79] sm:$0xff]
        %v3173 = vld [vmem:[#allocation2 + $0x81] sm:$0xff]
        %v3174 = vld [vmem:[#allocation2 + $0x89] sm:$0xff]
        %v3175 = vld [vmem:[#allocation2 + $0x91] sm:$0xff]
        %v3176 = vld [vmem:[#allocation2 + $0x99] sm:$0xff]
        %v3177 = vld [vmem:[#allocation2 + $0xa1] sm:$0xff]
        %v3178 = vld [vmem:[#allocation2 + $0xa9] sm:$0xff]
        %v3179 = vld [vmem:[#allocation2 + $0xb1] sm:$0xff]
        %v3180 = vld [vmem:[#allocation2 + $0xb9] sm:$0xff]
        %v3181 = vld [vmem:[#allocation2 + $0xc1] sm:$0xff]
        %v3182 = vld [vmem:[#allocation2 + $0xc9] sm:$0xff]
        %v3183 = vld [vmem:[#allocation2 + $0xd1] sm:$0xff]
        %v3184 = vld [vmem:[#allocation2 + $0xd9] sm:$0xff]
        %v3185 = vld [vmem:[#allocation2 + $0xe1] sm:$0xff]
        %v3186 = vld [vmem:[#allocation2 + $0xe9] sm:$0xff]
        %v3187 = vld [vmem:[#allocation2 + $0xf1] sm:$0xff]
        %v3188 = vld [vmem:[#allocation2 + $0xf9] sm:$0xff]
        %v3189 = vld [vmem:[#allocation2 + $0x101] sm:$0xff]
        %v3190 = vld [vmem:[#allocation2 + $0x109] sm:$0xff]
        %v3191 = vld [vmem:[#allocation2 + $0x111] sm:$0xff]
        %v3192 = vld [vmem:[#allocation2 + $0x119] sm:$0xff]
        %v3193 = vld [vmem:[#allocation2 + $0x121] sm:$0xff]
        %v3194 = vmul.f32 %v3162, %v1396
        %v3195 = vmul.f32 %v3163, %v1397
        %v3196 = vmul.f32 %v3164, %v1398
        %v3197 = vmul.f32 %v3165, %v1399
        %v3198 = vmul.f32 %v3166, %v1400
        %v3199 = vmul.f32 %v3167, %v1401
        %v3200 = vmul.f32 %v3168, %v1402
        %v3201 = vmul.f32 %v3169, %v1403
        %v3202 = vmul.f32 %v3170, %v1404
        %v3203 = vmul.f32 %v3171, %v1405
        %v3204 = vmul.f32 %v3172, %v1406
        %v3205 = vmul.f32 %v3173, %v1407
        %v3206 = vmul.f32 %v3174, %v1408
        %v3207 = vmul.f32 %v3175, %v1409
        %v3208 = vmul.f32 %v3176, %v1410
        %v3209 = vmul.f32 %v3177, %v1411
        %v3210 = vmul.f32 %v3178, %v1412
        %v3211 = vmul.f32 %v3179, %v1413
        %v3212 = vmul.f32 %v3180, %v1414
        %v3213 = vmul.f32 %v3181, %v1415
        %v3214 = vmul.f32 %v3182, %v1416
        %v3215 = vmul.f32 %v3183, %v1417
        %v3216 = vmul.f32 %v3184, %v1418
        %v3217 = vmul.f32 %v3185, %v1419
        %v3218 = vmul.f32 %v3186, %v1420
        %v3219 = vmul.f32 %v3187, %v1421
        %v3220 = vmul.f32 %v3188, %v1422
        %v3221 = vmul.f32 %v3189, %v1423
        %v3222 = vmul.f32 %v3190, %v1424
        %v3223 = vmul.f32 %v3191, %v1425
        %v3224 = vmul.f32 %v3192, %v1426
        %v3225 = vmul.f32 %v3193, %v1427
        %v3226 = vpack.c.bf16 %v3195, %v3194
        %v3227 = vpack.c.bf16 %v3197, %v3196
        %v3228 = vpack.c.bf16 %v3199, %v3198
        %v3229 = vpack.c.bf16 %v3201, %v3200
        %v3230 = vpack.c.bf16 %v3203, %v3202
        %v3231 = vpack.c.bf16 %v3205, %v3204
        %v3232 = vpack.c.bf16 %v3207, %v3206
        %v3233 = vpack.c.bf16 %v3209, %v3208
        %v3234 = vpack.c.bf16 %v3211, %v3210
        %v3235 = vpack.c.bf16 %v3213, %v3212
        %v3236 = vpack.c.bf16 %v3215, %v3214
        %v3237 = vpack.c.bf16 %v3217, %v3216
        %v3238 = vpack.c.bf16 %v3219, %v3218
        %v3239 = vpack.c.bf16 %v3221, %v3220
        %v3240 = vpack.c.bf16 %v3223, %v3222
        %v3241 = vpack.c.bf16 %v3225, %v3224
        %v3242 = vld [vmem:[#allocation8 + $0x200] sm:$0xf]
        %v3243 = vld [vmem:[#allocation8 + $0x204] sm:$0xf]
        %v3244 = vld [vmem:[#allocation8 + $0x208] sm:$0xf]
        %v3245 = vld [vmem:[#allocation8 + $0x20c] sm:$0xf]
        %v3246 = vld [vmem:[#allocation8 + $0x210] sm:$0xf]
        %v3247 = vld [vmem:[#allocation8 + $0x214] sm:$0xf]
        %v3248 = vld [vmem:[#allocation8 + $0x218] sm:$0xf]
        %v3249 = vld [vmem:[#allocation8 + $0x21c] sm:$0xf]
        %v3250 = vld [vmem:[#allocation8 + $0x220] sm:$0xf]
        %v3251 = vld [vmem:[#allocation8 + $0x224] sm:$0xf]
        %v3252 = vld [vmem:[#allocation8 + $0x228] sm:$0xf]
        %v3253 = vld [vmem:[#allocation8 + $0x22c] sm:$0xf]
        %v3254 = vld [vmem:[#allocation8 + $0x230] sm:$0xf]
        %v3255 = vld [vmem:[#allocation8 + $0x234] sm:$0xf]
        %v3256 = vld [vmem:[#allocation8 + $0x238] sm:$0xf]
        %v3257 = vld [vmem:[#allocation8 + $0x23c] sm:$0xf]
        %v3274 = vunpack.c.l.b16 %v3242
        %v3275 = vunpack.c.l.b16 %v3243
        %v3276 = vunpack.c.l.b16 %v3244
        %v3277 = vunpack.c.l.b16 %v3245
        %v3278 = vunpack.c.l.b16 %v3246
        %v3279 = vunpack.c.l.b16 %v3247
        %v3280 = vunpack.c.l.b16 %v3248
        %v3281 = vunpack.c.l.b16 %v3249
        %v3282 = vunpack.c.l.b16 %v3250
        %v3283 = vunpack.c.l.b16 %v3251
        %v3284 = vunpack.c.l.b16 %v3252
        %v3285 = vunpack.c.l.b16 %v3253
        %v3286 = vunpack.c.l.b16 %v3254
        %v3287 = vunpack.c.l.b16 %v3255
        %v3288 = vunpack.c.l.b16 %v3256
        %v3289 = vunpack.c.l.b16 %v3257
        %v3290 = vpack.c.b16 %v3275, %v3274
        %v3291 = vpack.c.b16 %v3277, %v3276
        %v3292 = vpack.c.b16 %v3279, %v3278
        %v3293 = vpack.c.b16 %v3281, %v3280
        %v3294 = vpack.c.b16 %v3283, %v3282
        %v3295 = vpack.c.b16 %v3285, %v3284
        %v3296 = vpack.c.b16 %v3287, %v3286
        %v3297 = vpack.c.b16 %v3289, %v3288
        %3306 = vmatprep.subr.bf16.mxu0 0
        %3307 = vmatpush1.bf16.msra.mxu0 %v3290
        %3308 = vmatprep.subr.bf16.mxu0 0
        %3309 = vmatpush1.bf16.msra.mxu0 %v3291
        %3310 = vmatprep.subr.bf16.mxu0 0
        %3311 = vmatpush1.bf16.msra.mxu0 %v3292
        %3312 = vmatprep.subr.bf16.mxu0 0
        %3313 = vmatpush1.bf16.msra.mxu0 %v3293
        %3314 = vmatprep.subr.bf16.mxu0 0
        %3315 = vmatpush1.bf16.msra.mxu0 %v3294
        %3316 = vmatprep.subr.bf16.mxu0 0
        %3317 = vmatpush1.bf16.msra.mxu0 %v3295
        %3318 = vmatprep.subr.bf16.mxu0 0
        %3319 = vmatpush1.bf16.msra.mxu0 %v3296
        %3320 = vmatprep.subr.bf16.mxu0 0
        %3321 = vmatpush1.bf16.msra.mxu0 %v3297
        %3322 = vmatprep.subr.bf16.mxu0 0
        %3323 = vmatpush1.bf16.msra.mxu0 0
        %3324 = vmatprep.subr.bf16.mxu0 0
        %3325 = vmatpush1.bf16.msra.mxu0 0
        %3326 = vmatprep.subr.bf16.mxu0 0
        %3327 = vmatpush1.bf16.msra.mxu0 0
        %3328 = vmatprep.subr.bf16.mxu0 0
        %3329 = vmatpush1.bf16.msra.mxu0 0
        %3330 = vmatprep.subr.bf16.mxu0 0
        %3331 = vmatpush1.bf16.msra.mxu0 0
        %3332 = vmatprep.subr.bf16.mxu0 0
        %3333 = vmatpush1.bf16.msra.mxu0 0
        %3334 = vmatprep.subr.bf16.mxu0 0
        %3335 = vmatpush1.bf16.msra.mxu0 0
        %3336 = vmatprep.subr.bf16.mxu0 0
        %3337 = vmatpush1.bf16.msra.mxu0 0
        %3338 = vmatprep.mubr.bf16.mxu0 0
        %3339 = vmatmul.mubr.bf16.gmra.mrb[0].mxu0 %v3226
        %v3340 = vpop.f32.mrb[0].mxu0
        %v3341 = vadd.f32 0.0, %v3340
        %v3342 = vpop.f32.mrb[0].mxu0
        %v3343 = vpop.f32.mrb[0].mxu0
        %v3344 = vadd.f32 0.0, %v3343
        %v3345 = vpop.f32.mrb[0].mxu0
        %3346 = vmatprep.mubr.bf16.mxu0 0
        %3347 = vmatmul.mubr.bf16.gmra.mrb[0].mxu0 %v3227
        %v3348 = vpop.f32.mrb[0].mxu0
        %v3349 = vadd.f32 0.0, %v3348
        %v3350 = vpop.f32.mrb[0].mxu0
        %v3351 = vpop.f32.mrb[0].mxu0
        %v3352 = vadd.f32 0.0, %v3351
        %v3353 = vpop.f32.mrb[0].mxu0
        %3354 = vmatprep.mubr.bf16.mxu0 0
        %3355 = vmatmul.mubr.bf16.gmra.mrb[0].mxu0 %v3228
        %v3356 = vpop.f32.mrb[0].mxu0
        %v3357 = vadd.f32 0.0, %v3356
        %v3358 = vpop.f32.mrb[0].mxu0
        %v3359 = vpop.f32.mrb[0].mxu0
        %v3360 = vadd.f32 0.0, %v3359
        %v3361 = vpop.f32.mrb[0].mxu0
        %3362 = vmatprep.mubr.bf16.mxu0 0
        %3363 = vmatmul.mubr.bf16.gmra.mrb[0].mxu0 %v3229
        %v3364 = vpop.f32.mrb[0].mxu0
        %v3365 = vadd.f32 0.0, %v3364
        %v3366 = vpop.f32.mrb[0].mxu0
        %v3367 = vpop.f32.mrb[0].mxu0
        %v3368 = vadd.f32 0.0, %v3367
        %v3369 = vpop.f32.mrb[0].mxu0
        %3370 = vmatprep.mubr.bf16.mxu0 0
        %3371 = vmatmul.mubr.bf16.gmra.mrb[0].mxu0 %v3230
        %v3372 = vpop.f32.mrb[0].mxu0
        %v3373 = vadd.f32 0.0, %v3372
        %v3374 = vpop.f32.mrb[0].mxu0
        %v3375 = vpop.f32.mrb[0].mxu0
        %v3376 = vadd.f32 0.0, %v3375
        %v3377 = vpop.f32.mrb[0].mxu0
        %3378 = vmatprep.mubr.bf16.mxu0 0
        %3379 = vmatmul.mubr.bf16.gmra.mrb[0].mxu0 %v3231
        %v3380 = vpop.f32.mrb[0].mxu0
        %v3381 = vadd.f32 0.0, %v3380
        %v3382 = vpop.f32.mrb[0].mxu0
        %v3383 = vpop.f32.mrb[0].mxu0
        %v3384 = vadd.f32 0.0, %v3383
        %v3385 = vpop.f32.mrb[0].mxu0
        %3386 = vmatprep.mubr.bf16.mxu0 0
        %3387 = vmatmul.mubr.bf16.gmra.mrb[0].mxu0 %v3232
        %v3388 = vpop.f32.mrb[0].mxu0
        %v3389 = vadd.f32 0.0, %v3388
        %v3390 = vpop.f32.mrb[0].mxu0
        %v3391 = vpop.f32.mrb[0].mxu0
        %v3392 = vadd.f32 0.0, %v3391
        %v3393 = vpop.f32.mrb[0].mxu0
        %3394 = vmatprep.mubr.bf16.mxu0 0
        %3395 = vmatmul.mubr.bf16.gmra.mrb[0].mxu0 %v3233
        %v3396 = vpop.f32.mrb[0].mxu0
        %v3397 = vadd.f32 0.0, %v3396
        %v3398 = vpop.f32.mrb[0].mxu0
        %v3399 = vpop.f32.mrb[0].mxu0
        %v3400 = vadd.f32 0.0, %v3399
        %v3401 = vpop.f32.mrb[0].mxu0
        %3402 = vmatprep.mubr.bf16.mxu0 0
        %3403 = vmatmul.mubr.bf16.gmra.mrb[0].mxu0 %v3234
        %v3404 = vpop.f32.mrb[0].mxu0
        %v3405 = vadd.f32 0.0, %v3404
        %v3406 = vpop.f32.mrb[0].mxu0
        %v3407 = vpop.f32.mrb[0].mxu0
        %v3408 = vadd.f32 0.0, %v3407
        %v3409 = vpop.f32.mrb[0].mxu0
        %3410 = vmatprep.mubr.bf16.mxu0 0
        %3411 = vmatmul.mubr.bf16.gmra.mrb[0].mxu0 %v3235
        %v3412 = vpop.f32.mrb[0].mxu0
        %v3413 = vadd.f32 0.0, %v3412
        %v3414 = vpop.f32.mrb[0].mxu0
        %v3415 = vpop.f32.mrb[0].mxu0
        %v3416 = vadd.f32 0.0, %v3415
        %v3417 = vpop.f32.mrb[0].mxu0
        %3418 = vmatprep.mubr.bf16.mxu0 0
        %3419 = vmatmul.mubr.bf16.gmra.mrb[0].mxu0 %v3236
        %v3420 = vpop.f32.mrb[0].mxu0
        %v3421 = vadd.f32 0.0, %v3420
        %v3422 = vpop.f32.mrb[0].mxu0
        %v3423 = vpop.f32.mrb[0].mxu0
        %v3424 = vadd.f32 0.0, %v3423
        %v3425 = vpop.f32.mrb[0].mxu0
        %3426 = vmatprep.mubr.bf16.mxu0 0
        %3427 = vmatmul.mubr.bf16.gmra.mrb[0].mxu0 %v3237
        %v3428 = vpop.f32.mrb[0].mxu0
        %v3429 = vadd.f32 0.0, %v3428
        %v3430 = vpop.f32.mrb[0].mxu0
        %v3431 = vpop.f32.mrb[0].mxu0
        %v3432 = vadd.f32 0.0, %v3431
        %v3433 = vpop.f32.mrb[0].mxu0
        %3434 = vmatprep.mubr.bf16.mxu0 0
        %3435 = vmatmul.mubr.bf16.gmra.mrb[0].mxu0 %v3238
        %v3436 = vpop.f32.mrb[0].mxu0
        %v3437 = vadd.f32 0.0, %v3436
        %v3438 = vpop.f32.mrb[0].mxu0
        %v3439 = vpop.f32.mrb[0].mxu0
        %v3440 = vadd.f32 0.0, %v3439
        %v3441 = vpop.f32.mrb[0].mxu0
        %3442 = vmatprep.mubr.bf16.mxu0 0
        %3443 = vmatmul.mubr.bf16.gmra.mrb[0].mxu0 %v3239
        %v3444 = vpop.f32.mrb[0].mxu0
        %v3445 = vadd.f32 0.0, %v3444
        %v3446 = vpop.f32.mrb[0].mxu0
        %v3447 = vpop.f32.mrb[0].mxu0
        %v3448 = vadd.f32 0.0, %v3447
        %v3449 = vpop.f32.mrb[0].mxu0
        %3450 = vmatprep.mubr.bf16.mxu0 0
        %3451 = vmatmul.mubr.bf16.gmra.mrb[0].mxu0 %v3240
        %v3452 = vpop.f32.mrb[0].mxu0
        %v3453 = vadd.f32 0.0, %v3452
        %v3454 = vpop.f32.mrb[0].mxu0
        %v3455 = vpop.f32.mrb[0].mxu0
        %v3456 = vadd.f32 0.0, %v3455
        %v3457 = vpop.f32.mrb[0].mxu0
        %3458 = vmatprep.mubr.bf16.mxu0 0
        %3459 = vmatmul.mubr.bf16.gmra.mrb[0].mxu0 %v3241
        %v3460 = vpop.f32.mrb[0].mxu0
        %v3461 = vadd.f32 0.0, %v3460
        %v3462 = vpop.f32.mrb[0].mxu0
        %v3463 = vpop.f32.mrb[0].mxu0
        %v3464 = vadd.f32 0.0, %v3463
        %v3465 = vpop.f32.mrb[0].mxu0
        %3466 = vdwg.mxu0
        %v3467 = vadd.f32 %v3130, %v3341
        %v3468 = vadd.f32 %v3131, %v3344
        %v3469 = vadd.f32 %v3132, %v3349
        %v3470 = vadd.f32 %v3133, %v3352
        %v3471 = vadd.f32 %v3134, %v3357
        %v3472 = vadd.f32 %v3135, %v3360
        %v3473 = vadd.f32 %v3136, %v3365
        %v3474 = vadd.f32 %v3137, %v3368
        %v3475 = vadd.f32 %v3138, %v3373
        %v3476 = vadd.f32 %v3139, %v3376
        %v3477 = vadd.f32 %v3140, %v3381
        %v3478 = vadd.f32 %v3141, %v3384
        %v3479 = vadd.f32 %v3142, %v3389
        %v3480 = vadd.f32 %v3143, %v3392
        %v3481 = vadd.f32 %v3144, %v3397
        %v3482 = vadd.f32 %v3145, %v3400
        %v3483 = vadd.f32 %v3146, %v3405
        %v3484 = vadd.f32 %v3147, %v3408
        %v3485 = vadd.f32 %v3148, %v3413
        %v3486 = vadd.f32 %v3149, %v3416
        %v3487 = vadd.f32 %v3150, %v3421
        %v3488 = vadd.f32 %v3151, %v3424
        %v3489 = vadd.f32 %v3152, %v3429
        %v3490 = vadd.f32 %v3153, %v3432
        %v3491 = vadd.f32 %v3154, %v3437
        %v3492 = vadd.f32 %v3155, %v3440
        %v3493 = vadd.f32 %v3156, %v3445
        %v3494 = vadd.f32 %v3157, %v3448
        %v3495 = vadd.f32 %v3158, %v3453
        %v3496 = vadd.f32 %v3159, %v3456
        %v3497 = vadd.f32 %v3160, %v3461
        %v3498 = vadd.f32 %v3161, %v3464
        %v3499 = vadd.f32 %v3467, %v3468
        %v3500 = vadd.f32 %v3499, %v3469
        %v3501 = vadd.f32 %v3500, %v3470
        %v3502 = vadd.f32 %v3501, %v3471
        %v3503 = vadd.f32 %v3502, %v3472
        %v3504 = vadd.f32 %v3503, %v3473
        %v3505 = vadd.f32 %v3504, %v3474
        %v3506 = vadd.f32 %v3505, %v3475
        %v3507 = vadd.f32 %v3506, %v3476
        %v3508 = vadd.f32 %v3507, %v3477
        %v3509 = vadd.f32 %v3508, %v3478
        %v3510 = vadd.f32 %v3509, %v3479
        %v3511 = vadd.f32 %v3510, %v3480
        %v3512 = vadd.f32 %v3511, %v3481
        %v3513 = vadd.f32 %v3512, %v3482
        %v3514 = vadd.f32 %v3513, %v3483
        %v3515 = vadd.f32 %v3514, %v3484
        %v3516 = vadd.f32 %v3515, %v3485
        %v3517 = vadd.f32 %v3516, %v3486
        %v3518 = vadd.f32 %v3517, %v3487
        %v3519 = vadd.f32 %v3518, %v3488
        %v3520 = vadd.f32 %v3519, %v3489
        %v3521 = vadd.f32 %v3520, %v3490
        %v3522 = vadd.f32 %v3521, %v3491
        %v3523 = vadd.f32 %v3522, %v3492
        %v3524 = vadd.f32 %v3523, %v3493
        %v3525 = vadd.f32 %v3524, %v3494
        %v3526 = vadd.f32 %v3525, %v3495
        %v3527 = vadd.f32 %v3526, %v3496
        %v3528 = vadd.f32 %v3527, %v3497
        %v3529 = vadd.f32 %v3528, %v3498
        %v3530 = vrot.slane %v3529, 4
        %v3531 = vadd.f32 %v3529, %v3530
        %v3532 = vrot.slane %v3531, 2
        %v3533 = vadd.f32 %v3531, %v3532
        %v3534 = vrot.slane %v3533, 1
        %v3535 = vadd.f32 %v3533, %v3534
        %v3536 = vmul.f32 %v3535, 0.00390625
        %v3537 = vsub.f32 %v3467, %v3536
        %v3538 = vsub.f32 %v3468, %v3536
        %v3539 = vsub.f32 %v3469, %v3536
        %v3540 = vsub.f32 %v3470, %v3536
        %v3541 = vsub.f32 %v3471, %v3536
        %v3542 = vsub.f32 %v3472, %v3536
        %v3543 = vsub.f32 %v3473, %v3536
        %v3544 = vsub.f32 %v3474, %v3536
        %v3545 = vsub.f32 %v3475, %v3536
        %v3546 = vsub.f32 %v3476, %v3536
        %v3547 = vsub.f32 %v3477, %v3536
        %v3548 = vsub.f32 %v3478, %v3536
        %v3549 = vsub.f32 %v3479, %v3536
        %v3550 = vsub.f32 %v3480, %v3536
        %v3551 = vsub.f32 %v3481, %v3536
        %v3552 = vsub.f32 %v3482, %v3536
        %v3553 = vsub.f32 %v3483, %v3536
        %v3554 = vsub.f32 %v3484, %v3536
        %v3555 = vsub.f32 %v3485, %v3536
        %v3556 = vsub.f32 %v3486, %v3536
        %v3557 = vsub.f32 %v3487, %v3536
        %v3558 = vsub.f32 %v3488, %v3536
        %v3559 = vsub.f32 %v3489, %v3536
        %v3560 = vsub.f32 %v3490, %v3536
        %v3561 = vsub.f32 %v3491, %v3536
        %v3562 = vsub.f32 %v3492, %v3536
        %v3563 = vsub.f32 %v3493, %v3536
        %v3564 = vsub.f32 %v3494, %v3536
        %v3565 = vsub.f32 %v3495, %v3536
        %v3566 = vsub.f32 %v3496, %v3536
        %v3567 = vsub.f32 %v3497, %v3536
        %v3568 = vsub.f32 %v3498, %v3536
        %v3569 = vmul.f32 %v3537, %v3537
        %v3570 = vmul.f32 %v3538, %v3538
        %v3571 = vmul.f32 %v3539, %v3539
        %v3572 = vmul.f32 %v3540, %v3540
        %v3573 = vmul.f32 %v3541, %v3541
        %v3574 = vmul.f32 %v3542, %v3542
        %v3575 = vmul.f32 %v3543, %v3543
        %v3576 = vmul.f32 %v3544, %v3544
        %v3577 = vmul.f32 %v3545, %v3545
        %v3578 = vmul.f32 %v3546, %v3546
        %v3579 = vmul.f32 %v3547, %v3547
        %v3580 = vmul.f32 %v3548, %v3548
        %v3581 = vmul.f32 %v3549, %v3549
        %v3582 = vmul.f32 %v3550, %v3550
        %v3583 = vmul.f32 %v3551, %v3551
        %v3584 = vmul.f32 %v3552, %v3552
        %v3585 = vmul.f32 %v3553, %v3553
        %v3586 = vmul.f32 %v3554, %v3554
        %v3587 = vmul.f32 %v3555, %v3555
        %v3588 = vmul.f32 %v3556, %v3556
        %v3589 = vmul.f32 %v3557, %v3557
        %v3590 = vmul.f32 %v3558, %v3558
        %v3591 = vmul.f32 %v3559, %v3559
        %v3592 = vmul.f32 %v3560, %v3560
        %v3593 = vmul.f32 %v3561, %v3561
        %v3594 = vmul.f32 %v3562, %v3562
        %v3595 = vmul.f32 %v3563, %v3563
        %v3596 = vmul.f32 %v3564, %v3564
        %v3597 = vmul.f32 %v3565, %v3565
        %v3598 = vmul.f32 %v3566, %v3566
        %v3599 = vmul.f32 %v3567, %v3567
        %v3600 = vmul.f32 %v3568, %v3568
        %v3601 = vadd.f32 %v3569, %v3570
        %v3602 = vadd.f32 %v3601, %v3571
        %v3603 = vadd.f32 %v3602, %v3572
        %v3604 = vadd.f32 %v3603, %v3573
        %v3605 = vadd.f32 %v3604, %v3574
        %v3606 = vadd.f32 %v3605, %v3575
        %v3607 = vadd.f32 %v3606, %v3576
        %v3608 = vadd.f32 %v3607, %v3577
        %v3609 = vadd.f32 %v3608, %v3578
        %v3610 = vadd.f32 %v3609, %v3579
        %v3611 = vadd.f32 %v3610, %v3580
        %v3612 = vadd.f32 %v3611, %v3581
        %v3613 = vadd.f32 %v3612, %v3582
        %v3614 = vadd.f32 %v3613, %v3583
        %v3615 = vadd.f32 %v3614, %v3584
        %v3616 = vadd.f32 %v3615, %v3585
        %v3617 = vadd.f32 %v3616, %v3586
        %v3618 = vadd.f32 %v3617, %v3587
        %v3619 = vadd.f32 %v3618, %v3588
        %v3620 = vadd.f32 %v3619, %v3589
        %v3621 = vadd.f32 %v3620, %v3590
        %v3622 = vadd.f32 %v3621, %v3591
        %v3623 = vadd.f32 %v3622, %v3592
        %v3624 = vadd.f32 %v3623, %v3593
        %v3625 = vadd.f32 %v3624, %v3594
        %v3626 = vadd.f32 %v3625, %v3595
        %v3627 = vadd.f32 %v3626, %v3596
        %v3628 = vadd.f32 %v3627, %v3597
        %v3629 = vadd.f32 %v3628, %v3598
        %v3630 = vadd.f32 %v3629, %v3599
        %v3631 = vadd.f32 %v3630, %v3600
        %v3632 = vrot.slane %v3631, 4
        %v3633 = vadd.f32 %v3631, %v3632
        %v3634 = vrot.slane %v3633, 2
        %v3635 = vadd.f32 %v3633, %v3634
        %v3636 = vrot.slane %v3635, 1
        %v3637 = vadd.f32 %v3635, %v3636
        %v3638 = vmul.f32 %v3637, 0.00390625
        %v3639 = vadd.f32 %v3638, 1e-05
        %v3640 = vrsqrt.pop %v3639
        %v3641 = vmul.f32 %v3537, %v3640
        %v3642 = vmul.f32 %v3538, %v3640
        %v3643 = vmul.f32 %v3539, %v3640
        %v3644 = vmul.f32 %v3540, %v3640
        %v3645 = vmul.f32 %v3541, %v3640
        %v3646 = vmul.f32 %v3542, %v3640
        %v3647 = vmul.f32 %v3543, %v3640
        %v3648 = vmul.f32 %v3544, %v3640
        %v3649 = vmul.f32 %v3545, %v3640
        %v3650 = vmul.f32 %v3546, %v3640
        %v3651 = vmul.f32 %v3547, %v3640
        %v3652 = vmul.f32 %v3548, %v3640
        %v3653 = vmul.f32 %v3549, %v3640
        %v3654 = vmul.f32 %v3550, %v3640
        %v3655 = vmul.f32 %v3551, %v3640
        %v3656 = vmul.f32 %v3552, %v3640
        %v3657 = vmul.f32 %v3553, %v3640
        %v3658 = vmul.f32 %v3554, %v3640
        %v3659 = vmul.f32 %v3555, %v3640
        %v3660 = vmul.f32 %v3556, %v3640
        %v3661 = vmul.f32 %v3557, %v3640
        %v3662 = vmul.f32 %v3558, %v3640
        %v3663 = vmul.f32 %v3559, %v3640
        %v3664 = vmul.f32 %v3560, %v3640
        %v3665 = vmul.f32 %v3561, %v3640
        %v3666 = vmul.f32 %v3562, %v3640
        %v3667 = vmul.f32 %v3563, %v3640
        %v3668 = vmul.f32 %v3564, %v3640
        %v3669 = vmul.f32 %v3565, %v3640
        %v3670 = vmul.f32 %v3566, %v3640
        %v3671 = vmul.f32 %v3567, %v3640
        %v3672 = vmul.f32 %v3568, %v3640
        %v3673 = vmax.f32 %v3641, 0.0
        %v3674 = vmax.f32 %v3642, 0.0
        %v3675 = vmax.f32 %v3643, 0.0
        %v3676 = vmax.f32 %v3644, 0.0
        %v3677 = vmax.f32 %v3645, 0.0
        %v3678 = vmax.f32 %v3646, 0.0
        %v3679 = vmax.f32 %v3647, 0.0
        %v3680 = vmax.f32 %v3648, 0.0
        %v3681 = vmax.f32 %v3649, 0.0
        %v3682 = vmax.f32 %v3650, 0.0
        %v3683 = vmax.f32 %v3651, 0.0
        %v3684 = vmax.f32 %v3652, 0.0
        %v3685 = vmax.f32 %v3653, 0.0
        %v3686 = vmax.f32 %v3654, 0.0
        %v3687 = vmax.f32 %v3655, 0.0
        %v3688 = vmax.f32 %v3656, 0.0
        %v3689 = vmax.f32 %v3657, 0.0
        %v3690 = vmax.f32 %v3658, 0.0
        %v3691 = vmax.f32 %v3659, 0.0
        %v3692 = vmax.f32 %v3660, 0.0
        %v3693 = vmax.f32 %v3661, 0.0
        %v3694 = vmax.f32 %v3662, 0.0
        %v3695 = vmax.f32 %v3663, 0.0
        %v3696 = vmax.f32 %v3664, 0.0
        %v3697 = vmax.f32 %v3665, 0.0
        %v3698 = vmax.f32 %v3666, 0.0
        %v3699 = vmax.f32 %v3667, 0.0
        %v3700 = vmax.f32 %v3668, 0.0
        %v3701 = vmax.f32 %v3669, 0.0
        %v3702 = vmax.f32 %v3670, 0.0
        %v3703 = vmax.f32 %v3671, 0.0
        %v3704 = vmax.f32 %v3672, 0.0
        %v3705 = vpack.c.bf16 %v3674, %v3673
        %v3706 = vpack.c.bf16 %v3676, %v3675
        %v3707 = vpack.c.bf16 %v3678, %v3677
        %v3708 = vpack.c.bf16 %v3680, %v3679
        %v3709 = vpack.c.bf16 %v3682, %v3681
        %v3710 = vpack.c.bf16 %v3684, %v3683
        %v3711 = vpack.c.bf16 %v3686, %v3685
        %v3712 = vpack.c.bf16 %v3688, %v3687
        %v3713 = vpack.c.bf16 %v3690, %v3689
        %v3714 = vpack.c.bf16 %v3692, %v3691
        %v3715 = vpack.c.bf16 %v3694, %v3693
        %v3716 = vpack.c.bf16 %v3696, %v3695
        %v3717 = vpack.c.bf16 %v3698, %v3697
        %v3718 = vpack.c.bf16 %v3700, %v3699
        %v3719 = vpack.c.bf16 %v3702, %v3701
        %v3720 = vpack.c.bf16 %v3704, %v3703
        %v3721 = vld [vmem:[#allocation9] sm:$0xf]
        %v3722 = vld [vmem:[#allocation9 + $0x4] sm:$0xf]
        %v3723 = vld [vmem:[#allocation9 + $0x8] sm:$0xf]
        %v3724 = vld [vmem:[#allocation9 + $0xc] sm:$0xf]
        %v3725 = vld [vmem:[#allocation9 + $0x10] sm:$0xf]
        %v3726 = vld [vmem:[#allocation9 + $0x14] sm:$0xf]
        %v3727 = vld [vmem:[#allocation9 + $0x18] sm:$0xf]
        %v3728 = vld [vmem:[#allocation9 + $0x1c] sm:$0xf]
        %v3729 = vld [vmem:[#allocation9 + $0x20] sm:$0xf]
        %v3730 = vld [vmem:[#allocation9 + $0x24] sm:$0xf]
        %v3731 = vld [vmem:[#allocation9 + $0x28] sm:$0xf]
        %v3732 = vld [vmem:[#allocation9 + $0x2c] sm:$0xf]
        %v3733 = vld [vmem:[#allocation9 + $0x30] sm:$0xf]
        %v3734 = vld [vmem:[#allocation9 + $0x34] sm:$0xf]
        %v3735 = vld [vmem:[#allocation9 + $0x38] sm:$0xf]
        %v3736 = vld [vmem:[#allocation9 + $0x3c] sm:$0xf]
        %v3753 = vunpack.c.l.b16 %v3721
        %v3754 = vunpack.c.l.b16 %v3722
        %v3755 = vunpack.c.l.b16 %v3723
        %v3756 = vunpack.c.l.b16 %v3724
        %v3757 = vunpack.c.l.b16 %v3725
        %v3758 = vunpack.c.l.b16 %v3726
        %v3759 = vunpack.c.l.b16 %v3727
        %v3760 = vunpack.c.l.b16 %v3728
        %v3761 = vunpack.c.l.b16 %v3729
        %v3762 = vunpack.c.l.b16 %v3730
        %v3763 = vunpack.c.l.b16 %v3731
        %v3764 = vunpack.c.l.b16 %v3732
        %v3765 = vunpack.c.l.b16 %v3733
        %v3766 = vunpack.c.l.b16 %v3734
        %v3767 = vunpack.c.l.b16 %v3735
        %v3768 = vunpack.c.l.b16 %v3736
        %v3769 = vpack.c.b16 %v3754, %v3753
        %v3770 = vpack.c.b16 %v3756, %v3755
        %v3771 = vpack.c.b16 %v3758, %v3757
        %v3772 = vpack.c.b16 %v3760, %v3759
        %v3773 = vpack.c.b16 %v3762, %v3761
        %v3774 = vpack.c.b16 %v3764, %v3763
        %v3775 = vpack.c.b16 %v3766, %v3765
        %v3776 = vpack.c.b16 %v3768, %v3767
        %3785 = vmatprep.subr.bf16.mxu0 0
        %3786 = vmatpush1.bf16.msra.mxu0 %v3769
        %3787 = vmatprep.subr.bf16.mxu0 0
        %3788 = vmatpush1.bf16.msra.mxu0 %v3770
        %3789 = vmatprep.subr.bf16.mxu0 0
        %3790 = vmatpush1.bf16.msra.mxu0 %v3771
        %3791 = vmatprep.subr.bf16.mxu0 0
        %3792 = vmatpush1.bf16.msra.mxu0 %v3772
        %3793 = vmatprep.subr.bf16.mxu0 0
        %3794 = vmatpush1.bf16.msra.mxu0 %v3773
        %3795 = vmatprep.subr.bf16.mxu0 0
        %3796 = vmatpush1.bf16.msra.mxu0 %v3774
        %3797 = vmatprep.subr.bf16.mxu0 0
        %3798 = vmatpush1.bf16.msra.mxu0 %v3775
        %3799 = vmatprep.subr.bf16.mxu0 0
        %3800 = vmatpush1.bf16.msra.mxu0 %v3776
        %3801 = vmatprep.subr.bf16.mxu0 0
        %3802 = vmatpush1.bf16.msra.mxu0 0
        %3803 = vmatprep.subr.bf16.mxu0 0
        %3804 = vmatpush1.bf16.msra.mxu0 0
        %3805 = vmatprep.subr.bf16.mxu0 0
        %3806 = vmatpush1.bf16.msra.mxu0 0
        %3807 = vmatprep.subr.bf16.mxu0 0
        %3808 = vmatpush1.bf16.msra.mxu0 0
        %3809 = vmatprep.subr.bf16.mxu0 0
        %3810 = vmatpush1.bf16.msra.mxu0 0
        %3811 = vmatprep.subr.bf16.mxu0 0
        %3812 = vmatpush1.bf16.msra.mxu0 0
        %3813 = vmatprep.subr.bf16.mxu0 0
        %3814 = vmatpush1.bf16.msra.mxu0 0
        %3815 = vmatprep.subr.bf16.mxu0 0
        %3816 = vmatpush1.bf16.msra.mxu0 0
        %3817 = vmatprep.mubr.bf16.mxu0 0
        %3818 = vmatmul.mubr.bf16.gmra.mrb[0].mxu0 %v3705
        %v3819 = vpop.f32.mrb[0].mxu0
        %v3820 = vadd.f32 0.0, %v3819
        %v3821 = vpop.f32.mrb[0].mxu0
        %v3822 = vpop.f32.mrb[0].mxu0
        %v3823 = vadd.f32 0.0, %v3822
        %v3824 = vpop.f32.mrb[0].mxu0
        %3825 = vmatprep.mubr.bf16.mxu0 0
        %3826 = vmatmul.mubr.bf16.gmra.mrb[0].mxu0 %v3706
        %v3827 = vpop.f32.mrb[0].mxu0
        %v3828 = vadd.f32 0.0, %v3827
        %v3829 = vpop.f32.mrb[0].mxu0
        %v3830 = vpop.f32.mrb[0].mxu0
        %v3831 = vadd.f32 0.0, %v3830
        %v3832 = vpop.f32.mrb[0].mxu0
        %3833 = vmatprep.mubr.bf16.mxu0 0
        %3834 = vmatmul.mubr.bf16.gmra.mrb[0].mxu0 %v3707
        %v3835 = vpop.f32.mrb[0].mxu0
        %v3836 = vadd.f32 0.0, %v3835
        %v3837 = vpop.f32.mrb[0].mxu0
        %v3838 = vpop.f32.mrb[0].mxu0
        %v3839 = vadd.f32 0.0, %v3838
        %v3840 = vpop.f32.mrb[0].mxu0
        %3841 = vmatprep.mubr.bf16.mxu0 0
        %3842 = vmatmul.mubr.bf16.gmra.mrb[0].mxu0 %v3708
        %v3843 = vpop.f32.mrb[0].mxu0
        %v3844 = vadd.f32 0.0, %v3843
        %v3845 = vpop.f32.mrb[0].mxu0
        %v3846 = vpop.f32.mrb[0].mxu0
        %v3847 = vadd.f32 0.0, %v3846
        %v3848 = vpop.f32.mrb[0].mxu0
        %3849 = vmatprep.mubr.bf16.mxu0 0
        %3850 = vmatmul.mubr.bf16.gmra.mrb[0].mxu0 %v3709
        %v3851 = vpop.f32.mrb[0].mxu0
        %v3852 = vadd.f32 0.0, %v3851
        %v3853 = vpop.f32.mrb[0].mxu0
        %v3854 = vpop.f32.mrb[0].mxu0
        %v3855 = vadd.f32 0.0, %v3854
        %v3856 = vpop.f32.mrb[0].mxu0
        %3857 = vmatprep.mubr.bf16.mxu0 0
        %3858 = vmatmul.mubr.bf16.gmra.mrb[0].mxu0 %v3710
        %v3859 = vpop.f32.mrb[0].mxu0
        %v3860 = vadd.f32 0.0, %v3859
        %v3861 = vpop.f32.mrb[0].mxu0
        %v3862 = vpop.f32.mrb[0].mxu0
        %v3863 = vadd.f32 0.0, %v3862
        %v3864 = vpop.f32.mrb[0].mxu0
        %3865 = vmatprep.mubr.bf16.mxu0 0
        %3866 = vmatmul.mubr.bf16.gmra.mrb[0].mxu0 %v3711
        %v3867 = vpop.f32.mrb[0].mxu0
        %v3868 = vadd.f32 0.0, %v3867
        %v3869 = vpop.f32.mrb[0].mxu0
        %v3870 = vpop.f32.mrb[0].mxu0
        %v3871 = vadd.f32 0.0, %v3870
        %v3872 = vpop.f32.mrb[0].mxu0
        %3873 = vmatprep.mubr.bf16.mxu0 0
        %3874 = vmatmul.mubr.bf16.gmra.mrb[0].mxu0 %v3712
        %v3875 = vpop.f32.mrb[0].mxu0
        %v3876 = vadd.f32 0.0, %v3875
        %v3877 = vpop.f32.mrb[0].mxu0
        %v3878 = vpop.f32.mrb[0].mxu0
        %v3879 = vadd.f32 0.0, %v3878
        %v3880 = vpop.f32.mrb[0].mxu0
        %3881 = vmatprep.mubr.bf16.mxu0 0
        %3882 = vmatmul.mubr.bf16.gmra.mrb[0].mxu0 %v3713
        %v3883 = vpop.f32.mrb[0].mxu0
        %v3884 = vadd.f32 0.0, %v3883
        %v3885 = vpop.f32.mrb[0].mxu0
        %v3886 = vpop.f32.mrb[0].mxu0
        %v3887 = vadd.f32 0.0, %v3886
        %v3888 = vpop.f32.mrb[0].mxu0
        %3889 = vmatprep.mubr.bf16.mxu0 0
        %3890 = vmatmul.mubr.bf16.gmra.mrb[0].mxu0 %v3714
        %v3891 = vpop.f32.mrb[0].mxu0
        %v3892 = vadd.f32 0.0, %v3891
        %v3893 = vpop.f32.mrb[0].mxu0
        %v3894 = vpop.f32.mrb[0].mxu0
        %v3895 = vadd.f32 0.0, %v3894
        %v3896 = vpop.f32.mrb[0].mxu0
        %3897 = vmatprep.mubr.bf16.mxu0 0
        %3898 = vmatmul.mubr.bf16.gmra.mrb[0].mxu0 %v3715
        %v3899 = vpop.f32.mrb[0].mxu0
        %v3900 = vadd.f32 0.0, %v3899
        %v3901 = vpop.f32.mrb[0].mxu0
        %v3902 = vpop.f32.mrb[0].mxu0
        %v3903 = vadd.f32 0.0, %v3902
        %v3904 = vpop.f32.mrb[0].mxu0
        %3905 = vmatprep.mubr.bf16.mxu0 0
        %3906 = vmatmul.mubr.bf16.gmra.mrb[0].mxu0 %v3716
        %v3907 = vpop.f32.mrb[0].mxu0
        %v3908 = vadd.f32 0.0, %v3907
        %v3909 = vpop.f32.mrb[0].mxu0
        %v3910 = vpop.f32.mrb[0].mxu0
        %v3911 = vadd.f32 0.0, %v3910
        %v3912 = vpop.f32.mrb[0].mxu0
        %3913 = vmatprep.mubr.bf16.mxu0 0
        %3914 = vmatmul.mubr.bf16.gmra.mrb[0].mxu0 %v3717
        %v3915 = vpop.f32.mrb[0].mxu0
        %v3916 = vadd.f32 0.0, %v3915
        %v3917 = vpop.f32.mrb[0].mxu0
        %v3918 = vpop.f32.mrb[0].mxu0
        %v3919 = vadd.f32 0.0, %v3918
        %v3920 = vpop.f32.mrb[0].mxu0
        %3921 = vmatprep.mubr.bf16.mxu0 0
        %3922 = vmatmul.mubr.bf16.gmra.mrb[0].mxu0 %v3718
        %v3923 = vpop.f32.mrb[0].mxu0
        %v3924 = vadd.f32 0.0, %v3923
        %v3925 = vpop.f32.mrb[0].mxu0
        %v3926 = vpop.f32.mrb[0].mxu0
        %v3927 = vadd.f32 0.0, %v3926
        %v3928 = vpop.f32.mrb[0].mxu0
        %3929 = vmatprep.mubr.bf16.mxu0 0
        %3930 = vmatmul.mubr.bf16.gmra.mrb[0].mxu0 %v3719
        %v3931 = vpop.f32.mrb[0].mxu0
        %v3932 = vadd.f32 0.0, %v3931
        %v3933 = vpop.f32.mrb[0].mxu0
        %v3934 = vpop.f32.mrb[0].mxu0
        %v3935 = vadd.f32 0.0, %v3934
        %v3936 = vpop.f32.mrb[0].mxu0
        %3937 = vmatprep.mubr.bf16.mxu0 0
        %3938 = vmatmul.mubr.bf16.gmra.mrb[0].mxu0 %v3720
        %v3939 = vpop.f32.mrb[0].mxu0
        %v3940 = vadd.f32 0.0, %v3939
        %v3941 = vpop.f32.mrb[0].mxu0
        %v3942 = vpop.f32.mrb[0].mxu0
        %v3943 = vadd.f32 0.0, %v3942
        %v3944 = vpop.f32.mrb[0].mxu0
        %3945 = vdwg.mxu0
        %v3946 = vadd.f32 %v3820, %v3823
        %v3947 = vadd.f32 %v3946, %v3828
        %v3948 = vadd.f32 %v3947, %v3831
        %v3949 = vadd.f32 %v3948, %v3836
        %v3950 = vadd.f32 %v3949, %v3839
        %v3951 = vadd.f32 %v3950, %v3844
        %v3952 = vadd.f32 %v3951, %v3847
        %v3953 = vadd.f32 %v3952, %v3852
        %v3954 = vadd.f32 %v3953, %v3855
        %v3955 = vadd.f32 %v3954, %v3860
        %v3956 = vadd.f32 %v3955, %v3863
        %v3957 = vadd.f32 %v3956, %v3868
        %v3958 = vadd.f32 %v3957, %v3871
        %v3959 = vadd.f32 %v3958, %v3876
        %v3960 = vadd.f32 %v3959, %v3879
        %v3961 = vadd.f32 %v3960, %v3884
        %v3962 = vadd.f32 %v3961, %v3887
        %v3963 = vadd.f32 %v3962, %v3892
        %v3964 = vadd.f32 %v3963, %v3895
        %v3965 = vadd.f32 %v3964, %v3900
        %v3966 = vadd.f32 %v3965, %v3903
        %v3967 = vadd.f32 %v3966, %v3908
        %v3968 = vadd.f32 %v3967, %v3911
        %v3969 = vadd.f32 %v3968, %v3916
        %v3970 = vadd.f32 %v3969, %v3919
        %v3971 = vadd.f32 %v3970, %v3924
        %v3972 = vadd.f32 %v3971, %v3927
        %v3973 = vadd.f32 %v3972, %v3932
        %v3974 = vadd.f32 %v3973, %v3935
        %v3975 = vadd.f32 %v3974, %v3940
        %v3976 = vadd.f32 %v3975, %v3943
        %v3977 = vrot.slane %v3976, 4
        %v3978 = vadd.f32 %v3976, %v3977
        %v3979 = vrot.slane %v3978, 2
        %v3980 = vadd.f32 %v3978, %v3979
        %v3981 = vrot.slane %v3980, 1
        %v3982 = vadd.f32 %v3980, %v3981
        %v3983 = vmul.f32 %v3982, 0.00390625
        %v3984 = vsub.f32 %v3820, %v3983
        %v3985 = vsub.f32 %v3823, %v3983
        %v3986 = vsub.f32 %v3828, %v3983
        %v3987 = vsub.f32 %v3831, %v3983
        %v3988 = vsub.f32 %v3836, %v3983
        %v3989 = vsub.f32 %v3839, %v3983
        %v3990 = vsub.f32 %v3844, %v3983
        %v3991 = vsub.f32 %v3847, %v3983
        %v3992 = vsub.f32 %v3852, %v3983
        %v3993 = vsub.f32 %v3855, %v3983
        %v3994 = vsub.f32 %v3860, %v3983
        %v3995 = vsub.f32 %v3863, %v3983
        %v3996 = vsub.f32 %v3868, %v3983
        %v3997 = vsub.f32 %v3871, %v3983
        %v3998 = vsub.f32 %v3876, %v3983
        %v3999 = vsub.f32 %v3879, %v3983
        %v4000 = vsub.f32 %v3884, %v3983
        %v4001 = vsub.f32 %v3887, %v3983
        %v4002 = vsub.f32 %v3892, %v3983
        %v4003 = vsub.f32 %v3895, %v3983
        %v4004 = vsub.f32 %v3900, %v3983
        %v4005 = vsub.f32 %v3903, %v3983
        %v4006 = vsub.f32 %v3908, %v3983
        %v4007 = vsub.f32 %v3911, %v3983
        %v4008 = vsub.f32 %v3916, %v3983
        %v4009 = vsub.f32 %v3919, %v3983
        %v4010 = vsub.f32 %v3924, %v3983
        %v4011 = vsub.f32 %v3927, %v3983
        %v4012 = vsub.f32 %v3932, %v3983
        %v4013 = vsub.f32 %v3935, %v3983
        %v4014 = vsub.f32 %v3940, %v3983
        %v4015 = vsub.f32 %v3943, %v3983
        %v4016 = vmul.f32 %v3984, %v3984
        %v4017 = vmul.f32 %v3985, %v3985
        %v4018 = vmul.f32 %v3986, %v3986
        %v4019 = vmul.f32 %v3987, %v3987
        %v4020 = vmul.f32 %v3988, %v3988
        %v4021 = vmul.f32 %v3989, %v3989
        %v4022 = vmul.f32 %v3990, %v3990
        %v4023 = vmul.f32 %v3991, %v3991
        %v4024 = vmul.f32 %v3992, %v3992
        %v4025 = vmul.f32 %v3993, %v3993
        %v4026 = vmul.f32 %v3994, %v3994
        %v4027 = vmul.f32 %v3995, %v3995
        %v4028 = vmul.f32 %v3996, %v3996
        %v4029 = vmul.f32 %v3997, %v3997
        %v4030 = vmul.f32 %v3998, %v3998
        %v4031 = vmul.f32 %v3999, %v3999
        %v4032 = vmul.f32 %v4000, %v4000
        %v4033 = vmul.f32 %v4001, %v4001
        %v4034 = vmul.f32 %v4002, %v4002
        %v4035 = vmul.f32 %v4003, %v4003
        %v4036 = vmul.f32 %v4004, %v4004
        %v4037 = vmul.f32 %v4005, %v4005
        %v4038 = vmul.f32 %v4006, %v4006
        %v4039 = vmul.f32 %v4007, %v4007
        %v4040 = vmul.f32 %v4008, %v4008
        %v4041 = vmul.f32 %v4009, %v4009
        %v4042 = vmul.f32 %v4010, %v4010
        %v4043 = vmul.f32 %v4011, %v4011
        %v4044 = vmul.f32 %v4012, %v4012
        %v4045 = vmul.f32 %v4013, %v4013
        %v4046 = vmul.f32 %v4014, %v4014
        %v4047 = vmul.f32 %v4015, %v4015
        %v4048 = vadd.f32 %v4016, %v4017
        %v4049 = vadd.f32 %v4048, %v4018
        %v4050 = vadd.f32 %v4049, %v4019
        %v4051 = vadd.f32 %v4050, %v4020
        %v4052 = vadd.f32 %v4051, %v4021
        %v4053 = vadd.f32 %v4052, %v4022
        %v4054 = vadd.f32 %v4053, %v4023
        %v4055 = vadd.f32 %v4054, %v4024
        %v4056 = vadd.f32 %v4055, %v4025
        %v4057 = vadd.f32 %v4056, %v4026
        %v4058 = vadd.f32 %v4057, %v4027
        %v4059 = vadd.f32 %v4058, %v4028
        %v4060 = vadd.f32 %v4059, %v4029
        %v4061 = vadd.f32 %v4060, %v4030
        %v4062 = vadd.f32 %v4061, %v4031
        %v4063 = vadd.f32 %v4062, %v4032
        %v4064 = vadd.f32 %v4063, %v4033
        %v4065 = vadd.f32 %v4064, %v4034
        %v4066 = vadd.f32 %v4065, %v4035
        %v4067 = vadd.f32 %v4066, %v4036
        %v4068 = vadd.f32 %v4067, %v4037
        %v4069 = vadd.f32 %v4068, %v4038
        %v4070 = vadd.f32 %v4069, %v4039
        %v4071 = vadd.f32 %v4070, %v4040
        %v4072 = vadd.f32 %v4071, %v4041
        %v4073 = vadd.f32 %v4072, %v4042
        %v4074 = vadd.f32 %v4073, %v4043
        %v4075 = vadd.f32 %v4074, %v4044
        %v4076 = vadd.f32 %v4075, %v4045
        %v4077 = vadd.f32 %v4076, %v4046
        %v4078 = vadd.f32 %v4077, %v4047
        %v4079 = vrot.slane %v4078, 4
        %v4080 = vadd.f32 %v4078, %v4079
        %v4081 = vrot.slane %v4080, 2
        %v4082 = vadd.f32 %v4080, %v4081
        %v4083 = vrot.slane %v4082, 1
        %v4084 = vadd.f32 %v4082, %v4083
        %v4085 = vmul.f32 %v4084, 0.00390625
        %v4086 = vadd.f32 %v4085, 1e-05
        %v4087 = vrsqrt.pop %v4086
        %v4088 = vmul.f32 %v3984, %v4087
        %v4089 = vmul.f32 %v3985, %v4087
        %v4090 = vmul.f32 %v3986, %v4087
        %v4091 = vmul.f32 %v3987, %v4087
        %v4092 = vmul.f32 %v3988, %v4087
        %v4093 = vmul.f32 %v3989, %v4087
        %v4094 = vmul.f32 %v3990, %v4087
        %v4095 = vmul.f32 %v3991, %v4087
        %v4096 = vmul.f32 %v3992, %v4087
        %v4097 = vmul.f32 %v3993, %v4087
        %v4098 = vmul.f32 %v3994, %v4087
        %v4099 = vmul.f32 %v3995, %v4087
        %v4100 = vmul.f32 %v3996, %v4087
        %v4101 = vmul.f32 %v3997, %v4087
        %v4102 = vmul.f32 %v3998, %v4087
        %v4103 = vmul.f32 %v3999, %v4087
        %v4104 = vmul.f32 %v4000, %v4087
        %v4105 = vmul.f32 %v4001, %v4087
        %v4106 = vmul.f32 %v4002, %v4087
        %v4107 = vmul.f32 %v4003, %v4087
        %v4108 = vmul.f32 %v4004, %v4087
        %v4109 = vmul.f32 %v4005, %v4087
        %v4110 = vmul.f32 %v4006, %v4087
        %v4111 = vmul.f32 %v4007, %v4087
        %v4112 = vmul.f32 %v4008, %v4087
        %v4113 = vmul.f32 %v4009, %v4087
        %v4114 = vmul.f32 %v4010, %v4087
        %v4115 = vmul.f32 %v4011, %v4087
        %v4116 = vmul.f32 %v4012, %v4087
        %v4117 = vmul.f32 %v4013, %v4087
        %v4118 = vmul.f32 %v4014, %v4087
        %v4119 = vmul.f32 %v4015, %v4087
        %v4120 = vmax.f32 %v4088, 0.0
        %v4121 = vmax.f32 %v4089, 0.0
        %v4122 = vmax.f32 %v4090, 0.0
        %v4123 = vmax.f32 %v4091, 0.0
        %v4124 = vmax.f32 %v4092, 0.0
        %v4125 = vmax.f32 %v4093, 0.0
        %v4126 = vmax.f32 %v4094, 0.0
        %v4127 = vmax.f32 %v4095, 0.0
        %v4128 = vmax.f32 %v4096, 0.0
        %v4129 = vmax.f32 %v4097, 0.0
        %v4130 = vmax.f32 %v4098, 0.0
        %v4131 = vmax.f32 %v4099, 0.0
        %v4132 = vmax.f32 %v4100, 0.0
        %v4133 = vmax.f32 %v4101, 0.0
        %v4134 = vmax.f32 %v4102, 0.0
        %v4135 = vmax.f32 %v4103, 0.0
        %v4136 = vmax.f32 %v4104, 0.0
        %v4137 = vmax.f32 %v4105, 0.0
        %v4138 = vmax.f32 %v4106, 0.0
        %v4139 = vmax.f32 %v4107, 0.0
        %v4140 = vmax.f32 %v4108, 0.0
        %v4141 = vmax.f32 %v4109, 0.0
        %v4142 = vmax.f32 %v4110, 0.0
        %v4143 = vmax.f32 %v4111, 0.0
        %v4144 = vmax.f32 %v4112, 0.0
        %v4145 = vmax.f32 %v4113, 0.0
        %v4146 = vmax.f32 %v4114, 0.0
        %v4147 = vmax.f32 %v4115, 0.0
        %v4148 = vmax.f32 %v4116, 0.0
        %v4149 = vmax.f32 %v4117, 0.0
        %v4150 = vmax.f32 %v4118, 0.0
        %v4151 = vmax.f32 %v4119, 0.0
        %v4152 = vld [vmem:[%s258] sm:$0xff]
        %v4153 = vld [vmem:[%s258 + $0x8] sm:$0xff]
        %v4154 = vld [vmem:[%s258 + $0x10] sm:$0xff]
        %v4155 = vld [vmem:[%s258 + $0x18] sm:$0xff]
        %v4156 = vld [vmem:[%s258 + $0x20] sm:$0xff]
        %v4157 = vld [vmem:[%s258 + $0x28] sm:$0xff]
        %v4158 = vld [vmem:[%s258 + $0x30] sm:$0xff]
        %v4159 = vld [vmem:[%s258 + $0x38] sm:$0xff]
        %v4160 = vld [vmem:[%s258 + $0x40] sm:$0xff]
        %v4161 = vld [vmem:[%s258 + $0x48] sm:$0xff]
        %v4162 = vld [vmem:[%s258 + $0x50] sm:$0xff]
        %v4163 = vld [vmem:[%s258 + $0x58] sm:$0xff]
        %v4164 = vld [vmem:[%s258 + $0x60] sm:$0xff]
        %v4165 = vld [vmem:[%s258 + $0x68] sm:$0xff]
        %v4166 = vld [vmem:[%s258 + $0x70] sm:$0xff]
        %v4167 = vld [vmem:[%s258 + $0x78] sm:$0xff]
        %v4168 = vld [vmem:[%s258 + $0x80] sm:$0xff]
        %v4169 = vld [vmem:[%s258 + $0x88] sm:$0xff]
        %v4170 = vld [vmem:[%s258 + $0x90] sm:$0xff]
        %v4171 = vld [vmem:[%s258 + $0x98] sm:$0xff]
        %v4172 = vld [vmem:[%s258 + $0xa0] sm:$0xff]
        %v4173 = vld [vmem:[%s258 + $0xa8] sm:$0xff]
        %v4174 = vld [vmem:[%s258 + $0xb0] sm:$0xff]
        %v4175 = vld [vmem:[%s258 + $0xb8] sm:$0xff]
        %v4176 = vld [vmem:[%s258 + $0xc0] sm:$0xff]
        %v4177 = vld [vmem:[%s258 + $0xc8] sm:$0xff]
        %v4178 = vld [vmem:[%s258 + $0xd0] sm:$0xff]
        %v4179 = vld [vmem:[%s258 + $0xd8] sm:$0xff]
        %v4180 = vld [vmem:[%s258 + $0xe0] sm:$0xff]
        %v4181 = vld [vmem:[%s258 + $0xe8] sm:$0xff]
        %v4182 = vld [vmem:[%s258 + $0xf0] sm:$0xff]
        %v4183 = vld [vmem:[%s258 + $0xf8] sm:$0xff]
        %v4184 = vpack.c.bf16 %v4153, %v4152
        %v4185 = vpack.c.bf16 %v4155, %v4154
        %v4186 = vpack.c.bf16 %v4157, %v4156
        %v4187 = vpack.c.bf16 %v4159, %v4158
        %v4188 = vpack.c.bf16 %v4161, %v4160
        %v4189 = vpack.c.bf16 %v4163, %v4162
        %v4190 = vpack.c.bf16 %v4165, %v4164
        %v4191 = vpack.c.bf16 %v4167, %v4166
        %v4192 = vpack.c.bf16 %v4169, %v4168
        %v4193 = vpack.c.bf16 %v4171, %v4170
        %v4194 = vpack.c.bf16 %v4173, %v4172
        %v4195 = vpack.c.bf16 %v4175, %v4174
        %v4196 = vpack.c.bf16 %v4177, %v4176
        %v4197 = vpack.c.bf16 %v4179, %v4178
        %v4198 = vpack.c.bf16 %v4181, %v4180
        %v4199 = vpack.c.bf16 %v4183, %v4182
        %v4200 = vld [vmem:[#allocation11] sm:$0xf]
        %v4201 = vld [vmem:[#allocation11 + $0x4] sm:$0xf]
        %v4202 = vld [vmem:[#allocation11 + $0x8] sm:$0xf]
        %v4203 = vld [vmem:[#allocation11 + $0xc] sm:$0xf]
        %v4204 = vld [vmem:[#allocation11 + $0x10] sm:$0xf]
        %v4205 = vld [vmem:[#allocation11 + $0x14] sm:$0xf]
        %v4206 = vld [vmem:[#allocation11 + $0x18] sm:$0xf]
        %v4207 = vld [vmem:[#allocation11 + $0x1c] sm:$0xf]
        %v4208 = vld [vmem:[#allocation11 + $0x20] sm:$0xf]
        %v4209 = vld [vmem:[#allocation11 + $0x24] sm:$0xf]
        %v4210 = vld [vmem:[#allocation11 + $0x28] sm:$0xf]
        %v4211 = vld [vmem:[#allocation11 + $0x2c] sm:$0xf]
        %v4212 = vld [vmem:[#allocation11 + $0x30] sm:$0xf]
        %v4213 = vld [vmem:[#allocation11 + $0x34] sm:$0xf]
        %v4214 = vld [vmem:[#allocation11 + $0x38] sm:$0xf]
        %v4215 = vld [vmem:[#allocation11 + $0x3c] sm:$0xf]
        %v4232 = vunpack.c.l.b16 %v4200
        %v4233 = vunpack.c.l.b16 %v4201
        %v4234 = vunpack.c.l.b16 %v4202
        %v4235 = vunpack.c.l.b16 %v4203
        %v4236 = vunpack.c.l.b16 %v4204
        %v4237 = vunpack.c.l.b16 %v4205
        %v4238 = vunpack.c.l.b16 %v4206
        %v4239 = vunpack.c.l.b16 %v4207
        %v4240 = vunpack.c.l.b16 %v4208
        %v4241 = vunpack.c.l.b16 %v4209
        %v4242 = vunpack.c.l.b16 %v4210
        %v4243 = vunpack.c.l.b16 %v4211
        %v4244 = vunpack.c.l.b16 %v4212
        %v4245 = vunpack.c.l.b16 %v4213
        %v4246 = vunpack.c.l.b16 %v4214
        %v4247 = vunpack.c.l.b16 %v4215
        %v4248 = vpack.c.b16 %v4233, %v4232
        %v4249 = vpack.c.b16 %v4235, %v4234
        %v4250 = vpack.c.b16 %v4237, %v4236
        %v4251 = vpack.c.b16 %v4239, %v4238
        %v4252 = vpack.c.b16 %v4241, %v4240
        %v4253 = vpack.c.b16 %v4243, %v4242
        %v4254 = vpack.c.b16 %v4245, %v4244
        %v4255 = vpack.c.b16 %v4247, %v4246
        %4264 = vmatprep.subr.bf16.mxu0 0
        %4265 = vmatpush1.bf16.msra.mxu0 %v4248
        %4266 = vmatprep.subr.bf16.mxu0 0
        %4267 = vmatpush1.bf16.msra.mxu0 %v4249
        %4268 = vmatprep.subr.bf16.mxu0 0
        %4269 = vmatpush1.bf16.msra.mxu0 %v4250
        %4270 = vmatprep.subr.bf16.mxu0 0
        %4271 = vmatpush1.bf16.msra.mxu0 %v4251
        %4272 = vmatprep.subr.bf16.mxu0 0
        %4273 = vmatpush1.bf16.msra.mxu0 %v4252
        %4274 = vmatprep.subr.bf16.mxu0 0
        %4275 = vmatpush1.bf16.msra.mxu0 %v4253
        %4276 = vmatprep.subr.bf16.mxu0 0
        %4277 = vmatpush1.bf16.msra.mxu0 %v4254
        %4278 = vmatprep.subr.bf16.mxu0 0
        %4279 = vmatpush1.bf16.msra.mxu0 %v4255
        %4280 = vmatprep.subr.bf16.mxu0 0
        %4281 = vmatpush1.bf16.msra.mxu0 0
        %4282 = vmatprep.subr.bf16.mxu0 0
        %4283 = vmatpush1.bf16.msra.mxu0 0
        %4284 = vmatprep.subr.bf16.mxu0 0
        %4285 = vmatpush1.bf16.msra.mxu0 0
        %4286 = vmatprep.subr.bf16.mxu0 0
        %4287 = vmatpush1.bf16.msra.mxu0 0
        %4288 = vmatprep.subr.bf16.mxu0 0
        %4289 = vmatpush1.bf16.msra.mxu0 0
        %4290 = vmatprep.subr.bf16.mxu0 0
        %4291 = vmatpush1.bf16.msra.mxu0 0
        %4292 = vmatprep.subr.bf16.mxu0 0
        %4293 = vmatpush1.bf16.msra.mxu0 0
        %4294 = vmatprep.subr.bf16.mxu0 0
        %4295 = vmatpush1.bf16.msra.mxu0 0
        %4296 = vmatprep.mubr.bf16.mxu0 0
        %4297 = vmatmul.mubr.bf16.gmra.mrb[0].mxu0 %v4184
        %v4298 = vpop.f32.mrb[0].mxu0
        %v4299 = vadd.f32 0.0, %v4298
        %v4300 = vpop.f32.mrb[0].mxu0
        %v4301 = vpop.f32.mrb[0].mxu0
        %v4302 = vadd.f32 0.0, %v4301
        %v4303 = vpop.f32.mrb[0].mxu0
        %4304 = vmatprep.mubr.bf16.mxu0 0
        %4305 = vmatmul.mubr.bf16.gmra.mrb[0].mxu0 %v4185
        %v4306 = vpop.f32.mrb[0].mxu0
        %v4307 = vadd.f32 0.0, %v4306
        %v4308 = vpop.f32.mrb[0].mxu0
        %v4309 = vpop.f32.mrb[0].mxu0
        %v4310 = vadd.f32 0.0, %v4309
        %v4311 = vpop.f32.mrb[0].mxu0
        %4312 = vmatprep.mubr.bf16.mxu0 0
        %4313 = vmatmul.mubr.bf16.gmra.mrb[0].mxu0 %v4186
        %v4314 = vpop.f32.mrb[0].mxu0
        %v4315 = vadd.f32 0.0, %v4314
        %v4316 = vpop.f32.mrb[0].mxu0
        %v4317 = vpop.f32.mrb[0].mxu0
        %v4318 = vadd.f32 0.0, %v4317
        %v4319 = vpop.f32.mrb[0].mxu0
        %4320 = vmatprep.mubr.bf16.mxu0 0
        %4321 = vmatmul.mubr.bf16.gmra.mrb[0].mxu0 %v4187
        %v4322 = vpop.f32.mrb[0].mxu0
        %v4323 = vadd.f32 0.0, %v4322
        %v4324 = vpop.f32.mrb[0].mxu0
        %v4325 = vpop.f32.mrb[0].mxu0
        %v4326 = vadd.f32 0.0, %v4325
        %v4327 = vpop.f32.mrb[0].mxu0
        %4328 = vmatprep.mubr.bf16.mxu0 0
        %4329 = vmatmul.mubr.bf16.gmra.mrb[0].mxu0 %v4188
        %v4330 = vpop.f32.mrb[0].mxu0
        %v4331 = vadd.f32 0.0, %v4330
        %v4332 = vpop.f32.mrb[0].mxu0
        %v4333 = vpop.f32.mrb[0].mxu0
        %v4334 = vadd.f32 0.0, %v4333
        %v4335 = vpop.f32.mrb[0].mxu0
        %4336 = vmatprep.mubr.bf16.mxu0 0
        %4337 = vmatmul.mubr.bf16.gmra.mrb[0].mxu0 %v4189
        %v4338 = vpop.f32.mrb[0].mxu0
        %v4339 = vadd.f32 0.0, %v4338
        %v4340 = vpop.f32.mrb[0].mxu0
        %v4341 = vpop.f32.mrb[0].mxu0
        %v4342 = vadd.f32 0.0, %v4341
        %v4343 = vpop.f32.mrb[0].mxu0
        %4344 = vmatprep.mubr.bf16.mxu0 0
        %4345 = vmatmul.mubr.bf16.gmra.mrb[0].mxu0 %v4190
        %v4346 = vpop.f32.mrb[0].mxu0
        %v4347 = vadd.f32 0.0, %v4346
        %v4348 = vpop.f32.mrb[0].mxu0
        %v4349 = vpop.f32.mrb[0].mxu0
        %v4350 = vadd.f32 0.0, %v4349
        %v4351 = vpop.f32.mrb[0].mxu0
        %4352 = vmatprep.mubr.bf16.mxu0 0
        %4353 = vmatmul.mubr.bf16.gmra.mrb[0].mxu0 %v4191
        %v4354 = vpop.f32.mrb[0].mxu0
        %v4355 = vadd.f32 0.0, %v4354
        %v4356 = vpop.f32.mrb[0].mxu0
        %v4357 = vpop.f32.mrb[0].mxu0
        %v4358 = vadd.f32 0.0, %v4357
        %v4359 = vpop.f32.mrb[0].mxu0
        %4360 = vmatprep.mubr.bf16.mxu0 0
        %4361 = vmatmul.mubr.bf16.gmra.mrb[0].mxu0 %v4192
        %v4362 = vpop.f32.mrb[0].mxu0
        %v4363 = vadd.f32 0.0, %v4362
        %v4364 = vpop.f32.mrb[0].mxu0
        %v4365 = vpop.f32.mrb[0].mxu0
        %v4366 = vadd.f32 0.0, %v4365
        %v4367 = vpop.f32.mrb[0].mxu0
        %4368 = vmatprep.mubr.bf16.mxu0 0
        %4369 = vmatmul.mubr.bf16.gmra.mrb[0].mxu0 %v4193
        %v4370 = vpop.f32.mrb[0].mxu0
        %v4371 = vadd.f32 0.0, %v4370
        %v4372 = vpop.f32.mrb[0].mxu0
        %v4373 = vpop.f32.mrb[0].mxu0
        %v4374 = vadd.f32 0.0, %v4373
        %v4375 = vpop.f32.mrb[0].mxu0
        %4376 = vmatprep.mubr.bf16.mxu0 0
        %4377 = vmatmul.mubr.bf16.gmra.mrb[0].mxu0 %v4194
        %v4378 = vpop.f32.mrb[0].mxu0
        %v4379 = vadd.f32 0.0, %v4378
        %v4380 = vpop.f32.mrb[0].mxu0
        %v4381 = vpop.f32.mrb[0].mxu0
        %v4382 = vadd.f32 0.0, %v4381
        %v4383 = vpop.f32.mrb[0].mxu0
        %4384 = vmatprep.mubr.bf16.mxu0 0
        %4385 = vmatmul.mubr.bf16.gmra.mrb[0].mxu0 %v4195
        %v4386 = vpop.f32.mrb[0].mxu0
        %v4387 = vadd.f32 0.0, %v4386
        %v4388 = vpop.f32.mrb[0].mxu0
        %v4389 = vpop.f32.mrb[0].mxu0
        %v4390 = vadd.f32 0.0, %v4389
        %v4391 = vpop.f32.mrb[0].mxu0
        %4392 = vmatprep.mubr.bf16.mxu0 0
        %4393 = vmatmul.mubr.bf16.gmra.mrb[0].mxu0 %v4196
        %v4394 = vpop.f32.mrb[0].mxu0
        %v4395 = vadd.f32 0.0, %v4394
        %v4396 = vpop.f32.mrb[0].mxu0
        %v4397 = vpop.f32.mrb[0].mxu0
        %v4398 = vadd.f32 0.0, %v4397
        %v4399 = vpop.f32.mrb[0].mxu0
        %4400 = vmatprep.mubr.bf16.mxu0 0
        %4401 = vmatmul.mubr.bf16.gmra.mrb[0].mxu0 %v4197
        %v4402 = vpop.f32.mrb[0].mxu0
        %v4403 = vadd.f32 0.0, %v4402
        %v4404 = vpop.f32.mrb[0].mxu0
        %v4405 = vpop.f32.mrb[0].mxu0
        %v4406 = vadd.f32 0.0, %v4405
        %v4407 = vpop.f32.mrb[0].mxu0
        %4408 = vmatprep.mubr.bf16.mxu0 0
        %4409 = vmatmul.mubr.bf16.gmra.mrb[0].mxu0 %v4198
        %v4410 = vpop.f32.mrb[0].mxu0
        %v4411 = vadd.f32 0.0, %v4410
        %v4412 = vpop.f32.mrb[0].mxu0
        %v4413 = vpop.f32.mrb[0].mxu0
        %v4414 = vadd.f32 0.0, %v4413
        %v4415 = vpop.f32.mrb[0].mxu0
        %4416 = vmatprep.mubr.bf16.mxu0 0
        %4417 = vmatmul.mubr.bf16.gmra.mrb[0].mxu0 %v4199
        %v4418 = vpop.f32.mrb[0].mxu0
        %v4419 = vadd.f32 0.0, %v4418
        %v4420 = vpop.f32.mrb[0].mxu0
        %v4421 = vpop.f32.mrb[0].mxu0
        %v4422 = vadd.f32 0.0, %v4421
        %v4423 = vpop.f32.mrb[0].mxu0
        %4424 = vdwg.mxu0
        %v4425 = vadd.f32 %v4299, %v4302
        %v4426 = vadd.f32 %v4425, %v4307
        %v4427 = vadd.f32 %v4426, %v4310
        %v4428 = vadd.f32 %v4427, %v4315
        %v4429 = vadd.f32 %v4428, %v4318
        %v4430 = vadd.f32 %v4429, %v4323
        %v4431 = vadd.f32 %v4430, %v4326
        %v4432 = vadd.f32 %v4431, %v4331
        %v4433 = vadd.f32 %v4432, %v4334
        %v4434 = vadd.f32 %v4433, %v4339
        %v4435 = vadd.f32 %v4434, %v4342
        %v4436 = vadd.f32 %v4435, %v4347
        %v4437 = vadd.f32 %v4436, %v4350
        %v4438 = vadd.f32 %v4437, %v4355
        %v4439 = vadd.f32 %v4438, %v4358
        %v4440 = vadd.f32 %v4439, %v4363
        %v4441 = vadd.f32 %v4440, %v4366
        %v4442 = vadd.f32 %v4441, %v4371
        %v4443 = vadd.f32 %v4442, %v4374
        %v4444 = vadd.f32 %v4443, %v4379
        %v4445 = vadd.f32 %v4444, %v4382
        %v4446 = vadd.f32 %v4445, %v4387
        %v4447 = vadd.f32 %v4446, %v4390
        %v4448 = vadd.f32 %v4447, %v4395
        %v4449 = vadd.f32 %v4448, %v4398
        %v4450 = vadd.f32 %v4449, %v4403
        %v4451 = vadd.f32 %v4450, %v4406
        %v4452 = vadd.f32 %v4451, %v4411
        %v4453 = vadd.f32 %v4452, %v4414
        %v4454 = vadd.f32 %v4453, %v4419
        %v4455 = vadd.f32 %v4454, %v4422
        %v4456 = vrot.slane %v4455, 4
        %v4457 = vadd.f32 %v4455, %v4456
        %v4458 = vrot.slane %v4457, 2
        %v4459 = vadd.f32 %v4457, %v4458
        %v4460 = vrot.slane %v4459, 1
        %v4461 = vadd.f32 %v4459, %v4460
        %v4462 = vmul.f32 %v4461, 0.00390625
        %v4463 = vsub.f32 %v4299, %v4462
        %v4464 = vsub.f32 %v4302, %v4462
        %v4465 = vsub.f32 %v4307, %v4462
        %v4466 = vsub.f32 %v4310, %v4462
        %v4467 = vsub.f32 %v4315, %v4462
        %v4468 = vsub.f32 %v4318, %v4462
        %v4469 = vsub.f32 %v4323, %v4462
        %v4470 = vsub.f32 %v4326, %v4462
        %v4471 = vsub.f32 %v4331, %v4462
        %v4472 = vsub.f32 %v4334, %v4462
        %v4473 = vsub.f32 %v4339, %v4462
        %v4474 = vsub.f32 %v4342, %v4462
        %v4475 = vsub.f32 %v4347, %v4462
        %v4476 = vsub.f32 %v4350, %v4462
        %v4477 = vsub.f32 %v4355, %v4462
        %v4478 = vsub.f32 %v4358, %v4462
        %v4479 = vsub.f32 %v4363, %v4462
        %v4480 = vsub.f32 %v4366, %v4462
        %v4481 = vsub.f32 %v4371, %v4462
        %v4482 = vsub.f32 %v4374, %v4462
        %v4483 = vsub.f32 %v4379, %v4462
        %v4484 = vsub.f32 %v4382, %v4462
        %v4485 = vsub.f32 %v4387, %v4462
        %v4486 = vsub.f32 %v4390, %v4462
        %v4487 = vsub.f32 %v4395, %v4462
        %v4488 = vsub.f32 %v4398, %v4462
        %v4489 = vsub.f32 %v4403, %v4462
        %v4490 = vsub.f32 %v4406, %v4462
        %v4491 = vsub.f32 %v4411, %v4462
        %v4492 = vsub.f32 %v4414, %v4462
        %v4493 = vsub.f32 %v4419, %v4462
        %v4494 = vsub.f32 %v4422, %v4462
        %v4495 = vmul.f32 %v4463, %v4463
        %v4496 = vmul.f32 %v4464, %v4464
        %v4497 = vmul.f32 %v4465, %v4465
        %v4498 = vmul.f32 %v4466, %v4466
        %v4499 = vmul.f32 %v4467, %v4467
        %v4500 = vmul.f32 %v4468, %v4468
        %v4501 = vmul.f32 %v4469, %v4469
        %v4502 = vmul.f32 %v4470, %v4470
        %v4503 = vmul.f32 %v4471, %v4471
        %v4504 = vmul.f32 %v4472, %v4472
        %v4505 = vmul.f32 %v4473, %v4473
        %v4506 = vmul.f32 %v4474, %v4474
        %v4507 = vmul.f32 %v4475, %v4475
        %v4508 = vmul.f32 %v4476, %v4476
        %v4509 = vmul.f32 %v4477, %v4477
        %v4510 = vmul.f32 %v4478, %v4478
        %v4511 = vmul.f32 %v4479, %v4479
        %v4512 = vmul.f32 %v4480, %v4480
        %v4513 = vmul.f32 %v4481, %v4481
        %v4514 = vmul.f32 %v4482, %v4482
        %v4515 = vmul.f32 %v4483, %v4483
        %v4516 = vmul.f32 %v4484, %v4484
        %v4517 = vmul.f32 %v4485, %v4485
        %v4518 = vmul.f32 %v4486, %v4486
        %v4519 = vmul.f32 %v4487, %v4487
        %v4520 = vmul.f32 %v4488, %v4488
        %v4521 = vmul.f32 %v4489, %v4489
        %v4522 = vmul.f32 %v4490, %v4490
        %v4523 = vmul.f32 %v4491, %v4491
        %v4524 = vmul.f32 %v4492, %v4492
        %v4525 = vmul.f32 %v4493, %v4493
        %v4526 = vmul.f32 %v4494, %v4494
        %v4527 = vadd.f32 %v4495, %v4496
        %v4528 = vadd.f32 %v4527, %v4497
        %v4529 = vadd.f32 %v4528, %v4498
        %v4530 = vadd.f32 %v4529, %v4499
        %v4531 = vadd.f32 %v4530, %v4500
        %v4532 = vadd.f32 %v4531, %v4501
        %v4533 = vadd.f32 %v4532, %v4502
        %v4534 = vadd.f32 %v4533, %v4503
        %v4535 = vadd.f32 %v4534, %v4504
        %v4536 = vadd.f32 %v4535, %v4505
        %v4537 = vadd.f32 %v4536, %v4506
        %v4538 = vadd.f32 %v4537, %v4507
        %v4539 = vadd.f32 %v4538, %v4508
        %v4540 = vadd.f32 %v4539, %v4509
        %v4541 = vadd.f32 %v4540, %v4510
        %v4542 = vadd.f32 %v4541, %v4511
        %v4543 = vadd.f32 %v4542, %v4512
        %v4544 = vadd.f32 %v4543, %v4513
        %v4545 = vadd.f32 %v4544, %v4514
        %v4546 = vadd.f32 %v4545, %v4515
        %v4547 = vadd.f32 %v4546, %v4516
        %v4548 = vadd.f32 %v4547, %v4517
        %v4549 = vadd.f32 %v4548, %v4518
        %v4550 = vadd.f32 %v4549, %v4519
        %v4551 = vadd.f32 %v4550, %v4520
        %v4552 = vadd.f32 %v4551, %v4521
        %v4553 = vadd.f32 %v4552, %v4522
        %v4554 = vadd.f32 %v4553, %v4523
        %v4555 = vadd.f32 %v4554, %v4524
        %v4556 = vadd.f32 %v4555, %v4525
        %v4557 = vadd.f32 %v4556, %v4526
        %v4558 = vrot.slane %v4557, 4
        %v4559 = vadd.f32 %v4557, %v4558
        %v4560 = vrot.slane %v4559, 2
        %v4561 = vadd.f32 %v4559, %v4560
        %v4562 = vrot.slane %v4561, 1
        %v4563 = vadd.f32 %v4561, %v4562
        %v4564 = vmul.f32 %v4563, 0.00390625
        %v4565 = vadd.f32 %v4564, 1e-05
        %v4566 = vrsqrt.pop %v4565
        %v4567 = vmul.f32 %v4463, %v4566
        %v4568 = vmul.f32 %v4464, %v4566
        %v4569 = vmul.f32 %v4465, %v4566
        %v4570 = vmul.f32 %v4466, %v4566
        %v4571 = vmul.f32 %v4467, %v4566
        %v4572 = vmul.f32 %v4468, %v4566
        %v4573 = vmul.f32 %v4469, %v4566
        %v4574 = vmul.f32 %v4470, %v4566
        %v4575 = vmul.f32 %v4471, %v4566
        %v4576 = vmul.f32 %v4472, %v4566
        %v4577 = vmul.f32 %v4473, %v4566
        %v4578 = vmul.f32 %v4474, %v4566
        %v4579 = vmul.f32 %v4475, %v4566
        %v4580 = vmul.f32 %v4476, %v4566
        %v4581 = vmul.f32 %v4477, %v4566
        %v4582 = vmul.f32 %v4478, %v4566
        %v4583 = vmul.f32 %v4479, %v4566
        %v4584 = vmul.f32 %v4480, %v4566
        %v4585 = vmul.f32 %v4481, %v4566
        %v4586 = vmul.f32 %v4482, %v4566
        %v4587 = vmul.f32 %v4483, %v4566
        %v4588 = vmul.f32 %v4484, %v4566
        %v4589 = vmul.f32 %v4485, %v4566
        %v4590 = vmul.f32 %v4486, %v4566
        %v4591 = vmul.f32 %v4487, %v4566
        %v4592 = vmul.f32 %v4488, %v4566
        %v4593 = vmul.f32 %v4489, %v4566
        %v4594 = vmul.f32 %v4490, %v4566
        %v4595 = vmul.f32 %v4491, %v4566
        %v4596 = vmul.f32 %v4492, %v4566
        %v4597 = vmul.f32 %v4493, %v4566
        %v4598 = vmul.f32 %v4494, %v4566
        %v4599 = vadd.f32 %v4120, %v4567
        %v4600 = vadd.f32 %v4121, %v4568
        %v4601 = vadd.f32 %v4122, %v4569
        %v4602 = vadd.f32 %v4123, %v4570
        %v4603 = vadd.f32 %v4124, %v4571
        %v4604 = vadd.f32 %v4125, %v4572
        %v4605 = vadd.f32 %v4126, %v4573
        %v4606 = vadd.f32 %v4127, %v4574
        %v4607 = vadd.f32 %v4128, %v4575
        %v4608 = vadd.f32 %v4129, %v4576
        %v4609 = vadd.f32 %v4130, %v4577
        %v4610 = vadd.f32 %v4131, %v4578
        %v4611 = vadd.f32 %v4132, %v4579
        %v4612 = vadd.f32 %v4133, %v4580
        %v4613 = vadd.f32 %v4134, %v4581
        %v4614 = vadd.f32 %v4135, %v4582
        %v4615 = vadd.f32 %v4136, %v4583
        %v4616 = vadd.f32 %v4137, %v4584
        %v4617 = vadd.f32 %v4138, %v4585
        %v4618 = vadd.f32 %v4139, %v4586
        %v4619 = vadd.f32 %v4140, %v4587
        %v4620 = vadd.f32 %v4141, %v4588
        %v4621 = vadd.f32 %v4142, %v4589
        %v4622 = vadd.f32 %v4143, %v4590
        %v4623 = vadd.f32 %v4144, %v4591
        %v4624 = vadd.f32 %v4145, %v4592
        %v4625 = vadd.f32 %v4146, %v4593
        %v4626 = vadd.f32 %v4147, %v4594
        %v4627 = vadd.f32 %v4148, %v4595
        %v4628 = vadd.f32 %v4149, %v4596
        %v4629 = vadd.f32 %v4150, %v4597
        %v4630 = vadd.f32 %v4151, %v4598
        %v4631 = vmax.f32 %v4599, 0.0
        %v4632 = vmax.f32 %v4600, 0.0
        %v4633 = vmax.f32 %v4601, 0.0
        %v4634 = vmax.f32 %v4602, 0.0
        %v4635 = vmax.f32 %v4603, 0.0
        %v4636 = vmax.f32 %v4604, 0.0
        %v4637 = vmax.f32 %v4605, 0.0
        %v4638 = vmax.f32 %v4606, 0.0
        %v4639 = vmax.f32 %v4607, 0.0
        %v4640 = vmax.f32 %v4608, 0.0
        %v4641 = vmax.f32 %v4609, 0.0
        %v4642 = vmax.f32 %v4610, 0.0
        %v4643 = vmax.f32 %v4611, 0.0
        %v4644 = vmax.f32 %v4612, 0.0
        %v4645 = vmax.f32 %v4613, 0.0
        %v4646 = vmax.f32 %v4614, 0.0
        %v4647 = vmax.f32 %v4615, 0.0
        %v4648 = vmax.f32 %v4616, 0.0
        %v4649 = vmax.f32 %v4617, 0.0
        %v4650 = vmax.f32 %v4618, 0.0
        %v4651 = vmax.f32 %v4619, 0.0
        %v4652 = vmax.f32 %v4620, 0.0
        %v4653 = vmax.f32 %v4621, 0.0
        %v4654 = vmax.f32 %v4622, 0.0
        %v4655 = vmax.f32 %v4623, 0.0
        %v4656 = vmax.f32 %v4624, 0.0
        %v4657 = vmax.f32 %v4625, 0.0
        %v4658 = vmax.f32 %v4626, 0.0
        %v4659 = vmax.f32 %v4627, 0.0
        %v4660 = vmax.f32 %v4628, 0.0
        %v4661 = vmax.f32 %v4629, 0.0
        %v4662 = vmax.f32 %v4630, 0.0
        %4663 = vst [vmem:[%s300] sm:$0xff] %v4631
        %4664 = vst [vmem:[%s300 + $0x8] sm:$0xff] %v4632
        %4665 = vst [vmem:[%s300 + $0x10] sm:$0xff] %v4633
        %4666 = vst [vmem:[%s300 + $0x18] sm:$0xff] %v4634
        %4667 = vst [vmem:[%s300 + $0x20] sm:$0xff] %v4635
        %4668 = vst [vmem:[%s300 + $0x28] sm:$0xff] %v4636
        %4669 = vst [vmem:[%s300 + $0x30] sm:$0xff] %v4637
        %4670 = vst [vmem:[%s300 + $0x38] sm:$0xff] %v4638
        %4671 = vst [vmem:[%s300 + $0x40] sm:$0xff] %v4639
        %4672 = vst [vmem:[%s300 + $0x48] sm:$0xff] %v4640
        %4673 = vst [vmem:[%s300 + $0x50] sm:$0xff] %v4641
        %4674 = vst [vmem:[%s300 + $0x58] sm:$0xff] %v4642
        %4675 = vst [vmem:[%s300 + $0x60] sm:$0xff] %v4643
        %4676 = vst [vmem:[%s300 + $0x68] sm:$0xff] %v4644
        %4677 = vst [vmem:[%s300 + $0x70] sm:$0xff] %v4645
        %4678 = vst [vmem:[%s300 + $0x78] sm:$0xff] %v4646
        %4679 = vst [vmem:[%s300 + $0x80] sm:$0xff] %v4647
        %4680 = vst [vmem:[%s300 + $0x88] sm:$0xff] %v4648
        %4681 = vst [vmem:[%s300 + $0x90] sm:$0xff] %v4649
        %4682 = vst [vmem:[%s300 + $0x98] sm:$0xff] %v4650
        %4683 = vst [vmem:[%s300 + $0xa0] sm:$0xff] %v4651
        %4684 = vst [vmem:[%s300 + $0xa8] sm:$0xff] %v4652
        %4685 = vst [vmem:[%s300 + $0xb0] sm:$0xff] %v4653
        %4686 = vst [vmem:[%s300 + $0xb8] sm:$0xff] %v4654
        %4687 = vst [vmem:[%s300 + $0xc0] sm:$0xff] %v4655
        %4688 = vst [vmem:[%s300 + $0xc8] sm:$0xff] %v4656
        %4689 = vst [vmem:[%s300 + $0xd0] sm:$0xff] %v4657
        %4690 = vst [vmem:[%s300 + $0xd8] sm:$0xff] %v4658
        %4691 = vst [vmem:[%s300 + $0xe0] sm:$0xff] %v4659
        %4692 = vst [vmem:[%s300 + $0xe8] sm:$0xff] %v4660
        %4693 = vst [vmem:[%s300 + $0xf0] sm:$0xff] %v4661
        %4694 = vst [vmem:[%s300 + $0xf8] sm:$0xff] %v4662
        %s4695 = sand.u32 %s142, 1
        %s4696 = scalar_lea.sflag [#allocation5], %s4695
        %s4697 = sand.u32 %s142, 1
        %s4698 = smul.addr %s4697, 256
        %s4699 = scalar_lea.vmem [#allocation12], %s4698
        // Predicated region
        $region61: #{tpu_custom_call.1} parent=39 // pred_check
          %p4700 = pneg %p152
        $region62: #{tpu_custom_call.1} parent=39 // pred_check_branch
          %4702 = sbr.rel (%p4700) target = $region64
        $region63: #{tpu_custom_call.1} parent=39 // pred_region
          %s4704 = ssub.s32 4096, 4096
          %4705 = vsyncadd %s4696, %s4704
          %s4706 = smul.addr %s24, 32
          %s4707 = smul.addr %s4706, 128
          %s4708 = scalar_lea.hbm %s5, %s4707
          %s4709 = sshll.u32 %s4699, 4
          %s4710 = int_to_ptr.vmem [resolvable:$true] %s4709
          %4715 = dma.vmem_to_hbm [thread:$0]  %s4710, 4096, %s4708, %s4696, 128, 128, 8
        $region64: #{tpu_custom_call.1} parent=39 // pred_fallthru
          _
      $region40: #{tpu_custom_call.1} parent=5 // pred_fallthru
        _
      %p4716 = scmp.le.s32.totalorder 2, %s19
      // Predicated region
      $region65: #{tpu_custom_call.1} parent=5 // pred_check
        %p4717 = pneg %p4716
      $region66: #{tpu_custom_call.1} parent=5 // pred_check_branch
        %4719 = sbr.rel (%p4717) target = $region68
      $region67: #{tpu_custom_call.1} parent=5 // pred_region
        %s4720 = ssub.s32 %s19, 2
        // Predicated region
        $region69: #{tpu_custom_call.1} parent=67 // pred_check
          %p4721 = pneg %p158
        $region70: #{tpu_custom_call.1} parent=67 // pred_check_branch
          %4723 = sbr.rel (%p4721) target = $region72
        $region71: #{tpu_custom_call.1} parent=67 // pred_region
          %s4724 = sand.u32 %s143, 1
          %s4725 = scalar_lea.sflag [#allocation5], %s4724
          %s4726 = sand.u32 %s143, 1
          %s4727 = smul.addr %s4726, 256
          %s4728 = scalar_lea.vmem [#allocation12], %s4727
          %4729 = dma.done %s4725, 4096
        $region72: #{tpu_custom_call.1} parent=67 // pred_fallthru
          _
      $region68: #{tpu_custom_call.1} parent=5 // pred_fallthru
        _
    $region6: #{tpu_custom_call.1} parent=1 // loop_footer
      %s23 = sadd.s32 1, %s19
    $region7: #{tpu_custom_call.1} parent=1 // loop_footer_branch
      %18 = sbr.rel target = $region3
    $region8: #{tpu_custom_call.1} parent=1 // loop_exit
      _
    %4730 = vsyncpa [#allocation4], 1
    %s4731 = scalar_lea.sflag [#allocation4], 1
    %4732 = vsyncpa %s4731, 1
    %4733 = vsyncpa [#allocation7], 1
    %4734 = vsyncpa [#allocation10], 1
    %4735 = vsyncpa [#allocation5], 1
    %s4736 = scalar_lea.sflag [#allocation5], 1
    %4737 = vsyncpa %s4736, 1

// kernel: tpu_custom_call.1
$region0: #{tpu_custom_call.1}
  #allocation0 [shape = 'u32[]', space=smem, size = 0x4, offset = 0x4, fixed_abs, tag = 'smem constant byte address 0x4 - core index']
  #allocation1 [shape = 'u32[144,128]{1,0:T(1,128)}', space=vmem, size = 0x12000, scoped, tag = 'internal scratch']
  #allocation2 [shape = 'f32[304,128]{1,0:T(8,128)}', space=vmem, size = 0x26000, scoped, tag = 'scratch operand']
  %s0 = inlined_call_operand.hbm [shape: f32[2,256,128], index: 0, kind: input, shape index: {}]
  %s1 = inlined_call_operand.hbm [shape: bf16[128,128], index: 1, kind: input, shape index: {}]
  %s2 = inlined_call_operand.hbm [shape: bf16[1152,128], index: 2, kind: input, shape index: {}]
  %s3 = inlined_call_operand.hbm [shape: bf16[128,128], index: 3, kind: input, shape index: {}]
  %s4 = inlined_call_operand.hbm [shape: bf16[128,128], index: 4, kind: input, shape index: {}]
  %s5 = inlined_call_operand.hbm [shape: f32[2,256,128], index: 5, kind: output, shape index: {}]
  %s6 = sld [smem:[#allocation0]]
  $region73: #{tpu_custom_call.1} parent=0
    _
  %s8 = ssub.s32 1, %s6
  %s9 = scalar_select 0, %s8, %s6
  $region1: #{tpu_custom_call.1} parent=0
    #allocation3 [shape = 'u8[262144]{0}', space=vmem, size = 0x40000, scoped, tag = 'input window, operand 0']
    #allocation4 [shape = 's32[2]{0}', space=sflag, size = 0x8, scoped, tag = 'scoped memory for tpu_custom_call.1']
    #allocation5 [shape = 's32[2]{0}', space=sflag, size = 0x8, scoped, tag = 'scoped memory for tpu_custom_call.1']
    #allocation6 [shape = 'u8[32768]{0}', space=vmem, size = 0x8000, scoped, tag = 'input window, operand 1, single buffered']
    #allocation7 [shape = 's32[1]{0}', space=sflag, size = 0x4, scoped, tag = 'scoped memory for tpu_custom_call.1']
    #allocation8 [shape = 'u8[294912]{0}', space=vmem, size = 0x48000, scoped, tag = 'input window, operand 2, single buffered']
    #allocation9 [shape = 'u8[32768]{0}', space=vmem, size = 0x8000, scoped, tag = 'input window, operand 3, single buffered']
    #allocation10 [shape = 's32[1]{0}', space=sflag, size = 0x4, scoped, tag = 'scoped memory for tpu_custom_call.1']
    #allocation11 [shape = 'u8[32768]{0}', space=vmem, size = 0x8000, scoped, tag = 'input window, operand 4, single buffered']
    #allocation12 [shape = 'u8[262144]{0}', space=vmem, size = 0x40000, scoped, tag = 'output window, operand 0']
    %10 = vsyncpa [#allocation4], 0
    %s11 = scalar_lea.sflag [#allocation4], 1
    %12 = vsyncpa %s11, 0
    %13 = vsyncpa [#allocation7], 0
    %14 = vsyncpa [#allocation10], 0
    %15 = vsyncpa [#allocation5], 0
    %s16 = scalar_lea.sflag [#allocation5], 1
    %17 = vsyncpa %s16, 0
    loop: start=0, step=1, limit=4
    $region2: #{tpu_custom_call.1} parent=1 // loop_pre_header
      _
    $region3: #{tpu_custom_call.1} parent=1 // loop_header
      %s19 = sphi 0, %s23
      %p20 = scmp.ge.s32.totalorder %s19, 4
      %s29 = sphi 0, %s31
      %s32 = sphi 0, %s29
      %s33 = sphi 0, %s32
      %s49 = sphi 0, %s33
      %s53 = sphi 0, %s53
      %s55 = sphi 0, %s53
      %s56 = sphi 0, %s55
      %s70 = sphi 0, %s56
      %s74 = sphi 0, %s74
      %s76 = sphi 0, %s74
      %s77 = sphi 0, %s76
      %s91 = sphi 0, %s77
      %s95 = sphi 0, %s95
      %s97 = sphi 0, %s95
      %s98 = sphi 0, %s97
      %s112 = sphi 0, %s98
      %s116 = sphi 0, %s116
      %s118 = sphi 0, %s116
      %s119 = sphi 0, %s118
      %s133 = sphi 0, %s119
      %s139 = sphi 0, %s141
      %s142 = sphi 0, %s139
      %s143 = sphi 0, %s142
      %s159 = sphi 0, %s143
    $region4: #{tpu_custom_call.1} parent=1 // loop_header_branch
      %22 = sbr.rel (%p20) target = $region8
    $region5: #{tpu_custom_call.1} parent=1 // loop_body
      %s24 = ssub.s32 %s19, 1
      %s25 = ssub.s32 %s19, 2
      %s26 = sadd.s32 %s19, 1
      %s27 = ssub.s32 %s19, %s26
      %p28 = scmp.eq.s32.totalorder %s27, 0
      %s30 = sadd.s32 %s29, 1
      %s31 = scalar_select %p28, %s29, %s30
      %p34 = pneg %p28
      %p35 = scmp.eq.s32.totalorder %s19, 1
      %p36 = por %p34, %p35
      %p37 = scmp.ne.s32.totalorder %s29, %s32
      %p38 = scmp.eq.s32.totalorder %s19, 0
      %p39 = por %p37, %p38
      %p40 = scmp.ne.s32.totalorder %s29, %s32
      %p41 = scmp.eq.s32.totalorder %s24, 1
      %p42 = por %p40, %p41
      %p43 = scmp.ne.s32.totalorder %s32, %s33
      %p44 = scmp.eq.s32.totalorder %s24, 0
      %p45 = por %p43, %p44
      %p46 = scmp.ne.s32.totalorder %s32, %s33
      %p47 = scmp.eq.s32.totalorder %s25, 1
      %p48 = por %p46, %p47
      %p50 = scmp.ne.s32.totalorder %s33, %s49
      %p51 = scmp.eq.s32.totalorder %s25, 0
      %p52 = por %p50, %p51
      %s54 = sadd.s32 %s53, 1
      %p57 = scmp.eq.s32.totalorder %s19, 1
      %p58 = scmp.ne.s32.totalorder %s53, %s55
      %p59 = scmp.eq.s32.totalorder %s19, 0
      %p60 = por %p58, %p59
      %p61 = scmp.ne.s32.totalorder %s53, %s55
      %p62 = scmp.eq.s32.totalorder %s24, 1
      %p63 = por %p61, %p62
      %p64 = scmp.ne.s32.totalorder %s55, %s56
      %p65 = scmp.eq.s32.totalorder %s24, 0
      %p66 = por %p64, %p65
      %p67 = scmp.ne.s32.totalorder %s55, %s56
      %p68 = scmp.eq.s32.totalorder %s25, 1
      %p69 = por %p67, %p68
      %p71 = scmp.ne.s32.totalorder %s56, %s70
      %p72 = scmp.eq.s32.totalorder %s25, 0
      %p73 = por %p71, %p72
      %s75 = sadd.s32 %s74, 1
      %p78 = scmp.eq.s32.totalorder %s19, 1
      %p79 = scmp.ne.s32.totalorder %s74, %s76
      %p80 = scmp.eq.s32.totalorder %s19, 0
      %p81 = por %p79, %p80
      %p82 = scmp.ne.s32.totalorder %s74, %s76
      %p83 = scmp.eq.s32.totalorder %s24, 1
      %p84 = por %p82, %p83
      %p85 = scmp.ne.s32.totalorder %s76, %s77
      %p86 = scmp.eq.s32.totalorder %s24, 0
      %p87 = por %p85, %p86
      %p88 = scmp.ne.s32.totalorder %s76, %s77
      %p89 = scmp.eq.s32.totalorder %s25, 1
      %p90 = por %p88, %p89
      %p92 = scmp.ne.s32.totalorder %s77, %s91
      %p93 = scmp.eq.s32.totalorder %s25, 0
      %p94 = por %p92, %p93
      %s96 = sadd.s32 %s95, 1
      %p99 = scmp.eq.s32.totalorder %s19, 1
      %p100 = scmp.ne.s32.totalorder %s95, %s97
      %p101 = scmp.eq.s32.totalorder %s19, 0
      %p102 = por %p100, %p101
      %p103 = scmp.ne.s32.totalorder %s95, %s97
      %p104 = scmp.eq.s32.totalorder %s24, 1
      %p105 = por %p103, %p104
      %p106 = scmp.ne.s32.totalorder %s97, %s98
      %p107 = scmp.eq.s32.totalorder %s24, 0
      %p108 = por %p106, %p107
      %p109 = scmp.ne.s32.totalorder %s97, %s98
      %p110 = scmp.eq.s32.totalorder %s25, 1
      %p111 = por %p109, %p110
      %p113 = scmp.ne.s32.totalorder %s98, %s112
      %p114 = scmp.eq.s32.totalorder %s25, 0
      %p115 = por %p113, %p114
      %s117 = sadd.s32 %s116, 1
      %p120 = scmp.eq.s32.totalorder %s19, 1
      %p121 = scmp.ne.s32.totalorder %s116, %s118
      %p122 = scmp.eq.s32.totalorder %s19, 0
      %p123 = por %p121, %p122
      %p124 = scmp.ne.s32.totalorder %s116, %s118
      %p125 = scmp.eq.s32.totalorder %s24, 1
      %p126 = por %p124, %p125
      %p127 = scmp.ne.s32.totalorder %s118, %s119
      %p128 = scmp.eq.s32.totalorder %s24, 0
      %p129 = por %p127, %p128
      %p130 = scmp.ne.s32.totalorder %s118, %s119
      %p131 = scmp.eq.s32.totalorder %s25, 1
      %p132 = por %p130, %p131
      %p134 = scmp.ne.s32.totalorder %s119, %s133
      %p135 = scmp.eq.s32.totalorder %s25, 0
      %p136 = por %p134, %p135
      %s137 = ssub.s32 %s19, %s26
      %p138 = scmp.eq.s32.totalorder %s137, 0
      %s140 = sadd.s32 %s139, 1
      %s141 = scalar_select %p138, %s139, %s140
      %p144 = pneg %p138
      %p145 = scmp.eq.s32.totalorder %s19, 1
      %p146 = por %p144, %p145
      %p147 = scmp.ne.s32.totalorder %s139, %s142
      %p148 = scmp.eq.s32.totalorder %s19, 0
      %p149 = por %p147, %p148
      %p150 = scmp.ne.s32.totalorder %s139, %s142
      %p151 = scmp.eq.s32.totalorder %s24, 1
      %p152 = por %p150, %p151
      %p153 = scmp.ne.s32.totalorder %s142, %s143
      %p154 = scmp.eq.s32.totalorder %s24, 0
      %p155 = por %p153, %p154
      %p156 = scmp.ne.s32.totalorder %s142, %s143
      %p157 = scmp.eq.s32.totalorder %s25, 1
      %p158 = por %p156, %p157
      %p160 = scmp.ne.s32.totalorder %s143, %s159
      %p161 = scmp.eq.s32.totalorder %s25, 0
      %p162 = por %p160, %p161
      %p163 = scmp.le.s32.totalorder 1, %s19
      %p164 = scmp.lt.s32.totalorder %s19, 3
      %p165 = pnand %p163, %p164
      %p166 = pneg %p165
      // Predicated region
      $region9: #{tpu_custom_call.1} parent=5 // pred_check
        _
      $region10: #{tpu_custom_call.1} parent=5 // pred_check_branch
        %168 = sbr.rel (%p165) target = $region12
      $region11: #{tpu_custom_call.1} parent=5 // pred_region
        %s169 = ssub.s32 %s19, 1
        // Predicated region
        $region13: #{tpu_custom_call.1} parent=11 // pred_check
          %p170 = pneg %p66
        $region14: #{tpu_custom_call.1} parent=11 // pred_check_branch
          %172 = sbr.rel (%p170) target = $region16
        $region15: #{tpu_custom_call.1} parent=11 // pred_region
          %s174 = ssub.s32 1024, 1024
          %175 = vsyncadd [#allocation7], %s174
          %s176 = sshll.u32 [#allocation6], 4
          %s177 = int_to_ptr.vmem [resolvable:$true] %s176
          %182 = dma.hbm_to_vmem [thread:$0]  %s1, 1024, %s177, [#allocation7], 64, 64, 4
        $region16: #{tpu_custom_call.1} parent=11 // pred_fallthru
          _
        // Predicated region
        $region17: #{tpu_custom_call.1} parent=11 // pred_check
          %p183 = pneg %p87
        $region18: #{tpu_custom_call.1} parent=11 // pred_check_branch
          %185 = sbr.rel (%p183) target = $region20
        $region19: #{tpu_custom_call.1} parent=11 // pred_region
          %s187 = ssub.s32 9216, 9216
          %188 = vsyncadd [#allocation7], %s187
          %s189 = sshll.u32 [#allocation8], 4
          %s190 = int_to_ptr.vmem [resolvable:$true] %s189
          %195 = dma.hbm_to_vmem [thread:$0]  %s2, 9216, %s190, [#allocation7], 64, 64, 4
        $region20: #{tpu_custom_call.1} parent=11 // pred_fallthru
          _
        // Predicated region
        $region21: #{tpu_custom_call.1} parent=11 // pred_check
          %p196 = pneg %p108
        $region22: #{tpu_custom_call.1} parent=11 // pred_check_branch
          %198 = sbr.rel (%p196) target = $region24
        $region23: #{tpu_custom_call.1} parent=11 // pred_region
          %s200 = ssub.s32 1024, 1024
          %201 = vsyncadd [#allocation10], %s200
          %s202 = sshll.u32 [#allocation9], 4
          %s203 = int_to_ptr.vmem [resolvable:$true] %s202
          %208 = dma.hbm_to_vmem [thread:$0]  %s3, 1024, %s203, [#allocation10], 64, 64, 4
        $region24: #{tpu_custom_call.1} parent=11 // pred_fallthru
          _
        // Predicated region
        $region25: #{tpu_custom_call.1} parent=11 // pred_check
          %p209 = pneg %p129
        $region26: #{tpu_custom_call.1} parent=11 // pred_check_branch
          %211 = sbr.rel (%p209) target = $region28
        $region27: #{tpu_custom_call.1} parent=11 // pred_region
          %s213 = ssub.s32 1024, 1024
          %214 = vsyncadd [#allocation10], %s213
          %s215 = sshll.u32 [#allocation11], 4
          %s216 = int_to_ptr.vmem [resolvable:$true] %s215
          %221 = dma.hbm_to_vmem [thread:$0]  %s4, 1024, %s216, [#allocation10], 64, 64, 4
        $region28: #{tpu_custom_call.1} parent=11 // pred_fallthru
          _
      $region12: #{tpu_custom_call.1} parent=5 // pred_fallthru
        _
      %p222 = scmp.lt.s32.totalorder %s19, 2
      // Predicated region
      $region29: #{tpu_custom_call.1} parent=5 // pred_check
        %p223 = pneg %p222
      $region30: #{tpu_custom_call.1} parent=5 // pred_check_branch
        %225 = sbr.rel (%p223) target = $region32
      $region31: #{tpu_custom_call.1} parent=5 // pred_region
        // Predicated region
        $region33: #{tpu_custom_call.1} parent=31 // pred_check
          %p226 = pneg %p39
        $region34: #{tpu_custom_call.1} parent=31 // pred_check_branch
          %228 = sbr.rel (%p226) target = $region36
        $region35: #{tpu_custom_call.1} parent=31 // pred_region
          %s229 = sand.u32 %s29, 1
          %s230 = scalar_lea.sflag [#allocation4], %s229
          %s231 = sand.u32 %s29, 1
          %s232 = smul.addr %s231, 256
          %s233 = scalar_lea.vmem [#allocation3], %s232
          %s235 = ssub.s32 4096, 4096
          %236 = vsyncadd %s230, %s235
          %s237 = smul.addr %s19, 32
          %s238 = smul.addr %s237, 128
          %s239 = scalar_lea.hbm %s0, %s238
          %s240 = sshll.u32 %s233, 4
          %s241 = int_to_ptr.vmem [resolvable:$true] %s240
          %246 = dma.hbm_to_vmem [thread:$0]  %s239, 4096, %s241, %s230, 128, 128, 8
        $region36: #{tpu_custom_call.1} parent=31 // pred_fallthru
          _
      $region32: #{tpu_custom_call.1} parent=5 // pred_fallthru
        _
      %p247 = scmp.le.s32.totalorder 1, %s19
      %p248 = scmp.lt.s32.totalorder %s19, 3
      %p249 = pnand %p247, %p248
      %p250 = pneg %p249
      // Predicated region
      $region37: #{tpu_custom_call.1} parent=5 // pred_check
        _
      $region38: #{tpu_custom_call.1} parent=5 // pred_check_branch
        %252 = sbr.rel (%p249) target = $region40
      $region39: #{tpu_custom_call.1} parent=5 // pred_region
        %s253 = ssub.s32 %s19, 1
        %s254 = sand.u32 %s32, 1
        %s255 = scalar_lea.sflag [#allocation4], %s254
        %s256 = sand.u32 %s32, 1
        %s257 = smul.addr %s256, 256
        %s258 = scalar_lea.vmem [#allocation3], %s257
        // Predicated region
        $region41: #{tpu_custom_call.1} parent=39 // pred_check
          %p259 = pneg %p45
        $region42: #{tpu_custom_call.1} parent=39 // pred_check_branch
          %261 = sbr.rel (%p259) target = $region44
        $region43: #{tpu_custom_call.1} parent=39 // pred_region
          %262 = dma.done %s255, 4096
        $region44: #{tpu_custom_call.1} parent=39 // pred_fallthru
          _
        // Predicated region
        $region45: #{tpu_custom_call.1} parent=39 // pred_check
          %p263 = pneg %p66
        $region46: #{tpu_custom_call.1} parent=39 // pred_check_branch
          %265 = sbr.rel (%p263) target = $region48
        $region47: #{tpu_custom_call.1} parent=39 // pred_region
          %266 = dma.done [#allocation7], 1024
        $region48: #{tpu_custom_call.1} parent=39 // pred_fallthru
          _
        // Predicated region
        $region49: #{tpu_custom_call.1} parent=39 // pred_check
          %p267 = pneg %p87
        $region50: #{tpu_custom_call.1} parent=39 // pred_check_branch
          %269 = sbr.rel (%p267) target = $region52
        $region51: #{tpu_custom_call.1} parent=39 // pred_region
          %270 = dma.done [#allocation7], 9216
        $region52: #{tpu_custom_call.1} parent=39 // pred_fallthru
          _
        // Predicated region
        $region53: #{tpu_custom_call.1} parent=39 // pred_check
          %p271 = pneg %p108
        $region54: #{tpu_custom_call.1} parent=39 // pred_check_branch
          %273 = sbr.rel (%p271) target = $region56
        $region55: #{tpu_custom_call.1} parent=39 // pred_region
          %274 = dma.done [#allocation10], 1024
        $region56: #{tpu_custom_call.1} parent=39 // pred_fallthru
          _
        // Predicated region
        $region57: #{tpu_custom_call.1} parent=39 // pred_check
          %p275 = pneg %p129
        $region58: #{tpu_custom_call.1} parent=39 // pred_check_branch
          %277 = sbr.rel (%p275) target = $region60
        $region59: #{tpu_custom_call.1} parent=39 // pred_region
          %278 = dma.done [#allocation10], 1024
        $region60: #{tpu_custom_call.1} parent=39 // pred_fallthru
          _
        %s279 = sand.u32 %s32, 1
        %s280 = scalar_lea.sflag [#allocation4], %s279
        %s281 = sand.u32 %s32, 1
        %s282 = smul.addr %s281, 256
        %s283 = scalar_lea.vmem [#allocation3], %s282
        %p284 = pneg %p45
        %p285 = pneg %p42
        %p286 = pneg %p66
        %p287 = pneg %p63
        %p288 = pneg %p87
        %p289 = pneg %p84
        %p290 = pneg %p108
        %p291 = pneg %p105
        %p292 = pneg %p129
        %p293 = pneg %p126
        %p294 = pneg %p155
        %p295 = pneg %p152
        %s296 = sand.u32 %s142, 1
        %s297 = scalar_lea.sflag [#allocation5], %s296
        %s298 = sand.u32 %s142, 1
        %s299 = smul.addr %s298, 256
        %s300 = scalar_lea.vmem [#allocation12], %s299
        %302 = vst [vmem:[#allocation2] sm:$0xff] 0.0
        %303 = vst [vmem:[#allocation2 + $0x8] sm:$0xff] 0.0
        %304 = vst [vmem:[#allocation2 + $0x10] sm:$0xff] 0.0
        %305 = vst [vmem:[#allocation2 + $0x118] sm:$0xff] 0.0
        %306 = vst [vmem:[#allocation2 + $0x120] sm:$0xff] 0.0
        %307 = vst [vmem:[#allocation2 + $0x128] sm:$0xff] 0.0
        %v308 = vld [vmem:[%s258] sm:$0xff]
        %v309 = vld [vmem:[%s258 + $0x8] sm:$0xff]
        %v310 = vld [vmem:[%s258 + $0x10] sm:$0xff]
        %v311 = vld [vmem:[%s258 + $0x18] sm:$0xff]
        %v312 = vld [vmem:[%s258 + $0x20] sm:$0xff]
        %v313 = vld [vmem:[%s258 + $0x28] sm:$0xff]
        %v314 = vld [vmem:[%s258 + $0x30] sm:$0xff]
        %v315 = vld [vmem:[%s258 + $0x38] sm:$0xff]
        %v316 = vld [vmem:[%s258 + $0x40] sm:$0xff]
        %v317 = vld [vmem:[%s258 + $0x48] sm:$0xff]
        %v318 = vld [vmem:[%s258 + $0x50] sm:$0xff]
        %v319 = vld [vmem:[%s258 + $0x58] sm:$0xff]
        %v320 = vld [vmem:[%s258 + $0x60] sm:$0xff]
        %v321 = vld [vmem:[%s258 + $0x68] sm:$0xff]
        %v322 = vld [vmem:[%s258 + $0x70] sm:$0xff]
        %v323 = vld [vmem:[%s258 + $0x78] sm:$0xff]
        %v324 = vld [vmem:[%s258 + $0x80] sm:$0xff]
        %v325 = vld [vmem:[%s258 + $0x88] sm:$0xff]
        %v326 = vld [vmem:[%s258 + $0x90] sm:$0xff]
        %v327 = vld [vmem:[%s258 + $0x98] sm:$0xff]
        %v328 = vld [vmem:[%s258 + $0xa0] sm:$0xff]
        %v329 = vld [vmem:[%s258 + $0xa8] sm:$0xff]
        %v330 = vld [vmem:[%s258 + $0xb0] sm:$0xff]
        %v331 = vld [vmem:[%s258 + $0xb8] sm:$0xff]
        %v332 = vld [vmem:[%s258 + $0xc0] sm:$0xff]
        %v333 = vld [vmem:[%s258 + $0xc8] sm:$0xff]
        %v334 = vld [vmem:[%s258 + $0xd0] sm:$0xff]
        %v335 = vld [vmem:[%s258 + $0xd8] sm:$0xff]
        %v336 = vld [vmem:[%s258 + $0xe0] sm:$0xff]
        %v337 = vld [vmem:[%s258 + $0xe8] sm:$0xff]
        %v338 = vld [vmem:[%s258 + $0xf0] sm:$0xff]
        %v339 = vld [vmem:[%s258 + $0xf8] sm:$0xff]
        %v340 = vpack.c.bf16 %v309, %v308
        %v341 = vpack.c.bf16 %v311, %v310
        %v342 = vpack.c.bf16 %v313, %v312
        %v343 = vpack.c.bf16 %v315, %v314
        %v344 = vpack.c.bf16 %v317, %v316
        %v345 = vpack.c.bf16 %v319, %v318
        %v346 = vpack.c.bf16 %v321, %v320
        %v347 = vpack.c.bf16 %v323, %v322
        %v348 = vpack.c.bf16 %v325, %v324
        %v349 = vpack.c.bf16 %v327, %v326
        %v350 = vpack.c.bf16 %v329, %v328
        %v351 = vpack.c.bf16 %v331, %v330
        %v352 = vpack.c.bf16 %v333, %v332
        %v353 = vpack.c.bf16 %v335, %v334
        %v354 = vpack.c.bf16 %v337, %v336
        %v355 = vpack.c.bf16 %v339, %v338
        %v356 = vld [vmem:[#allocation6] sm:$0xf]
        %v357 = vld [vmem:[#allocation6 + $0x4] sm:$0xf]
        %v358 = vld [vmem:[#allocation6 + $0x8] sm:$0xf]
        %v359 = vld [vmem:[#allocation6 + $0xc] sm:$0xf]
        %v360 = vld [vmem:[#allocation6 + $0x10] sm:$0xf]
        %v361 = vld [vmem:[#allocation6 + $0x14] sm:$0xf]
        %v362 = vld [vmem:[#allocation6 + $0x18] sm:$0xf]
        %v363 = vld [vmem:[#allocation6 + $0x1c] sm:$0xf]
        %v364 = vld [vmem:[#allocation6 + $0x20] sm:$0xf]
        %v365 = vld [vmem:[#allocation6 + $0x24] sm:$0xf]
        %v366 = vld [vmem:[#allocation6 + $0x28] sm:$0xf]
        %v367 = vld [vmem:[#allocation6 + $0x2c] sm:$0xf]
        %v368 = vld [vmem:[#allocation6 + $0x30] sm:$0xf]
        %v369 = vld [vmem:[#allocation6 + $0x34] sm:$0xf]
        %v370 = vld [vmem:[#allocation6 + $0x38] sm:$0xf]
        %v371 = vld [vmem:[#allocation6 + $0x3c] sm:$0xf]
        %v388 = vunpack.c.l.b16 %v356
        %v389 = vunpack.c.l.b16 %v357
        %v390 = vunpack.c.l.b16 %v358
        %v391 = vunpack.c.l.b16 %v359
        %v392 = vunpack.c.l.b16 %v360
        %v393 = vunpack.c.l.b16 %v361
        %v394 = vunpack.c.l.b16 %v362
        %v395 = vunpack.c.l.b16 %v363
        %v396 = vunpack.c.l.b16 %v364
        %v397 = vunpack.c.l.b16 %v365
        %v398 = vunpack.c.l.b16 %v366
        %v399 = vunpack.c.l.b16 %v367
        %v400 = vunpack.c.l.b16 %v368
        %v401 = vunpack.c.l.b16 %v369
        %v402 = vunpack.c.l.b16 %v370
        %v403 = vunpack.c.l.b16 %v371
        %v404 = vpack.c.b16 %v389, %v388
        %v405 = vpack.c.b16 %v391, %v390
        %v406 = vpack.c.b16 %v393, %v392
        %v407 = vpack.c.b16 %v395, %v394
        %v408 = vpack.c.b16 %v397, %v396
        %v409 = vpack.c.b16 %v399, %v398
        %v410 = vpack.c.b16 %v401, %v400
        %v411 = vpack.c.b16 %v403, %v402
        %420 = vmatprep.subr.bf16.mxu0 0
        %421 = vmatpush1.bf16.msra.mxu0 %v404
        %422 = vmatprep.subr.bf16.mxu0 0
        %423 = vmatpush1.bf16.msra.mxu0 %v405
        %424 = vmatprep.subr.bf16.mxu0 0
        %425 = vmatpush1.bf16.msra.mxu0 %v406
        %426 = vmatprep.subr.bf16.mxu0 0
        %427 = vmatpush1.bf16.msra.mxu0 %v407
        %428 = vmatprep.subr.bf16.mxu0 0
        %429 = vmatpush1.bf16.msra.mxu0 %v408
        %430 = vmatprep.subr.bf16.mxu0 0
        %431 = vmatpush1.bf16.msra.mxu0 %v409
        %432 = vmatprep.subr.bf16.mxu0 0
        %433 = vmatpush1.bf16.msra.mxu0 %v410
        %434 = vmatprep.subr.bf16.mxu0 0
        %435 = vmatpush1.bf16.msra.mxu0 %v411
        %436 = vmatprep.subr.bf16.mxu0 0
        %437 = vmatpush1.bf16.msra.mxu0 0
        %438 = vmatprep.subr.bf16.mxu0 0
        %439 = vmatpush1.bf16.msra.mxu0 0
        %440 = vmatprep.subr.bf16.mxu0 0
        %441 = vmatpush1.bf16.msra.mxu0 0
        %442 = vmatprep.subr.bf16.mxu0 0
        %443 = vmatpush1.bf16.msra.mxu0 0
        %444 = vmatprep.subr.bf16.mxu0 0
        %445 = vmatpush1.bf16.msra.mxu0 0
        %446 = vmatprep.subr.bf16.mxu0 0
        %447 = vmatpush1.bf16.msra.mxu0 0
        %448 = vmatprep.subr.bf16.mxu0 0
        %449 = vmatpush1.bf16.msra.mxu0 0
        %450 = vmatprep.subr.bf16.mxu0 0
        %451 = vmatpush1.bf16.msra.mxu0 0
        %452 = vmatprep.mubr.bf16.mxu0 0
        %453 = vmatmul.mubr.bf16.gmra.mrb[0].mxu0 %v340
        %v454 = vpop.f32.mrb[0].mxu0
        %v455 = vadd.f32 0.0, %v454
        %v456 = vpop.f32.mrb[0].mxu0
        %v457 = vpop.f32.mrb[0].mxu0
        %v458 = vadd.f32 0.0, %v457
        %v459 = vpop.f32.mrb[0].mxu0
        %460 = vmatprep.mubr.bf16.mxu0 0
        %461 = vmatmul.mubr.bf16.gmra.mrb[0].mxu0 %v341
        %v462 = vpop.f32.mrb[0].mxu0
        %v463 = vadd.f32 0.0, %v462
        %v464 = vpop.f32.mrb[0].mxu0
        %v465 = vpop.f32.mrb[0].mxu0
        %v466 = vadd.f32 0.0, %v465
        %v467 = vpop.f32.mrb[0].mxu0
        %468 = vmatprep.mubr.bf16.mxu0 0
        %469 = vmatmul.mubr.bf16.gmra.mrb[0].mxu0 %v342
        %v470 = vpop.f32.mrb[0].mxu0
        %v471 = vadd.f32 0.0, %v470
        %v472 = vpop.f32.mrb[0].mxu0
        %v473 = vpop.f32.mrb[0].mxu0
        %v474 = vadd.f32 0.0, %v473
        %v475 = vpop.f32.mrb[0].mxu0
        %476 = vmatprep.mubr.bf16.mxu0 0
        %477 = vmatmul.mubr.bf16.gmra.mrb[0].mxu0 %v343
        %v478 = vpop.f32.mrb[0].mxu0
        %v479 = vadd.f32 0.0, %v478
        %v480 = vpop.f32.mrb[0].mxu0
        %v481 = vpop.f32.mrb[0].mxu0
        %v482 = vadd.f32 0.0, %v481
        %v483 = vpop.f32.mrb[0].mxu0
        %484 = vmatprep.mubr.bf16.mxu0 0
        %485 = vmatmul.mubr.bf16.gmra.mrb[0].mxu0 %v344
        %v486 = vpop.f32.mrb[0].mxu0
        %v487 = vadd.f32 0.0, %v486
        %v488 = vpop.f32.mrb[0].mxu0
        %v489 = vpop.f32.mrb[0].mxu0
        %v490 = vadd.f32 0.0, %v489
        %v491 = vpop.f32.mrb[0].mxu0
        %492 = vmatprep.mubr.bf16.mxu0 0
        %493 = vmatmul.mubr.bf16.gmra.mrb[0].mxu0 %v345
        %v494 = vpop.f32.mrb[0].mxu0
        %v495 = vadd.f32 0.0, %v494
        %v496 = vpop.f32.mrb[0].mxu0
        %v497 = vpop.f32.mrb[0].mxu0
        %v498 = vadd.f32 0.0, %v497
        %v499 = vpop.f32.mrb[0].mxu0
        %500 = vmatprep.mubr.bf16.mxu0 0
        %501 = vmatmul.mubr.bf16.gmra.mrb[0].mxu0 %v346
        %v502 = vpop.f32.mrb[0].mxu0
        %v503 = vadd.f32 0.0, %v502
        %v504 = vpop.f32.mrb[0].mxu0
        %v505 = vpop.f32.mrb[0].mxu0
        %v506 = vadd.f32 0.0, %v505
        %v507 = vpop.f32.mrb[0].mxu0
        %508 = vmatprep.mubr.bf16.mxu0 0
        %509 = vmatmul.mubr.bf16.gmra.mrb[0].mxu0 %v347
        %v510 = vpop.f32.mrb[0].mxu0
        %v511 = vadd.f32 0.0, %v510
        %v512 = vpop.f32.mrb[0].mxu0
        %v513 = vpop.f32.mrb[0].mxu0
        %v514 = vadd.f32 0.0, %v513
        %v515 = vpop.f32.mrb[0].mxu0
        %516 = vmatprep.mubr.bf16.mxu0 0
        %517 = vmatmul.mubr.bf16.gmra.mrb[0].mxu0 %v348
        %v518 = vpop.f32.mrb[0].mxu0
        %v519 = vadd.f32 0.0, %v518
        %v520 = vpop.f32.mrb[0].mxu0
        %v521 = vpop.f32.mrb[0].mxu0
        %v522 = vadd.f32 0.0, %v521
        %v523 = vpop.f32.mrb[0].mxu0
        %524 = vmatprep.mubr.bf16.mxu0 0
        %525 = vmatmul.mubr.bf16.gmra.mrb[0].mxu0 %v349
        %v526 = vpop.f32.mrb[0].mxu0
        %v527 = vadd.f32 0.0, %v526
        %v528 = vpop.f32.mrb[0].mxu0
        %v529 = vpop.f32.mrb[0].mxu0
        %v530 = vadd.f32 0.0, %v529
        %v531 = vpop.f32.mrb[0].mxu0
        %532 = vmatprep.mubr.bf16.mxu0 0
        %533 = vmatmul.mubr.bf16.gmra.mrb[0].mxu0 %v350
        %v534 = vpop.f32.mrb[0].mxu0
        %v535 = vadd.f32 0.0, %v534
        %v536 = vpop.f32.mrb[0].mxu0
        %v537 = vpop.f32.mrb[0].mxu0
        %v538 = vadd.f32 0.0, %v537
        %v539 = vpop.f32.mrb[0].mxu0
        %540 = vmatprep.mubr.bf16.mxu0 0
        %541 = vmatmul.mubr.bf16.gmra.mrb[0].mxu0 %v351
        %v542 = vpop.f32.mrb[0].mxu0
        %v543 = vadd.f32 0.0, %v542
        %v544 = vpop.f32.mrb[0].mxu0
        %v545 = vpop.f32.mrb[0].mxu0
        %v546 = vadd.f32 0.0, %v545
        %v547 = vpop.f32.mrb[0].mxu0
        %548 = vmatprep.mubr.bf16.mxu0 0
        %549 = vmatmul.mubr.bf16.gmra.mrb[0].mxu0 %v352
        %v550 = vpop.f32.mrb[0].mxu0
        %v551 = vadd.f32 0.0, %v550
        %v552 = vpop.f32.mrb[0].mxu0
        %v553 = vpop.f32.mrb[0].mxu0
        %v554 = vadd.f32 0.0, %v553
        %v555 = vpop.f32.mrb[0].mxu0
        %556 = vmatprep.mubr.bf16.mxu0 0
        %557 = vmatmul.mubr.bf16.gmra.mrb[0].mxu0 %v353
        %v558 = vpop.f32.mrb[0].mxu0
        %v559 = vadd.f32 0.0, %v558
        %v560 = vpop.f32.mrb[0].mxu0
        %v561 = vpop.f32.mrb[0].mxu0
        %v562 = vadd.f32 0.0, %v561
        %v563 = vpop.f32.mrb[0].mxu0
        %564 = vmatprep.mubr.bf16.mxu0 0
        %565 = vmatmul.mubr.bf16.gmra.mrb[0].mxu0 %v354
        %v566 = vpop.f32.mrb[0].mxu0
        %v567 = vadd.f32 0.0, %v566
        %v568 = vpop.f32.mrb[0].mxu0
        %v569 = vpop.f32.mrb[0].mxu0
        %v570 = vadd.f32 0.0, %v569
        %v571 = vpop.f32.mrb[0].mxu0
        %572 = vmatprep.mubr.bf16.mxu0 0
        %573 = vmatmul.mubr.bf16.gmra.mrb[0].mxu0 %v355
        %v574 = vpop.f32.mrb[0].mxu0
        %v575 = vadd.f32 0.0, %v574
        %v576 = vpop.f32.mrb[0].mxu0
        %v577 = vpop.f32.mrb[0].mxu0
        %v578 = vadd.f32 0.0, %v577
        %v579 = vpop.f32.mrb[0].mxu0
        %580 = vdwg.mxu0
        %v581 = vadd.f32 %v455, %v458
        %v582 = vadd.f32 %v581, %v463
        %v583 = vadd.f32 %v582, %v466
        %v584 = vadd.f32 %v583, %v471
        %v585 = vadd.f32 %v584, %v474
        %v586 = vadd.f32 %v585, %v479
        %v587 = vadd.f32 %v586, %v482
        %v588 = vadd.f32 %v587, %v487
        %v589 = vadd.f32 %v588, %v490
        %v590 = vadd.f32 %v589, %v495
        %v591 = vadd.f32 %v590, %v498
        %v592 = vadd.f32 %v591, %v503
        %v593 = vadd.f32 %v592, %v506
        %v594 = vadd.f32 %v593, %v511
        %v595 = vadd.f32 %v594, %v514
        %v596 = vadd.f32 %v595, %v519
        %v597 = vadd.f32 %v596, %v522
        %v598 = vadd.f32 %v597, %v527
        %v599 = vadd.f32 %v598, %v530
        %v600 = vadd.f32 %v599, %v535
        %v601 = vadd.f32 %v600, %v538
        %v602 = vadd.f32 %v601, %v543
        %v603 = vadd.f32 %v602, %v546
        %v604 = vadd.f32 %v603, %v551
        %v605 = vadd.f32 %v604, %v554
        %v606 = vadd.f32 %v605, %v559
        %v607 = vadd.f32 %v606, %v562
        %v608 = vadd.f32 %v607, %v567
        %v609 = vadd.f32 %v608, %v570
        %v610 = vadd.f32 %v609, %v575
        %v611 = vadd.f32 %v610, %v578
        %v612 = vrot.slane %v611, 4
        %v613 = vadd.f32 %v611, %v612
        %v614 = vrot.slane %v613, 2
        %v615 = vadd.f32 %v613, %v614
        %v616 = vrot.slane %v615, 1
        %v617 = vadd.f32 %v615, %v616
        %v618 = vmul.f32 %v617, 0.00390625
        %v619 = vsub.f32 %v455, %v618
        %v620 = vsub.f32 %v458, %v618
        %v621 = vsub.f32 %v463, %v618
        %v622 = vsub.f32 %v466, %v618
        %v623 = vsub.f32 %v471, %v618
        %v624 = vsub.f32 %v474, %v618
        %v625 = vsub.f32 %v479, %v618
        %v626 = vsub.f32 %v482, %v618
        %v627 = vsub.f32 %v487, %v618
        %v628 = vsub.f32 %v490, %v618
        %v629 = vsub.f32 %v495, %v618
        %v630 = vsub.f32 %v498, %v618
        %v631 = vsub.f32 %v503, %v618
        %v632 = vsub.f32 %v506, %v618
        %v633 = vsub.f32 %v511, %v618
        %v634 = vsub.f32 %v514, %v618
        %v635 = vsub.f32 %v519, %v618
        %v636 = vsub.f32 %v522, %v618
        %v637 = vsub.f32 %v527, %v618
        %v638 = vsub.f32 %v530, %v618
        %v639 = vsub.f32 %v535, %v618
        %v640 = vsub.f32 %v538, %v618
        %v641 = vsub.f32 %v543, %v618
        %v642 = vsub.f32 %v546, %v618
        %v643 = vsub.f32 %v551, %v618
        %v644 = vsub.f32 %v554, %v618
        %v645 = vsub.f32 %v559, %v618
        %v646 = vsub.f32 %v562, %v618
        %v647 = vsub.f32 %v567, %v618
        %v648 = vsub.f32 %v570, %v618
        %v649 = vsub.f32 %v575, %v618
        %v650 = vsub.f32 %v578, %v618
        %v651 = vmul.f32 %v619, %v619
        %v652 = vmul.f32 %v620, %v620
        %v653 = vmul.f32 %v621, %v621
        %v654 = vmul.f32 %v622, %v622
        %v655 = vmul.f32 %v623, %v623
        %v656 = vmul.f32 %v624, %v624
        %v657 = vmul.f32 %v625, %v625
        %v658 = vmul.f32 %v626, %v626
        %v659 = vmul.f32 %v627, %v627
        %v660 = vmul.f32 %v628, %v628
        %v661 = vmul.f32 %v629, %v629
        %v662 = vmul.f32 %v630, %v630
        %v663 = vmul.f32 %v631, %v631
        %v664 = vmul.f32 %v632, %v632
        %v665 = vmul.f32 %v633, %v633
        %v666 = vmul.f32 %v634, %v634
        %v667 = vmul.f32 %v635, %v635
        %v668 = vmul.f32 %v636, %v636
        %v669 = vmul.f32 %v637, %v637
        %v670 = vmul.f32 %v638, %v638
        %v671 = vmul.f32 %v639, %v639
        %v672 = vmul.f32 %v640, %v640
        %v673 = vmul.f32 %v641, %v641
        %v674 = vmul.f32 %v642, %v642
        %v675 = vmul.f32 %v643, %v643
        %v676 = vmul.f32 %v644, %v644
        %v677 = vmul.f32 %v645, %v645
        %v678 = vmul.f32 %v646, %v646
        %v679 = vmul.f32 %v647, %v647
        %v680 = vmul.f32 %v648, %v648
        %v681 = vmul.f32 %v649, %v649
        %v682 = vmul.f32 %v650, %v650
        %v683 = vadd.f32 %v651, %v652
        %v684 = vadd.f32 %v683, %v653
        %v685 = vadd.f32 %v684, %v654
        %v686 = vadd.f32 %v685, %v655
        %v687 = vadd.f32 %v686, %v656
        %v688 = vadd.f32 %v687, %v657
        %v689 = vadd.f32 %v688, %v658
        %v690 = vadd.f32 %v689, %v659
        %v691 = vadd.f32 %v690, %v660
        %v692 = vadd.f32 %v691, %v661
        %v693 = vadd.f32 %v692, %v662
        %v694 = vadd.f32 %v693, %v663
        %v695 = vadd.f32 %v694, %v664
        %v696 = vadd.f32 %v695, %v665
        %v697 = vadd.f32 %v696, %v666
        %v698 = vadd.f32 %v697, %v667
        %v699 = vadd.f32 %v698, %v668
        %v700 = vadd.f32 %v699, %v669
        %v701 = vadd.f32 %v700, %v670
        %v702 = vadd.f32 %v701, %v671
        %v703 = vadd.f32 %v702, %v672
        %v704 = vadd.f32 %v703, %v673
        %v705 = vadd.f32 %v704, %v674
        %v706 = vadd.f32 %v705, %v675
        %v707 = vadd.f32 %v706, %v676
        %v708 = vadd.f32 %v707, %v677
        %v709 = vadd.f32 %v708, %v678
        %v710 = vadd.f32 %v709, %v679
        %v711 = vadd.f32 %v710, %v680
        %v712 = vadd.f32 %v711, %v681
        %v713 = vadd.f32 %v712, %v682
        %v714 = vrot.slane %v713, 4
        %v715 = vadd.f32 %v713, %v714
        %v716 = vrot.slane %v715, 2
        %v717 = vadd.f32 %v715, %v716
        %v718 = vrot.slane %v717, 1
        %v719 = vadd.f32 %v717, %v718
        %v720 = vmul.f32 %v719, 0.00390625
        %v721 = vadd.f32 %v720, 1e-05
        %v722 = vrsqrt.pop %v721
        %v723 = vmul.f32 %v619, %v722
        %v724 = vmul.f32 %v620, %v722
        %v725 = vmul.f32 %v621, %v722
        %v726 = vmul.f32 %v622, %v722
        %v727 = vmul.f32 %v623, %v722
        %v728 = vmul.f32 %v624, %v722
        %v729 = vmul.f32 %v625, %v722
        %v730 = vmul.f32 %v626, %v722
        %v731 = vmul.f32 %v627, %v722
        %v732 = vmul.f32 %v628, %v722
        %v733 = vmul.f32 %v629, %v722
        %v734 = vmul.f32 %v630, %v722
        %v735 = vmul.f32 %v631, %v722
        %v736 = vmul.f32 %v632, %v722
        %v737 = vmul.f32 %v633, %v722
        %v738 = vmul.f32 %v634, %v722
        %v739 = vmul.f32 %v635, %v722
        %v740 = vmul.f32 %v636, %v722
        %v741 = vmul.f32 %v637, %v722
        %v742 = vmul.f32 %v638, %v722
        %v743 = vmul.f32 %v639, %v722
        %v744 = vmul.f32 %v640, %v722
        %v745 = vmul.f32 %v641, %v722
        %v746 = vmul.f32 %v642, %v722
        %v747 = vmul.f32 %v643, %v722
        %v748 = vmul.f32 %v644, %v722
        %v749 = vmul.f32 %v645, %v722
        %v750 = vmul.f32 %v646, %v722
        %v751 = vmul.f32 %v647, %v722
        %v752 = vmul.f32 %v648, %v722
        %v753 = vmul.f32 %v649, %v722
        %v754 = vmul.f32 %v650, %v722
        %v755 = vmax.f32 %v723, 0.0
        %v756 = vmax.f32 %v724, 0.0
        %v757 = vmax.f32 %v725, 0.0
        %v758 = vmax.f32 %v726, 0.0
        %v759 = vmax.f32 %v727, 0.0
        %v760 = vmax.f32 %v728, 0.0
        %v761 = vmax.f32 %v729, 0.0
        %v762 = vmax.f32 %v730, 0.0
        %v763 = vmax.f32 %v731, 0.0
        %v764 = vmax.f32 %v732, 0.0
        %v765 = vmax.f32 %v733, 0.0
        %v766 = vmax.f32 %v734, 0.0
        %v767 = vmax.f32 %v735, 0.0
        %v768 = vmax.f32 %v736, 0.0
        %v769 = vmax.f32 %v737, 0.0
        %v770 = vmax.f32 %v738, 0.0
        %v771 = vmax.f32 %v739, 0.0
        %v772 = vmax.f32 %v740, 0.0
        %v773 = vmax.f32 %v741, 0.0
        %v774 = vmax.f32 %v742, 0.0
        %v775 = vmax.f32 %v743, 0.0
        %v776 = vmax.f32 %v744, 0.0
        %v777 = vmax.f32 %v745, 0.0
        %v778 = vmax.f32 %v746, 0.0
        %v779 = vmax.f32 %v747, 0.0
        %v780 = vmax.f32 %v748, 0.0
        %v781 = vmax.f32 %v749, 0.0
        %v782 = vmax.f32 %v750, 0.0
        %v783 = vmax.f32 %v751, 0.0
        %v784 = vmax.f32 %v752, 0.0
        %v785 = vmax.f32 %v753, 0.0
        %v786 = vmax.f32 %v754, 0.0
        %787 = vst [vmem:[#allocation2 + $0x18] sm:$0xff] %v755
        %788 = vst [vmem:[#allocation2 + $0x20] sm:$0xff] %v756
        %789 = vst [vmem:[#allocation2 + $0x28] sm:$0xff] %v757
        %790 = vst [vmem:[#allocation2 + $0x30] sm:$0xff] %v758
        %791 = vst [vmem:[#allocation2 + $0x38] sm:$0xff] %v759
        %792 = vst [vmem:[#allocation2 + $0x40] sm:$0xff] %v760
        %793 = vst [vmem:[#allocation2 + $0x48] sm:$0xff] %v761
        %794 = vst [vmem:[#allocation2 + $0x50] sm:$0xff] %v762
        %795 = vst [vmem:[#allocation2 + $0x58] sm:$0xff] %v763
        %796 = vst [vmem:[#allocation2 + $0x60] sm:$0xff] %v764
        %797 = vst [vmem:[#allocation2 + $0x68] sm:$0xff] %v765
        %798 = vst [vmem:[#allocation2 + $0x70] sm:$0xff] %v766
        %799 = vst [vmem:[#allocation2 + $0x78] sm:$0xff] %v767
        %800 = vst [vmem:[#allocation2 + $0x80] sm:$0xff] %v768
        %801 = vst [vmem:[#allocation2 + $0x88] sm:$0xff] %v769
        %802 = vst [vmem:[#allocation2 + $0x90] sm:$0xff] %v770
        %803 = vst [vmem:[#allocation2 + $0x98] sm:$0xff] %v771
        %804 = vst [vmem:[#allocation2 + $0xa0] sm:$0xff] %v772
        %805 = vst [vmem:[#allocation2 + $0xa8] sm:$0xff] %v773
        %806 = vst [vmem:[#allocation2 + $0xb0] sm:$0xff] %v774
        %807 = vst [vmem:[#allocation2 + $0xb8] sm:$0xff] %v775
        %808 = vst [vmem:[#allocation2 + $0xc0] sm:$0xff] %v776
        %809 = vst [vmem:[#allocation2 + $0xc8] sm:$0xff] %v777
        %810 = vst [vmem:[#allocation2 + $0xd0] sm:$0xff] %v778
        %811 = vst [vmem:[#allocation2 + $0xd8] sm:$0xff] %v779
        %812 = vst [vmem:[#allocation2 + $0xe0] sm:$0xff] %v780
        %813 = vst [vmem:[#allocation2 + $0xe8] sm:$0xff] %v781
        %814 = vst [vmem:[#allocation2 + $0xf0] sm:$0xff] %v782
        %815 = vst [vmem:[#allocation2 + $0xf8] sm:$0xff] %v783
        %816 = vst [vmem:[#allocation2 + $0x100] sm:$0xff] %v784
        %817 = vst [vmem:[#allocation2 + $0x108] sm:$0xff] %v785
        %818 = vst [vmem:[#allocation2 + $0x110] sm:$0xff] %v786
        %v819 = vlaneseq
        %v820 = vshrl.u32 %v819, 7
        %v821 = vadd.s32 %v820, 8
        %v822 = vadd.s32 %v820, 16
        %v823 = vadd.s32 %v820, 24
        %v824 = vadd.s32 %v820, 32
        %v825 = vadd.s32 %v820, 40
        %v826 = vadd.s32 %v820, 48
        %v827 = vadd.s32 %v820, 56
        %v828 = vadd.s32 %v820, 64
        %v829 = vadd.s32 %v820, 72
        %v830 = vadd.s32 %v820, 80
        %v831 = vadd.s32 %v820, 88
        %v832 = vadd.s32 %v820, 96
        %v833 = vadd.s32 %v820, 104
        %v834 = vadd.s32 %v820, 112
        %v835 = vadd.s32 %v820, 120
        %v836 = vadd.s32 %v820, 128
        %v837 = vadd.s32 %v820, 136
        %v838 = vadd.s32 %v820, 144
        %v839 = vadd.s32 %v820, 152
        %v840 = vadd.s32 %v820, 160
        %v841 = vadd.s32 %v820, 168
        %v842 = vadd.s32 %v820, 176
        %v843 = vadd.s32 %v820, 184
        %v844 = vadd.s32 %v820, 192
        %v845 = vadd.s32 %v820, 200
        %v846 = vadd.s32 %v820, 208
        %v847 = vadd.s32 %v820, 216
        %v848 = vadd.s32 %v820, 224
        %v849 = vadd.s32 %v820, 232
        %v850 = vadd.s32 %v820, 240
        %v851 = vadd.s32 %v820, 248
        %vm852 = vcmp.lt.s32.totalorder %v820, 0
        %v853 = vsub.s32 0, %v820
        %v854 = vsel %vm852, %v853, %v820
        %v855 = vshrl.u32 %v854, 4
        %v856 = vand.u32 %v854, 15
        %v857 = vsub.s32 0, %v856
        %v858 = vsel %vm852, %v857, %v856
        %vm859 = vcmp.lt.s32.totalorder %v821, 0
        %v860 = vsub.s32 0, %v821
        %v861 = vsel %vm859, %v860, %v821
        %v862 = vshrl.u32 %v861, 4
        %v863 = vand.u32 %v861, 15
        %v864 = vsub.s32 0, %v863
        %v865 = vsel %vm859, %v864, %v863
        %vm866 = vcmp.lt.s32.totalorder %v822, 0
        %v867 = vsub.s32 0, %v822
        %v868 = vsel %vm866, %v867, %v822
        %v869 = vshrl.u32 %v868, 4
        %v870 = vand.u32 %v868, 15
        %v871 = vsub.s32 0, %v870
        %v872 = vsel %vm866, %v871, %v870
        %vm873 = vcmp.lt.s32.totalorder %v823, 0
        %v874 = vsub.s32 0, %v823
        %v875 = vsel %vm873, %v874, %v823
        %v876 = vshrl.u32 %v875, 4
        %v877 = vand.u32 %v875, 15
        %v878 = vsub.s32 0, %v877
        %v879 = vsel %vm873, %v878, %v877
        %vm880 = vcmp.lt.s32.totalorder %v824, 0
        %v881 = vsub.s32 0, %v824
        %v882 = vsel %vm880, %v881, %v824
        %v883 = vshrl.u32 %v882, 4
        %v884 = vand.u32 %v882, 15
        %v885 = vsub.s32 0, %v884
        %v886 = vsel %vm880, %v885, %v884
        %vm887 = vcmp.lt.s32.totalorder %v825, 0
        %v888 = vsub.s32 0, %v825
        %v889 = vsel %vm887, %v888, %v825
        %v890 = vshrl.u32 %v889, 4
        %v891 = vand.u32 %v889, 15
        %v892 = vsub.s32 0, %v891
        %v893 = vsel %vm887, %v892, %v891
        %vm894 = vcmp.lt.s32.totalorder %v826, 0
        %v895 = vsub.s32 0, %v826
        %v896 = vsel %vm894, %v895, %v826
        %v897 = vshrl.u32 %v896, 4
        %v898 = vand.u32 %v896, 15
        %v899 = vsub.s32 0, %v898
        %v900 = vsel %vm894, %v899, %v898
        %vm901 = vcmp.lt.s32.totalorder %v827, 0
        %v902 = vsub.s32 0, %v827
        %v903 = vsel %vm901, %v902, %v827
        %v904 = vshrl.u32 %v903, 4
        %v905 = vand.u32 %v903, 15
        %v906 = vsub.s32 0, %v905
        %v907 = vsel %vm901, %v906, %v905
        %vm908 = vcmp.lt.s32.totalorder %v828, 0
        %v909 = vsub.s32 0, %v828
        %v910 = vsel %vm908, %v909, %v828
        %v911 = vshrl.u32 %v910, 4
        %v912 = vand.u32 %v910, 15
        %v913 = vsub.s32 0, %v912
        %v914 = vsel %vm908, %v913, %v912
        %vm915 = vcmp.lt.s32.totalorder %v829, 0
        %v916 = vsub.s32 0, %v829
        %v917 = vsel %vm915, %v916, %v829
        %v918 = vshrl.u32 %v917, 4
        %v919 = vand.u32 %v917, 15
        %v920 = vsub.s32 0, %v919
        %v921 = vsel %vm915, %v920, %v919
        %vm922 = vcmp.lt.s32.totalorder %v830, 0
        %v923 = vsub.s32 0, %v830
        %v924 = vsel %vm922, %v923, %v830
        %v925 = vshrl.u32 %v924, 4
        %v926 = vand.u32 %v924, 15
        %v927 = vsub.s32 0, %v926
        %v928 = vsel %vm922, %v927, %v926
        %vm929 = vcmp.lt.s32.totalorder %v831, 0
        %v930 = vsub.s32 0, %v831
        %v931 = vsel %vm929, %v930, %v831
        %v932 = vshrl.u32 %v931, 4
        %v933 = vand.u32 %v931, 15
        %v934 = vsub.s32 0, %v933
        %v935 = vsel %vm929, %v934, %v933
        %vm936 = vcmp.lt.s32.totalorder %v832, 0
        %v937 = vsub.s32 0, %v832
        %v938 = vsel %vm936, %v937, %v832
        %v939 = vshrl.u32 %v938, 4
        %v940 = vand.u32 %v938, 15
        %v941 = vsub.s32 0, %v940
        %v942 = vsel %vm936, %v941, %v940
        %vm943 = vcmp.lt.s32.totalorder %v833, 0
        %v944 = vsub.s32 0, %v833
        %v945 = vsel %vm943, %v944, %v833
        %v946 = vshrl.u32 %v945, 4
        %v947 = vand.u32 %v945, 15
        %v948 = vsub.s32 0, %v947
        %v949 = vsel %vm943, %v948, %v947
        %vm950 = vcmp.lt.s32.totalorder %v834, 0
        %v951 = vsub.s32 0, %v834
        %v952 = vsel %vm950, %v951, %v834
        %v953 = vshrl.u32 %v952, 4
        %v954 = vand.u32 %v952, 15
        %v955 = vsub.s32 0, %v954
        %v956 = vsel %vm950, %v955, %v954
        %vm957 = vcmp.lt.s32.totalorder %v835, 0
        %v958 = vsub.s32 0, %v835
        %v959 = vsel %vm957, %v958, %v835
        %v960 = vshrl.u32 %v959, 4
        %v961 = vand.u32 %v959, 15
        %v962 = vsub.s32 0, %v961
        %v963 = vsel %vm957, %v962, %v961
        %vm964 = vcmp.lt.s32.totalorder %v836, 0
        %v965 = vsub.s32 0, %v836
        %v966 = vsel %vm964, %v965, %v836
        %v967 = vshrl.u32 %v966, 4
        %v968 = vand.u32 %v966, 15
        %v969 = vsub.s32 0, %v968
        %v970 = vsel %vm964, %v969, %v968
        %vm971 = vcmp.lt.s32.totalorder %v837, 0
        %v972 = vsub.s32 0, %v837
        %v973 = vsel %vm971, %v972, %v837
        %v974 = vshrl.u32 %v973, 4
        %v975 = vand.u32 %v973, 15
        %v976 = vsub.s32 0, %v975
        %v977 = vsel %vm971, %v976, %v975
        %vm978 = vcmp.lt.s32.totalorder %v838, 0
        %v979 = vsub.s32 0, %v838
        %v980 = vsel %vm978, %v979, %v838
        %v981 = vshrl.u32 %v980, 4
        %v982 = vand.u32 %v980, 15
        %v983 = vsub.s32 0, %v982
        %v984 = vsel %vm978, %v983, %v982
        %vm985 = vcmp.lt.s32.totalorder %v839, 0
        %v986 = vsub.s32 0, %v839
        %v987 = vsel %vm985, %v986, %v839
        %v988 = vshrl.u32 %v987, 4
        %v989 = vand.u32 %v987, 15
        %v990 = vsub.s32 0, %v989
        %v991 = vsel %vm985, %v990, %v989
        %vm992 = vcmp.lt.s32.totalorder %v840, 0
        %v993 = vsub.s32 0, %v840
        %v994 = vsel %vm992, %v993, %v840
        %v995 = vshrl.u32 %v994, 4
        %v996 = vand.u32 %v994, 15
        %v997 = vsub.s32 0, %v996
        %v998 = vsel %vm992, %v997, %v996
        %vm999 = vcmp.lt.s32.totalorder %v841, 0
        %v1000 = vsub.s32 0, %v841
        %v1001 = vsel %vm999, %v1000, %v841
        %v1002 = vshrl.u32 %v1001, 4
        %v1003 = vand.u32 %v1001, 15
        %v1004 = vsub.s32 0, %v1003
        %v1005 = vsel %vm999, %v1004, %v1003
        %vm1006 = vcmp.lt.s32.totalorder %v842, 0
        %v1007 = vsub.s32 0, %v842
        %v1008 = vsel %vm1006, %v1007, %v842
        %v1009 = vshrl.u32 %v1008, 4
        %v1010 = vand.u32 %v1008, 15
        %v1011 = vsub.s32 0, %v1010
        %v1012 = vsel %vm1006, %v1011, %v1010
        %vm1013 = vcmp.lt.s32.totalorder %v843, 0
        %v1014 = vsub.s32 0, %v843
        %v1015 = vsel %vm1013, %v1014, %v843
        %v1016 = vshrl.u32 %v1015, 4
        %v1017 = vand.u32 %v1015, 15
        %v1018 = vsub.s32 0, %v1017
        %v1019 = vsel %vm1013, %v1018, %v1017
        %vm1020 = vcmp.lt.s32.totalorder %v844, 0
        %v1021 = vsub.s32 0, %v844
        %v1022 = vsel %vm1020, %v1021, %v844
        %v1023 = vshrl.u32 %v1022, 4
        %v1024 = vand.u32 %v1022, 15
        %v1025 = vsub.s32 0, %v1024
        %v1026 = vsel %vm1020, %v1025, %v1024
        %vm1027 = vcmp.lt.s32.totalorder %v845, 0
        %v1028 = vsub.s32 0, %v845
        %v1029 = vsel %vm1027, %v1028, %v845
        %v1030 = vshrl.u32 %v1029, 4
        %v1031 = vand.u32 %v1029, 15
        %v1032 = vsub.s32 0, %v1031
        %v1033 = vsel %vm1027, %v1032, %v1031
        %vm1034 = vcmp.lt.s32.totalorder %v846, 0
        %v1035 = vsub.s32 0, %v846
        %v1036 = vsel %vm1034, %v1035, %v846
        %v1037 = vshrl.u32 %v1036, 4
        %v1038 = vand.u32 %v1036, 15
        %v1039 = vsub.s32 0, %v1038
        %v1040 = vsel %vm1034, %v1039, %v1038
        %vm1041 = vcmp.lt.s32.totalorder %v847, 0
        %v1042 = vsub.s32 0, %v847
        %v1043 = vsel %vm1041, %v1042, %v847
        %v1044 = vshrl.u32 %v1043, 4
        %v1045 = vand.u32 %v1043, 15
        %v1046 = vsub.s32 0, %v1045
        %v1047 = vsel %vm1041, %v1046, %v1045
        %vm1048 = vcmp.lt.s32.totalorder %v848, 0
        %v1049 = vsub.s32 0, %v848
        %v1050 = vsel %vm1048, %v1049, %v848
        %v1051 = vshrl.u32 %v1050, 4
        %v1052 = vand.u32 %v1050, 15
        %v1053 = vsub.s32 0, %v1052
        %v1054 = vsel %vm1048, %v1053, %v1052
        %vm1055 = vcmp.lt.s32.totalorder %v849, 0
        %v1056 = vsub.s32 0, %v849
        %v1057 = vsel %vm1055, %v1056, %v849
        %v1058 = vshrl.u32 %v1057, 4
        %v1059 = vand.u32 %v1057, 15
        %v1060 = vsub.s32 0, %v1059
        %v1061 = vsel %vm1055, %v1060, %v1059
        %vm1062 = vcmp.lt.s32.totalorder %v850, 0
        %v1063 = vsub.s32 0, %v850
        %v1064 = vsel %vm1062, %v1063, %v850
        %v1065 = vshrl.u32 %v1064, 4
        %v1066 = vand.u32 %v1064, 15
        %v1067 = vsub.s32 0, %v1066
        %v1068 = vsel %vm1062, %v1067, %v1066
        %vm1069 = vcmp.lt.s32.totalorder %v851, 0
        %v1070 = vsub.s32 0, %v851
        %v1071 = vsel %vm1069, %v1070, %v851
        %v1072 = vshrl.u32 %v1071, 4
        %v1073 = vand.u32 %v1071, 15
        %v1074 = vsub.s32 0, %v1073
        %v1075 = vsel %vm1069, %v1074, %v1073
        %vm1076 = vcmp.ne.s32.totalorder %v858, 0
        %vm1077 = vcmp.ne.s32.totalorder %v865, 0
        %vm1078 = vcmp.ne.s32.totalorder %v872, 0
        %vm1079 = vcmp.ne.s32.totalorder %v879, 0
        %vm1080 = vcmp.ne.s32.totalorder %v886, 0
        %vm1081 = vcmp.ne.s32.totalorder %v893, 0
        %vm1082 = vcmp.ne.s32.totalorder %v900, 0
        %vm1083 = vcmp.ne.s32.totalorder %v907, 0
        %vm1084 = vcmp.ne.s32.totalorder %v914, 0
        %vm1085 = vcmp.ne.s32.totalorder %v921, 0
        %vm1086 = vcmp.ne.s32.totalorder %v928, 0
        %vm1087 = vcmp.ne.s32.totalorder %v935, 0
        %vm1088 = vcmp.ne.s32.totalorder %v942, 0
        %vm1089 = vcmp.ne.s32.totalorder %v949, 0
        %vm1090 = vcmp.ne.s32.totalorder %v956, 0
        %vm1091 = vcmp.ne.s32.totalorder %v963, 0
        %vm1092 = vcmp.ne.s32.totalorder %v970, 0
        %vm1093 = vcmp.ne.s32.totalorder %v977, 0
        %vm1094 = vcmp.ne.s32.totalorder %v984, 0
        %vm1095 = vcmp.ne.s32.totalorder %v991, 0
        %vm1096 = vcmp.ne.s32.totalorder %v998, 0
        %vm1097 = vcmp.ne.s32.totalorder %v1005, 0
        %vm1098 = vcmp.ne.s32.totalorder %v1012, 0
        %vm1099 = vcmp.ne.s32.totalorder %v1019, 0
        %vm1100 = vcmp.ne.s32.totalorder %v1026, 0
        %vm1101 = vcmp.ne.s32.totalorder %v1033, 0
        %vm1102 = vcmp.ne.s32.totalorder %v1040, 0
        %vm1103 = vcmp.ne.s32.totalorder %v1047, 0
        %vm1104 = vcmp.ne.s32.totalorder %v1054, 0
        %vm1105 = vcmp.ne.s32.totalorder %v1061, 0
        %vm1106 = vcmp.ne.s32.totalorder %v1068, 0
        %vm1107 = vcmp.ne.s32.totalorder %v1075, 0
        %vm1108 = vcmp.lt.s32.totalorder %v858, 0
        %vm1109 = vcmp.lt.s32.totalorder %v865, 0
        %vm1110 = vcmp.lt.s32.totalorder %v872, 0
        %vm1111 = vcmp.lt.s32.totalorder %v879, 0
        %vm1112 = vcmp.lt.s32.totalorder %v886, 0
        %vm1113 = vcmp.lt.s32.totalorder %v893, 0
        %vm1114 = vcmp.lt.s32.totalorder %v900, 0
        %vm1115 = vcmp.lt.s32.totalorder %v907, 0
        %vm1116 = vcmp.lt.s32.totalorder %v914, 0
        %vm1117 = vcmp.lt.s32.totalorder %v921, 0
        %vm1118 = vcmp.lt.s32.totalorder %v928, 0
        %vm1119 = vcmp.lt.s32.totalorder %v935, 0
        %vm1120 = vcmp.lt.s32.totalorder %v942, 0
        %vm1121 = vcmp.lt.s32.totalorder %v949, 0
        %vm1122 = vcmp.lt.s32.totalorder %v956, 0
        %vm1123 = vcmp.lt.s32.totalorder %v963, 0
        %vm1124 = vcmp.lt.s32.totalorder %v970, 0
        %vm1125 = vcmp.lt.s32.totalorder %v977, 0
        %vm1126 = vcmp.lt.s32.totalorder %v984, 0
        %vm1127 = vcmp.lt.s32.totalorder %v991, 0
        %vm1128 = vcmp.lt.s32.totalorder %v998, 0
        %vm1129 = vcmp.lt.s32.totalorder %v1005, 0
        %vm1130 = vcmp.lt.s32.totalorder %v1012, 0
        %vm1131 = vcmp.lt.s32.totalorder %v1019, 0
        %vm1132 = vcmp.lt.s32.totalorder %v1026, 0
        %vm1133 = vcmp.lt.s32.totalorder %v1033, 0
        %vm1134 = vcmp.lt.s32.totalorder %v1040, 0
        %vm1135 = vcmp.lt.s32.totalorder %v1047, 0
        %vm1136 = vcmp.lt.s32.totalorder %v1054, 0
        %vm1137 = vcmp.lt.s32.totalorder %v1061, 0
        %vm1138 = vcmp.lt.s32.totalorder %v1068, 0
        %vm1139 = vcmp.lt.s32.totalorder %v1075, 0
        %vm1140 = vmand %vm1108, %vm1076
        %vm1141 = vmand %vm1109, %vm1077
        %vm1142 = vmand %vm1110, %vm1078
        %vm1143 = vmand %vm1111, %vm1079
        %vm1144 = vmand %vm1112, %vm1080
        %vm1145 = vmand %vm1113, %vm1081
        %vm1146 = vmand %vm1114, %vm1082
        %vm1147 = vmand %vm1115, %vm1083
        %vm1148 = vmand %vm1116, %vm1084
        %vm1149 = vmand %vm1117, %vm1085
        %vm1150 = vmand %vm1118, %vm1086
        %vm1151 = vmand %vm1119, %vm1087
        %vm1152 = vmand %vm1120, %vm1088
        %vm1153 = vmand %vm1121, %vm1089
        %vm1154 = vmand %vm1122, %vm1090
        %vm1155 = vmand %vm1123, %vm1091
        %vm1156 = vmand %vm1124, %vm1092
        %vm1157 = vmand %vm1125, %vm1093
        %vm1158 = vmand %vm1126, %vm1094
        %vm1159 = vmand %vm1127, %vm1095
        %vm1160 = vmand %vm1128, %vm1096
        %vm1161 = vmand %vm1129, %vm1097
        %vm1162 = vmand %vm1130, %vm1098
        %vm1163 = vmand %vm1131, %vm1099
        %vm1164 = vmand %vm1132, %vm1100
        %vm1165 = vmand %vm1133, %vm1101
        %vm1166 = vmand %vm1134, %vm1102
        %vm1167 = vmand %vm1135, %vm1103
        %vm1168 = vmand %vm1136, %vm1104
        %vm1169 = vmand %vm1137, %vm1105
        %vm1170 = vmand %vm1138, %vm1106
        %vm1171 = vmand %vm1139, %vm1107
        %v1172 = vadd.s32 %v858, 16
        %v1173 = vadd.s32 %v865, 16
        %v1174 = vadd.s32 %v872, 16
        %v1175 = vadd.s32 %v879, 16
        %v1176 = vadd.s32 %v886, 16
        %v1177 = vadd.s32 %v893, 16
        %v1178 = vadd.s32 %v900, 16
        %v1179 = vadd.s32 %v907, 16
        %v1180 = vadd.s32 %v914, 16
        %v1181 = vadd.s32 %v921, 16
        %v1182 = vadd.s32 %v928, 16
        %v1183 = vadd.s32 %v935, 16
        %v1184 = vadd.s32 %v942, 16
        %v1185 = vadd.s32 %v949, 16
        %v1186 = vadd.s32 %v956, 16
        %v1187 = vadd.s32 %v963, 16
        %v1188 = vadd.s32 %v970, 16
        %v1189 = vadd.s32 %v977, 16
        %v1190 = vadd.s32 %v984, 16
        %v1191 = vadd.s32 %v991, 16
        %v1192 = vadd.s32 %v998, 16
        %v1193 = vadd.s32 %v1005, 16
        %v1194 = vadd.s32 %v1012, 16
        %v1195 = vadd.s32 %v1019, 16
        %v1196 = vadd.s32 %v1026, 16
        %v1197 = vadd.s32 %v1033, 16
        %v1198 = vadd.s32 %v1040, 16
        %v1199 = vadd.s32 %v1047, 16
        %v1200 = vadd.s32 %v1054, 16
        %v1201 = vadd.s32 %v1061, 16
        %v1202 = vadd.s32 %v1068, 16
        %v1203 = vadd.s32 %v1075, 16
        %v1204 = vsel %vm1140, %v1172, %v858
        %v1205 = vsel %vm1141, %v1173, %v865
        %v1206 = vsel %vm1142, %v1174, %v872
        %v1207 = vsel %vm1143, %v1175, %v879
        %v1208 = vsel %vm1144, %v1176, %v886
        %v1209 = vsel %vm1145, %v1177, %v893
        %v1210 = vsel %vm1146, %v1178, %v900
        %v1211 = vsel %vm1147, %v1179, %v907
        %v1212 = vsel %vm1148, %v1180, %v914
        %v1213 = vsel %vm1149, %v1181, %v921
        %v1214 = vsel %vm1150, %v1182, %v928
        %v1215 = vsel %vm1151, %v1183, %v935
        %v1216 = vsel %vm1152, %v1184, %v942
        %v1217 = vsel %vm1153, %v1185, %v949
        %v1218 = vsel %vm1154, %v1186, %v956
        %v1219 = vsel %vm1155, %v1187, %v963
        %v1220 = vsel %vm1156, %v1188, %v970
        %v1221 = vsel %vm1157, %v1189, %v977
        %v1222 = vsel %vm1158, %v1190, %v984
        %v1223 = vsel %vm1159, %v1191, %v991
        %v1224 = vsel %vm1160, %v1192, %v998
        %v1225 = vsel %vm1161, %v1193, %v1005
        %v1226 = vsel %vm1162, %v1194, %v1012
        %v1227 = vsel %vm1163, %v1195, %v1019
        %v1228 = vsel %vm1164, %v1196, %v1026
        %v1229 = vsel %vm1165, %v1197, %v1033
        %v1230 = vsel %vm1166, %v1198, %v1040
        %v1231 = vsel %vm1167, %v1199, %v1047
        %v1232 = vsel %vm1168, %v1200, %v1054
        %v1233 = vsel %vm1169, %v1201, %v1061
        %v1234 = vsel %vm1170, %v1202, %v1068
        %v1235 = vsel %vm1171, %v1203, %v1075
        %vm1236 = vcmp.ge.s32.totalorder %v1204, 1
        %vm1237 = vcmp.ge.s32.totalorder %v1205, 1
        %vm1238 = vcmp.ge.s32.totalorder %v1206, 1
        %vm1239 = vcmp.ge.s32.totalorder %v1207, 1
        %vm1240 = vcmp.ge.s32.totalorder %v1208, 1
        %vm1241 = vcmp.ge.s32.totalorder %v1209, 1
        %vm1242 = vcmp.ge.s32.totalorder %v1210, 1
        %vm1243 = vcmp.ge.s32.totalorder %v1211, 1
        %vm1244 = vcmp.ge.s32.totalorder %v1212, 1
        %vm1245 = vcmp.ge.s32.totalorder %v1213, 1
        %vm1246 = vcmp.ge.s32.totalorder %v1214, 1
        %vm1247 = vcmp.ge.s32.totalorder %v1215, 1
        %vm1248 = vcmp.ge.s32.totalorder %v1216, 1
        %vm1249 = vcmp.ge.s32.totalorder %v1217, 1
        %vm1250 = vcmp.ge.s32.totalorder %v1218, 1
        %vm1251 = vcmp.ge.s32.totalorder %v1219, 1
        %vm1252 = vcmp.ge.s32.totalorder %v1220, 1
        %vm1253 = vcmp.ge.s32.totalorder %v1221, 1
        %vm1254 = vcmp.ge.s32.totalorder %v1222, 1
        %vm1255 = vcmp.ge.s32.totalorder %v1223, 1
        %vm1256 = vcmp.ge.s32.totalorder %v1224, 1
        %vm1257 = vcmp.ge.s32.totalorder %v1225, 1
        %vm1258 = vcmp.ge.s32.totalorder %v1226, 1
        %vm1259 = vcmp.ge.s32.totalorder %v1227, 1
        %vm1260 = vcmp.ge.s32.totalorder %v1228, 1
        %vm1261 = vcmp.ge.s32.totalorder %v1229, 1
        %vm1262 = vcmp.ge.s32.totalorder %v1230, 1
        %vm1263 = vcmp.ge.s32.totalorder %v1231, 1
        %vm1264 = vcmp.ge.s32.totalorder %v1232, 1
        %vm1265 = vcmp.ge.s32.totalorder %v1233, 1
        %vm1266 = vcmp.ge.s32.totalorder %v1234, 1
        %vm1267 = vcmp.ge.s32.totalorder %v1235, 1
        %v1268 = vsel %vm1236, 1, 0
        %v1269 = vsel %vm1237, 1, 0
        %v1270 = vsel %vm1238, 1, 0
        %v1271 = vsel %vm1239, 1, 0
        %v1272 = vsel %vm1240, 1, 0
        %v1273 = vsel %vm1241, 1, 0
        %v1274 = vsel %vm1242, 1, 0
        %v1275 = vsel %vm1243, 1, 0
        %v1276 = vsel %vm1244, 1, 0
        %v1277 = vsel %vm1245, 1, 0
        %v1278 = vsel %vm1246, 1, 0
        %v1279 = vsel %vm1247, 1, 0
        %v1280 = vsel %vm1248, 1, 0
        %v1281 = vsel %vm1249, 1, 0
        %v1282 = vsel %vm1250, 1, 0
        %v1283 = vsel %vm1251, 1, 0
        %v1284 = vsel %vm1252, 1, 0
        %v1285 = vsel %vm1253, 1, 0
        %v1286 = vsel %vm1254, 1, 0
        %v1287 = vsel %vm1255, 1, 0
        %v1288 = vsel %vm1256, 1, 0
        %v1289 = vsel %vm1257, 1, 0
        %v1290 = vsel %vm1258, 1, 0
        %v1291 = vsel %vm1259, 1, 0
        %v1292 = vsel %vm1260, 1, 0
        %v1293 = vsel %vm1261, 1, 0
        %v1294 = vsel %vm1262, 1, 0
        %v1295 = vsel %vm1263, 1, 0
        %v1296 = vsel %vm1264, 1, 0
        %v1297 = vsel %vm1265, 1, 0
        %v1298 = vsel %vm1266, 1, 0
        %v1299 = vsel %vm1267, 1, 0
        %v1300 = vcvt.s32.f32 %v1268
        %v1301 = vcvt.s32.f32 %v1269
        %v1302 = vcvt.s32.f32 %v1270
        %v1303 = vcvt.s32.f32 %v1271
        %v1304 = vcvt.s32.f32 %v1272
        %v1305 = vcvt.s32.f32 %v1273
        %v1306 = vcvt.s32.f32 %v1274
        %v1307 = vcvt.s32.f32 %v1275
        %v1308 = vcvt.s32.f32 %v1276
        %v1309 = vcvt.s32.f32 %v1277
        %v1310 = vcvt.s32.f32 %v1278
        %v1311 = vcvt.s32.f32 %v1279
        %v1312 = vcvt.s32.f32 %v1280
        %v1313 = vcvt.s32.f32 %v1281
        %v1314 = vcvt.s32.f32 %v1282
        %v1315 = vcvt.s32.f32 %v1283
        %v1316 = vcvt.s32.f32 %v1284
        %v1317 = vcvt.s32.f32 %v1285
        %v1318 = vcvt.s32.f32 %v1286
        %v1319 = vcvt.s32.f32 %v1287
        %v1320 = vcvt.s32.f32 %v1288
        %v1321 = vcvt.s32.f32 %v1289
        %v1322 = vcvt.s32.f32 %v1290
        %v1323 = vcvt.s32.f32 %v1291
        %v1324 = vcvt.s32.f32 %v1292
        %v1325 = vcvt.s32.f32 %v1293
        %v1326 = vcvt.s32.f32 %v1294
        %v1327 = vcvt.s32.f32 %v1295
        %v1328 = vcvt.s32.f32 %v1296
        %v1329 = vcvt.s32.f32 %v1297
        %v1330 = vcvt.s32.f32 %v1298
        %v1331 = vcvt.s32.f32 %v1299
        %vm1332 = vcmp.le.s32.totalorder %v1204, 14
        %vm1333 = vcmp.le.s32.totalorder %v1205, 14
        %vm1334 = vcmp.le.s32.totalorder %v1206, 14
        %vm1335 = vcmp.le.s32.totalorder %v1207, 14
        %vm1336 = vcmp.le.s32.totalorder %v1208, 14
        %vm1337 = vcmp.le.s32.totalorder %v1209, 14
        %vm1338 = vcmp.le.s32.totalorder %v1210, 14
        %vm1339 = vcmp.le.s32.totalorder %v1211, 14
        %vm1340 = vcmp.le.s32.totalorder %v1212, 14
        %vm1341 = vcmp.le.s32.totalorder %v1213, 14
        %vm1342 = vcmp.le.s32.totalorder %v1214, 14
        %vm1343 = vcmp.le.s32.totalorder %v1215, 14
        %vm1344 = vcmp.le.s32.totalorder %v1216, 14
        %vm1345 = vcmp.le.s32.totalorder %v1217, 14
        %vm1346 = vcmp.le.s32.totalorder %v1218, 14
        %vm1347 = vcmp.le.s32.totalorder %v1219, 14
        %vm1348 = vcmp.le.s32.totalorder %v1220, 14
        %vm1349 = vcmp.le.s32.totalorder %v1221, 14
        %vm1350 = vcmp.le.s32.totalorder %v1222, 14
        %vm1351 = vcmp.le.s32.totalorder %v1223, 14
        %vm1352 = vcmp.le.s32.totalorder %v1224, 14
        %vm1353 = vcmp.le.s32.totalorder %v1225, 14
        %vm1354 = vcmp.le.s32.totalorder %v1226, 14
        %vm1355 = vcmp.le.s32.totalorder %v1227, 14
        %vm1356 = vcmp.le.s32.totalorder %v1228, 14
        %vm1357 = vcmp.le.s32.totalorder %v1229, 14
        %vm1358 = vcmp.le.s32.totalorder %v1230, 14
        %vm1359 = vcmp.le.s32.totalorder %v1231, 14
        %vm1360 = vcmp.le.s32.totalorder %v1232, 14
        %vm1361 = vcmp.le.s32.totalorder %v1233, 14
        %vm1362 = vcmp.le.s32.totalorder %v1234, 14
        %vm1363 = vcmp.le.s32.totalorder %v1235, 14
        %v1364 = vsel %vm1332, 1, 0
        %v1365 = vsel %vm1333, 1, 0
        %v1366 = vsel %vm1334, 1, 0
        %v1367 = vsel %vm1335, 1, 0
        %v1368 = vsel %vm1336, 1, 0
        %v1369 = vsel %vm1337, 1, 0
        %v1370 = vsel %vm1338, 1, 0
        %v1371 = vsel %vm1339, 1, 0
        %v1372 = vsel %vm1340, 1, 0
        %v1373 = vsel %vm1341, 1, 0
        %v1374 = vsel %vm1342, 1, 0
        %v1375 = vsel %vm1343, 1, 0
        %v1376 = vsel %vm1344, 1, 0
        %v1377 = vsel %vm1345, 1, 0
        %v1378 = vsel %vm1346, 1, 0
        %v1379 = vsel %vm1347, 1, 0
        %v1380 = vsel %vm1348, 1, 0
        %v1381 = vsel %vm1349, 1, 0
        %v1382 = vsel %vm1350, 1, 0
        %v1383 = vsel %vm1351, 1, 0
        %v1384 = vsel %vm1352, 1, 0
        %v1385 = vsel %vm1353, 1, 0
        %v1386 = vsel %vm1354, 1, 0
        %v1387 = vsel %vm1355, 1, 0
        %v1388 = vsel %vm1356, 1, 0
        %v1389 = vsel %vm1357, 1, 0
        %v1390 = vsel %vm1358, 1, 0
        %v1391 = vsel %vm1359, 1, 0
        %v1392 = vsel %vm1360, 1, 0
        %v1393 = vsel %vm1361, 1, 0
        %v1394 = vsel %vm1362, 1, 0
        %v1395 = vsel %vm1363, 1, 0
        %v1396 = vcvt.s32.f32 %v1364
        %v1397 = vcvt.s32.f32 %v1365
        %v1398 = vcvt.s32.f32 %v1366
        %v1399 = vcvt.s32.f32 %v1367
        %v1400 = vcvt.s32.f32 %v1368
        %v1401 = vcvt.s32.f32 %v1369
        %v1402 = vcvt.s32.f32 %v1370
        %v1403 = vcvt.s32.f32 %v1371
        %v1404 = vcvt.s32.f32 %v1372
        %v1405 = vcvt.s32.f32 %v1373
        %v1406 = vcvt.s32.f32 %v1374
        %v1407 = vcvt.s32.f32 %v1375
        %v1408 = vcvt.s32.f32 %v1376
        %v1409 = vcvt.s32.f32 %v1377
        %v1410 = vcvt.s32.f32 %v1378
        %v1411 = vcvt.s32.f32 %v1379
        %v1412 = vcvt.s32.f32 %v1380
        %v1413 = vcvt.s32.f32 %v1381
        %v1414 = vcvt.s32.f32 %v1382
        %v1415 = vcvt.s32.f32 %v1383
        %v1416 = vcvt.s32.f32 %v1384
        %v1417 = vcvt.s32.f32 %v1385
        %v1418 = vcvt.s32.f32 %v1386
        %v1419 = vcvt.s32.f32 %v1387
        %v1420 = vcvt.s32.f32 %v1388
        %v1421 = vcvt.s32.f32 %v1389
        %v1422 = vcvt.s32.f32 %v1390
        %v1423 = vcvt.s32.f32 %v1391
        %v1424 = vcvt.s32.f32 %v1392
        %v1425 = vcvt.s32.f32 %v1393
        %v1426 = vcvt.s32.f32 %v1394
        %v1427 = vcvt.s32.f32 %v1395
        %v1428 = vld [vmem:[#allocation2 + $0x7] sm:$0xff]
        %v1429 = vld [vmem:[#allocation2 + $0xf] sm:$0xff]
        %v1430 = vld [vmem:[#allocation2 + $0x17] sm:$0xff]
        %v1431 = vld [vmem:[#allocation2 + $0x1f] sm:$0xff]
        %v1432 = vld [vmem:[#allocation2 + $0x27] sm:$0xff]
        %v1433 = vld [vmem:[#allocation2 + $0x2f] sm:$0xff]
        %v1434 = vld [vmem:[#allocation2 + $0x37] sm:$0xff]
        %v1435 = vld [vmem:[#allocation2 + $0x3f] sm:$0xff]
        %v1436 = vld [vmem:[#allocation2 + $0x47] sm:$0xff]
        %v1437 = vld [vmem:[#allocation2 + $0x4f] sm:$0xff]
        %v1438 = vld [vmem:[#allocation2 + $0x57] sm:$0xff]
        %v1439 = vld [vmem:[#allocation2 + $0x5f] sm:$0xff]
        %v1440 = vld [vmem:[#allocation2 + $0x67] sm:$0xff]
        %v1441 = vld [vmem:[#allocation2 + $0x6f] sm:$0xff]
        %v1442 = vld [vmem:[#allocation2 + $0x77] sm:$0xff]
        %v1443 = vld [vmem:[#allocation2 + $0x7f] sm:$0xff]
        %v1444 = vld [vmem:[#allocation2 + $0x87] sm:$0xff]
        %v1445 = vld [vmem:[#allocation2 + $0x8f] sm:$0xff]
        %v1446 = vld [vmem:[#allocation2 + $0x97] sm:$0xff]
        %v1447 = vld [vmem:[#allocation2 + $0x9f] sm:$0xff]
        %v1448 = vld [vmem:[#allocation2 + $0xa7] sm:$0xff]
        %v1449 = vld [vmem:[#allocation2 + $0xaf] sm:$0xff]
        %v1450 = vld [vmem:[#allocation2 + $0xb7] sm:$0xff]
        %v1451 = vld [vmem:[#allocation2 + $0xbf] sm:$0xff]
        %v1452 = vld [vmem:[#allocation2 + $0xc7] sm:$0xff]
        %v1453 = vld [vmem:[#allocation2 + $0xcf] sm:$0xff]
        %v1454 = vld [vmem:[#allocation2 + $0xd7] sm:$0xff]
        %v1455 = vld [vmem:[#allocation2 + $0xdf] sm:$0xff]
        %v1456 = vld [vmem:[#allocation2 + $0xe7] sm:$0xff]
        %v1457 = vld [vmem:[#allocation2 + $0xef] sm:$0xff]
        %v1458 = vld [vmem:[#allocation2 + $0xf7] sm:$0xff]
        %v1459 = vld [vmem:[#allocation2 + $0xff] sm:$0xff]
        %v1460 = vmul.f32 %v1428, %v1300
        %v1461 = vmul.f32 %v1429, %v1301
        %v1462 = vmul.f32 %v1430, %v1302
        %v1463 = vmul.f32 %v1431, %v1303
        %v1464 = vmul.f32 %v1432, %v1304
        %v1465 = vmul.f32 %v1433, %v1305
        %v1466 = vmul.f32 %v1434, %v1306
        %v1467 = vmul.f32 %v1435, %v1307
        %v1468 = vmul.f32 %v1436, %v1308
        %v1469 = vmul.f32 %v1437, %v1309
        %v1470 = vmul.f32 %v1438, %v1310
        %v1471 = vmul.f32 %v1439, %v1311
        %v1472 = vmul.f32 %v1440, %v1312
        %v1473 = vmul.f32 %v1441, %v1313
        %v1474 = vmul.f32 %v1442, %v1314
        %v1475 = vmul.f32 %v1443, %v1315
        %v1476 = vmul.f32 %v1444, %v1316
        %v1477 = vmul.f32 %v1445, %v1317
        %v1478 = vmul.f32 %v1446, %v1318
        %v1479 = vmul.f32 %v1447, %v1319
        %v1480 = vmul.f32 %v1448, %v1320
        %v1481 = vmul.f32 %v1449, %v1321
        %v1482 = vmul.f32 %v1450, %v1322
        %v1483 = vmul.f32 %v1451, %v1323
        %v1484 = vmul.f32 %v1452, %v1324
        %v1485 = vmul.f32 %v1453, %v1325
        %v1486 = vmul.f32 %v1454, %v1326
        %v1487 = vmul.f32 %v1455, %v1327
        %v1488 = vmul.f32 %v1456, %v1328
        %v1489 = vmul.f32 %v1457, %v1329
        %v1490 = vmul.f32 %v1458, %v1330
        %v1491 = vmul.f32 %v1459, %v1331
        %v1492 = vpack.c.bf16 %v1461, %v1460
        %v1493 = vpack.c.bf16 %v1463, %v1462
        %v1494 = vpack.c.bf16 %v1465, %v1464
        %v1495 = vpack.c.bf16 %v1467, %v1466
        %v1496 = vpack.c.bf16 %v1469, %v1468
        %v1497 = vpack.c.bf16 %v1471, %v1470
        %v1498 = vpack.c.bf16 %v1473, %v1472
        %v1499 = vpack.c.bf16 %v1475, %v1474
        %v1500 = vpack.c.bf16 %v1477, %v1476
        %v1501 = vpack.c.bf16 %v1479, %v1478
        %v1502 = vpack.c.bf16 %v1481, %v1480
        %v1503 = vpack.c.bf16 %v1483, %v1482
        %v1504 = vpack.c.bf16 %v1485, %v1484
        %v1505 = vpack.c.bf16 %v1487, %v1486
        %v1506 = vpack.c.bf16 %v1489, %v1488
        %v1507 = vpack.c.bf16 %v1491, %v1490
        %v1508 = vld [vmem:[#allocation2 + $0x8] sm:$0xff]
        %v1509 = vld [vmem:[#allocation2 + $0x10] sm:$0xff]
        %v1510 = vld [vmem:[#allocation2 + $0x18] sm:$0xff]
        %v1511 = vld [vmem:[#allocation2 + $0x20] sm:$0xff]
        %v1512 = vld [vmem:[#allocation2 + $0x28] sm:$0xff]
        %v1513 = vld [vmem:[#allocation2 + $0x30] sm:$0xff]
        %v1514 = vld [vmem:[#allocation2 + $0x38] sm:$0xff]
        %v1515 = vld [vmem:[#allocation2 + $0x40] sm:$0xff]
        %v1516 = vld [vmem:[#allocation2 + $0x48] sm:$0xff]
        %v1517 = vld [vmem:[#allocation2 + $0x50] sm:$0xff]
        %v1518 = vld [vmem:[#allocation2 + $0x58] sm:$0xff]
        %v1519 = vld [vmem:[#allocation2 + $0x60] sm:$0xff]
        %v1520 = vld [vmem:[#allocation2 + $0x68] sm:$0xff]
        %v1521 = vld [vmem:[#allocation2 + $0x70] sm:$0xff]
        %v1522 = vld [vmem:[#allocation2 + $0x78] sm:$0xff]
        %v1523 = vld [vmem:[#allocation2 + $0x80] sm:$0xff]
        %v1524 = vld [vmem:[#allocation2 + $0x88] sm:$0xff]
        %v1525 = vld [vmem:[#allocation2 + $0x90] sm:$0xff]
        %v1526 = vld [vmem:[#allocation2 + $0x98] sm:$0xff]
        %v1527 = vld [vmem:[#allocation2 + $0xa0] sm:$0xff]
        %v1528 = vld [vmem:[#allocation2 + $0xa8] sm:$0xff]
        %v1529 = vld [vmem:[#allocation2 + $0xb0] sm:$0xff]
        %v1530 = vld [vmem:[#allocation2 + $0xb8] sm:$0xff]
        %v1531 = vld [vmem:[#allocation2 + $0xc0] sm:$0xff]
        %v1532 = vld [vmem:[#allocation2 + $0xc8] sm:$0xff]
        %v1533 = vld [vmem:[#allocation2 + $0xd0] sm:$0xff]
        %v1534 = vld [vmem:[#allocation2 + $0xd8] sm:$0xff]
        %v1535 = vld [vmem:[#allocation2 + $0xe0] sm:$0xff]
        %v1536 = vld [vmem:[#allocation2 + $0xe8] sm:$0xff]
        %v1537 = vld [vmem:[#allocation2 + $0xf0] sm:$0xff]
        %v1538 = vld [vmem:[#allocation2 + $0xf8] sm:$0xff]
        %v1539 = vld [vmem:[#allocation2 + $0x100] sm:$0xff]
        %v1540 = vpack.c.bf16 %v1509, %v1508
        %v1541 = vpack.c.bf16 %v1511, %v1510
        %v1542 = vpack.c.bf16 %v1513, %v1512
        %v1543 = vpack.c.bf16 %v1515, %v1514
        %v1544 = vpack.c.bf16 %v1517, %v1516
        %v1545 = vpack.c.bf16 %v1519, %v1518
        %v1546 = vpack.c.bf16 %v1521, %v1520
        %v1547 = vpack.c.bf16 %v1523, %v1522
        %v1548 = vpack.c.bf16 %v1525, %v1524
        %v1549 = vpack.c.bf16 %v1527, %v1526
        %v1550 = vpack.c.bf16 %v1529, %v1528
        %v1551 = vpack.c.bf16 %v1531, %v1530
        %v1552 = vpack.c.bf16 %v1533, %v1532
        %v1553 = vpack.c.bf16 %v1535, %v1534
        %v1554 = vpack.c.bf16 %v1537, %v1536
        %v1555 = vpack.c.bf16 %v1539, %v1538
        %v1556 = vld [vmem:[#allocation8] sm:$0xf]
        %v1557 = vld [vmem:[#allocation8 + $0x4] sm:$0xf]
        %v1558 = vld [vmem:[#allocation8 + $0x8] sm:$0xf]
        %v1559 = vld [vmem:[#allocation8 + $0xc] sm:$0xf]
        %v1560 = vld [vmem:[#allocation8 + $0x10] sm:$0xf]
        %v1561 = vld [vmem:[#allocation8 + $0x14] sm:$0xf]
        %v1562 = vld [vmem:[#allocation8 + $0x18] sm:$0xf]
        %v1563 = vld [vmem:[#allocation8 + $0x1c] sm:$0xf]
        %v1564 = vld [vmem:[#allocation8 + $0x20] sm:$0xf]
        %v1565 = vld [vmem:[#allocation8 + $0x24] sm:$0xf]
        %v1566 = vld [vmem:[#allocation8 + $0x28] sm:$0xf]
        %v1567 = vld [vmem:[#allocation8 + $0x2c] sm:$0xf]
        %v1568 = vld [vmem:[#allocation8 + $0x30] sm:$0xf]
        %v1569 = vld [vmem:[#allocation8 + $0x34] sm:$0xf]
        %v1570 = vld [vmem:[#allocation8 + $0x38] sm:$0xf]
        %v1571 = vld [vmem:[#allocation8 + $0x3c] sm:$0xf]
        %v1572 = vld [vmem:[#allocation8 + $0x40] sm:$0xf]
        %v1573 = vld [vmem:[#allocation8 + $0x44] sm:$0xf]
        %v1574 = vld [vmem:[#allocation8 + $0x48] sm:$0xf]
        %v1575 = vld [vmem:[#allocation8 + $0x4c] sm:$0xf]
        %v1576 = vld [vmem:[#allocation8 + $0x50] sm:$0xf]
        %v1577 = vld [vmem:[#allocation8 + $0x54] sm:$0xf]
        %v1578 = vld [vmem:[#allocation8 + $0x58] sm:$0xf]
        %v1579 = vld [vmem:[#allocation8 + $0x5c] sm:$0xf]
        %v1580 = vld [vmem:[#allocation8 + $0x60] sm:$0xf]
        %v1581 = vld [vmem:[#allocation8 + $0x64] sm:$0xf]
        %v1582 = vld [vmem:[#allocation8 + $0x68] sm:$0xf]
        %v1583 = vld [vmem:[#allocation8 + $0x6c] sm:$0xf]
        %v1584 = vld [vmem:[#allocation8 + $0x70] sm:$0xf]
        %v1585 = vld [vmem:[#allocation8 + $0x74] sm:$0xf]
        %v1586 = vld [vmem:[#allocation8 + $0x78] sm:$0xf]
        %v1587 = vld [vmem:[#allocation8 + $0x7c] sm:$0xf]
        %v1588 = vld [vmem:[#allocation2 + $0x9] sm:$0xff]
        %v1589 = vld [vmem:[#allocation2 + $0x11] sm:$0xff]
        %v1590 = vld [vmem:[#allocation2 + $0x19] sm:$0xff]
        %v1591 = vld [vmem:[#allocation2 + $0x21] sm:$0xff]
        %v1592 = vld [vmem:[#allocation2 + $0x29] sm:$0xff]
        %v1593 = vld [vmem:[#allocation2 + $0x31] sm:$0xff]
        %v1594 = vld [vmem:[#allocation2 + $0x39] sm:$0xff]
        %v1595 = vld [vmem:[#allocation2 + $0x41] sm:$0xff]
        %v1596 = vld [vmem:[#allocation2 + $0x49] sm:$0xff]
        %v1597 = vld [vmem:[#allocation2 + $0x51] sm:$0xff]
        %v1598 = vld [vmem:[#allocation2 + $0x59] sm:$0xff]
        %v1599 = vld [vmem:[#allocation2 + $0x61] sm:$0xff]
        %v1600 = vld [vmem:[#allocation2 + $0x69] sm:$0xff]
        %v1601 = vld [vmem:[#allocation2 + $0x71] sm:$0xff]
        %v1602 = vld [vmem:[#allocation2 + $0x79] sm:$0xff]
        %v1603 = vld [vmem:[#allocation2 + $0x81] sm:$0xff]
        %v1604 = vld [vmem:[#allocation2 + $0x89] sm:$0xff]
        %v1605 = vld [vmem:[#allocation2 + $0x91] sm:$0xff]
        %v1606 = vld [vmem:[#allocation2 + $0x99] sm:$0xff]
        %v1607 = vld [vmem:[#allocation2 + $0xa1] sm:$0xff]
        %v1608 = vld [vmem:[#allocation2 + $0xa9] sm:$0xff]
        %v1609 = vld [vmem:[#allocation2 + $0xb1] sm:$0xff]
        %v1610 = vld [vmem:[#allocation2 + $0xb9] sm:$0xff]
        %v1611 = vld [vmem:[#allocation2 + $0xc1] sm:$0xff]
        %v1612 = vld [vmem:[#allocation2 + $0xc9] sm:$0xff]
        %v1613 = vld [vmem:[#allocation2 + $0xd1] sm:$0xff]
        %v1614 = vld [vmem:[#allocation2 + $0xd9] sm:$0xff]
        %v1615 = vld [vmem:[#allocation2 + $0xe1] sm:$0xff]
        %v1616 = vld [vmem:[#allocation2 + $0xe9] sm:$0xff]
        %v1617 = vld [vmem:[#allocation2 + $0xf1] sm:$0xff]
        %v1618 = vld [vmem:[#allocation2 + $0xf9] sm:$0xff]
        %v1619 = vld [vmem:[#allocation2 + $0x101] sm:$0xff]
        %v1620 = vmul.f32 %v1588, %v1396
        %v1621 = vmul.f32 %v1589, %v1397
        %v1622 = vmul.f32 %v1590, %v1398
        %v1623 = vmul.f32 %v1591, %v1399
        %v1624 = vmul.f32 %v1592, %v1400
        %v1625 = vmul.f32 %v1593, %v1401
        %v1626 = vmul.f32 %v1594, %v1402
        %v1627 = vmul.f32 %v1595, %v1403
        %v1628 = vmul.f32 %v1596, %v1404
        %v1629 = vmul.f32 %v1597, %v1405
        %v1630 = vmul.f32 %v1598, %v1406
        %v1631 = vmul.f32 %v1599, %v1407
        %v1632 = vmul.f32 %v1600, %v1408
        %v1633 = vmul.f32 %v1601, %v1409
        %v1634 = vmul.f32 %v1602, %v1410
        %v1635 = vmul.f32 %v1603, %v1411
        %v1636 = vmul.f32 %v1604, %v1412
        %v1637 = vmul.f32 %v1605, %v1413
        %v1638 = vmul.f32 %v1606, %v1414
        %v1639 = vmul.f32 %v1607, %v1415
        %v1640 = vmul.f32 %v1608, %v1416
        %v1641 = vmul.f32 %v1609, %v1417
        %v1642 = vmul.f32 %v1610, %v1418
        %v1643 = vmul.f32 %v1611, %v1419
        %v1644 = vmul.f32 %v1612, %v1420
        %v1645 = vmul.f32 %v1613, %v1421
        %v1646 = vmul.f32 %v1614, %v1422
        %v1647 = vmul.f32 %v1615, %v1423
        %v1648 = vmul.f32 %v1616, %v1424
        %v1649 = vmul.f32 %v1617, %v1425
        %v1650 = vmul.f32 %v1618, %v1426
        %v1651 = vmul.f32 %v1619, %v1427
        %v1652 = vpack.c.bf16 %v1621, %v1620
        %v1653 = vpack.c.bf16 %v1623, %v1622
        %v1654 = vpack.c.bf16 %v1625, %v1624
        %v1655 = vpack.c.bf16 %v1627, %v1626
        %v1656 = vpack.c.bf16 %v1629, %v1628
        %v1657 = vpack.c.bf16 %v1631, %v1630
        %v1658 = vpack.c.bf16 %v1633, %v1632
        %v1659 = vpack.c.bf16 %v1635, %v1634
        %v1660 = vpack.c.bf16 %v1637, %v1636
        %v1661 = vpack.c.bf16 %v1639, %v1638
        %v1662 = vpack.c.bf16 %v1641, %v1640
        %v1663 = vpack.c.bf16 %v1643, %v1642
        %v1664 = vpack.c.bf16 %v1645, %v1644
        %v1665 = vpack.c.bf16 %v1647, %v1646
        %v1666 = vpack.c.bf16 %v1649, %v1648
        %v1667 = vpack.c.bf16 %v1651, %v1650
        %v1668 = vld [vmem:[#allocation2 + $0x107] sm:$0xff]
        %v1669 = vld [vmem:[#allocation2 + $0x10f] sm:$0xff]
        %v1670 = vmul.f32 %v1430, %v1300
        %v1671 = vmul.f32 %v1431, %v1301
        %v1672 = vmul.f32 %v1432, %v1302
        %v1673 = vmul.f32 %v1433, %v1303
        %v1674 = vmul.f32 %v1434, %v1304
        %v1675 = vmul.f32 %v1435, %v1305
        %v1676 = vmul.f32 %v1436, %v1306
        %v1677 = vmul.f32 %v1437, %v1307
        %v1678 = vmul.f32 %v1438, %v1308
        %v1679 = vmul.f32 %v1439, %v1309
        %v1680 = vmul.f32 %v1440, %v1310
        %v1681 = vmul.f32 %v1441, %v1311
        %v1682 = vmul.f32 %v1442, %v1312
        %v1683 = vmul.f32 %v1443, %v1313
        %v1684 = vmul.f32 %v1444, %v1314
        %v1685 = vmul.f32 %v1445, %v1315
        %v1686 = vmul.f32 %v1446, %v1316
        %v1687 = vmul.f32 %v1447, %v1317
        %v1688 = vmul.f32 %v1448, %v1318
        %v1689 = vmul.f32 %v1449, %v1319
        %v1690 = vmul.f32 %v1450, %v1320
        %v1691 = vmul.f32 %v1451, %v1321
        %v1692 = vmul.f32 %v1452, %v1322
        %v1693 = vmul.f32 %v1453, %v1323
        %v1694 = vmul.f32 %v1454, %v1324
        %v1695 = vmul.f32 %v1455, %v1325
        %v1696 = vmul.f32 %v1456, %v1326
        %v1697 = vmul.f32 %v1457, %v1327
        %v1698 = vmul.f32 %v1458, %v1328
        %v1699 = vmul.f32 %v1459, %v1329
        %v1700 = vmul.f32 %v1668, %v1330
        %v1701 = vmul.f32 %v1669, %v1331
        %v1702 = vpack.c.bf16 %v1671, %v1670
        %v1703 = vpack.c.bf16 %v1673, %v1672
        %v1704 = vpack.c.bf16 %v1675, %v1674
        %v1705 = vpack.c.bf16 %v1677, %v1676
        %v1706 = vpack.c.bf16 %v1679, %v1678
        %v1707 = vpack.c.bf16 %v1681, %v1680
        %v1708 = vpack.c.bf16 %v1683, %v1682
        %v1709 = vpack.c.bf16 %v1685, %v1684
        %v1710 = vpack.c.bf16 %v1687, %v1686
        %v1711 = vpack.c.bf16 %v1689, %v1688
        %v1712 = vpack.c.bf16 %v1691, %v1690
        %v1713 = vpack.c.bf16 %v1693, %v1692
        %v1714 = vpack.c.bf16 %v1695, %v1694
        %v1715 = vpack.c.bf16 %v1697, %v1696
        %v1716 = vpack.c.bf16 %v1699, %v1698
        %v1717 = vpack.c.bf16 %v1701, %v1700
        %v1718 = vld [vmem:[#allocation8 + $0x80] sm:$0xf]
        %v1719 = vld [vmem:[#allocation8 + $0x84] sm:$0xf]
        %v1720 = vld [vmem:[#allocation8 + $0x88] sm:$0xf]
        %v1721 = vld [vmem:[#allocation8 + $0x8c] sm:$0xf]
        %v1722 = vld [vmem:[#allocation8 + $0x90] sm:$0xf]
        %v1723 = vld [vmem:[#allocation8 + $0x94] sm:$0xf]
        %v1724 = vld [vmem:[#allocation8 + $0x98] sm:$0xf]
        %v1725 = vld [vmem:[#allocation8 + $0x9c] sm:$0xf]
        %v1726 = vld [vmem:[#allocation8 + $0xa0] sm:$0xf]
        %v1727 = vld [vmem:[#allocation8 + $0xa4] sm:$0xf]
        %v1728 = vld [vmem:[#allocation8 + $0xa8] sm:$0xf]
        %v1729 = vld [vmem:[#allocation8 + $0xac] sm:$0xf]
        %v1730 = vld [vmem:[#allocation8 + $0xb0] sm:$0xf]
        %v1731 = vld [vmem:[#allocation8 + $0xb4] sm:$0xf]
        %v1732 = vld [vmem:[#allocation8 + $0xb8] sm:$0xf]
        %v1733 = vld [vmem:[#allocation8 + $0xbc] sm:$0xf]
        %v1734 = vld [vmem:[#allocation8 + $0xc0] sm:$0xf]
        %v1735 = vld [vmem:[#allocation8 + $0xc4] sm:$0xf]
        %v1736 = vld [vmem:[#allocation8 + $0xc8] sm:$0xf]
        %v1737 = vld [vmem:[#allocation8 + $0xcc] sm:$0xf]
        %v1738 = vld [vmem:[#allocation8 + $0xd0] sm:$0xf]
        %v1739 = vld [vmem:[#allocation8 + $0xd4] sm:$0xf]
        %v1740 = vld [vmem:[#allocation8 + $0xd8] sm:$0xf]
        %v1741 = vld [vmem:[#allocation8 + $0xdc] sm:$0xf]
        %v1742 = vld [vmem:[#allocation8 + $0xe0] sm:$0xf]
        %v1743 = vld [vmem:[#allocation8 + $0xe4] sm:$0xf]
        %v1744 = vld [vmem:[#allocation8 + $0xe8] sm:$0xf]
        %v1745 = vld [vmem:[#allocation8 + $0xec] sm:$0xf]
        %v1746 = vld [vmem:[#allocation8 + $0xf0] sm:$0xf]
        %v1747 = vld [vmem:[#allocation8 + $0xf4] sm:$0xf]
        %v1748 = vld [vmem:[#allocation8 + $0xf8] sm:$0xf]
        %v1749 = vld [vmem:[#allocation8 + $0xfc] sm:$0xf]
        %v1782 = vunpack.c.l.b16 %v1718
        %v1783 = vunpack.c.l.b16 %v1719
        %v1784 = vunpack.c.l.b16 %v1720
        %v1785 = vunpack.c.l.b16 %v1721
        %v1786 = vunpack.c.l.b16 %v1722
        %v1787 = vunpack.c.l.b16 %v1723
        %v1788 = vunpack.c.l.b16 %v1724
        %v1789 = vunpack.c.l.b16 %v1725
        %v1790 = vunpack.c.l.b16 %v1726
        %v1791 = vunpack.c.l.b16 %v1727
        %v1792 = vunpack.c.l.b16 %v1728
        %v1793 = vunpack.c.l.b16 %v1729
        %v1794 = vunpack.c.l.b16 %v1730
        %v1795 = vunpack.c.l.b16 %v1731
        %v1796 = vunpack.c.l.b16 %v1732
        %v1797 = vunpack.c.l.b16 %v1733
        %v1798 = vunpack.c.l.b16 %v1734
        %v1799 = vunpack.c.l.b16 %v1735
        %v1800 = vunpack.c.l.b16 %v1736
        %v1801 = vunpack.c.l.b16 %v1737
        %v1802 = vunpack.c.l.b16 %v1738
        %v1803 = vunpack.c.l.b16 %v1739
        %v1804 = vunpack.c.l.b16 %v1740
        %v1805 = vunpack.c.l.b16 %v1741
        %v1806 = vunpack.c.l.b16 %v1742
        %v1807 = vunpack.c.l.b16 %v1743
        %v1808 = vunpack.c.l.b16 %v1744
        %v1809 = vunpack.c.l.b16 %v1745
        %v1810 = vunpack.c.l.b16 %v1746
        %v1811 = vunpack.c.l.b16 %v1747
        %v1812 = vunpack.c.l.b16 %v1748
        %v1813 = vunpack.c.l.b16 %v1749
        %v1814 = vpack.c.b16 %v1783, %v1782
        %v1815 = vpack.c.b16 %v1785, %v1784
        %v1816 = vpack.c.b16 %v1787, %v1786
        %v1817 = vpack.c.b16 %v1789, %v1788
        %v1818 = vpack.c.b16 %v1791, %v1790
        %v1819 = vpack.c.b16 %v1793, %v1792
        %v1820 = vpack.c.b16 %v1795, %v1794
        %v1821 = vpack.c.b16 %v1797, %v1796
        %v1822 = vpack.c.b16 %v1799, %v1798
        %v1823 = vpack.c.b16 %v1801, %v1800
        %v1824 = vpack.c.b16 %v1803, %v1802
        %v1825 = vpack.c.b16 %v1805, %v1804
        %v1826 = vpack.c.b16 %v1807, %v1806
        %v1827 = vpack.c.b16 %v1809, %v1808
        %v1828 = vpack.c.b16 %v1811, %v1810
        %v1829 = vpack.c.b16 %v1813, %v1812
        %1846 = vmatprep.subr.bf16.mxu0 0
        %1847 = vmatpush1.bf16.msra.mxu0 %v1814
        %1848 = vmatprep.subr.bf16.mxu0 0
        %1849 = vmatpush1.bf16.msra.mxu0 %v1815
        %1850 = vmatprep.subr.bf16.mxu0 0
        %1851 = vmatpush1.bf16.msra.mxu0 %v1816
        %1852 = vmatprep.subr.bf16.mxu0 0
        %1853 = vmatpush1.bf16.msra.mxu0 %v1817
        %1854 = vmatprep.subr.bf16.mxu0 0
        %1855 = vmatpush1.bf16.msra.mxu0 %v1818
        %1856 = vmatprep.subr.bf16.mxu0 0
        %1857 = vmatpush1.bf16.msra.mxu0 %v1819
        %1858 = vmatprep.subr.bf16.mxu0 0
        %1859 = vmatpush1.bf16.msra.mxu0 %v1820
        %1860 = vmatprep.subr.bf16.mxu0 0
        %1861 = vmatpush1.bf16.msra.mxu0 %v1821
        %1862 = vmatprep.subr.bf16.mxu0 0
        %1863 = vmatpush1.bf16.msra.mxu0 %v1822
        %1864 = vmatprep.subr.bf16.mxu0 0
        %1865 = vmatpush1.bf16.msra.mxu0 %v1823
        %1866 = vmatprep.subr.bf16.mxu0 0
        %1867 = vmatpush1.bf16.msra.mxu0 %v1824
        %1868 = vmatprep.subr.bf16.mxu0 0
        %1869 = vmatpush1.bf16.msra.mxu0 %v1825
        %1870 = vmatprep.subr.bf16.mxu0 0
        %1871 = vmatpush1.bf16.msra.mxu0 %v1826
        %1872 = vmatprep.subr.bf16.mxu0 0
        %1873 = vmatpush1.bf16.msra.mxu0 %v1827
        %1874 = vmatprep.subr.bf16.mxu0 0
        %1875 = vmatpush1.bf16.msra.mxu0 %v1828
        %1876 = vmatprep.subr.bf16.mxu0 0
        %1877 = vmatpush1.bf16.msra.mxu0 %v1829
        %1878 = vmatprep.mubr.bf16.mxu0 %v1702
        %1879 = vmatmul.mubr.bf16.gmra.mrb[0].mxu0 %v1652
        %v1880 = vpop.f32.mrb[0].mxu0
        %v1881 = vadd.f32 0.0, %v1880
        %v1882 = vpop.f32.mrb[0].mxu0
        %v1883 = vpop.f32.mrb[0].mxu0
        %v1884 = vadd.f32 0.0, %v1883
        %v1885 = vpop.f32.mrb[0].mxu0
        %1886 = vmatprep.mubr.bf16.mxu0 %v1703
        %1887 = vmatmul.mubr.bf16.gmra.mrb[0].mxu0 %v1653
        %v1888 = vpop.f32.mrb[0].mxu0
        %v1889 = vadd.f32 0.0, %v1888
        %v1890 = vpop.f32.mrb[0].mxu0
        %v1891 = vpop.f32.mrb[0].mxu0
        %v1892 = vadd.f32 0.0, %v1891
        %v1893 = vpop.f32.mrb[0].mxu0
        %1894 = vmatprep.mubr.bf16.mxu0 %v1704
        %1895 = vmatmul.mubr.bf16.gmra.mrb[0].mxu0 %v1654
        %v1896 = vpop.f32.mrb[0].mxu0
        %v1897 = vadd.f32 0.0, %v1896
        %v1898 = vpop.f32.mrb[0].mxu0
        %v1899 = vpop.f32.mrb[0].mxu0
        %v1900 = vadd.f32 0.0, %v1899
        %v1901 = vpop.f32.mrb[0].mxu0
        %1902 = vmatprep.mubr.bf16.mxu0 %v1705
        %1903 = vmatmul.mubr.bf16.gmra.mrb[0].mxu0 %v1655
        %v1904 = vpop.f32.mrb[0].mxu0
        %v1905 = vadd.f32 0.0, %v1904
        %v1906 = vpop.f32.mrb[0].mxu0
        %v1907 = vpop.f32.mrb[0].mxu0
        %v1908 = vadd.f32 0.0, %v1907
        %v1909 = vpop.f32.mrb[0].mxu0
        %1910 = vmatprep.mubr.bf16.mxu0 %v1706
        %1911 = vmatmul.mubr.bf16.gmra.mrb[0].mxu0 %v1656
        %v1912 = vpop.f32.mrb[0].mxu0
        %v1913 = vadd.f32 0.0, %v1912
        %v1914 = vpop.f32.mrb[0].mxu0
        %v1915 = vpop.f32.mrb[0].mxu0
        %v1916 = vadd.f32 0.0, %v1915
        %v1917 = vpop.f32.mrb[0].mxu0
        %1918 = vmatprep.mubr.bf16.mxu0 %v1707
        %1919 = vmatmul.mubr.bf16.gmra.mrb[0].mxu0 %v1657
        %v1920 = vpop.f32.mrb[0].mxu0
        %v1921 = vadd.f32 0.0, %v1920
        %v1922 = vpop.f32.mrb[0].mxu0
        %v1923 = vpop.f32.mrb[0].mxu0
        %v1924 = vadd.f32 0.0, %v1923
        %v1925 = vpop.f32.mrb[0].mxu0
        %1926 = vmatprep.mubr.bf16.mxu0 %v1708
        %1927 = vmatmul.mubr.bf16.gmra.mrb[0].mxu0 %v1658
        %v1928 = vpop.f32.mrb[0].mxu0
        %v1929 = vadd.f32 0.0, %v1928
        %v1930 = vpop.f32.mrb[0].mxu0
        %v1931 = vpop.f32.mrb[0].mxu0
        %v1932 = vadd.f32 0.0, %v1931
        %v1933 = vpop.f32.mrb[0].mxu0
        %1934 = vmatprep.mubr.bf16.mxu0 %v1709
        %1935 = vmatmul.mubr.bf16.gmra.mrb[0].mxu0 %v1659
        %v1936 = vpop.f32.mrb[0].mxu0
        %v1937 = vadd.f32 0.0, %v1936
        %v1938 = vpop.f32.mrb[0].mxu0
        %v1939 = vpop.f32.mrb[0].mxu0
        %v1940 = vadd.f32 0.0, %v1939
        %v1941 = vpop.f32.mrb[0].mxu0
        %1942 = vmatprep.mubr.bf16.mxu0 %v1710
        %1943 = vmatmul.mubr.bf16.gmra.mrb[0].mxu0 %v1660
        %v1944 = vpop.f32.mrb[0].mxu0
        %v1945 = vadd.f32 0.0, %v1944
        %v1946 = vpop.f32.mrb[0].mxu0
        %v1947 = vpop.f32.mrb[0].mxu0
        %v1948 = vadd.f32 0.0, %v1947
        %v1949 = vpop.f32.mrb[0].mxu0
        %1950 = vmatprep.mubr.bf16.mxu0 %v1711
        %1951 = vmatmul.mubr.bf16.gmra.mrb[0].mxu0 %v1661
        %v1952 = vpop.f32.mrb[0].mxu0
        %v1953 = vadd.f32 0.0, %v1952
        %v1954 = vpop.f32.mrb[0].mxu0
        %v1955 = vpop.f32.mrb[0].mxu0
        %v1956 = vadd.f32 0.0, %v1955
        %v1957 = vpop.f32.mrb[0].mxu0
        %1958 = vmatprep.mubr.bf16.mxu0 %v1712
        %1959 = vmatmul.mubr.bf16.gmra.mrb[0].mxu0 %v1662
        %v1960 = vpop.f32.mrb[0].mxu0
        %v1961 = vadd.f32 0.0, %v1960
        %v1962 = vpop.f32.mrb[0].mxu0
        %v1963 = vpop.f32.mrb[0].mxu0
        %v1964 = vadd.f32 0.0, %v1963
        %v1965 = vpop.f32.mrb[0].mxu0
        %1966 = vmatprep.mubr.bf16.mxu0 %v1713
        %1967 = vmatmul.mubr.bf16.gmra.mrb[0].mxu0 %v1663
        %v1968 = vpop.f32.mrb[0].mxu0
        %v1969 = vadd.f32 0.0, %v1968
        %v1970 = vpop.f32.mrb[0].mxu0
        %v1971 = vpop.f32.mrb[0].mxu0
        %v1972 = vadd.f32 0.0, %v1971
        %v1973 = vpop.f32.mrb[0].mxu0
        %1974 = vmatprep.mubr.bf16.mxu0 %v1714
        %1975 = vmatmul.mubr.bf16.gmra.mrb[0].mxu0 %v1664
        %v1976 = vpop.f32.mrb[0].mxu0
        %v1977 = vadd.f32 0.0, %v1976
        %v1978 = vpop.f32.mrb[0].mxu0
        %v1979 = vpop.f32.mrb[0].mxu0
        %v1980 = vadd.f32 0.0, %v1979
        %v1981 = vpop.f32.mrb[0].mxu0
        %1982 = vmatprep.mubr.bf16.mxu0 %v1715
        %1983 = vmatmul.mubr.bf16.gmra.mrb[0].mxu0 %v1665
        %v1984 = vpop.f32.mrb[0].mxu0
        %v1985 = vadd.f32 0.0, %v1984
        %v1986 = vpop.f32.mrb[0].mxu0
        %v1987 = vpop.f32.mrb[0].mxu0
        %v1988 = vadd.f32 0.0, %v1987
        %v1989 = vpop.f32.mrb[0].mxu0
        %1990 = vmatprep.mubr.bf16.mxu0 %v1716
        %1991 = vmatmul.mubr.bf16.gmra.mrb[0].mxu0 %v1666
        %v1992 = vpop.f32.mrb[0].mxu0
        %v1993 = vadd.f32 0.0, %v1992
        %v1994 = vpop.f32.mrb[0].mxu0
        %v1995 = vpop.f32.mrb[0].mxu0
        %v1996 = vadd.f32 0.0, %v1995
        %v1997 = vpop.f32.mrb[0].mxu0
        %1998 = vmatprep.mubr.bf16.mxu0 %v1717
        %1999 = vmatmul.mubr.bf16.gmra.mrb[0].mxu0 %v1667
        %v2000 = vpop.f32.mrb[0].mxu0
        %v2001 = vadd.f32 0.0, %v2000
        %v2002 = vpop.f32.mrb[0].mxu0
        %v2003 = vpop.f32.mrb[0].mxu0
        %v2004 = vadd.f32 0.0, %v2003
        %v2005 = vpop.f32.mrb[0].mxu0
        %2006 = vdwg.mxu0
        %v2039 = vunpack.c.l.b16 %v1556
        %v2040 = vunpack.c.l.b16 %v1557
        %v2041 = vunpack.c.l.b16 %v1558
        %v2042 = vunpack.c.l.b16 %v1559
        %v2043 = vunpack.c.l.b16 %v1560
        %v2044 = vunpack.c.l.b16 %v1561
        %v2045 = vunpack.c.l.b16 %v1562
        %v2046 = vunpack.c.l.b16 %v1563
        %v2047 = vunpack.c.l.b16 %v1564
        %v2048 = vunpack.c.l.b16 %v1565
        %v2049 = vunpack.c.l.b16 %v1566
        %v2050 = vunpack.c.l.b16 %v1567
        %v2051 = vunpack.c.l.b16 %v1568
        %v2052 = vunpack.c.l.b16 %v1569
        %v2053 = vunpack.c.l.b16 %v1570
        %v2054 = vunpack.c.l.b16 %v1571
        %v2055 = vunpack.c.l.b16 %v1572
        %v2056 = vunpack.c.l.b16 %v1573
        %v2057 = vunpack.c.l.b16 %v1574
        %v2058 = vunpack.c.l.b16 %v1575
        %v2059 = vunpack.c.l.b16 %v1576
        %v2060 = vunpack.c.l.b16 %v1577
        %v2061 = vunpack.c.l.b16 %v1578
        %v2062 = vunpack.c.l.b16 %v1579
        %v2063 = vunpack.c.l.b16 %v1580
        %v2064 = vunpack.c.l.b16 %v1581
        %v2065 = vunpack.c.l.b16 %v1582
        %v2066 = vunpack.c.l.b16 %v1583
        %v2067 = vunpack.c.l.b16 %v1584
        %v2068 = vunpack.c.l.b16 %v1585
        %v2069 = vunpack.c.l.b16 %v1586
        %v2070 = vunpack.c.l.b16 %v1587
        %v2071 = vpack.c.b16 %v2040, %v2039
        %v2072 = vpack.c.b16 %v2042, %v2041
        %v2073 = vpack.c.b16 %v2044, %v2043
        %v2074 = vpack.c.b16 %v2046, %v2045
        %v2075 = vpack.c.b16 %v2048, %v2047
        %v2076 = vpack.c.b16 %v2050, %v2049
        %v2077 = vpack.c.b16 %v2052, %v2051
        %v2078 = vpack.c.b16 %v2054, %v2053
        %v2079 = vpack.c.b16 %v2056, %v2055
        %v2080 = vpack.c.b16 %v2058, %v2057
        %v2081 = vpack.c.b16 %v2060, %v2059
        %v2082 = vpack.c.b16 %v2062, %v2061
        %v2083 = vpack.c.b16 %v2064, %v2063
        %v2084 = vpack.c.b16 %v2066, %v2065
        %v2085 = vpack.c.b16 %v2068, %v2067
        %v2086 = vpack.c.b16 %v2070, %v2069
        %2103 = vmatprep.subr.bf16.mxu0 0
        %2104 = vmatpush1.bf16.msra.mxu0 %v2071
        %2105 = vmatprep.subr.bf16.mxu0 0
        %2106 = vmatpush1.bf16.msra.mxu0 %v2072
        %2107 = vmatprep.subr.bf16.mxu0 0
        %2108 = vmatpush1.bf16.msra.mxu0 %v2073
        %2109 = vmatprep.subr.bf16.mxu0 0
        %2110 = vmatpush1.bf16.msra.mxu0 %v2074
        %2111 = vmatprep.subr.bf16.mxu0 0
        %2112 = vmatpush1.bf16.msra.mxu0 %v2075
        %2113 = vmatprep.subr.bf16.mxu0 0
        %2114 = vmatpush1.bf16.msra.mxu0 %v2076
        %2115 = vmatprep.subr.bf16.mxu0 0
        %2116 = vmatpush1.bf16.msra.mxu0 %v2077
        %2117 = vmatprep.subr.bf16.mxu0 0
        %2118 = vmatpush1.bf16.msra.mxu0 %v2078
        %2119 = vmatprep.subr.bf16.mxu0 0
        %2120 = vmatpush1.bf16.msra.mxu0 %v2079
        %2121 = vmatprep.subr.bf16.mxu0 0
        %2122 = vmatpush1.bf16.msra.mxu0 %v2080
        %2123 = vmatprep.subr.bf16.mxu0 0
        %2124 = vmatpush1.bf16.msra.mxu0 %v2081
        %2125 = vmatprep.subr.bf16.mxu0 0
        %2126 = vmatpush1.bf16.msra.mxu0 %v2082
        %2127 = vmatprep.subr.bf16.mxu0 0
        %2128 = vmatpush1.bf16.msra.mxu0 %v2083
        %2129 = vmatprep.subr.bf16.mxu0 0
        %2130 = vmatpush1.bf16.msra.mxu0 %v2084
        %2131 = vmatprep.subr.bf16.mxu0 0
        %2132 = vmatpush1.bf16.msra.mxu0 %v2085
        %2133 = vmatprep.subr.bf16.mxu0 0
        %2134 = vmatpush1.bf16.msra.mxu0 %v2086
        %2135 = vmatprep.mubr.bf16.mxu0 %v1540
        %2136 = vmatmul.mubr.bf16.gmra.mrb[0].mxu0 %v1492
        %v2137 = vpop.f32.mrb[0].mxu0
        %v2138 = vadd.f32 %v1881, %v2137
        %v2139 = vpop.f32.mrb[0].mxu0
        %v2140 = vpop.f32.mrb[0].mxu0
        %v2141 = vadd.f32 %v1884, %v2140
        %v2142 = vpop.f32.mrb[0].mxu0
        %2143 = vmatprep.mubr.bf16.mxu0 %v1541
        %2144 = vmatmul.mubr.bf16.gmra.mrb[0].mxu0 %v1493
        %v2145 = vpop.f32.mrb[0].mxu0
        %v2146 = vadd.f32 %v1889, %v2145
        %v2147 = vpop.f32.mrb[0].mxu0
        %v2148 = vpop.f32.mrb[0].mxu0
        %v2149 = vadd.f32 %v1892, %v2148
        %v2150 = vpop.f32.mrb[0].mxu0
        %2151 = vmatprep.mubr.bf16.mxu0 %v1542
        %2152 = vmatmul.mubr.bf16.gmra.mrb[0].mxu0 %v1494
        %v2153 = vpop.f32.mrb[0].mxu0
        %v2154 = vadd.f32 %v1897, %v2153
        %v2155 = vpop.f32.mrb[0].mxu0
        %v2156 = vpop.f32.mrb[0].mxu0
        %v2157 = vadd.f32 %v1900, %v2156
        %v2158 = vpop.f32.mrb[0].mxu0
        %2159 = vmatprep.mubr.bf16.mxu0 %v1543
        %2160 = vmatmul.mubr.bf16.gmra.mrb[0].mxu0 %v1495
        %v2161 = vpop.f32.mrb[0].mxu0
        %v2162 = vadd.f32 %v1905, %v2161
        %v2163 = vpop.f32.mrb[0].mxu0
        %v2164 = vpop.f32.mrb[0].mxu0
        %v2165 = vadd.f32 %v1908, %v2164
        %v2166 = vpop.f32.mrb[0].mxu0
        %2167 = vmatprep.mubr.bf16.mxu0 %v1544
        %2168 = vmatmul.mubr.bf16.gmra.mrb[0].mxu0 %v1496
        %v2169 = vpop.f32.mrb[0].mxu0
        %v2170 = vadd.f32 %v1913, %v2169
        %v2171 = vpop.f32.mrb[0].mxu0
        %v2172 = vpop.f32.mrb[0].mxu0
        %v2173 = vadd.f32 %v1916, %v2172
        %v2174 = vpop.f32.mrb[0].mxu0
        %2175 = vmatprep.mubr.bf16.mxu0 %v1545
        %2176 = vmatmul.mubr.bf16.gmra.mrb[0].mxu0 %v1497
        %v2177 = vpop.f32.mrb[0].mxu0
        %v2178 = vadd.f32 %v1921, %v2177
        %v2179 = vpop.f32.mrb[0].mxu0
        %v2180 = vpop.f32.mrb[0].mxu0
        %v2181 = vadd.f32 %v1924, %v2180
        %v2182 = vpop.f32.mrb[0].mxu0
        %2183 = vmatprep.mubr.bf16.mxu0 %v1546
        %2184 = vmatmul.mubr.bf16.gmra.mrb[0].mxu0 %v1498
        %v2185 = vpop.f32.mrb[0].mxu0
        %v2186 = vadd.f32 %v1929, %v2185
        %v2187 = vpop.f32.mrb[0].mxu0
        %v2188 = vpop.f32.mrb[0].mxu0
        %v2189 = vadd.f32 %v1932, %v2188
        %v2190 = vpop.f32.mrb[0].mxu0
        %2191 = vmatprep.mubr.bf16.mxu0 %v1547
        %2192 = vmatmul.mubr.bf16.gmra.mrb[0].mxu0 %v1499
        %v2193 = vpop.f32.mrb[0].mxu0
        %v2194 = vadd.f32 %v1937, %v2193
        %v2195 = vpop.f32.mrb[0].mxu0
        %v2196 = vpop.f32.mrb[0].mxu0
        %v2197 = vadd.f32 %v1940, %v2196
        %v2198 = vpop.f32.mrb[0].mxu0
        %2199 = vmatprep.mubr.bf16.mxu0 %v1548
        %2200 = vmatmul.mubr.bf16.gmra.mrb[0].mxu0 %v1500
        %v2201 = vpop.f32.mrb[0].mxu0
        %v2202 = vadd.f32 %v1945, %v2201
        %v2203 = vpop.f32.mrb[0].mxu0
        %v2204 = vpop.f32.mrb[0].mxu0
        %v2205 = vadd.f32 %v1948, %v2204
        %v2206 = vpop.f32.mrb[0].mxu0
        %2207 = vmatprep.mubr.bf16.mxu0 %v1549
        %2208 = vmatmul.mubr.bf16.gmra.mrb[0].mxu0 %v1501
        %v2209 = vpop.f32.mrb[0].mxu0
        %v2210 = vadd.f32 %v1953, %v2209
        %v2211 = vpop.f32.mrb[0].mxu0
        %v2212 = vpop.f32.mrb[0].mxu0
        %v2213 = vadd.f32 %v1956, %v2212
        %v2214 = vpop.f32.mrb[0].mxu0
        %2215 = vmatprep.mubr.bf16.mxu0 %v1550
        %2216 = vmatmul.mubr.bf16.gmra.mrb[0].mxu0 %v1502
        %v2217 = vpop.f32.mrb[0].mxu0
        %v2218 = vadd.f32 %v1961, %v2217
        %v2219 = vpop.f32.mrb[0].mxu0
        %v2220 = vpop.f32.mrb[0].mxu0
        %v2221 = vadd.f32 %v1964, %v2220
        %v2222 = vpop.f32.mrb[0].mxu0
        %2223 = vmatprep.mubr.bf16.mxu0 %v1551
        %2224 = vmatmul.mubr.bf16.gmra.mrb[0].mxu0 %v1503
        %v2225 = vpop.f32.mrb[0].mxu0
        %v2226 = vadd.f32 %v1969, %v2225
        %v2227 = vpop.f32.mrb[0].mxu0
        %v2228 = vpop.f32.mrb[0].mxu0
        %v2229 = vadd.f32 %v1972, %v2228
        %v2230 = vpop.f32.mrb[0].mxu0
        %2231 = vmatprep.mubr.bf16.mxu0 %v1552
        %2232 = vmatmul.mubr.bf16.gmra.mrb[0].mxu0 %v1504
        %v2233 = vpop.f32.mrb[0].mxu0
        %v2234 = vadd.f32 %v1977, %v2233
        %v2235 = vpop.f32.mrb[0].mxu0
        %v2236 = vpop.f32.mrb[0].mxu0
        %v2237 = vadd.f32 %v1980, %v2236
        %v2238 = vpop.f32.mrb[0].mxu0
        %2239 = vmatprep.mubr.bf16.mxu0 %v1553
        %2240 = vmatmul.mubr.bf16.gmra.mrb[0].mxu0 %v1505
        %v2241 = vpop.f32.mrb[0].mxu0
        %v2242 = vadd.f32 %v1985, %v2241
        %v2243 = vpop.f32.mrb[0].mxu0
        %v2244 = vpop.f32.mrb[0].mxu0
        %v2245 = vadd.f32 %v1988, %v2244
        %v2246 = vpop.f32.mrb[0].mxu0
        %2247 = vmatprep.mubr.bf16.mxu0 %v1554
        %2248 = vmatmul.mubr.bf16.gmra.mrb[0].mxu0 %v1506
        %v2249 = vpop.f32.mrb[0].mxu0
        %v2250 = vadd.f32 %v1993, %v2249
        %v2251 = vpop.f32.mrb[0].mxu0
        %v2252 = vpop.f32.mrb[0].mxu0
        %v2253 = vadd.f32 %v1996, %v2252
        %v2254 = vpop.f32.mrb[0].mxu0
        %2255 = vmatprep.mubr.bf16.mxu0 %v1555
        %2256 = vmatmul.mubr.bf16.gmra.mrb[0].mxu0 %v1507
        %v2257 = vpop.f32.mrb[0].mxu0
        %v2258 = vadd.f32 %v2001, %v2257
        %v2259 = vpop.f32.mrb[0].mxu0
        %v2260 = vpop.f32.mrb[0].mxu0
        %v2261 = vadd.f32 %v2004, %v2260
        %v2262 = vpop.f32.mrb[0].mxu0
        %2263 = vdwg.mxu0
        %v2264 = vld [vmem:[#allocation2 + $0x18] sm:$0xff]
        %v2265 = vld [vmem:[#allocation2 + $0x20] sm:$0xff]
        %v2266 = vld [vmem:[#allocation2 + $0x28] sm:$0xff]
        %v2267 = vld [vmem:[#allocation2 + $0x30] sm:$0xff]
        %v2268 = vld [vmem:[#allocation2 + $0x38] sm:$0xff]
        %v2269 = vld [vmem:[#allocation2 + $0x40] sm:$0xff]
        %v2270 = vld [vmem:[#allocation2 + $0x48] sm:$0xff]
        %v2271 = vld [vmem:[#allocation2 + $0x50] sm:$0xff]
        %v2272 = vld [vmem:[#allocation2 + $0x58] sm:$0xff]
        %v2273 = vld [vmem:[#allocation2 + $0x60] sm:$0xff]
        %v2274 = vld [vmem:[#allocation2 + $0x68] sm:$0xff]
        %v2275 = vld [vmem:[#allocation2 + $0x70] sm:$0xff]
        %v2276 = vld [vmem:[#allocation2 + $0x78] sm:$0xff]
        %v2277 = vld [vmem:[#allocation2 + $0x80] sm:$0xff]
        %v2278 = vld [vmem:[#allocation2 + $0x88] sm:$0xff]
        %v2279 = vld [vmem:[#allocation2 + $0x90] sm:$0xff]
        %v2280 = vld [vmem:[#allocation2 + $0x98] sm:$0xff]
        %v2281 = vld [vmem:[#allocation2 + $0xa0] sm:$0xff]
        %v2282 = vld [vmem:[#allocation2 + $0xa8] sm:$0xff]
        %v2283 = vld [vmem:[#allocation2 + $0xb0] sm:$0xff]
        %v2284 = vld [vmem:[#allocation2 + $0xb8] sm:$0xff]
        %v2285 = vld [vmem:[#allocation2 + $0xc0] sm:$0xff]
        %v2286 = vld [vmem:[#allocation2 + $0xc8] sm:$0xff]
        %v2287 = vld [vmem:[#allocation2 + $0xd0] sm:$0xff]
        %v2288 = vld [vmem:[#allocation2 + $0xd8] sm:$0xff]
        %v2289 = vld [vmem:[#allocation2 + $0xe0] sm:$0xff]
        %v2290 = vld [vmem:[#allocation2 + $0xe8] sm:$0xff]
        %v2291 = vld [vmem:[#allocation2 + $0xf0] sm:$0xff]
        %v2292 = vld [vmem:[#allocation2 + $0xf8] sm:$0xff]
        %v2293 = vld [vmem:[#allocation2 + $0x100] sm:$0xff]
        %v2294 = vld [vmem:[#allocation2 + $0x108] sm:$0xff]
        %v2295 = vld [vmem:[#allocation2 + $0x110] sm:$0xff]
        %v2296 = vpack.c.bf16 %v2265, %v2264
        %v2297 = vpack.c.bf16 %v2267, %v2266
        %v2298 = vpack.c.bf16 %v2269, %v2268
        %v2299 = vpack.c.bf16 %v2271, %v2270
        %v2300 = vpack.c.bf16 %v2273, %v2272
        %v2301 = vpack.c.bf16 %v2275, %v2274
        %v2302 = vpack.c.bf16 %v2277, %v2276
        %v2303 = vpack.c.bf16 %v2279, %v2278
        %v2304 = vpack.c.bf16 %v2281, %v2280
        %v2305 = vpack.c.bf16 %v2283, %v2282
        %v2306 = vpack.c.bf16 %v2285, %v2284
        %v2307 = vpack.c.bf16 %v2287, %v2286
        %v2308 = vpack.c.bf16 %v2289, %v2288
        %v2309 = vpack.c.bf16 %v2291, %v2290
        %v2310 = vpack.c.bf16 %v2293, %v2292
        %v2311 = vpack.c.bf16 %v2295, %v2294
        %v2312 = vld [vmem:[#allocation2 + $0x19] sm:$0xff]
        %v2313 = vld [vmem:[#allocation2 + $0x21] sm:$0xff]
        %v2314 = vld [vmem:[#allocation2 + $0x29] sm:$0xff]
        %v2315 = vld [vmem:[#allocation2 + $0x31] sm:$0xff]
        %v2316 = vld [vmem:[#allocation2 + $0x39] sm:$0xff]
        %v2317 = vld [vmem:[#allocation2 + $0x41] sm:$0xff]
        %v2318 = vld [vmem:[#allocation2 + $0x49] sm:$0xff]
        %v2319 = vld [vmem:[#allocation2 + $0x51] sm:$0xff]
        %v2320 = vld [vmem:[#allocation2 + $0x59] sm:$0xff]
        %v2321 = vld [vmem:[#allocation2 + $0x61] sm:$0xff]
        %v2322 = vld [vmem:[#allocation2 + $0x69] sm:$0xff]
        %v2323 = vld [vmem:[#allocation2 + $0x71] sm:$0xff]
        %v2324 = vld [vmem:[#allocation2 + $0x79] sm:$0xff]
        %v2325 = vld [vmem:[#allocation2 + $0x81] sm:$0xff]
        %v2326 = vld [vmem:[#allocation2 + $0x89] sm:$0xff]
        %v2327 = vld [vmem:[#allocation2 + $0x91] sm:$0xff]
        %v2328 = vld [vmem:[#allocation2 + $0x99] sm:$0xff]
        %v2329 = vld [vmem:[#allocation2 + $0xa1] sm:$0xff]
        %v2330 = vld [vmem:[#allocation2 + $0xa9] sm:$0xff]
        %v2331 = vld [vmem:[#allocation2 + $0xb1] sm:$0xff]
        %v2332 = vld [vmem:[#allocation2 + $0xb9] sm:$0xff]
        %v2333 = vld [vmem:[#allocation2 + $0xc1] sm:$0xff]
        %v2334 = vld [vmem:[#allocation2 + $0xc9] sm:$0xff]
        %v2335 = vld [vmem:[#allocation2 + $0xd1] sm:$0xff]
        %v2336 = vld [vmem:[#allocation2 + $0xd9] sm:$0xff]
        %v2337 = vld [vmem:[#allocation2 + $0xe1] sm:$0xff]
        %v2338 = vld [vmem:[#allocation2 + $0xe9] sm:$0xff]
        %v2339 = vld [vmem:[#allocation2 + $0xf1] sm:$0xff]
        %v2340 = vld [vmem:[#allocation2 + $0xf9] sm:$0xff]
        %v2341 = vld [vmem:[#allocation2 + $0x101] sm:$0xff]
        %v2342 = vld [vmem:[#allocation2 + $0x109] sm:$0xff]
        %v2343 = vld [vmem:[#allocation2 + $0x111] sm:$0xff]
        %v2344 = vmul.f32 %v2312, %v1396
        %v2345 = vmul.f32 %v2313, %v1397
        %v2346 = vmul.f32 %v2314, %v1398
        %v2347 = vmul.f32 %v2315, %v1399
        %v2348 = vmul.f32 %v2316, %v1400
        %v2349 = vmul.f32 %v2317, %v1401
        %v2350 = vmul.f32 %v2318, %v1402
        %v2351 = vmul.f32 %v2319, %v1403
        %v2352 = vmul.f32 %v2320, %v1404
        %v2353 = vmul.f32 %v2321, %v1405
        %v2354 = vmul.f32 %v2322, %v1406
        %v2355 = vmul.f32 %v2323, %v1407
        %v2356 = vmul.f32 %v2324, %v1408
        %v2357 = vmul.f32 %v2325, %v1409
        %v2358 = vmul.f32 %v2326, %v1410
        %v2359 = vmul.f32 %v2327, %v1411
        %v2360 = vmul.f32 %v2328, %v1412
        %v2361 = vmul.f32 %v2329, %v1413
        %v2362 = vmul.f32 %v2330, %v1414
        %v2363 = vmul.f32 %v2331, %v1415
        %v2364 = vmul.f32 %v2332, %v1416
        %v2365 = vmul.f32 %v2333, %v1417
        %v2366 = vmul.f32 %v2334, %v1418
        %v2367 = vmul.f32 %v2335, %v1419
        %v2368 = vmul.f32 %v2336, %v1420
        %v2369 = vmul.f32 %v2337, %v1421
        %v2370 = vmul.f32 %v2338, %v1422
        %v2371 = vmul.f32 %v2339, %v1423
        %v2372 = vmul.f32 %v2340, %v1424
        %v2373 = vmul.f32 %v2341, %v1425
        %v2374 = vmul.f32 %v2342, %v1426
        %v2375 = vmul.f32 %v2343, %v1427
        %v2376 = vpack.c.bf16 %v2345, %v2344
        %v2377 = vpack.c.bf16 %v2347, %v2346
        %v2378 = vpack.c.bf16 %v2349, %v2348
        %v2379 = vpack.c.bf16 %v2351, %v2350
        %v2380 = vpack.c.bf16 %v2353, %v2352
        %v2381 = vpack.c.bf16 %v2355, %v2354
        %v2382 = vpack.c.bf16 %v2357, %v2356
        %v2383 = vpack.c.bf16 %v2359, %v2358
        %v2384 = vpack.c.bf16 %v2361, %v2360
        %v2385 = vpack.c.bf16 %v2363, %v2362
        %v2386 = vpack.c.bf16 %v2365, %v2364
        %v2387 = vpack.c.bf16 %v2367, %v2366
        %v2388 = vpack.c.bf16 %v2369, %v2368
        %v2389 = vpack.c.bf16 %v2371, %v2370
        %v2390 = vpack.c.bf16 %v2373, %v2372
        %v2391 = vpack.c.bf16 %v2375, %v2374
        %v2392 = vld [vmem:[#allocation8 + $0x100] sm:$0xf]
        %v2393 = vld [vmem:[#allocation8 + $0x104] sm:$0xf]
        %v2394 = vld [vmem:[#allocation8 + $0x108] sm:$0xf]
        %v2395 = vld [vmem:[#allocation8 + $0x10c] sm:$0xf]
        %v2396 = vld [vmem:[#allocation8 + $0x110] sm:$0xf]
        %v2397 = vld [vmem:[#allocation8 + $0x114] sm:$0xf]
        %v2398 = vld [vmem:[#allocation8 + $0x118] sm:$0xf]
        %v2399 = vld [vmem:[#allocation8 + $0x11c] sm:$0xf]
        %v2400 = vld [vmem:[#allocation8 + $0x120] sm:$0xf]
        %v2401 = vld [vmem:[#allocation8 + $0x124] sm:$0xf]
        %v2402 = vld [vmem:[#allocation8 + $0x128] sm:$0xf]
        %v2403 = vld [vmem:[#allocation8 + $0x12c] sm:$0xf]
        %v2404 = vld [vmem:[#allocation8 + $0x130] sm:$0xf]
        %v2405 = vld [vmem:[#allocation8 + $0x134] sm:$0xf]
        %v2406 = vld [vmem:[#allocation8 + $0x138] sm:$0xf]
        %v2407 = vld [vmem:[#allocation8 + $0x13c] sm:$0xf]
        %v2408 = vld [vmem:[#allocation8 + $0x140] sm:$0xf]
        %v2409 = vld [vmem:[#allocation8 + $0x144] sm:$0xf]
        %v2410 = vld [vmem:[#allocation8 + $0x148] sm:$0xf]
        %v2411 = vld [vmem:[#allocation8 + $0x14c] sm:$0xf]
        %v2412 = vld [vmem:[#allocation8 + $0x150] sm:$0xf]
        %v2413 = vld [vmem:[#allocation8 + $0x154] sm:$0xf]
        %v2414 = vld [vmem:[#allocation8 + $0x158] sm:$0xf]
        %v2415 = vld [vmem:[#allocation8 + $0x15c] sm:$0xf]
        %v2416 = vld [vmem:[#allocation8 + $0x160] sm:$0xf]
        %v2417 = vld [vmem:[#allocation8 + $0x164] sm:$0xf]
        %v2418 = vld [vmem:[#allocation8 + $0x168] sm:$0xf]
        %v2419 = vld [vmem:[#allocation8 + $0x16c] sm:$0xf]
        %v2420 = vld [vmem:[#allocation8 + $0x170] sm:$0xf]
        %v2421 = vld [vmem:[#allocation8 + $0x174] sm:$0xf]
        %v2422 = vld [vmem:[#allocation8 + $0x178] sm:$0xf]
        %v2423 = vld [vmem:[#allocation8 + $0x17c] sm:$0xf]
        %v2456 = vunpack.c.l.b16 %v2392
        %v2457 = vunpack.c.l.b16 %v2393
        %v2458 = vunpack.c.l.b16 %v2394
        %v2459 = vunpack.c.l.b16 %v2395
        %v2460 = vunpack.c.l.b16 %v2396
        %v2461 = vunpack.c.l.b16 %v2397
        %v2462 = vunpack.c.l.b16 %v2398
        %v2463 = vunpack.c.l.b16 %v2399
        %v2464 = vunpack.c.l.b16 %v2400
        %v2465 = vunpack.c.l.b16 %v2401
        %v2466 = vunpack.c.l.b16 %v2402
        %v2467 = vunpack.c.l.b16 %v2403
        %v2468 = vunpack.c.l.b16 %v2404
        %v2469 = vunpack.c.l.b16 %v2405
        %v2470 = vunpack.c.l.b16 %v2406
        %v2471 = vunpack.c.l.b16 %v2407
        %v2472 = vunpack.c.l.b16 %v2408
        %v2473 = vunpack.c.l.b16 %v2409
        %v2474 = vunpack.c.l.b16 %v2410
        %v2475 = vunpack.c.l.b16 %v2411
        %v2476 = vunpack.c.l.b16 %v2412
        %v2477 = vunpack.c.l.b16 %v2413
        %v2478 = vunpack.c.l.b16 %v2414
        %v2479 = vunpack.c.l.b16 %v2415
        %v2480 = vunpack.c.l.b16 %v2416
        %v2481 = vunpack.c.l.b16 %v2417
        %v2482 = vunpack.c.l.b16 %v2418
        %v2483 = vunpack.c.l.b16 %v2419
        %v2484 = vunpack.c.l.b16 %v2420
        %v2485 = vunpack.c.l.b16 %v2421
        %v2486 = vunpack.c.l.b16 %v2422
        %v2487 = vunpack.c.l.b16 %v2423
        %v2488 = vpack.c.b16 %v2457, %v2456
        %v2489 = vpack.c.b16 %v2459, %v2458
        %v2490 = vpack.c.b16 %v2461, %v2460
        %v2491 = vpack.c.b16 %v2463, %v2462
        %v2492 = vpack.c.b16 %v2465, %v2464
        %v2493 = vpack.c.b16 %v2467, %v2466
        %v2494 = vpack.c.b16 %v2469, %v2468
        %v2495 = vpack.c.b16 %v2471, %v2470
        %v2496 = vpack.c.b16 %v2473, %v2472
        %v2497 = vpack.c.b16 %v2475, %v2474
        %v2498 = vpack.c.b16 %v2477, %v2476
        %v2499 = vpack.c.b16 %v2479, %v2478
        %v2500 = vpack.c.b16 %v2481, %v2480
        %v2501 = vpack.c.b16 %v2483, %v2482
        %v2502 = vpack.c.b16 %v2485, %v2484
        %v2503 = vpack.c.b16 %v2487, %v2486
        %2520 = vmatprep.subr.bf16.mxu0 0
        %2521 = vmatpush1.bf16.msra.mxu0 %v2488
        %2522 = vmatprep.subr.bf16.mxu0 0
        %2523 = vmatpush1.bf16.msra.mxu0 %v2489
        %2524 = vmatprep.subr.bf16.mxu0 0
        %2525 = vmatpush1.bf16.msra.mxu0 %v2490
        %2526 = vmatprep.subr.bf16.mxu0 0
        %2527 = vmatpush1.bf16.msra.mxu0 %v2491
        %2528 = vmatprep.subr.bf16.mxu0 0
        %2529 = vmatpush1.bf16.msra.mxu0 %v2492
        %2530 = vmatprep.subr.bf16.mxu0 0
        %2531 = vmatpush1.bf16.msra.mxu0 %v2493
        %2532 = vmatprep.subr.bf16.mxu0 0
        %2533 = vmatpush1.bf16.msra.mxu0 %v2494
        %2534 = vmatprep.subr.bf16.mxu0 0
        %2535 = vmatpush1.bf16.msra.mxu0 %v2495
        %2536 = vmatprep.subr.bf16.mxu0 0
        %2537 = vmatpush1.bf16.msra.mxu0 %v2496
        %2538 = vmatprep.subr.bf16.mxu0 0
        %2539 = vmatpush1.bf16.msra.mxu0 %v2497
        %2540 = vmatprep.subr.bf16.mxu0 0
        %2541 = vmatpush1.bf16.msra.mxu0 %v2498
        %2542 = vmatprep.subr.bf16.mxu0 0
        %2543 = vmatpush1.bf16.msra.mxu0 %v2499
        %2544 = vmatprep.subr.bf16.mxu0 0
        %2545 = vmatpush1.bf16.msra.mxu0 %v2500
        %2546 = vmatprep.subr.bf16.mxu0 0
        %2547 = vmatpush1.bf16.msra.mxu0 %v2501
        %2548 = vmatprep.subr.bf16.mxu0 0
        %2549 = vmatpush1.bf16.msra.mxu0 %v2502
        %2550 = vmatprep.subr.bf16.mxu0 0
        %2551 = vmatpush1.bf16.msra.mxu0 %v2503
        %2552 = vmatprep.mubr.bf16.mxu0 %v2376
        %2553 = vmatmul.mubr.bf16.gmra.mrb[0].mxu0 %v2296
        %v2554 = vpop.f32.mrb[0].mxu0
        %v2555 = vadd.f32 0.0, %v2554
        %v2556 = vpop.f32.mrb[0].mxu0
        %v2557 = vpop.f32.mrb[0].mxu0
        %v2558 = vadd.f32 0.0, %v2557
        %v2559 = vpop.f32.mrb[0].mxu0
        %2560 = vmatprep.mubr.bf16.mxu0 %v2377
        %2561 = vmatmul.mubr.bf16.gmra.mrb[0].mxu0 %v2297
        %v2562 = vpop.f32.mrb[0].mxu0
        %v2563 = vadd.f32 0.0, %v2562
        %v2564 = vpop.f32.mrb[0].mxu0
        %v2565 = vpop.f32.mrb[0].mxu0
        %v2566 = vadd.f32 0.0, %v2565
        %v2567 = vpop.f32.mrb[0].mxu0
        %2568 = vmatprep.mubr.bf16.mxu0 %v2378
        %2569 = vmatmul.mubr.bf16.gmra.mrb[0].mxu0 %v2298
        %v2570 = vpop.f32.mrb[0].mxu0
        %v2571 = vadd.f32 0.0, %v2570
        %v2572 = vpop.f32.mrb[0].mxu0
        %v2573 = vpop.f32.mrb[0].mxu0
        %v2574 = vadd.f32 0.0, %v2573
        %v2575 = vpop.f32.mrb[0].mxu0
        %2576 = vmatprep.mubr.bf16.mxu0 %v2379
        %2577 = vmatmul.mubr.bf16.gmra.mrb[0].mxu0 %v2299
        %v2578 = vpop.f32.mrb[0].mxu0
        %v2579 = vadd.f32 0.0, %v2578
        %v2580 = vpop.f32.mrb[0].mxu0
        %v2581 = vpop.f32.mrb[0].mxu0
        %v2582 = vadd.f32 0.0, %v2581
        %v2583 = vpop.f32.mrb[0].mxu0
        %2584 = vmatprep.mubr.bf16.mxu0 %v2380
        %2585 = vmatmul.mubr.bf16.gmra.mrb[0].mxu0 %v2300
        %v2586 = vpop.f32.mrb[0].mxu0
        %v2587 = vadd.f32 0.0, %v2586
        %v2588 = vpop.f32.mrb[0].mxu0
        %v2589 = vpop.f32.mrb[0].mxu0
        %v2590 = vadd.f32 0.0, %v2589
        %v2591 = vpop.f32.mrb[0].mxu0
        %2592 = vmatprep.mubr.bf16.mxu0 %v2381
        %2593 = vmatmul.mubr.bf16.gmra.mrb[0].mxu0 %v2301
        %v2594 = vpop.f32.mrb[0].mxu0
        %v2595 = vadd.f32 0.0, %v2594
        %v2596 = vpop.f32.mrb[0].mxu0
        %v2597 = vpop.f32.mrb[0].mxu0
        %v2598 = vadd.f32 0.0, %v2597
        %v2599 = vpop.f32.mrb[0].mxu0
        %2600 = vmatprep.mubr.bf16.mxu0 %v2382
        %2601 = vmatmul.mubr.bf16.gmra.mrb[0].mxu0 %v2302
        %v2602 = vpop.f32.mrb[0].mxu0
        %v2603 = vadd.f32 0.0, %v2602
        %v2604 = vpop.f32.mrb[0].mxu0
        %v2605 = vpop.f32.mrb[0].mxu0
        %v2606 = vadd.f32 0.0, %v2605
        %v2607 = vpop.f32.mrb[0].mxu0
        %2608 = vmatprep.mubr.bf16.mxu0 %v2383
        %2609 = vmatmul.mubr.bf16.gmra.mrb[0].mxu0 %v2303
        %v2610 = vpop.f32.mrb[0].mxu0
        %v2611 = vadd.f32 0.0, %v2610
        %v2612 = vpop.f32.mrb[0].mxu0
        %v2613 = vpop.f32.mrb[0].mxu0
        %v2614 = vadd.f32 0.0, %v2613
        %v2615 = vpop.f32.mrb[0].mxu0
        %2616 = vmatprep.mubr.bf16.mxu0 %v2384
        %2617 = vmatmul.mubr.bf16.gmra.mrb[0].mxu0 %v2304
        %v2618 = vpop.f32.mrb[0].mxu0
        %v2619 = vadd.f32 0.0, %v2618
        %v2620 = vpop.f32.mrb[0].mxu0
        %v2621 = vpop.f32.mrb[0].mxu0
        %v2622 = vadd.f32 0.0, %v2621
        %v2623 = vpop.f32.mrb[0].mxu0
        %2624 = vmatprep.mubr.bf16.mxu0 %v2385
        %2625 = vmatmul.mubr.bf16.gmra.mrb[0].mxu0 %v2305
        %v2626 = vpop.f32.mrb[0].mxu0
        %v2627 = vadd.f32 0.0, %v2626
        %v2628 = vpop.f32.mrb[0].mxu0
        %v2629 = vpop.f32.mrb[0].mxu0
        %v2630 = vadd.f32 0.0, %v2629
        %v2631 = vpop.f32.mrb[0].mxu0
        %2632 = vmatprep.mubr.bf16.mxu0 %v2386
        %2633 = vmatmul.mubr.bf16.gmra.mrb[0].mxu0 %v2306
        %v2634 = vpop.f32.mrb[0].mxu0
        %v2635 = vadd.f32 0.0, %v2634
        %v2636 = vpop.f32.mrb[0].mxu0
        %v2637 = vpop.f32.mrb[0].mxu0
        %v2638 = vadd.f32 0.0, %v2637
        %v2639 = vpop.f32.mrb[0].mxu0
        %2640 = vmatprep.mubr.bf16.mxu0 %v2387
        %2641 = vmatmul.mubr.bf16.gmra.mrb[0].mxu0 %v2307
        %v2642 = vpop.f32.mrb[0].mxu0
        %v2643 = vadd.f32 0.0, %v2642
        %v2644 = vpop.f32.mrb[0].mxu0
        %v2645 = vpop.f32.mrb[0].mxu0
        %v2646 = vadd.f32 0.0, %v2645
        %v2647 = vpop.f32.mrb[0].mxu0
        %2648 = vmatprep.mubr.bf16.mxu0 %v2388
        %2649 = vmatmul.mubr.bf16.gmra.mrb[0].mxu0 %v2308
        %v2650 = vpop.f32.mrb[0].mxu0
        %v2651 = vadd.f32 0.0, %v2650
        %v2652 = vpop.f32.mrb[0].mxu0
        %v2653 = vpop.f32.mrb[0].mxu0
        %v2654 = vadd.f32 0.0, %v2653
        %v2655 = vpop.f32.mrb[0].mxu0
        %2656 = vmatprep.mubr.bf16.mxu0 %v2389
        %2657 = vmatmul.mubr.bf16.gmra.mrb[0].mxu0 %v2309
        %v2658 = vpop.f32.mrb[0].mxu0
        %v2659 = vadd.f32 0.0, %v2658
        %v2660 = vpop.f32.mrb[0].mxu0
        %v2661 = vpop.f32.mrb[0].mxu0
        %v2662 = vadd.f32 0.0, %v2661
        %v2663 = vpop.f32.mrb[0].mxu0
        %2664 = vmatprep.mubr.bf16.mxu0 %v2390
        %2665 = vmatmul.mubr.bf16.gmra.mrb[0].mxu0 %v2310
        %v2666 = vpop.f32.mrb[0].mxu0
        %v2667 = vadd.f32 0.0, %v2666
        %v2668 = vpop.f32.mrb[0].mxu0
        %v2669 = vpop.f32.mrb[0].mxu0
        %v2670 = vadd.f32 0.0, %v2669
        %v2671 = vpop.f32.mrb[0].mxu0
        %2672 = vmatprep.mubr.bf16.mxu0 %v2391
        %2673 = vmatmul.mubr.bf16.gmra.mrb[0].mxu0 %v2311
        %v2674 = vpop.f32.mrb[0].mxu0
        %v2675 = vadd.f32 0.0, %v2674
        %v2676 = vpop.f32.mrb[0].mxu0
        %v2677 = vpop.f32.mrb[0].mxu0
        %v2678 = vadd.f32 0.0, %v2677
        %v2679 = vpop.f32.mrb[0].mxu0
        %2680 = vdwg.mxu0
        %v2681 = vadd.f32 %v2138, %v2555
        %v2682 = vadd.f32 %v2141, %v2558
        %v2683 = vadd.f32 %v2146, %v2563
        %v2684 = vadd.f32 %v2149, %v2566
        %v2685 = vadd.f32 %v2154, %v2571
        %v2686 = vadd.f32 %v2157, %v2574
        %v2687 = vadd.f32 %v2162, %v2579
        %v2688 = vadd.f32 %v2165, %v2582
        %v2689 = vadd.f32 %v2170, %v2587
        %v2690 = vadd.f32 %v2173, %v2590
        %v2691 = vadd.f32 %v2178, %v2595
        %v2692 = vadd.f32 %v2181, %v2598
        %v2693 = vadd.f32 %v2186, %v2603
        %v2694 = vadd.f32 %v2189, %v2606
        %v2695 = vadd.f32 %v2194, %v2611
        %v2696 = vadd.f32 %v2197, %v2614
        %v2697 = vadd.f32 %v2202, %v2619
        %v2698 = vadd.f32 %v2205, %v2622
        %v2699 = vadd.f32 %v2210, %v2627
        %v2700 = vadd.f32 %v2213, %v2630
        %v2701 = vadd.f32 %v2218, %v2635
        %v2702 = vadd.f32 %v2221, %v2638
        %v2703 = vadd.f32 %v2226, %v2643
        %v2704 = vadd.f32 %v2229, %v2646
        %v2705 = vadd.f32 %v2234, %v2651
        %v2706 = vadd.f32 %v2237, %v2654
        %v2707 = vadd.f32 %v2242, %v2659
        %v2708 = vadd.f32 %v2245, %v2662
        %v2709 = vadd.f32 %v2250, %v2667
        %v2710 = vadd.f32 %v2253, %v2670
        %v2711 = vadd.f32 %v2258, %v2675
        %v2712 = vadd.f32 %v2261, %v2678
        %v2713 = vld [vmem:[#allocation2 + $0x27] sm:$0xff]
        %v2714 = vld [vmem:[#allocation2 + $0x2f] sm:$0xff]
        %v2715 = vld [vmem:[#allocation2 + $0x37] sm:$0xff]
        %v2716 = vld [vmem:[#allocation2 + $0x3f] sm:$0xff]
        %v2717 = vld [vmem:[#allocation2 + $0x47] sm:$0xff]
        %v2718 = vld [vmem:[#allocation2 + $0x4f] sm:$0xff]
        %v2719 = vld [vmem:[#allocation2 + $0x57] sm:$0xff]
        %v2720 = vld [vmem:[#allocation2 + $0x5f] sm:$0xff]
        %v2721 = vld [vmem:[#allocation2 + $0x67] sm:$0xff]
        %v2722 = vld [vmem:[#allocation2 + $0x6f] sm:$0xff]
        %v2723 = vld [vmem:[#allocation2 + $0x77] sm:$0xff]
        %v2724 = vld [vmem:[#allocation2 + $0x7f] sm:$0xff]
        %v2725 = vld [vmem:[#allocation2 + $0x87] sm:$0xff]
        %v2726 = vld [vmem:[#allocation2 + $0x8f] sm:$0xff]
        %v2727 = vld [vmem:[#allocation2 + $0x97] sm:$0xff]
        %v2728 = vld [vmem:[#allocation2 + $0x9f] sm:$0xff]
        %v2729 = vld [vmem:[#allocation2 + $0xa7] sm:$0xff]
        %v2730 = vld [vmem:[#allocation2 + $0xaf] sm:$0xff]
        %v2731 = vld [vmem:[#allocation2 + $0xb7] sm:$0xff]
        %v2732 = vld [vmem:[#allocation2 + $0xbf] sm:$0xff]
        %v2733 = vld [vmem:[#allocation2 + $0xc7] sm:$0xff]
        %v2734 = vld [vmem:[#allocation2 + $0xcf] sm:$0xff]
        %v2735 = vld [vmem:[#allocation2 + $0xd7] sm:$0xff]
        %v2736 = vld [vmem:[#allocation2 + $0xdf] sm:$0xff]
        %v2737 = vld [vmem:[#allocation2 + $0xe7] sm:$0xff]
        %v2738 = vld [vmem:[#allocation2 + $0xef] sm:$0xff]
        %v2739 = vld [vmem:[#allocation2 + $0xf7] sm:$0xff]
        %v2740 = vld [vmem:[#allocation2 + $0xff] sm:$0xff]
        %v2741 = vld [vmem:[#allocation2 + $0x107] sm:$0xff]
        %v2742 = vld [vmem:[#allocation2 + $0x10f] sm:$0xff]
        %v2743 = vld [vmem:[#allocation2 + $0x117] sm:$0xff]
        %v2744 = vld [vmem:[#allocation2 + $0x11f] sm:$0xff]
        %v2745 = vmul.f32 %v2713, %v1300
        %v2746 = vmul.f32 %v2714, %v1301
        %v2747 = vmul.f32 %v2715, %v1302
        %v2748 = vmul.f32 %v2716, %v1303
        %v2749 = vmul.f32 %v2717, %v1304
        %v2750 = vmul.f32 %v2718, %v1305
        %v2751 = vmul.f32 %v2719, %v1306
        %v2752 = vmul.f32 %v2720, %v1307
        %v2753 = vmul.f32 %v2721, %v1308
        %v2754 = vmul.f32 %v2722, %v1309
        %v2755 = vmul.f32 %v2723, %v1310
        %v2756 = vmul.f32 %v2724, %v1311
        %v2757 = vmul.f32 %v2725, %v1312
        %v2758 = vmul.f32 %v2726, %v1313
        %v2759 = vmul.f32 %v2727, %v1314
        %v2760 = vmul.f32 %v2728, %v1315
        %v2761 = vmul.f32 %v2729, %v1316
        %v2762 = vmul.f32 %v2730, %v1317
        %v2763 = vmul.f32 %v2731, %v1318
        %v2764 = vmul.f32 %v2732, %v1319
        %v2765 = vmul.f32 %v2733, %v1320
        %v2766 = vmul.f32 %v2734, %v1321
        %v2767 = vmul.f32 %v2735, %v1322
        %v2768 = vmul.f32 %v2736, %v1323
        %v2769 = vmul.f32 %v2737, %v1324
        %v2770 = vmul.f32 %v2738, %v1325
        %v2771 = vmul.f32 %v2739, %v1326
        %v2772 = vmul.f32 %v2740, %v1327
        %v2773 = vmul.f32 %v2741, %v1328
        %v2774 = vmul.f32 %v2742, %v1329
        %v2775 = vmul.f32 %v2743, %v1330
        %v2776 = vmul.f32 %v2744, %v1331
        %v2777 = vpack.c.bf16 %v2746, %v2745
        %v2778 = vpack.c.bf16 %v2748, %v2747
        %v2779 = vpack.c.bf16 %v2750, %v2749
        %v2780 = vpack.c.bf16 %v2752, %v2751
        %v2781 = vpack.c.bf16 %v2754, %v2753
        %v2782 = vpack.c.bf16 %v2756, %v2755
        %v2783 = vpack.c.bf16 %v2758, %v2757
        %v2784 = vpack.c.bf16 %v2760, %v2759
        %v2785 = vpack.c.bf16 %v2762, %v2761
        %v2786 = vpack.c.bf16 %v2764, %v2763
        %v2787 = vpack.c.bf16 %v2766, %v2765
        %v2788 = vpack.c.bf16 %v2768, %v2767
        %v2789 = vpack.c.bf16 %v2770, %v2769
        %v2790 = vpack.c.bf16 %v2772, %v2771
        %v2791 = vpack.c.bf16 %v2774, %v2773
        %v2792 = vpack.c.bf16 %v2776, %v2775
        %v2793 = vld [vmem:[#allocation2 + $0x28] sm:$0xff]
        %v2794 = vld [vmem:[#allocation2 + $0x30] sm:$0xff]
        %v2795 = vld [vmem:[#allocation2 + $0x38] sm:$0xff]
        %v2796 = vld [vmem:[#allocation2 + $0x40] sm:$0xff]
        %v2797 = vld [vmem:[#allocation2 + $0x48] sm:$0xff]
        %v2798 = vld [vmem:[#allocation2 + $0x50] sm:$0xff]
        %v2799 = vld [vmem:[#allocation2 + $0x58] sm:$0xff]
        %v2800 = vld [vmem:[#allocation2 + $0x60] sm:$0xff]
        %v2801 = vld [vmem:[#allocation2 + $0x68] sm:$0xff]
        %v2802 = vld [vmem:[#allocation2 + $0x70] sm:$0xff]
        %v2803 = vld [vmem:[#allocation2 + $0x78] sm:$0xff]
        %v2804 = vld [vmem:[#allocation2 + $0x80] sm:$0xff]
        %v2805 = vld [vmem:[#allocation2 + $0x88] sm:$0xff]
        %v2806 = vld [vmem:[#allocation2 + $0x90] sm:$0xff]
        %v2807 = vld [vmem:[#allocation2 + $0x98] sm:$0xff]
        %v2808 = vld [vmem:[#allocation2 + $0xa0] sm:$0xff]
        %v2809 = vld [vmem:[#allocation2 + $0xa8] sm:$0xff]
        %v2810 = vld [vmem:[#allocation2 + $0xb0] sm:$0xff]
        %v2811 = vld [vmem:[#allocation2 + $0xb8] sm:$0xff]
        %v2812 = vld [vmem:[#allocation2 + $0xc0] sm:$0xff]
        %v2813 = vld [vmem:[#allocation2 + $0xc8] sm:$0xff]
        %v2814 = vld [vmem:[#allocation2 + $0xd0] sm:$0xff]
        %v2815 = vld [vmem:[#allocation2 + $0xd8] sm:$0xff]
        %v2816 = vld [vmem:[#allocation2 + $0xe0] sm:$0xff]
        %v2817 = vld [vmem:[#allocation2 + $0xe8] sm:$0xff]
        %v2818 = vld [vmem:[#allocation2 + $0xf0] sm:$0xff]
        %v2819 = vld [vmem:[#allocation2 + $0xf8] sm:$0xff]
        %v2820 = vld [vmem:[#allocation2 + $0x100] sm:$0xff]
        %v2821 = vld [vmem:[#allocation2 + $0x108] sm:$0xff]
        %v2822 = vld [vmem:[#allocation2 + $0x110] sm:$0xff]
        %v2823 = vld [vmem:[#allocation2 + $0x118] sm:$0xff]
        %v2824 = vld [vmem:[#allocation2 + $0x120] sm:$0xff]
        %v2825 = vpack.c.bf16 %v2794, %v2793
        %v2826 = vpack.c.bf16 %v2796, %v2795
        %v2827 = vpack.c.bf16 %v2798, %v2797
        %v2828 = vpack.c.bf16 %v2800, %v2799
        %v2829 = vpack.c.bf16 %v2802, %v2801
        %v2830 = vpack.c.bf16 %v2804, %v2803
        %v2831 = vpack.c.bf16 %v2806, %v2805
        %v2832 = vpack.c.bf16 %v2808, %v2807
        %v2833 = vpack.c.bf16 %v2810, %v2809
        %v2834 = vpack.c.bf16 %v2812, %v2811
        %v2835 = vpack.c.bf16 %v2814, %v2813
        %v2836 = vpack.c.bf16 %v2816, %v2815
        %v2837 = vpack.c.bf16 %v2818, %v2817
        %v2838 = vpack.c.bf16 %v2820, %v2819
        %v2839 = vpack.c.bf16 %v2822, %v2821
        %v2840 = vpack.c.bf16 %v2824, %v2823
        %v2841 = vld [vmem:[#allocation8 + $0x180] sm:$0xf]
        %v2842 = vld [vmem:[#allocation8 + $0x184] sm:$0xf]
        %v2843 = vld [vmem:[#allocation8 + $0x188] sm:$0xf]
        %v2844 = vld [vmem:[#allocation8 + $0x18c] sm:$0xf]
        %v2845 = vld [vmem:[#allocation8 + $0x190] sm:$0xf]
        %v2846 = vld [vmem:[#allocation8 + $0x194] sm:$0xf]
        %v2847 = vld [vmem:[#allocation8 + $0x198] sm:$0xf]
        %v2848 = vld [vmem:[#allocation8 + $0x19c] sm:$0xf]
        %v2849 = vld [vmem:[#allocation8 + $0x1a0] sm:$0xf]
        %v2850 = vld [vmem:[#allocation8 + $0x1a4] sm:$0xf]
        %v2851 = vld [vmem:[#allocation8 + $0x1a8] sm:$0xf]
        %v2852 = vld [vmem:[#allocation8 + $0x1ac] sm:$0xf]
        %v2853 = vld [vmem:[#allocation8 + $0x1b0] sm:$0xf]
        %v2854 = vld [vmem:[#allocation8 + $0x1b4] sm:$0xf]
        %v2855 = vld [vmem:[#allocation8 + $0x1b8] sm:$0xf]
        %v2856 = vld [vmem:[#allocation8 + $0x1bc] sm:$0xf]
        %v2857 = vld [vmem:[#allocation8 + $0x1c0] sm:$0xf]
        %v2858 = vld [vmem:[#allocation8 + $0x1c4] sm:$0xf]
        %v2859 = vld [vmem:[#allocation8 + $0x1c8] sm:$0xf]
        %v2860 = vld [vmem:[#allocation8 + $0x1cc] sm:$0xf]
        %v2861 = vld [vmem:[#allocation8 + $0x1d0] sm:$0xf]
        %v2862 = vld [vmem:[#allocation8 + $0x1d4] sm:$0xf]
        %v2863 = vld [vmem:[#allocation8 + $0x1d8] sm:$0xf]
        %v2864 = vld [vmem:[#allocation8 + $0x1dc] sm:$0xf]
        %v2865 = vld [vmem:[#allocation8 + $0x1e0] sm:$0xf]
        %v2866 = vld [vmem:[#allocation8 + $0x1e4] sm:$0xf]
        %v2867 = vld [vmem:[#allocation8 + $0x1e8] sm:$0xf]
        %v2868 = vld [vmem:[#allocation8 + $0x1ec] sm:$0xf]
        %v2869 = vld [vmem:[#allocation8 + $0x1f0] sm:$0xf]
        %v2870 = vld [vmem:[#allocation8 + $0x1f4] sm:$0xf]
        %v2871 = vld [vmem:[#allocation8 + $0x1f8] sm:$0xf]
        %v2872 = vld [vmem:[#allocation8 + $0x1fc] sm:$0xf]
        %v2905 = vunpack.c.l.b16 %v2841
        %v2906 = vunpack.c.l.b16 %v2842
        %v2907 = vunpack.c.l.b16 %v2843
        %v2908 = vunpack.c.l.b16 %v2844
        %v2909 = vunpack.c.l.b16 %v2845
        %v2910 = vunpack.c.l.b16 %v2846
        %v2911 = vunpack.c.l.b16 %v2847
        %v2912 = vunpack.c.l.b16 %v2848
        %v2913 = vunpack.c.l.b16 %v2849
        %v2914 = vunpack.c.l.b16 %v2850
        %v2915 = vunpack.c.l.b16 %v2851
        %v2916 = vunpack.c.l.b16 %v2852
        %v2917 = vunpack.c.l.b16 %v2853
        %v2918 = vunpack.c.l.b16 %v2854
        %v2919 = vunpack.c.l.b16 %v2855
        %v2920 = vunpack.c.l.b16 %v2856
        %v2921 = vunpack.c.l.b16 %v2857
        %v2922 = vunpack.c.l.b16 %v2858
        %v2923 = vunpack.c.l.b16 %v2859
        %v2924 = vunpack.c.l.b16 %v2860
        %v2925 = vunpack.c.l.b16 %v2861
        %v2926 = vunpack.c.l.b16 %v2862
        %v2927 = vunpack.c.l.b16 %v2863
        %v2928 = vunpack.c.l.b16 %v2864
        %v2929 = vunpack.c.l.b16 %v2865
        %v2930 = vunpack.c.l.b16 %v2866
        %v2931 = vunpack.c.l.b16 %v2867
        %v2932 = vunpack.c.l.b16 %v2868
        %v2933 = vunpack.c.l.b16 %v2869
        %v2934 = vunpack.c.l.b16 %v2870
        %v2935 = vunpack.c.l.b16 %v2871
        %v2936 = vunpack.c.l.b16 %v2872
        %v2937 = vpack.c.b16 %v2906, %v2905
        %v2938 = vpack.c.b16 %v2908, %v2907
        %v2939 = vpack.c.b16 %v2910, %v2909
        %v2940 = vpack.c.b16 %v2912, %v2911
        %v2941 = vpack.c.b16 %v2914, %v2913
        %v2942 = vpack.c.b16 %v2916, %v2915
        %v2943 = vpack.c.b16 %v2918, %v2917
        %v2944 = vpack.c.b16 %v2920, %v2919
        %v2945 = vpack.c.b16 %v2922, %v2921
        %v2946 = vpack.c.b16 %v2924, %v2923
        %v2947 = vpack.c.b16 %v2926, %v2925
        %v2948 = vpack.c.b16 %v2928, %v2927
        %v2949 = vpack.c.b16 %v2930, %v2929
        %v2950 = vpack.c.b16 %v2932, %v2931
        %v2951 = vpack.c.b16 %v2934, %v2933
        %v2952 = vpack.c.b16 %v2936, %v2935
        %2969 = vmatprep.subr.bf16.mxu0 0
        %2970 = vmatpush1.bf16.msra.mxu0 %v2937
        %2971 = vmatprep.subr.bf16.mxu0 0
        %2972 = vmatpush1.bf16.msra.mxu0 %v2938
        %2973 = vmatprep.subr.bf16.mxu0 0
        %2974 = vmatpush1.bf16.msra.mxu0 %v2939
        %2975 = vmatprep.subr.bf16.mxu0 0
        %2976 = vmatpush1.bf16.msra.mxu0 %v2940
        %2977 = vmatprep.subr.bf16.mxu0 0
        %2978 = vmatpush1.bf16.msra.mxu0 %v2941
        %2979 = vmatprep.subr.bf16.mxu0 0
        %2980 = vmatpush1.bf16.msra.mxu0 %v2942
        %2981 = vmatprep.subr.bf16.mxu0 0
        %2982 = vmatpush1.bf16.msra.mxu0 %v2943
        %2983 = vmatprep.subr.bf16.mxu0 0
        %2984 = vmatpush1.bf16.msra.mxu0 %v2944
        %2985 = vmatprep.subr.bf16.mxu0 0
        %2986 = vmatpush1.bf16.msra.mxu0 %v2945
        %2987 = vmatprep.subr.bf16.mxu0 0
        %2988 = vmatpush1.bf16.msra.mxu0 %v2946
        %2989 = vmatprep.subr.bf16.mxu0 0
        %2990 = vmatpush1.bf16.msra.mxu0 %v2947
        %2991 = vmatprep.subr.bf16.mxu0 0
        %2992 = vmatpush1.bf16.msra.mxu0 %v2948
        %2993 = vmatprep.subr.bf16.mxu0 0
        %2994 = vmatpush1.bf16.msra.mxu0 %v2949
        %2995 = vmatprep.subr.bf16.mxu0 0
        %2996 = vmatpush1.bf16.msra.mxu0 %v2950
        %2997 = vmatprep.subr.bf16.mxu0 0
        %2998 = vmatpush1.bf16.msra.mxu0 %v2951
        %2999 = vmatprep.subr.bf16.mxu0 0
        %3000 = vmatpush1.bf16.msra.mxu0 %v2952
        %3001 = vmatprep.mubr.bf16.mxu0 %v2825
        %3002 = vmatmul.mubr.bf16.gmra.mrb[0].mxu0 %v2777
        %v3003 = vpop.f32.mrb[0].mxu0
        %v3004 = vadd.f32 0.0, %v3003
        %v3005 = vpop.f32.mrb[0].mxu0
        %v3006 = vpop.f32.mrb[0].mxu0
        %v3007 = vadd.f32 0.0, %v3006
        %v3008 = vpop.f32.mrb[0].mxu0
        %3009 = vmatprep.mubr.bf16.mxu0 %v2826
        %3010 = vmatmul.mubr.bf16.gmra.mrb[0].mxu0 %v2778
        %v3011 = vpop.f32.mrb[0].mxu0
        %v3012 = vadd.f32 0.0, %v3011
        %v3013 = vpop.f32.mrb[0].mxu0
        %v3014 = vpop.f32.mrb[0].mxu0
        %v3015 = vadd.f32 0.0, %v3014
        %v3016 = vpop.f32.mrb[0].mxu0
        %3017 = vmatprep.mubr.bf16.mxu0 %v2827
        %3018 = vmatmul.mubr.bf16.gmra.mrb[0].mxu0 %v2779
        %v3019 = vpop.f32.mrb[0].mxu0
        %v3020 = vadd.f32 0.0, %v3019
        %v3021 = vpop.f32.mrb[0].mxu0
        %v3022 = vpop.f32.mrb[0].mxu0
        %v3023 = vadd.f32 0.0, %v3022
        %v3024 = vpop.f32.mrb[0].mxu0
        %3025 = vmatprep.mubr.bf16.mxu0 %v2828
        %3026 = vmatmul.mubr.bf16.gmra.mrb[0].mxu0 %v2780
        %v3027 = vpop.f32.mrb[0].mxu0
        %v3028 = vadd.f32 0.0, %v3027
        %v3029 = vpop.f32.mrb[0].mxu0
        %v3030 = vpop.f32.mrb[0].mxu0
        %v3031 = vadd.f32 0.0, %v3030
        %v3032 = vpop.f32.mrb[0].mxu0
        %3033 = vmatprep.mubr.bf16.mxu0 %v2829
        %3034 = vmatmul.mubr.bf16.gmra.mrb[0].mxu0 %v2781
        %v3035 = vpop.f32.mrb[0].mxu0
        %v3036 = vadd.f32 0.0, %v3035
        %v3037 = vpop.f32.mrb[0].mxu0
        %v3038 = vpop.f32.mrb[0].mxu0
        %v3039 = vadd.f32 0.0, %v3038
        %v3040 = vpop.f32.mrb[0].mxu0
        %3041 = vmatprep.mubr.bf16.mxu0 %v2830
        %3042 = vmatmul.mubr.bf16.gmra.mrb[0].mxu0 %v2782
        %v3043 = vpop.f32.mrb[0].mxu0
        %v3044 = vadd.f32 0.0, %v3043
        %v3045 = vpop.f32.mrb[0].mxu0
        %v3046 = vpop.f32.mrb[0].mxu0
        %v3047 = vadd.f32 0.0, %v3046
        %v3048 = vpop.f32.mrb[0].mxu0
        %3049 = vmatprep.mubr.bf16.mxu0 %v2831
        %3050 = vmatmul.mubr.bf16.gmra.mrb[0].mxu0 %v2783
        %v3051 = vpop.f32.mrb[0].mxu0
        %v3052 = vadd.f32 0.0, %v3051
        %v3053 = vpop.f32.mrb[0].mxu0
        %v3054 = vpop.f32.mrb[0].mxu0
        %v3055 = vadd.f32 0.0, %v3054
        %v3056 = vpop.f32.mrb[0].mxu0
        %3057 = vmatprep.mubr.bf16.mxu0 %v2832
        %3058 = vmatmul.mubr.bf16.gmra.mrb[0].mxu0 %v2784
        %v3059 = vpop.f32.mrb[0].mxu0
        %v3060 = vadd.f32 0.0, %v3059
        %v3061 = vpop.f32.mrb[0].mxu0
        %v3062 = vpop.f32.mrb[0].mxu0
        %v3063 = vadd.f32 0.0, %v3062
        %v3064 = vpop.f32.mrb[0].mxu0
        %3065 = vmatprep.mubr.bf16.mxu0 %v2833
        %3066 = vmatmul.mubr.bf16.gmra.mrb[0].mxu0 %v2785
        %v3067 = vpop.f32.mrb[0].mxu0
        %v3068 = vadd.f32 0.0, %v3067
        %v3069 = vpop.f32.mrb[0].mxu0
        %v3070 = vpop.f32.mrb[0].mxu0
        %v3071 = vadd.f32 0.0, %v3070
        %v3072 = vpop.f32.mrb[0].mxu0
        %3073 = vmatprep.mubr.bf16.mxu0 %v2834
        %3074 = vmatmul.mubr.bf16.gmra.mrb[0].mxu0 %v2786
        %v3075 = vpop.f32.mrb[0].mxu0
        %v3076 = vadd.f32 0.0, %v3075
        %v3077 = vpop.f32.mrb[0].mxu0
        %v3078 = vpop.f32.mrb[0].mxu0
        %v3079 = vadd.f32 0.0, %v3078
        %v3080 = vpop.f32.mrb[0].mxu0
        %3081 = vmatprep.mubr.bf16.mxu0 %v2835
        %3082 = vmatmul.mubr.bf16.gmra.mrb[0].mxu0 %v2787
        %v3083 = vpop.f32.mrb[0].mxu0
        %v3084 = vadd.f32 0.0, %v3083
        %v3085 = vpop.f32.mrb[0].mxu0
        %v3086 = vpop.f32.mrb[0].mxu0
        %v3087 = vadd.f32 0.0, %v3086
        %v3088 = vpop.f32.mrb[0].mxu0
        %3089 = vmatprep.mubr.bf16.mxu0 %v2836
        %3090 = vmatmul.mubr.bf16.gmra.mrb[0].mxu0 %v2788
        %v3091 = vpop.f32.mrb[0].mxu0
        %v3092 = vadd.f32 0.0, %v3091
        %v3093 = vpop.f32.mrb[0].mxu0
        %v3094 = vpop.f32.mrb[0].mxu0
        %v3095 = vadd.f32 0.0, %v3094
        %v3096 = vpop.f32.mrb[0].mxu0
        %3097 = vmatprep.mubr.bf16.mxu0 %v2837
        %3098 = vmatmul.mubr.bf16.gmra.mrb[0].mxu0 %v2789
        %v3099 = vpop.f32.mrb[0].mxu0
        %v3100 = vadd.f32 0.0, %v3099
        %v3101 = vpop.f32.mrb[0].mxu0
        %v3102 = vpop.f32.mrb[0].mxu0
        %v3103 = vadd.f32 0.0, %v3102
        %v3104 = vpop.f32.mrb[0].mxu0
        %3105 = vmatprep.mubr.bf16.mxu0 %v2838
        %3106 = vmatmul.mubr.bf16.gmra.mrb[0].mxu0 %v2790
        %v3107 = vpop.f32.mrb[0].mxu0
        %v3108 = vadd.f32 0.0, %v3107
        %v3109 = vpop.f32.mrb[0].mxu0
        %v3110 = vpop.f32.mrb[0].mxu0
        %v3111 = vadd.f32 0.0, %v3110
        %v3112 = vpop.f32.mrb[0].mxu0
        %3113 = vmatprep.mubr.bf16.mxu0 %v2839
        %3114 = vmatmul.mubr.bf16.gmra.mrb[0].mxu0 %v2791
        %v3115 = vpop.f32.mrb[0].mxu0
        %v3116 = vadd.f32 0.0, %v3115
        %v3117 = vpop.f32.mrb[0].mxu0
        %v3118 = vpop.f32.mrb[0].mxu0
        %v3119 = vadd.f32 0.0, %v3118
        %v3120 = vpop.f32.mrb[0].mxu0
        %3121 = vmatprep.mubr.bf16.mxu0 %v2840
        %3122 = vmatmul.mubr.bf16.gmra.mrb[0].mxu0 %v2792
        %v3123 = vpop.f32.mrb[0].mxu0
        %v3124 = vadd.f32 0.0, %v3123
        %v3125 = vpop.f32.mrb[0].mxu0
        %v3126 = vpop.f32.mrb[0].mxu0
        %v3127 = vadd.f32 0.0, %v3126
        %v3128 = vpop.f32.mrb[0].mxu0
        %3129 = vdwg.mxu0
        %v3130 = vadd.f32 %v2681, %v3004
        %v3131 = vadd.f32 %v2682, %v3007
        %v3132 = vadd.f32 %v2683, %v3012
        %v3133 = vadd.f32 %v2684, %v3015
        %v3134 = vadd.f32 %v2685, %v3020
        %v3135 = vadd.f32 %v2686, %v3023
        %v3136 = vadd.f32 %v2687, %v3028
        %v3137 = vadd.f32 %v2688, %v3031
        %v3138 = vadd.f32 %v2689, %v3036
        %v3139 = vadd.f32 %v2690, %v3039
        %v3140 = vadd.f32 %v2691, %v3044
        %v3141 = vadd.f32 %v2692, %v3047
        %v3142 = vadd.f32 %v2693, %v3052
        %v3143 = vadd.f32 %v2694, %v3055
        %v3144 = vadd.f32 %v2695, %v3060
        %v3145 = vadd.f32 %v2696, %v3063
        %v3146 = vadd.f32 %v2697, %v3068
        %v3147 = vadd.f32 %v2698, %v3071
        %v3148 = vadd.f32 %v2699, %v3076
        %v3149 = vadd.f32 %v2700, %v3079
        %v3150 = vadd.f32 %v2701, %v3084
        %v3151 = vadd.f32 %v2702, %v3087
        %v3152 = vadd.f32 %v2703, %v3092
        %v3153 = vadd.f32 %v2704, %v3095
        %v3154 = vadd.f32 %v2705, %v3100
        %v3155 = vadd.f32 %v2706, %v3103
        %v3156 = vadd.f32 %v2707, %v3108
        %v3157 = vadd.f32 %v2708, %v3111
        %v3158 = vadd.f32 %v2709, %v3116
        %v3159 = vadd.f32 %v2710, %v3119
        %v3160 = vadd.f32 %v2711, %v3124
        %v3161 = vadd.f32 %v2712, %v3127
        %v3162 = vld [vmem:[#allocation2 + $0x29] sm:$0xff]
        %v3163 = vld [vmem:[#allocation2 + $0x31] sm:$0xff]
        %v3164 = vld [vmem:[#allocation2 + $0x39] sm:$0xff]
        %v3165 = vld [vmem:[#allocation2 + $0x41] sm:$0xff]
        %v3166 = vld [vmem:[#allocation2 + $0x49] sm:$0xff]
        %v3167 = vld [vmem:[#allocation2 + $0x51] sm:$0xff]
        %v3168 = vld [vmem:[#allocation2 + $0x59] sm:$0xff]
        %v3169 = vld [vmem:[#allocation2 + $0x61] sm:$0xff]
        %v3170 = vld [vmem:[#allocation2 + $0x69] sm:$0xff]
        %v3171 = vld [vmem:[#allocation2 + $0x71] sm:$0xff]
        %v3172 = vld [vmem:[#allocation2 + $0x79] sm:$0xff]
        %v3173 = vld [vmem:[#allocation2 + $0x81] sm:$0xff]
        %v3174 = vld [vmem:[#allocation2 + $0x89] sm:$0xff]
        %v3175 = vld [vmem:[#allocation2 + $0x91] sm:$0xff]
        %v3176 = vld [vmem:[#allocation2 + $0x99] sm:$0xff]
        %v3177 = vld [vmem:[#allocation2 + $0xa1] sm:$0xff]
        %v3178 = vld [vmem:[#allocation2 + $0xa9] sm:$0xff]
        %v3179 = vld [vmem:[#allocation2 + $0xb1] sm:$0xff]
        %v3180 = vld [vmem:[#allocation2 + $0xb9] sm:$0xff]
        %v3181 = vld [vmem:[#allocation2 + $0xc1] sm:$0xff]
        %v3182 = vld [vmem:[#allocation2 + $0xc9] sm:$0xff]
        %v3183 = vld [vmem:[#allocation2 + $0xd1] sm:$0xff]
        %v3184 = vld [vmem:[#allocation2 + $0xd9] sm:$0xff]
        %v3185 = vld [vmem:[#allocation2 + $0xe1] sm:$0xff]
        %v3186 = vld [vmem:[#allocation2 + $0xe9] sm:$0xff]
        %v3187 = vld [vmem:[#allocation2 + $0xf1] sm:$0xff]
        %v3188 = vld [vmem:[#allocation2 + $0xf9] sm:$0xff]
        %v3189 = vld [vmem:[#allocation2 + $0x101] sm:$0xff]
        %v3190 = vld [vmem:[#allocation2 + $0x109] sm:$0xff]
        %v3191 = vld [vmem:[#allocation2 + $0x111] sm:$0xff]
        %v3192 = vld [vmem:[#allocation2 + $0x119] sm:$0xff]
        %v3193 = vld [vmem:[#allocation2 + $0x121] sm:$0xff]
        %v3194 = vmul.f32 %v3162, %v1396
        %v3195 = vmul.f32 %v3163, %v1397
        %v3196 = vmul.f32 %v3164, %v1398
        %v3197 = vmul.f32 %v3165, %v1399
        %v3198 = vmul.f32 %v3166, %v1400
        %v3199 = vmul.f32 %v3167, %v1401
        %v3200 = vmul.f32 %v3168, %v1402
        %v3201 = vmul.f32 %v3169, %v1403
        %v3202 = vmul.f32 %v3170, %v1404
        %v3203 = vmul.f32 %v3171, %v1405
        %v3204 = vmul.f32 %v3172, %v1406
        %v3205 = vmul.f32 %v3173, %v1407
        %v3206 = vmul.f32 %v3174, %v1408
        %v3207 = vmul.f32 %v3175, %v1409
        %v3208 = vmul.f32 %v3176, %v1410
        %v3209 = vmul.f32 %v3177, %v1411
        %v3210 = vmul.f32 %v3178, %v1412
        %v3211 = vmul.f32 %v3179, %v1413
        %v3212 = vmul.f32 %v3180, %v1414
        %v3213 = vmul.f32 %v3181, %v1415
        %v3214 = vmul.f32 %v3182, %v1416
        %v3215 = vmul.f32 %v3183, %v1417
        %v3216 = vmul.f32 %v3184, %v1418
        %v3217 = vmul.f32 %v3185, %v1419
        %v3218 = vmul.f32 %v3186, %v1420
        %v3219 = vmul.f32 %v3187, %v1421
        %v3220 = vmul.f32 %v3188, %v1422
        %v3221 = vmul.f32 %v3189, %v1423
        %v3222 = vmul.f32 %v3190, %v1424
        %v3223 = vmul.f32 %v3191, %v1425
        %v3224 = vmul.f32 %v3192, %v1426
        %v3225 = vmul.f32 %v3193, %v1427
        %v3226 = vpack.c.bf16 %v3195, %v3194
        %v3227 = vpack.c.bf16 %v3197, %v3196
        %v3228 = vpack.c.bf16 %v3199, %v3198
        %v3229 = vpack.c.bf16 %v3201, %v3200
        %v3230 = vpack.c.bf16 %v3203, %v3202
        %v3231 = vpack.c.bf16 %v3205, %v3204
        %v3232 = vpack.c.bf16 %v3207, %v3206
        %v3233 = vpack.c.bf16 %v3209, %v3208
        %v3234 = vpack.c.bf16 %v3211, %v3210
        %v3235 = vpack.c.bf16 %v3213, %v3212
        %v3236 = vpack.c.bf16 %v3215, %v3214
        %v3237 = vpack.c.bf16 %v3217, %v3216
        %v3238 = vpack.c.bf16 %v3219, %v3218
        %v3239 = vpack.c.bf16 %v3221, %v3220
        %v3240 = vpack.c.bf16 %v3223, %v3222
        %v3241 = vpack.c.bf16 %v3225, %v3224
        %v3242 = vld [vmem:[#allocation8 + $0x200] sm:$0xf]
        %v3243 = vld [vmem:[#allocation8 + $0x204] sm:$0xf]
        %v3244 = vld [vmem:[#allocation8 + $0x208] sm:$0xf]
        %v3245 = vld [vmem:[#allocation8 + $0x20c] sm:$0xf]
        %v3246 = vld [vmem:[#allocation8 + $0x210] sm:$0xf]
        %v3247 = vld [vmem:[#allocation8 + $0x214] sm:$0xf]
        %v3248 = vld [vmem:[#allocation8 + $0x218] sm:$0xf]
        %v3249 = vld [vmem:[#allocation8 + $0x21c] sm:$0xf]
        %v3250 = vld [vmem:[#allocation8 + $0x220] sm:$0xf]
        %v3251 = vld [vmem:[#allocation8 + $0x224] sm:$0xf]
        %v3252 = vld [vmem:[#allocation8 + $0x228] sm:$0xf]
        %v3253 = vld [vmem:[#allocation8 + $0x22c] sm:$0xf]
        %v3254 = vld [vmem:[#allocation8 + $0x230] sm:$0xf]
        %v3255 = vld [vmem:[#allocation8 + $0x234] sm:$0xf]
        %v3256 = vld [vmem:[#allocation8 + $0x238] sm:$0xf]
        %v3257 = vld [vmem:[#allocation8 + $0x23c] sm:$0xf]
        %v3274 = vunpack.c.l.b16 %v3242
        %v3275 = vunpack.c.l.b16 %v3243
        %v3276 = vunpack.c.l.b16 %v3244
        %v3277 = vunpack.c.l.b16 %v3245
        %v3278 = vunpack.c.l.b16 %v3246
        %v3279 = vunpack.c.l.b16 %v3247
        %v3280 = vunpack.c.l.b16 %v3248
        %v3281 = vunpack.c.l.b16 %v3249
        %v3282 = vunpack.c.l.b16 %v3250
        %v3283 = vunpack.c.l.b16 %v3251
        %v3284 = vunpack.c.l.b16 %v3252
        %v3285 = vunpack.c.l.b16 %v3253
        %v3286 = vunpack.c.l.b16 %v3254
        %v3287 = vunpack.c.l.b16 %v3255
        %v3288 = vunpack.c.l.b16 %v3256
        %v3289 = vunpack.c.l.b16 %v3257
        %v3290 = vpack.c.b16 %v3275, %v3274
        %v3291 = vpack.c.b16 %v3277, %v3276
        %v3292 = vpack.c.b16 %v3279, %v3278
        %v3293 = vpack.c.b16 %v3281, %v3280
        %v3294 = vpack.c.b16 %v3283, %v3282
        %v3295 = vpack.c.b16 %v3285, %v3284
        %v3296 = vpack.c.b16 %v3287, %v3286
        %v3297 = vpack.c.b16 %v3289, %v3288
        %3306 = vmatprep.subr.bf16.mxu0 0
        %3307 = vmatpush1.bf16.msra.mxu0 %v3290
        %3308 = vmatprep.subr.bf16.mxu0 0
        %3309 = vmatpush1.bf16.msra.mxu0 %v3291
        %3310 = vmatprep.subr.bf16.mxu0 0
        %3311 = vmatpush1.bf16.msra.mxu0 %v3292
        %3312 = vmatprep.subr.bf16.mxu0 0
        %3313 = vmatpush1.bf16.msra.mxu0 %v3293
        %3314 = vmatprep.subr.bf16.mxu0 0
        %3315 = vmatpush1.bf16.msra.mxu0 %v3294
        %3316 = vmatprep.subr.bf16.mxu0 0
        %3317 = vmatpush1.bf16.msra.mxu0 %v3295
        %3318 = vmatprep.subr.bf16.mxu0 0
        %3319 = vmatpush1.bf16.msra.mxu0 %v3296
        %3320 = vmatprep.subr.bf16.mxu0 0
        %3321 = vmatpush1.bf16.msra.mxu0 %v3297
        %3322 = vmatprep.subr.bf16.mxu0 0
        %3323 = vmatpush1.bf16.msra.mxu0 0
        %3324 = vmatprep.subr.bf16.mxu0 0
        %3325 = vmatpush1.bf16.msra.mxu0 0
        %3326 = vmatprep.subr.bf16.mxu0 0
        %3327 = vmatpush1.bf16.msra.mxu0 0
        %3328 = vmatprep.subr.bf16.mxu0 0
        %3329 = vmatpush1.bf16.msra.mxu0 0
        %3330 = vmatprep.subr.bf16.mxu0 0
        %3331 = vmatpush1.bf16.msra.mxu0 0
        %3332 = vmatprep.subr.bf16.mxu0 0
        %3333 = vmatpush1.bf16.msra.mxu0 0
        %3334 = vmatprep.subr.bf16.mxu0 0
        %3335 = vmatpush1.bf16.msra.mxu0 0
        %3336 = vmatprep.subr.bf16.mxu0 0
        %3337 = vmatpush1.bf16.msra.mxu0 0
        %3338 = vmatprep.mubr.bf16.mxu0 0
        %3339 = vmatmul.mubr.bf16.gmra.mrb[0].mxu0 %v3226
        %v3340 = vpop.f32.mrb[0].mxu0
        %v3341 = vadd.f32 0.0, %v3340
        %v3342 = vpop.f32.mrb[0].mxu0
        %v3343 = vpop.f32.mrb[0].mxu0
        %v3344 = vadd.f32 0.0, %v3343
        %v3345 = vpop.f32.mrb[0].mxu0
        %3346 = vmatprep.mubr.bf16.mxu0 0
        %3347 = vmatmul.mubr.bf16.gmra.mrb[0].mxu0 %v3227
        %v3348 = vpop.f32.mrb[0].mxu0
        %v3349 = vadd.f32 0.0, %v3348
        %v3350 = vpop.f32.mrb[0].mxu0
        %v3351 = vpop.f32.mrb[0].mxu0
        %v3352 = vadd.f32 0.0, %v3351
        %v3353 = vpop.f32.mrb[0].mxu0
        %3354 = vmatprep.mubr.bf16.mxu0 0
        %3355 = vmatmul.mubr.bf16.gmra.mrb[0].mxu0 %v3228
        %v3356 = vpop.f32.mrb[0].mxu0
        %v3357 = vadd.f32 0.0, %v3356
        %v3358 = vpop.f32.mrb[0].mxu0
        %v3359 = vpop.f32.mrb[0].mxu0
        %v3360 = vadd.f32 0.0, %v3359
        %v3361 = vpop.f32.mrb[0].mxu0
        %3362 = vmatprep.mubr.bf16.mxu0 0
        %3363 = vmatmul.mubr.bf16.gmra.mrb[0].mxu0 %v3229
        %v3364 = vpop.f32.mrb[0].mxu0
        %v3365 = vadd.f32 0.0, %v3364
        %v3366 = vpop.f32.mrb[0].mxu0
        %v3367 = vpop.f32.mrb[0].mxu0
        %v3368 = vadd.f32 0.0, %v3367
        %v3369 = vpop.f32.mrb[0].mxu0
        %3370 = vmatprep.mubr.bf16.mxu0 0
        %3371 = vmatmul.mubr.bf16.gmra.mrb[0].mxu0 %v3230
        %v3372 = vpop.f32.mrb[0].mxu0
        %v3373 = vadd.f32 0.0, %v3372
        %v3374 = vpop.f32.mrb[0].mxu0
        %v3375 = vpop.f32.mrb[0].mxu0
        %v3376 = vadd.f32 0.0, %v3375
        %v3377 = vpop.f32.mrb[0].mxu0
        %3378 = vmatprep.mubr.bf16.mxu0 0
        %3379 = vmatmul.mubr.bf16.gmra.mrb[0].mxu0 %v3231
        %v3380 = vpop.f32.mrb[0].mxu0
        %v3381 = vadd.f32 0.0, %v3380
        %v3382 = vpop.f32.mrb[0].mxu0
        %v3383 = vpop.f32.mrb[0].mxu0
        %v3384 = vadd.f32 0.0, %v3383
        %v3385 = vpop.f32.mrb[0].mxu0
        %3386 = vmatprep.mubr.bf16.mxu0 0
        %3387 = vmatmul.mubr.bf16.gmra.mrb[0].mxu0 %v3232
        %v3388 = vpop.f32.mrb[0].mxu0
        %v3389 = vadd.f32 0.0, %v3388
        %v3390 = vpop.f32.mrb[0].mxu0
        %v3391 = vpop.f32.mrb[0].mxu0
        %v3392 = vadd.f32 0.0, %v3391
        %v3393 = vpop.f32.mrb[0].mxu0
        %3394 = vmatprep.mubr.bf16.mxu0 0
        %3395 = vmatmul.mubr.bf16.gmra.mrb[0].mxu0 %v3233
        %v3396 = vpop.f32.mrb[0].mxu0
        %v3397 = vadd.f32 0.0, %v3396
        %v3398 = vpop.f32.mrb[0].mxu0
        %v3399 = vpop.f32.mrb[0].mxu0
        %v3400 = vadd.f32 0.0, %v3399
        %v3401 = vpop.f32.mrb[0].mxu0
        %3402 = vmatprep.mubr.bf16.mxu0 0
        %3403 = vmatmul.mubr.bf16.gmra.mrb[0].mxu0 %v3234
        %v3404 = vpop.f32.mrb[0].mxu0
        %v3405 = vadd.f32 0.0, %v3404
        %v3406 = vpop.f32.mrb[0].mxu0
        %v3407 = vpop.f32.mrb[0].mxu0
        %v3408 = vadd.f32 0.0, %v3407
        %v3409 = vpop.f32.mrb[0].mxu0
        %3410 = vmatprep.mubr.bf16.mxu0 0
        %3411 = vmatmul.mubr.bf16.gmra.mrb[0].mxu0 %v3235
        %v3412 = vpop.f32.mrb[0].mxu0
        %v3413 = vadd.f32 0.0, %v3412
        %v3414 = vpop.f32.mrb[0].mxu0
        %v3415 = vpop.f32.mrb[0].mxu0
        %v3416 = vadd.f32 0.0, %v3415
        %v3417 = vpop.f32.mrb[0].mxu0
        %3418 = vmatprep.mubr.bf16.mxu0 0
        %3419 = vmatmul.mubr.bf16.gmra.mrb[0].mxu0 %v3236
        %v3420 = vpop.f32.mrb[0].mxu0
        %v3421 = vadd.f32 0.0, %v3420
        %v3422 = vpop.f32.mrb[0].mxu0
        %v3423 = vpop.f32.mrb[0].mxu0
        %v3424 = vadd.f32 0.0, %v3423
        %v3425 = vpop.f32.mrb[0].mxu0
        %3426 = vmatprep.mubr.bf16.mxu0 0
        %3427 = vmatmul.mubr.bf16.gmra.mrb[0].mxu0 %v3237
        %v3428 = vpop.f32.mrb[0].mxu0
        %v3429 = vadd.f32 0.0, %v3428
        %v3430 = vpop.f32.mrb[0].mxu0
        %v3431 = vpop.f32.mrb[0].mxu0
        %v3432 = vadd.f32 0.0, %v3431
        %v3433 = vpop.f32.mrb[0].mxu0
        %3434 = vmatprep.mubr.bf16.mxu0 0
        %3435 = vmatmul.mubr.bf16.gmra.mrb[0].mxu0 %v3238
        %v3436 = vpop.f32.mrb[0].mxu0
        %v3437 = vadd.f32 0.0, %v3436
        %v3438 = vpop.f32.mrb[0].mxu0
        %v3439 = vpop.f32.mrb[0].mxu0
        %v3440 = vadd.f32 0.0, %v3439
        %v3441 = vpop.f32.mrb[0].mxu0
        %3442 = vmatprep.mubr.bf16.mxu0 0
        %3443 = vmatmul.mubr.bf16.gmra.mrb[0].mxu0 %v3239
        %v3444 = vpop.f32.mrb[0].mxu0
        %v3445 = vadd.f32 0.0, %v3444
        %v3446 = vpop.f32.mrb[0].mxu0
        %v3447 = vpop.f32.mrb[0].mxu0
        %v3448 = vadd.f32 0.0, %v3447
        %v3449 = vpop.f32.mrb[0].mxu0
        %3450 = vmatprep.mubr.bf16.mxu0 0
        %3451 = vmatmul.mubr.bf16.gmra.mrb[0].mxu0 %v3240
        %v3452 = vpop.f32.mrb[0].mxu0
        %v3453 = vadd.f32 0.0, %v3452
        %v3454 = vpop.f32.mrb[0].mxu0
        %v3455 = vpop.f32.mrb[0].mxu0
        %v3456 = vadd.f32 0.0, %v3455
        %v3457 = vpop.f32.mrb[0].mxu0
        %3458 = vmatprep.mubr.bf16.mxu0 0
        %3459 = vmatmul.mubr.bf16.gmra.mrb[0].mxu0 %v3241
        %v3460 = vpop.f32.mrb[0].mxu0
        %v3461 = vadd.f32 0.0, %v3460
        %v3462 = vpop.f32.mrb[0].mxu0
        %v3463 = vpop.f32.mrb[0].mxu0
        %v3464 = vadd.f32 0.0, %v3463
        %v3465 = vpop.f32.mrb[0].mxu0
        %3466 = vdwg.mxu0
        %v3467 = vadd.f32 %v3130, %v3341
        %v3468 = vadd.f32 %v3131, %v3344
        %v3469 = vadd.f32 %v3132, %v3349
        %v3470 = vadd.f32 %v3133, %v3352
        %v3471 = vadd.f32 %v3134, %v3357
        %v3472 = vadd.f32 %v3135, %v3360
        %v3473 = vadd.f32 %v3136, %v3365
        %v3474 = vadd.f32 %v3137, %v3368
        %v3475 = vadd.f32 %v3138, %v3373
        %v3476 = vadd.f32 %v3139, %v3376
        %v3477 = vadd.f32 %v3140, %v3381
        %v3478 = vadd.f32 %v3141, %v3384
        %v3479 = vadd.f32 %v3142, %v3389
        %v3480 = vadd.f32 %v3143, %v3392
        %v3481 = vadd.f32 %v3144, %v3397
        %v3482 = vadd.f32 %v3145, %v3400
        %v3483 = vadd.f32 %v3146, %v3405
        %v3484 = vadd.f32 %v3147, %v3408
        %v3485 = vadd.f32 %v3148, %v3413
        %v3486 = vadd.f32 %v3149, %v3416
        %v3487 = vadd.f32 %v3150, %v3421
        %v3488 = vadd.f32 %v3151, %v3424
        %v3489 = vadd.f32 %v3152, %v3429
        %v3490 = vadd.f32 %v3153, %v3432
        %v3491 = vadd.f32 %v3154, %v3437
        %v3492 = vadd.f32 %v3155, %v3440
        %v3493 = vadd.f32 %v3156, %v3445
        %v3494 = vadd.f32 %v3157, %v3448
        %v3495 = vadd.f32 %v3158, %v3453
        %v3496 = vadd.f32 %v3159, %v3456
        %v3497 = vadd.f32 %v3160, %v3461
        %v3498 = vadd.f32 %v3161, %v3464
        %v3499 = vadd.f32 %v3467, %v3468
        %v3500 = vadd.f32 %v3499, %v3469
        %v3501 = vadd.f32 %v3500, %v3470
        %v3502 = vadd.f32 %v3501, %v3471
        %v3503 = vadd.f32 %v3502, %v3472
        %v3504 = vadd.f32 %v3503, %v3473
        %v3505 = vadd.f32 %v3504, %v3474
        %v3506 = vadd.f32 %v3505, %v3475
        %v3507 = vadd.f32 %v3506, %v3476
        %v3508 = vadd.f32 %v3507, %v3477
        %v3509 = vadd.f32 %v3508, %v3478
        %v3510 = vadd.f32 %v3509, %v3479
        %v3511 = vadd.f32 %v3510, %v3480
        %v3512 = vadd.f32 %v3511, %v3481
        %v3513 = vadd.f32 %v3512, %v3482
        %v3514 = vadd.f32 %v3513, %v3483
        %v3515 = vadd.f32 %v3514, %v3484
        %v3516 = vadd.f32 %v3515, %v3485
        %v3517 = vadd.f32 %v3516, %v3486
        %v3518 = vadd.f32 %v3517, %v3487
        %v3519 = vadd.f32 %v3518, %v3488
        %v3520 = vadd.f32 %v3519, %v3489
        %v3521 = vadd.f32 %v3520, %v3490
        %v3522 = vadd.f32 %v3521, %v3491
        %v3523 = vadd.f32 %v3522, %v3492
        %v3524 = vadd.f32 %v3523, %v3493
        %v3525 = vadd.f32 %v3524, %v3494
        %v3526 = vadd.f32 %v3525, %v3495
        %v3527 = vadd.f32 %v3526, %v3496
        %v3528 = vadd.f32 %v3527, %v3497
        %v3529 = vadd.f32 %v3528, %v3498
        %v3530 = vrot.slane %v3529, 4
        %v3531 = vadd.f32 %v3529, %v3530
        %v3532 = vrot.slane %v3531, 2
        %v3533 = vadd.f32 %v3531, %v3532
        %v3534 = vrot.slane %v3533, 1
        %v3535 = vadd.f32 %v3533, %v3534
        %v3536 = vmul.f32 %v3535, 0.00390625
        %v3537 = vsub.f32 %v3467, %v3536
        %v3538 = vsub.f32 %v3468, %v3536
        %v3539 = vsub.f32 %v3469, %v3536
        %v3540 = vsub.f32 %v3470, %v3536
        %v3541 = vsub.f32 %v3471, %v3536
        %v3542 = vsub.f32 %v3472, %v3536
        %v3543 = vsub.f32 %v3473, %v3536
        %v3544 = vsub.f32 %v3474, %v3536
        %v3545 = vsub.f32 %v3475, %v3536
        %v3546 = vsub.f32 %v3476, %v3536
        %v3547 = vsub.f32 %v3477, %v3536
        %v3548 = vsub.f32 %v3478, %v3536
        %v3549 = vsub.f32 %v3479, %v3536
        %v3550 = vsub.f32 %v3480, %v3536
        %v3551 = vsub.f32 %v3481, %v3536
        %v3552 = vsub.f32 %v3482, %v3536
        %v3553 = vsub.f32 %v3483, %v3536
        %v3554 = vsub.f32 %v3484, %v3536
        %v3555 = vsub.f32 %v3485, %v3536
        %v3556 = vsub.f32 %v3486, %v3536
        %v3557 = vsub.f32 %v3487, %v3536
        %v3558 = vsub.f32 %v3488, %v3536
        %v3559 = vsub.f32 %v3489, %v3536
        %v3560 = vsub.f32 %v3490, %v3536
        %v3561 = vsub.f32 %v3491, %v3536
        %v3562 = vsub.f32 %v3492, %v3536
        %v3563 = vsub.f32 %v3493, %v3536
        %v3564 = vsub.f32 %v3494, %v3536
        %v3565 = vsub.f32 %v3495, %v3536
        %v3566 = vsub.f32 %v3496, %v3536
        %v3567 = vsub.f32 %v3497, %v3536
        %v3568 = vsub.f32 %v3498, %v3536
        %v3569 = vmul.f32 %v3537, %v3537
        %v3570 = vmul.f32 %v3538, %v3538
        %v3571 = vmul.f32 %v3539, %v3539
        %v3572 = vmul.f32 %v3540, %v3540
        %v3573 = vmul.f32 %v3541, %v3541
        %v3574 = vmul.f32 %v3542, %v3542
        %v3575 = vmul.f32 %v3543, %v3543
        %v3576 = vmul.f32 %v3544, %v3544
        %v3577 = vmul.f32 %v3545, %v3545
        %v3578 = vmul.f32 %v3546, %v3546
        %v3579 = vmul.f32 %v3547, %v3547
        %v3580 = vmul.f32 %v3548, %v3548
        %v3581 = vmul.f32 %v3549, %v3549
        %v3582 = vmul.f32 %v3550, %v3550
        %v3583 = vmul.f32 %v3551, %v3551
        %v3584 = vmul.f32 %v3552, %v3552
        %v3585 = vmul.f32 %v3553, %v3553
        %v3586 = vmul.f32 %v3554, %v3554
        %v3587 = vmul.f32 %v3555, %v3555
        %v3588 = vmul.f32 %v3556, %v3556
        %v3589 = vmul.f32 %v3557, %v3557
        %v3590 = vmul.f32 %v3558, %v3558
        %v3591 = vmul.f32 %v3559, %v3559
        %v3592 = vmul.f32 %v3560, %v3560
        %v3593 = vmul.f32 %v3561, %v3561
        %v3594 = vmul.f32 %v3562, %v3562
        %v3595 = vmul.f32 %v3563, %v3563
        %v3596 = vmul.f32 %v3564, %v3564
        %v3597 = vmul.f32 %v3565, %v3565
        %v3598 = vmul.f32 %v3566, %v3566
        %v3599 = vmul.f32 %v3567, %v3567
        %v3600 = vmul.f32 %v3568, %v3568
        %v3601 = vadd.f32 %v3569, %v3570
        %v3602 = vadd.f32 %v3601, %v3571
        %v3603 = vadd.f32 %v3602, %v3572
        %v3604 = vadd.f32 %v3603, %v3573
        %v3605 = vadd.f32 %v3604, %v3574
        %v3606 = vadd.f32 %v3605, %v3575
        %v3607 = vadd.f32 %v3606, %v3576
        %v3608 = vadd.f32 %v3607, %v3577
        %v3609 = vadd.f32 %v3608, %v3578
        %v3610 = vadd.f32 %v3609, %v3579
        %v3611 = vadd.f32 %v3610, %v3580
        %v3612 = vadd.f32 %v3611, %v3581
        %v3613 = vadd.f32 %v3612, %v3582
        %v3614 = vadd.f32 %v3613, %v3583
        %v3615 = vadd.f32 %v3614, %v3584
        %v3616 = vadd.f32 %v3615, %v3585
        %v3617 = vadd.f32 %v3616, %v3586
        %v3618 = vadd.f32 %v3617, %v3587
        %v3619 = vadd.f32 %v3618, %v3588
        %v3620 = vadd.f32 %v3619, %v3589
        %v3621 = vadd.f32 %v3620, %v3590
        %v3622 = vadd.f32 %v3621, %v3591
        %v3623 = vadd.f32 %v3622, %v3592
        %v3624 = vadd.f32 %v3623, %v3593
        %v3625 = vadd.f32 %v3624, %v3594
        %v3626 = vadd.f32 %v3625, %v3595
        %v3627 = vadd.f32 %v3626, %v3596
        %v3628 = vadd.f32 %v3627, %v3597
        %v3629 = vadd.f32 %v3628, %v3598
        %v3630 = vadd.f32 %v3629, %v3599
        %v3631 = vadd.f32 %v3630, %v3600
        %v3632 = vrot.slane %v3631, 4
        %v3633 = vadd.f32 %v3631, %v3632
        %v3634 = vrot.slane %v3633, 2
        %v3635 = vadd.f32 %v3633, %v3634
        %v3636 = vrot.slane %v3635, 1
        %v3637 = vadd.f32 %v3635, %v3636
        %v3638 = vmul.f32 %v3637, 0.00390625
        %v3639 = vadd.f32 %v3638, 1e-05
        %v3640 = vrsqrt.pop %v3639
        %v3641 = vmul.f32 %v3537, %v3640
        %v3642 = vmul.f32 %v3538, %v3640
        %v3643 = vmul.f32 %v3539, %v3640
        %v3644 = vmul.f32 %v3540, %v3640
        %v3645 = vmul.f32 %v3541, %v3640
        %v3646 = vmul.f32 %v3542, %v3640
        %v3647 = vmul.f32 %v3543, %v3640
        %v3648 = vmul.f32 %v3544, %v3640
        %v3649 = vmul.f32 %v3545, %v3640
        %v3650 = vmul.f32 %v3546, %v3640
        %v3651 = vmul.f32 %v3547, %v3640
        %v3652 = vmul.f32 %v3548, %v3640
        %v3653 = vmul.f32 %v3549, %v3640
        %v3654 = vmul.f32 %v3550, %v3640
        %v3655 = vmul.f32 %v3551, %v3640
        %v3656 = vmul.f32 %v3552, %v3640
        %v3657 = vmul.f32 %v3553, %v3640
        %v3658 = vmul.f32 %v3554, %v3640
        %v3659 = vmul.f32 %v3555, %v3640
        %v3660 = vmul.f32 %v3556, %v3640
        %v3661 = vmul.f32 %v3557, %v3640
        %v3662 = vmul.f32 %v3558, %v3640
        %v3663 = vmul.f32 %v3559, %v3640
        %v3664 = vmul.f32 %v3560, %v3640
        %v3665 = vmul.f32 %v3561, %v3640
        %v3666 = vmul.f32 %v3562, %v3640
        %v3667 = vmul.f32 %v3563, %v3640
        %v3668 = vmul.f32 %v3564, %v3640
        %v3669 = vmul.f32 %v3565, %v3640
        %v3670 = vmul.f32 %v3566, %v3640
        %v3671 = vmul.f32 %v3567, %v3640
        %v3672 = vmul.f32 %v3568, %v3640
        %v3673 = vmax.f32 %v3641, 0.0
        %v3674 = vmax.f32 %v3642, 0.0
        %v3675 = vmax.f32 %v3643, 0.0
        %v3676 = vmax.f32 %v3644, 0.0
        %v3677 = vmax.f32 %v3645, 0.0
        %v3678 = vmax.f32 %v3646, 0.0
        %v3679 = vmax.f32 %v3647, 0.0
        %v3680 = vmax.f32 %v3648, 0.0
        %v3681 = vmax.f32 %v3649, 0.0
        %v3682 = vmax.f32 %v3650, 0.0
        %v3683 = vmax.f32 %v3651, 0.0
        %v3684 = vmax.f32 %v3652, 0.0
        %v3685 = vmax.f32 %v3653, 0.0
        %v3686 = vmax.f32 %v3654, 0.0
        %v3687 = vmax.f32 %v3655, 0.0
        %v3688 = vmax.f32 %v3656, 0.0
        %v3689 = vmax.f32 %v3657, 0.0
        %v3690 = vmax.f32 %v3658, 0.0
        %v3691 = vmax.f32 %v3659, 0.0
        %v3692 = vmax.f32 %v3660, 0.0
        %v3693 = vmax.f32 %v3661, 0.0
        %v3694 = vmax.f32 %v3662, 0.0
        %v3695 = vmax.f32 %v3663, 0.0
        %v3696 = vmax.f32 %v3664, 0.0
        %v3697 = vmax.f32 %v3665, 0.0
        %v3698 = vmax.f32 %v3666, 0.0
        %v3699 = vmax.f32 %v3667, 0.0
        %v3700 = vmax.f32 %v3668, 0.0
        %v3701 = vmax.f32 %v3669, 0.0
        %v3702 = vmax.f32 %v3670, 0.0
        %v3703 = vmax.f32 %v3671, 0.0
        %v3704 = vmax.f32 %v3672, 0.0
        %v3705 = vpack.c.bf16 %v3674, %v3673
        %v3706 = vpack.c.bf16 %v3676, %v3675
        %v3707 = vpack.c.bf16 %v3678, %v3677
        %v3708 = vpack.c.bf16 %v3680, %v3679
        %v3709 = vpack.c.bf16 %v3682, %v3681
        %v3710 = vpack.c.bf16 %v3684, %v3683
        %v3711 = vpack.c.bf16 %v3686, %v3685
        %v3712 = vpack.c.bf16 %v3688, %v3687
        %v3713 = vpack.c.bf16 %v3690, %v3689
        %v3714 = vpack.c.bf16 %v3692, %v3691
        %v3715 = vpack.c.bf16 %v3694, %v3693
        %v3716 = vpack.c.bf16 %v3696, %v3695
        %v3717 = vpack.c.bf16 %v3698, %v3697
        %v3718 = vpack.c.bf16 %v3700, %v3699
        %v3719 = vpack.c.bf16 %v3702, %v3701
        %v3720 = vpack.c.bf16 %v3704, %v3703
        %v3721 = vld [vmem:[#allocation9] sm:$0xf]
        %v3722 = vld [vmem:[#allocation9 + $0x4] sm:$0xf]
        %v3723 = vld [vmem:[#allocation9 + $0x8] sm:$0xf]
        %v3724 = vld [vmem:[#allocation9 + $0xc] sm:$0xf]
        %v3725 = vld [vmem:[#allocation9 + $0x10] sm:$0xf]
        %v3726 = vld [vmem:[#allocation9 + $0x14] sm:$0xf]
        %v3727 = vld [vmem:[#allocation9 + $0x18] sm:$0xf]
        %v3728 = vld [vmem:[#allocation9 + $0x1c] sm:$0xf]
        %v3729 = vld [vmem:[#allocation9 + $0x20] sm:$0xf]
        %v3730 = vld [vmem:[#allocation9 + $0x24] sm:$0xf]
        %v3731 = vld [vmem:[#allocation9 + $0x28] sm:$0xf]
        %v3732 = vld [vmem:[#allocation9 + $0x2c] sm:$0xf]
        %v3733 = vld [vmem:[#allocation9 + $0x30] sm:$0xf]
        %v3734 = vld [vmem:[#allocation9 + $0x34] sm:$0xf]
        %v3735 = vld [vmem:[#allocation9 + $0x38] sm:$0xf]
        %v3736 = vld [vmem:[#allocation9 + $0x3c] sm:$0xf]
        %v3753 = vunpack.c.l.b16 %v3721
        %v3754 = vunpack.c.l.b16 %v3722
        %v3755 = vunpack.c.l.b16 %v3723
        %v3756 = vunpack.c.l.b16 %v3724
        %v3757 = vunpack.c.l.b16 %v3725
        %v3758 = vunpack.c.l.b16 %v3726
        %v3759 = vunpack.c.l.b16 %v3727
        %v3760 = vunpack.c.l.b16 %v3728
        %v3761 = vunpack.c.l.b16 %v3729
        %v3762 = vunpack.c.l.b16 %v3730
        %v3763 = vunpack.c.l.b16 %v3731
        %v3764 = vunpack.c.l.b16 %v3732
        %v3765 = vunpack.c.l.b16 %v3733
        %v3766 = vunpack.c.l.b16 %v3734
        %v3767 = vunpack.c.l.b16 %v3735
        %v3768 = vunpack.c.l.b16 %v3736
        %v3769 = vpack.c.b16 %v3754, %v3753
        %v3770 = vpack.c.b16 %v3756, %v3755
        %v3771 = vpack.c.b16 %v3758, %v3757
        %v3772 = vpack.c.b16 %v3760, %v3759
        %v3773 = vpack.c.b16 %v3762, %v3761
        %v3774 = vpack.c.b16 %v3764, %v3763
        %v3775 = vpack.c.b16 %v3766, %v3765
        %v3776 = vpack.c.b16 %v3768, %v3767
        %3785 = vmatprep.subr.bf16.mxu0 0
        %3786 = vmatpush1.bf16.msra.mxu0 %v3769
        %3787 = vmatprep.subr.bf16.mxu0 0
        %3788 = vmatpush1.bf16.msra.mxu0 %v3770
        %3789 = vmatprep.subr.bf16.mxu0 0
        %3790 = vmatpush1.bf16.msra.mxu0 %v3771
        %3791 = vmatprep.subr.bf16.mxu0 0
        %3792 = vmatpush1.bf16.msra.mxu0 %v3772
        %3793 = vmatprep.subr.bf16.mxu0 0
        %3794 = vmatpush1.bf16.msra.mxu0 %v3773
        %3795 = vmatprep.subr.bf16.mxu0 0
        %3796 = vmatpush1.bf16.msra.mxu0 %v3774
        %3797 = vmatprep.subr.bf16.mxu0 0
        %3798 = vmatpush1.bf16.msra.mxu0 %v3775
        %3799 = vmatprep.subr.bf16.mxu0 0
        %3800 = vmatpush1.bf16.msra.mxu0 %v3776
        %3801 = vmatprep.subr.bf16.mxu0 0
        %3802 = vmatpush1.bf16.msra.mxu0 0
        %3803 = vmatprep.subr.bf16.mxu0 0
        %3804 = vmatpush1.bf16.msra.mxu0 0
        %3805 = vmatprep.subr.bf16.mxu0 0
        %3806 = vmatpush1.bf16.msra.mxu0 0
        %3807 = vmatprep.subr.bf16.mxu0 0
        %3808 = vmatpush1.bf16.msra.mxu0 0
        %3809 = vmatprep.subr.bf16.mxu0 0
        %3810 = vmatpush1.bf16.msra.mxu0 0
        %3811 = vmatprep.subr.bf16.mxu0 0
        %3812 = vmatpush1.bf16.msra.mxu0 0
        %3813 = vmatprep.subr.bf16.mxu0 0
        %3814 = vmatpush1.bf16.msra.mxu0 0
        %3815 = vmatprep.subr.bf16.mxu0 0
        %3816 = vmatpush1.bf16.msra.mxu0 0
        %3817 = vmatprep.mubr.bf16.mxu0 0
        %3818 = vmatmul.mubr.bf16.gmra.mrb[0].mxu0 %v3705
        %v3819 = vpop.f32.mrb[0].mxu0
        %v3820 = vadd.f32 0.0, %v3819
        %v3821 = vpop.f32.mrb[0].mxu0
        %v3822 = vpop.f32.mrb[0].mxu0
        %v3823 = vadd.f32 0.0, %v3822
        %v3824 = vpop.f32.mrb[0].mxu0
        %3825 = vmatprep.mubr.bf16.mxu0 0
        %3826 = vmatmul.mubr.bf16.gmra.mrb[0].mxu0 %v3706
        %v3827 = vpop.f32.mrb[0].mxu0
        %v3828 = vadd.f32 0.0, %v3827
        %v3829 = vpop.f32.mrb[0].mxu0
        %v3830 = vpop.f32.mrb[0].mxu0
        %v3831 = vadd.f32 0.0, %v3830
        %v3832 = vpop.f32.mrb[0].mxu0
        %3833 = vmatprep.mubr.bf16.mxu0 0
        %3834 = vmatmul.mubr.bf16.gmra.mrb[0].mxu0 %v3707
        %v3835 = vpop.f32.mrb[0].mxu0
        %v3836 = vadd.f32 0.0, %v3835
        %v3837 = vpop.f32.mrb[0].mxu0
        %v3838 = vpop.f32.mrb[0].mxu0
        %v3839 = vadd.f32 0.0, %v3838
        %v3840 = vpop.f32.mrb[0].mxu0
        %3841 = vmatprep.mubr.bf16.mxu0 0
        %3842 = vmatmul.mubr.bf16.gmra.mrb[0].mxu0 %v3708
        %v3843 = vpop.f32.mrb[0].mxu0
        %v3844 = vadd.f32 0.0, %v3843
        %v3845 = vpop.f32.mrb[0].mxu0
        %v3846 = vpop.f32.mrb[0].mxu0
        %v3847 = vadd.f32 0.0, %v3846
        %v3848 = vpop.f32.mrb[0].mxu0
        %3849 = vmatprep.mubr.bf16.mxu0 0
        %3850 = vmatmul.mubr.bf16.gmra.mrb[0].mxu0 %v3709
        %v3851 = vpop.f32.mrb[0].mxu0
        %v3852 = vadd.f32 0.0, %v3851
        %v3853 = vpop.f32.mrb[0].mxu0
        %v3854 = vpop.f32.mrb[0].mxu0
        %v3855 = vadd.f32 0.0, %v3854
        %v3856 = vpop.f32.mrb[0].mxu0
        %3857 = vmatprep.mubr.bf16.mxu0 0
        %3858 = vmatmul.mubr.bf16.gmra.mrb[0].mxu0 %v3710
        %v3859 = vpop.f32.mrb[0].mxu0
        %v3860 = vadd.f32 0.0, %v3859
        %v3861 = vpop.f32.mrb[0].mxu0
        %v3862 = vpop.f32.mrb[0].mxu0
        %v3863 = vadd.f32 0.0, %v3862
        %v3864 = vpop.f32.mrb[0].mxu0
        %3865 = vmatprep.mubr.bf16.mxu0 0
        %3866 = vmatmul.mubr.bf16.gmra.mrb[0].mxu0 %v3711
        %v3867 = vpop.f32.mrb[0].mxu0
        %v3868 = vadd.f32 0.0, %v3867
        %v3869 = vpop.f32.mrb[0].mxu0
        %v3870 = vpop.f32.mrb[0].mxu0
        %v3871 = vadd.f32 0.0, %v3870
        %v3872 = vpop.f32.mrb[0].mxu0
        %3873 = vmatprep.mubr.bf16.mxu0 0
        %3874 = vmatmul.mubr.bf16.gmra.mrb[0].mxu0 %v3712
        %v3875 = vpop.f32.mrb[0].mxu0
        %v3876 = vadd.f32 0.0, %v3875
        %v3877 = vpop.f32.mrb[0].mxu0
        %v3878 = vpop.f32.mrb[0].mxu0
        %v3879 = vadd.f32 0.0, %v3878
        %v3880 = vpop.f32.mrb[0].mxu0
        %3881 = vmatprep.mubr.bf16.mxu0 0
        %3882 = vmatmul.mubr.bf16.gmra.mrb[0].mxu0 %v3713
        %v3883 = vpop.f32.mrb[0].mxu0
        %v3884 = vadd.f32 0.0, %v3883
        %v3885 = vpop.f32.mrb[0].mxu0
        %v3886 = vpop.f32.mrb[0].mxu0
        %v3887 = vadd.f32 0.0, %v3886
        %v3888 = vpop.f32.mrb[0].mxu0
        %3889 = vmatprep.mubr.bf16.mxu0 0
        %3890 = vmatmul.mubr.bf16.gmra.mrb[0].mxu0 %v3714
        %v3891 = vpop.f32.mrb[0].mxu0
        %v3892 = vadd.f32 0.0, %v3891
        %v3893 = vpop.f32.mrb[0].mxu0
        %v3894 = vpop.f32.mrb[0].mxu0
        %v3895 = vadd.f32 0.0, %v3894
        %v3896 = vpop.f32.mrb[0].mxu0
        %3897 = vmatprep.mubr.bf16.mxu0 0
        %3898 = vmatmul.mubr.bf16.gmra.mrb[0].mxu0 %v3715
        %v3899 = vpop.f32.mrb[0].mxu0
        %v3900 = vadd.f32 0.0, %v3899
        %v3901 = vpop.f32.mrb[0].mxu0
        %v3902 = vpop.f32.mrb[0].mxu0
        %v3903 = vadd.f32 0.0, %v3902
        %v3904 = vpop.f32.mrb[0].mxu0
        %3905 = vmatprep.mubr.bf16.mxu0 0
        %3906 = vmatmul.mubr.bf16.gmra.mrb[0].mxu0 %v3716
        %v3907 = vpop.f32.mrb[0].mxu0
        %v3908 = vadd.f32 0.0, %v3907
        %v3909 = vpop.f32.mrb[0].mxu0
        %v3910 = vpop.f32.mrb[0].mxu0
        %v3911 = vadd.f32 0.0, %v3910
        %v3912 = vpop.f32.mrb[0].mxu0
        %3913 = vmatprep.mubr.bf16.mxu0 0
        %3914 = vmatmul.mubr.bf16.gmra.mrb[0].mxu0 %v3717
        %v3915 = vpop.f32.mrb[0].mxu0
        %v3916 = vadd.f32 0.0, %v3915
        %v3917 = vpop.f32.mrb[0].mxu0
        %v3918 = vpop.f32.mrb[0].mxu0
        %v3919 = vadd.f32 0.0, %v3918
        %v3920 = vpop.f32.mrb[0].mxu0
        %3921 = vmatprep.mubr.bf16.mxu0 0
        %3922 = vmatmul.mubr.bf16.gmra.mrb[0].mxu0 %v3718
        %v3923 = vpop.f32.mrb[0].mxu0
        %v3924 = vadd.f32 0.0, %v3923
        %v3925 = vpop.f32.mrb[0].mxu0
        %v3926 = vpop.f32.mrb[0].mxu0
        %v3927 = vadd.f32 0.0, %v3926
        %v3928 = vpop.f32.mrb[0].mxu0
        %3929 = vmatprep.mubr.bf16.mxu0 0
        %3930 = vmatmul.mubr.bf16.gmra.mrb[0].mxu0 %v3719
        %v3931 = vpop.f32.mrb[0].mxu0
        %v3932 = vadd.f32 0.0, %v3931
        %v3933 = vpop.f32.mrb[0].mxu0
        %v3934 = vpop.f32.mrb[0].mxu0
        %v3935 = vadd.f32 0.0, %v3934
        %v3936 = vpop.f32.mrb[0].mxu0
        %3937 = vmatprep.mubr.bf16.mxu0 0
        %3938 = vmatmul.mubr.bf16.gmra.mrb[0].mxu0 %v3720
        %v3939 = vpop.f32.mrb[0].mxu0
        %v3940 = vadd.f32 0.0, %v3939
        %v3941 = vpop.f32.mrb[0].mxu0
        %v3942 = vpop.f32.mrb[0].mxu0
        %v3943 = vadd.f32 0.0, %v3942
        %v3944 = vpop.f32.mrb[0].mxu0
        %3945 = vdwg.mxu0
        %v3946 = vadd.f32 %v3820, %v3823
        %v3947 = vadd.f32 %v3946, %v3828
        %v3948 = vadd.f32 %v3947, %v3831
        %v3949 = vadd.f32 %v3948, %v3836
        %v3950 = vadd.f32 %v3949, %v3839
        %v3951 = vadd.f32 %v3950, %v3844
        %v3952 = vadd.f32 %v3951, %v3847
        %v3953 = vadd.f32 %v3952, %v3852
        %v3954 = vadd.f32 %v3953, %v3855
        %v3955 = vadd.f32 %v3954, %v3860
        %v3956 = vadd.f32 %v3955, %v3863
        %v3957 = vadd.f32 %v3956, %v3868
        %v3958 = vadd.f32 %v3957, %v3871
        %v3959 = vadd.f32 %v3958, %v3876
        %v3960 = vadd.f32 %v3959, %v3879
        %v3961 = vadd.f32 %v3960, %v3884
        %v3962 = vadd.f32 %v3961, %v3887
        %v3963 = vadd.f32 %v3962, %v3892
        %v3964 = vadd.f32 %v3963, %v3895
        %v3965 = vadd.f32 %v3964, %v3900
        %v3966 = vadd.f32 %v3965, %v3903
        %v3967 = vadd.f32 %v3966, %v3908
        %v3968 = vadd.f32 %v3967, %v3911
        %v3969 = vadd.f32 %v3968, %v3916
        %v3970 = vadd.f32 %v3969, %v3919
        %v3971 = vadd.f32 %v3970, %v3924
        %v3972 = vadd.f32 %v3971, %v3927
        %v3973 = vadd.f32 %v3972, %v3932
        %v3974 = vadd.f32 %v3973, %v3935
        %v3975 = vadd.f32 %v3974, %v3940
        %v3976 = vadd.f32 %v3975, %v3943
        %v3977 = vrot.slane %v3976, 4
        %v3978 = vadd.f32 %v3976, %v3977
        %v3979 = vrot.slane %v3978, 2
        %v3980 = vadd.f32 %v3978, %v3979
        %v3981 = vrot.slane %v3980, 1
        %v3982 = vadd.f32 %v3980, %v3981
        %v3983 = vmul.f32 %v3982, 0.00390625
        %v3984 = vsub.f32 %v3820, %v3983
        %v3985 = vsub.f32 %v3823, %v3983
        %v3986 = vsub.f32 %v3828, %v3983
        %v3987 = vsub.f32 %v3831, %v3983
        %v3988 = vsub.f32 %v3836, %v3983
        %v3989 = vsub.f32 %v3839, %v3983
        %v3990 = vsub.f32 %v3844, %v3983
        %v3991 = vsub.f32 %v3847, %v3983
        %v3992 = vsub.f32 %v3852, %v3983
        %v3993 = vsub.f32 %v3855, %v3983
        %v3994 = vsub.f32 %v3860, %v3983
        %v3995 = vsub.f32 %v3863, %v3983
        %v3996 = vsub.f32 %v3868, %v3983
        %v3997 = vsub.f32 %v3871, %v3983
        %v3998 = vsub.f32 %v3876, %v3983
        %v3999 = vsub.f32 %v3879, %v3983
        %v4000 = vsub.f32 %v3884, %v3983
        %v4001 = vsub.f32 %v3887, %v3983
        %v4002 = vsub.f32 %v3892, %v3983
        %v4003 = vsub.f32 %v3895, %v3983
        %v4004 = vsub.f32 %v3900, %v3983
        %v4005 = vsub.f32 %v3903, %v3983
        %v4006 = vsub.f32 %v3908, %v3983
        %v4007 = vsub.f32 %v3911, %v3983
        %v4008 = vsub.f32 %v3916, %v3983
        %v4009 = vsub.f32 %v3919, %v3983
        %v4010 = vsub.f32 %v3924, %v3983
        %v4011 = vsub.f32 %v3927, %v3983
        %v4012 = vsub.f32 %v3932, %v3983
        %v4013 = vsub.f32 %v3935, %v3983
        %v4014 = vsub.f32 %v3940, %v3983
        %v4015 = vsub.f32 %v3943, %v3983
        %v4016 = vmul.f32 %v3984, %v3984
        %v4017 = vmul.f32 %v3985, %v3985
        %v4018 = vmul.f32 %v3986, %v3986
        %v4019 = vmul.f32 %v3987, %v3987
        %v4020 = vmul.f32 %v3988, %v3988
        %v4021 = vmul.f32 %v3989, %v3989
        %v4022 = vmul.f32 %v3990, %v3990
        %v4023 = vmul.f32 %v3991, %v3991
        %v4024 = vmul.f32 %v3992, %v3992
        %v4025 = vmul.f32 %v3993, %v3993
        %v4026 = vmul.f32 %v3994, %v3994
        %v4027 = vmul.f32 %v3995, %v3995
        %v4028 = vmul.f32 %v3996, %v3996
        %v4029 = vmul.f32 %v3997, %v3997
        %v4030 = vmul.f32 %v3998, %v3998
        %v4031 = vmul.f32 %v3999, %v3999
        %v4032 = vmul.f32 %v4000, %v4000
        %v4033 = vmul.f32 %v4001, %v4001
        %v4034 = vmul.f32 %v4002, %v4002
        %v4035 = vmul.f32 %v4003, %v4003
        %v4036 = vmul.f32 %v4004, %v4004
        %v4037 = vmul.f32 %v4005, %v4005
        %v4038 = vmul.f32 %v4006, %v4006
        %v4039 = vmul.f32 %v4007, %v4007
        %v4040 = vmul.f32 %v4008, %v4008
        %v4041 = vmul.f32 %v4009, %v4009
        %v4042 = vmul.f32 %v4010, %v4010
        %v4043 = vmul.f32 %v4011, %v4011
        %v4044 = vmul.f32 %v4012, %v4012
        %v4045 = vmul.f32 %v4013, %v4013
        %v4046 = vmul.f32 %v4014, %v4014
        %v4047 = vmul.f32 %v4015, %v4015
        %v4048 = vadd.f32 %v4016, %v4017
        %v4049 = vadd.f32 %v4048, %v4018
        %v4050 = vadd.f32 %v4049, %v4019
        %v4051 = vadd.f32 %v4050, %v4020
        %v4052 = vadd.f32 %v4051, %v4021
        %v4053 = vadd.f32 %v4052, %v4022
        %v4054 = vadd.f32 %v4053, %v4023
        %v4055 = vadd.f32 %v4054, %v4024
        %v4056 = vadd.f32 %v4055, %v4025
        %v4057 = vadd.f32 %v4056, %v4026
        %v4058 = vadd.f32 %v4057, %v4027
        %v4059 = vadd.f32 %v4058, %v4028
        %v4060 = vadd.f32 %v4059, %v4029
        %v4061 = vadd.f32 %v4060, %v4030
        %v4062 = vadd.f32 %v4061, %v4031
        %v4063 = vadd.f32 %v4062, %v4032
        %v4064 = vadd.f32 %v4063, %v4033
        %v4065 = vadd.f32 %v4064, %v4034
        %v4066 = vadd.f32 %v4065, %v4035
        %v4067 = vadd.f32 %v4066, %v4036
        %v4068 = vadd.f32 %v4067, %v4037
        %v4069 = vadd.f32 %v4068, %v4038
        %v4070 = vadd.f32 %v4069, %v4039
        %v4071 = vadd.f32 %v4070, %v4040
        %v4072 = vadd.f32 %v4071, %v4041
        %v4073 = vadd.f32 %v4072, %v4042
        %v4074 = vadd.f32 %v4073, %v4043
        %v4075 = vadd.f32 %v4074, %v4044
        %v4076 = vadd.f32 %v4075, %v4045
        %v4077 = vadd.f32 %v4076, %v4046
        %v4078 = vadd.f32 %v4077, %v4047
        %v4079 = vrot.slane %v4078, 4
        %v4080 = vadd.f32 %v4078, %v4079
        %v4081 = vrot.slane %v4080, 2
        %v4082 = vadd.f32 %v4080, %v4081
        %v4083 = vrot.slane %v4082, 1
        %v4084 = vadd.f32 %v4082, %v4083
        %v4085 = vmul.f32 %v4084, 0.00390625
        %v4086 = vadd.f32 %v4085, 1e-05
        %v4087 = vrsqrt.pop %v4086
        %v4088 = vmul.f32 %v3984, %v4087
        %v4089 = vmul.f32 %v3985, %v4087
        %v4090 = vmul.f32 %v3986, %v4087
        %v4091 = vmul.f32 %v3987, %v4087
        %v4092 = vmul.f32 %v3988, %v4087
        %v4093 = vmul.f32 %v3989, %v4087
        %v4094 = vmul.f32 %v3990, %v4087
        %v4095 = vmul.f32 %v3991, %v4087
        %v4096 = vmul.f32 %v3992, %v4087
        %v4097 = vmul.f32 %v3993, %v4087
        %v4098 = vmul.f32 %v3994, %v4087
        %v4099 = vmul.f32 %v3995, %v4087
        %v4100 = vmul.f32 %v3996, %v4087
        %v4101 = vmul.f32 %v3997, %v4087
        %v4102 = vmul.f32 %v3998, %v4087
        %v4103 = vmul.f32 %v3999, %v4087
        %v4104 = vmul.f32 %v4000, %v4087
        %v4105 = vmul.f32 %v4001, %v4087
        %v4106 = vmul.f32 %v4002, %v4087
        %v4107 = vmul.f32 %v4003, %v4087
        %v4108 = vmul.f32 %v4004, %v4087
        %v4109 = vmul.f32 %v4005, %v4087
        %v4110 = vmul.f32 %v4006, %v4087
        %v4111 = vmul.f32 %v4007, %v4087
        %v4112 = vmul.f32 %v4008, %v4087
        %v4113 = vmul.f32 %v4009, %v4087
        %v4114 = vmul.f32 %v4010, %v4087
        %v4115 = vmul.f32 %v4011, %v4087
        %v4116 = vmul.f32 %v4012, %v4087
        %v4117 = vmul.f32 %v4013, %v4087
        %v4118 = vmul.f32 %v4014, %v4087
        %v4119 = vmul.f32 %v4015, %v4087
        %v4120 = vmax.f32 %v4088, 0.0
        %v4121 = vmax.f32 %v4089, 0.0
        %v4122 = vmax.f32 %v4090, 0.0
        %v4123 = vmax.f32 %v4091, 0.0
        %v4124 = vmax.f32 %v4092, 0.0
        %v4125 = vmax.f32 %v4093, 0.0
        %v4126 = vmax.f32 %v4094, 0.0
        %v4127 = vmax.f32 %v4095, 0.0
        %v4128 = vmax.f32 %v4096, 0.0
        %v4129 = vmax.f32 %v4097, 0.0
        %v4130 = vmax.f32 %v4098, 0.0
        %v4131 = vmax.f32 %v4099, 0.0
        %v4132 = vmax.f32 %v4100, 0.0
        %v4133 = vmax.f32 %v4101, 0.0
        %v4134 = vmax.f32 %v4102, 0.0
        %v4135 = vmax.f32 %v4103, 0.0
        %v4136 = vmax.f32 %v4104, 0.0
        %v4137 = vmax.f32 %v4105, 0.0
        %v4138 = vmax.f32 %v4106, 0.0
        %v4139 = vmax.f32 %v4107, 0.0
        %v4140 = vmax.f32 %v4108, 0.0
        %v4141 = vmax.f32 %v4109, 0.0
        %v4142 = vmax.f32 %v4110, 0.0
        %v4143 = vmax.f32 %v4111, 0.0
        %v4144 = vmax.f32 %v4112, 0.0
        %v4145 = vmax.f32 %v4113, 0.0
        %v4146 = vmax.f32 %v4114, 0.0
        %v4147 = vmax.f32 %v4115, 0.0
        %v4148 = vmax.f32 %v4116, 0.0
        %v4149 = vmax.f32 %v4117, 0.0
        %v4150 = vmax.f32 %v4118, 0.0
        %v4151 = vmax.f32 %v4119, 0.0
        %v4152 = vld [vmem:[%s258] sm:$0xff]
        %v4153 = vld [vmem:[%s258 + $0x8] sm:$0xff]
        %v4154 = vld [vmem:[%s258 + $0x10] sm:$0xff]
        %v4155 = vld [vmem:[%s258 + $0x18] sm:$0xff]
        %v4156 = vld [vmem:[%s258 + $0x20] sm:$0xff]
        %v4157 = vld [vmem:[%s258 + $0x28] sm:$0xff]
        %v4158 = vld [vmem:[%s258 + $0x30] sm:$0xff]
        %v4159 = vld [vmem:[%s258 + $0x38] sm:$0xff]
        %v4160 = vld [vmem:[%s258 + $0x40] sm:$0xff]
        %v4161 = vld [vmem:[%s258 + $0x48] sm:$0xff]
        %v4162 = vld [vmem:[%s258 + $0x50] sm:$0xff]
        %v4163 = vld [vmem:[%s258 + $0x58] sm:$0xff]
        %v4164 = vld [vmem:[%s258 + $0x60] sm:$0xff]
        %v4165 = vld [vmem:[%s258 + $0x68] sm:$0xff]
        %v4166 = vld [vmem:[%s258 + $0x70] sm:$0xff]
        %v4167 = vld [vmem:[%s258 + $0x78] sm:$0xff]
        %v4168 = vld [vmem:[%s258 + $0x80] sm:$0xff]
        %v4169 = vld [vmem:[%s258 + $0x88] sm:$0xff]
        %v4170 = vld [vmem:[%s258 + $0x90] sm:$0xff]
        %v4171 = vld [vmem:[%s258 + $0x98] sm:$0xff]
        %v4172 = vld [vmem:[%s258 + $0xa0] sm:$0xff]
        %v4173 = vld [vmem:[%s258 + $0xa8] sm:$0xff]
        %v4174 = vld [vmem:[%s258 + $0xb0] sm:$0xff]
        %v4175 = vld [vmem:[%s258 + $0xb8] sm:$0xff]
        %v4176 = vld [vmem:[%s258 + $0xc0] sm:$0xff]
        %v4177 = vld [vmem:[%s258 + $0xc8] sm:$0xff]
        %v4178 = vld [vmem:[%s258 + $0xd0] sm:$0xff]
        %v4179 = vld [vmem:[%s258 + $0xd8] sm:$0xff]
        %v4180 = vld [vmem:[%s258 + $0xe0] sm:$0xff]
        %v4181 = vld [vmem:[%s258 + $0xe8] sm:$0xff]
        %v4182 = vld [vmem:[%s258 + $0xf0] sm:$0xff]
        %v4183 = vld [vmem:[%s258 + $0xf8] sm:$0xff]
        %v4184 = vpack.c.bf16 %v4153, %v4152
        %v4185 = vpack.c.bf16 %v4155, %v4154
        %v4186 = vpack.c.bf16 %v4157, %v4156
        %v4187 = vpack.c.bf16 %v4159, %v4158
        %v4188 = vpack.c.bf16 %v4161, %v4160
        %v4189 = vpack.c.bf16 %v4163, %v4162
        %v4190 = vpack.c.bf16 %v4165, %v4164
        %v4191 = vpack.c.bf16 %v4167, %v4166
        %v4192 = vpack.c.bf16 %v4169, %v4168
        %v4193 = vpack.c.bf16 %v4171, %v4170
        %v4194 = vpack.c.bf16 %v4173, %v4172
        %v4195 = vpack.c.bf16 %v4175, %v4174
        %v4196 = vpack.c.bf16 %v4177, %v4176
        %v4197 = vpack.c.bf16 %v4179, %v4178
        %v4198 = vpack.c.bf16 %v4181, %v4180
        %v4199 = vpack.c.bf16 %v4183, %v4182
        %v4200 = vld [vmem:[#allocation11] sm:$0xf]
        %v4201 = vld [vmem:[#allocation11 + $0x4] sm:$0xf]
        %v4202 = vld [vmem:[#allocation11 + $0x8] sm:$0xf]
        %v4203 = vld [vmem:[#allocation11 + $0xc] sm:$0xf]
        %v4204 = vld [vmem:[#allocation11 + $0x10] sm:$0xf]
        %v4205 = vld [vmem:[#allocation11 + $0x14] sm:$0xf]
        %v4206 = vld [vmem:[#allocation11 + $0x18] sm:$0xf]
        %v4207 = vld [vmem:[#allocation11 + $0x1c] sm:$0xf]
        %v4208 = vld [vmem:[#allocation11 + $0x20] sm:$0xf]
        %v4209 = vld [vmem:[#allocation11 + $0x24] sm:$0xf]
        %v4210 = vld [vmem:[#allocation11 + $0x28] sm:$0xf]
        %v4211 = vld [vmem:[#allocation11 + $0x2c] sm:$0xf]
        %v4212 = vld [vmem:[#allocation11 + $0x30] sm:$0xf]
        %v4213 = vld [vmem:[#allocation11 + $0x34] sm:$0xf]
        %v4214 = vld [vmem:[#allocation11 + $0x38] sm:$0xf]
        %v4215 = vld [vmem:[#allocation11 + $0x3c] sm:$0xf]
        %v4232 = vunpack.c.l.b16 %v4200
        %v4233 = vunpack.c.l.b16 %v4201
        %v4234 = vunpack.c.l.b16 %v4202
        %v4235 = vunpack.c.l.b16 %v4203
        %v4236 = vunpack.c.l.b16 %v4204
        %v4237 = vunpack.c.l.b16 %v4205
        %v4238 = vunpack.c.l.b16 %v4206
        %v4239 = vunpack.c.l.b16 %v4207
        %v4240 = vunpack.c.l.b16 %v4208
        %v4241 = vunpack.c.l.b16 %v4209
        %v4242 = vunpack.c.l.b16 %v4210
        %v4243 = vunpack.c.l.b16 %v4211
        %v4244 = vunpack.c.l.b16 %v4212
        %v4245 = vunpack.c.l.b16 %v4213
        %v4246 = vunpack.c.l.b16 %v4214
        %v4247 = vunpack.c.l.b16 %v4215
        %v4248 = vpack.c.b16 %v4233, %v4232
        %v4249 = vpack.c.b16 %v4235, %v4234
        %v4250 = vpack.c.b16 %v4237, %v4236
        %v4251 = vpack.c.b16 %v4239, %v4238
        %v4252 = vpack.c.b16 %v4241, %v4240
        %v4253 = vpack.c.b16 %v4243, %v4242
        %v4254 = vpack.c.b16 %v4245, %v4244
        %v4255 = vpack.c.b16 %v4247, %v4246
        %4264 = vmatprep.subr.bf16.mxu0 0
        %4265 = vmatpush1.bf16.msra.mxu0 %v4248
        %4266 = vmatprep.subr.bf16.mxu0 0
        %4267 = vmatpush1.bf16.msra.mxu0 %v4249
        %4268 = vmatprep.subr.bf16.mxu0 0
        %4269 = vmatpush1.bf16.msra.mxu0 %v4250
        %4270 = vmatprep.subr.bf16.mxu0 0
        %4271 = vmatpush1.bf16.msra.mxu0 %v4251
        %4272 = vmatprep.subr.bf16.mxu0 0
        %4273 = vmatpush1.bf16.msra.mxu0 %v4252
        %4274 = vmatprep.subr.bf16.mxu0 0
        %4275 = vmatpush1.bf16.msra.mxu0 %v4253
        %4276 = vmatprep.subr.bf16.mxu0 0
        %4277 = vmatpush1.bf16.msra.mxu0 %v4254
        %4278 = vmatprep.subr.bf16.mxu0 0
        %4279 = vmatpush1.bf16.msra.mxu0 %v4255
        %4280 = vmatprep.subr.bf16.mxu0 0
        %4281 = vmatpush1.bf16.msra.mxu0 0
        %4282 = vmatprep.subr.bf16.mxu0 0
        %4283 = vmatpush1.bf16.msra.mxu0 0
        %4284 = vmatprep.subr.bf16.mxu0 0
        %4285 = vmatpush1.bf16.msra.mxu0 0
        %4286 = vmatprep.subr.bf16.mxu0 0
        %4287 = vmatpush1.bf16.msra.mxu0 0
        %4288 = vmatprep.subr.bf16.mxu0 0
        %4289 = vmatpush1.bf16.msra.mxu0 0
        %4290 = vmatprep.subr.bf16.mxu0 0
        %4291 = vmatpush1.bf16.msra.mxu0 0
        %4292 = vmatprep.subr.bf16.mxu0 0
        %4293 = vmatpush1.bf16.msra.mxu0 0
        %4294 = vmatprep.subr.bf16.mxu0 0
        %4295 = vmatpush1.bf16.msra.mxu0 0
        %4296 = vmatprep.mubr.bf16.mxu0 0
        %4297 = vmatmul.mubr.bf16.gmra.mrb[0].mxu0 %v4184
        %v4298 = vpop.f32.mrb[0].mxu0
        %v4299 = vadd.f32 0.0, %v4298
        %v4300 = vpop.f32.mrb[0].mxu0
        %v4301 = vpop.f32.mrb[0].mxu0
        %v4302 = vadd.f32 0.0, %v4301
        %v4303 = vpop.f32.mrb[0].mxu0
        %4304 = vmatprep.mubr.bf16.mxu0 0
        %4305 = vmatmul.mubr.bf16.gmra.mrb[0].mxu0 %v4185
        %v4306 = vpop.f32.mrb[0].mxu0
        %v4307 = vadd.f32 0.0, %v4306
        %v4308 = vpop.f32.mrb[0].mxu0
        %v4309 = vpop.f32.mrb[0].mxu0
        %v4310 = vadd.f32 0.0, %v4309
        %v4311 = vpop.f32.mrb[0].mxu0
        %4312 = vmatprep.mubr.bf16.mxu0 0
        %4313 = vmatmul.mubr.bf16.gmra.mrb[0].mxu0 %v4186
        %v4314 = vpop.f32.mrb[0].mxu0
        %v4315 = vadd.f32 0.0, %v4314
        %v4316 = vpop.f32.mrb[0].mxu0
        %v4317 = vpop.f32.mrb[0].mxu0
        %v4318 = vadd.f32 0.0, %v4317
        %v4319 = vpop.f32.mrb[0].mxu0
        %4320 = vmatprep.mubr.bf16.mxu0 0
        %4321 = vmatmul.mubr.bf16.gmra.mrb[0].mxu0 %v4187
        %v4322 = vpop.f32.mrb[0].mxu0
        %v4323 = vadd.f32 0.0, %v4322
        %v4324 = vpop.f32.mrb[0].mxu0
        %v4325 = vpop.f32.mrb[0].mxu0
        %v4326 = vadd.f32 0.0, %v4325
        %v4327 = vpop.f32.mrb[0].mxu0
        %4328 = vmatprep.mubr.bf16.mxu0 0
        %4329 = vmatmul.mubr.bf16.gmra.mrb[0].mxu0 %v4188
        %v4330 = vpop.f32.mrb[0].mxu0
        %v4331 = vadd.f32 0.0, %v4330
        %v4332 = vpop.f32.mrb[0].mxu0
        %v4333 = vpop.f32.mrb[0].mxu0
        %v4334 = vadd.f32 0.0, %v4333
        %v4335 = vpop.f32.mrb[0].mxu0
        %4336 = vmatprep.mubr.bf16.mxu0 0
        %4337 = vmatmul.mubr.bf16.gmra.mrb[0].mxu0 %v4189
        %v4338 = vpop.f32.mrb[0].mxu0
        %v4339 = vadd.f32 0.0, %v4338
        %v4340 = vpop.f32.mrb[0].mxu0
        %v4341 = vpop.f32.mrb[0].mxu0
        %v4342 = vadd.f32 0.0, %v4341
        %v4343 = vpop.f32.mrb[0].mxu0
        %4344 = vmatprep.mubr.bf16.mxu0 0
        %4345 = vmatmul.mubr.bf16.gmra.mrb[0].mxu0 %v4190
        %v4346 = vpop.f32.mrb[0].mxu0
        %v4347 = vadd.f32 0.0, %v4346
        %v4348 = vpop.f32.mrb[0].mxu0
        %v4349 = vpop.f32.mrb[0].mxu0
        %v4350 = vadd.f32 0.0, %v4349
        %v4351 = vpop.f32.mrb[0].mxu0
        %4352 = vmatprep.mubr.bf16.mxu0 0
        %4353 = vmatmul.mubr.bf16.gmra.mrb[0].mxu0 %v4191
        %v4354 = vpop.f32.mrb[0].mxu0
        %v4355 = vadd.f32 0.0, %v4354
        %v4356 = vpop.f32.mrb[0].mxu0
        %v4357 = vpop.f32.mrb[0].mxu0
        %v4358 = vadd.f32 0.0, %v4357
        %v4359 = vpop.f32.mrb[0].mxu0
        %4360 = vmatprep.mubr.bf16.mxu0 0
        %4361 = vmatmul.mubr.bf16.gmra.mrb[0].mxu0 %v4192
        %v4362 = vpop.f32.mrb[0].mxu0
        %v4363 = vadd.f32 0.0, %v4362
        %v4364 = vpop.f32.mrb[0].mxu0
        %v4365 = vpop.f32.mrb[0].mxu0
        %v4366 = vadd.f32 0.0, %v4365
        %v4367 = vpop.f32.mrb[0].mxu0
        %4368 = vmatprep.mubr.bf16.mxu0 0
        %4369 = vmatmul.mubr.bf16.gmra.mrb[0].mxu0 %v4193
        %v4370 = vpop.f32.mrb[0].mxu0
        %v4371 = vadd.f32 0.0, %v4370
        %v4372 = vpop.f32.mrb[0].mxu0
        %v4373 = vpop.f32.mrb[0].mxu0
        %v4374 = vadd.f32 0.0, %v4373
        %v4375 = vpop.f32.mrb[0].mxu0
        %4376 = vmatprep.mubr.bf16.mxu0 0
        %4377 = vmatmul.mubr.bf16.gmra.mrb[0].mxu0 %v4194
        %v4378 = vpop.f32.mrb[0].mxu0
        %v4379 = vadd.f32 0.0, %v4378
        %v4380 = vpop.f32.mrb[0].mxu0
        %v4381 = vpop.f32.mrb[0].mxu0
        %v4382 = vadd.f32 0.0, %v4381
        %v4383 = vpop.f32.mrb[0].mxu0
        %4384 = vmatprep.mubr.bf16.mxu0 0
        %4385 = vmatmul.mubr.bf16.gmra.mrb[0].mxu0 %v4195
        %v4386 = vpop.f32.mrb[0].mxu0
        %v4387 = vadd.f32 0.0, %v4386
        %v4388 = vpop.f32.mrb[0].mxu0
        %v4389 = vpop.f32.mrb[0].mxu0
        %v4390 = vadd.f32 0.0, %v4389
        %v4391 = vpop.f32.mrb[0].mxu0
        %4392 = vmatprep.mubr.bf16.mxu0 0
        %4393 = vmatmul.mubr.bf16.gmra.mrb[0].mxu0 %v4196
        %v4394 = vpop.f32.mrb[0].mxu0
        %v4395 = vadd.f32 0.0, %v4394
        %v4396 = vpop.f32.mrb[0].mxu0
        %v4397 = vpop.f32.mrb[0].mxu0
        %v4398 = vadd.f32 0.0, %v4397
        %v4399 = vpop.f32.mrb[0].mxu0
        %4400 = vmatprep.mubr.bf16.mxu0 0
        %4401 = vmatmul.mubr.bf16.gmra.mrb[0].mxu0 %v4197
        %v4402 = vpop.f32.mrb[0].mxu0
        %v4403 = vadd.f32 0.0, %v4402
        %v4404 = vpop.f32.mrb[0].mxu0
        %v4405 = vpop.f32.mrb[0].mxu0
        %v4406 = vadd.f32 0.0, %v4405
        %v4407 = vpop.f32.mrb[0].mxu0
        %4408 = vmatprep.mubr.bf16.mxu0 0
        %4409 = vmatmul.mubr.bf16.gmra.mrb[0].mxu0 %v4198
        %v4410 = vpop.f32.mrb[0].mxu0
        %v4411 = vadd.f32 0.0, %v4410
        %v4412 = vpop.f32.mrb[0].mxu0
        %v4413 = vpop.f32.mrb[0].mxu0
        %v4414 = vadd.f32 0.0, %v4413
        %v4415 = vpop.f32.mrb[0].mxu0
        %4416 = vmatprep.mubr.bf16.mxu0 0
        %4417 = vmatmul.mubr.bf16.gmra.mrb[0].mxu0 %v4199
        %v4418 = vpop.f32.mrb[0].mxu0
        %v4419 = vadd.f32 0.0, %v4418
        %v4420 = vpop.f32.mrb[0].mxu0
        %v4421 = vpop.f32.mrb[0].mxu0
        %v4422 = vadd.f32 0.0, %v4421
        %v4423 = vpop.f32.mrb[0].mxu0
        %4424 = vdwg.mxu0
        %v4425 = vadd.f32 %v4299, %v4302
        %v4426 = vadd.f32 %v4425, %v4307
        %v4427 = vadd.f32 %v4426, %v4310
        %v4428 = vadd.f32 %v4427, %v4315
        %v4429 = vadd.f32 %v4428, %v4318
        %v4430 = vadd.f32 %v4429, %v4323
        %v4431 = vadd.f32 %v4430, %v4326
        %v4432 = vadd.f32 %v4431, %v4331
        %v4433 = vadd.f32 %v4432, %v4334
        %v4434 = vadd.f32 %v4433, %v4339
        %v4435 = vadd.f32 %v4434, %v4342
        %v4436 = vadd.f32 %v4435, %v4347
        %v4437 = vadd.f32 %v4436, %v4350
        %v4438 = vadd.f32 %v4437, %v4355
        %v4439 = vadd.f32 %v4438, %v4358
        %v4440 = vadd.f32 %v4439, %v4363
        %v4441 = vadd.f32 %v4440, %v4366
        %v4442 = vadd.f32 %v4441, %v4371
        %v4443 = vadd.f32 %v4442, %v4374
        %v4444 = vadd.f32 %v4443, %v4379
        %v4445 = vadd.f32 %v4444, %v4382
        %v4446 = vadd.f32 %v4445, %v4387
        %v4447 = vadd.f32 %v4446, %v4390
        %v4448 = vadd.f32 %v4447, %v4395
        %v4449 = vadd.f32 %v4448, %v4398
        %v4450 = vadd.f32 %v4449, %v4403
        %v4451 = vadd.f32 %v4450, %v4406
        %v4452 = vadd.f32 %v4451, %v4411
        %v4453 = vadd.f32 %v4452, %v4414
        %v4454 = vadd.f32 %v4453, %v4419
        %v4455 = vadd.f32 %v4454, %v4422
        %v4456 = vrot.slane %v4455, 4
        %v4457 = vadd.f32 %v4455, %v4456
        %v4458 = vrot.slane %v4457, 2
        %v4459 = vadd.f32 %v4457, %v4458
        %v4460 = vrot.slane %v4459, 1
        %v4461 = vadd.f32 %v4459, %v4460
        %v4462 = vmul.f32 %v4461, 0.00390625
        %v4463 = vsub.f32 %v4299, %v4462
        %v4464 = vsub.f32 %v4302, %v4462
        %v4465 = vsub.f32 %v4307, %v4462
        %v4466 = vsub.f32 %v4310, %v4462
        %v4467 = vsub.f32 %v4315, %v4462
        %v4468 = vsub.f32 %v4318, %v4462
        %v4469 = vsub.f32 %v4323, %v4462
        %v4470 = vsub.f32 %v4326, %v4462
        %v4471 = vsub.f32 %v4331, %v4462
        %v4472 = vsub.f32 %v4334, %v4462
        %v4473 = vsub.f32 %v4339, %v4462
        %v4474 = vsub.f32 %v4342, %v4462
        %v4475 = vsub.f32 %v4347, %v4462
        %v4476 = vsub.f32 %v4350, %v4462
        %v4477 = vsub.f32 %v4355, %v4462
        %v4478 = vsub.f32 %v4358, %v4462
        %v4479 = vsub.f32 %v4363, %v4462
        %v4480 = vsub.f32 %v4366, %v4462
        %v4481 = vsub.f32 %v4371, %v4462
        %v4482 = vsub.f32 %v4374, %v4462
        %v4483 = vsub.f32 %v4379, %v4462
        %v4484 = vsub.f32 %v4382, %v4462
        %v4485 = vsub.f32 %v4387, %v4462
        %v4486 = vsub.f32 %v4390, %v4462
        %v4487 = vsub.f32 %v4395, %v4462
        %v4488 = vsub.f32 %v4398, %v4462
        %v4489 = vsub.f32 %v4403, %v4462
        %v4490 = vsub.f32 %v4406, %v4462
        %v4491 = vsub.f32 %v4411, %v4462
        %v4492 = vsub.f32 %v4414, %v4462
        %v4493 = vsub.f32 %v4419, %v4462
        %v4494 = vsub.f32 %v4422, %v4462
        %v4495 = vmul.f32 %v4463, %v4463
        %v4496 = vmul.f32 %v4464, %v4464
        %v4497 = vmul.f32 %v4465, %v4465
        %v4498 = vmul.f32 %v4466, %v4466
        %v4499 = vmul.f32 %v4467, %v4467
        %v4500 = vmul.f32 %v4468, %v4468
        %v4501 = vmul.f32 %v4469, %v4469
        %v4502 = vmul.f32 %v4470, %v4470
        %v4503 = vmul.f32 %v4471, %v4471
        %v4504 = vmul.f32 %v4472, %v4472
        %v4505 = vmul.f32 %v4473, %v4473
        %v4506 = vmul.f32 %v4474, %v4474
        %v4507 = vmul.f32 %v4475, %v4475
        %v4508 = vmul.f32 %v4476, %v4476
        %v4509 = vmul.f32 %v4477, %v4477
        %v4510 = vmul.f32 %v4478, %v4478
        %v4511 = vmul.f32 %v4479, %v4479
        %v4512 = vmul.f32 %v4480, %v4480
        %v4513 = vmul.f32 %v4481, %v4481
        %v4514 = vmul.f32 %v4482, %v4482
        %v4515 = vmul.f32 %v4483, %v4483
        %v4516 = vmul.f32 %v4484, %v4484
        %v4517 = vmul.f32 %v4485, %v4485
        %v4518 = vmul.f32 %v4486, %v4486
        %v4519 = vmul.f32 %v4487, %v4487
        %v4520 = vmul.f32 %v4488, %v4488
        %v4521 = vmul.f32 %v4489, %v4489
        %v4522 = vmul.f32 %v4490, %v4490
        %v4523 = vmul.f32 %v4491, %v4491
        %v4524 = vmul.f32 %v4492, %v4492
        %v4525 = vmul.f32 %v4493, %v4493
        %v4526 = vmul.f32 %v4494, %v4494
        %v4527 = vadd.f32 %v4495, %v4496
        %v4528 = vadd.f32 %v4527, %v4497
        %v4529 = vadd.f32 %v4528, %v4498
        %v4530 = vadd.f32 %v4529, %v4499
        %v4531 = vadd.f32 %v4530, %v4500
        %v4532 = vadd.f32 %v4531, %v4501
        %v4533 = vadd.f32 %v4532, %v4502
        %v4534 = vadd.f32 %v4533, %v4503
        %v4535 = vadd.f32 %v4534, %v4504
        %v4536 = vadd.f32 %v4535, %v4505
        %v4537 = vadd.f32 %v4536, %v4506
        %v4538 = vadd.f32 %v4537, %v4507
        %v4539 = vadd.f32 %v4538, %v4508
        %v4540 = vadd.f32 %v4539, %v4509
        %v4541 = vadd.f32 %v4540, %v4510
        %v4542 = vadd.f32 %v4541, %v4511
        %v4543 = vadd.f32 %v4542, %v4512
        %v4544 = vadd.f32 %v4543, %v4513
        %v4545 = vadd.f32 %v4544, %v4514
        %v4546 = vadd.f32 %v4545, %v4515
        %v4547 = vadd.f32 %v4546, %v4516
        %v4548 = vadd.f32 %v4547, %v4517
        %v4549 = vadd.f32 %v4548, %v4518
        %v4550 = vadd.f32 %v4549, %v4519
        %v4551 = vadd.f32 %v4550, %v4520
        %v4552 = vadd.f32 %v4551, %v4521
        %v4553 = vadd.f32 %v4552, %v4522
        %v4554 = vadd.f32 %v4553, %v4523
        %v4555 = vadd.f32 %v4554, %v4524
        %v4556 = vadd.f32 %v4555, %v4525
        %v4557 = vadd.f32 %v4556, %v4526
        %v4558 = vrot.slane %v4557, 4
        %v4559 = vadd.f32 %v4557, %v4558
        %v4560 = vrot.slane %v4559, 2
        %v4561 = vadd.f32 %v4559, %v4560
        %v4562 = vrot.slane %v4561, 1
        %v4563 = vadd.f32 %v4561, %v4562
        %v4564 = vmul.f32 %v4563, 0.00390625
        %v4565 = vadd.f32 %v4564, 1e-05
        %v4566 = vrsqrt.pop %v4565
        %v4567 = vmul.f32 %v4463, %v4566
        %v4568 = vmul.f32 %v4464, %v4566
        %v4569 = vmul.f32 %v4465, %v4566
        %v4570 = vmul.f32 %v4466, %v4566
        %v4571 = vmul.f32 %v4467, %v4566
        %v4572 = vmul.f32 %v4468, %v4566
        %v4573 = vmul.f32 %v4469, %v4566
        %v4574 = vmul.f32 %v4470, %v4566
        %v4575 = vmul.f32 %v4471, %v4566
        %v4576 = vmul.f32 %v4472, %v4566
        %v4577 = vmul.f32 %v4473, %v4566
        %v4578 = vmul.f32 %v4474, %v4566
        %v4579 = vmul.f32 %v4475, %v4566
        %v4580 = vmul.f32 %v4476, %v4566
        %v4581 = vmul.f32 %v4477, %v4566
        %v4582 = vmul.f32 %v4478, %v4566
        %v4583 = vmul.f32 %v4479, %v4566
        %v4584 = vmul.f32 %v4480, %v4566
        %v4585 = vmul.f32 %v4481, %v4566
        %v4586 = vmul.f32 %v4482, %v4566
        %v4587 = vmul.f32 %v4483, %v4566
        %v4588 = vmul.f32 %v4484, %v4566
        %v4589 = vmul.f32 %v4485, %v4566
        %v4590 = vmul.f32 %v4486, %v4566
        %v4591 = vmul.f32 %v4487, %v4566
        %v4592 = vmul.f32 %v4488, %v4566
        %v4593 = vmul.f32 %v4489, %v4566
        %v4594 = vmul.f32 %v4490, %v4566
        %v4595 = vmul.f32 %v4491, %v4566
        %v4596 = vmul.f32 %v4492, %v4566
        %v4597 = vmul.f32 %v4493, %v4566
        %v4598 = vmul.f32 %v4494, %v4566
        %v4599 = vadd.f32 %v4120, %v4567
        %v4600 = vadd.f32 %v4121, %v4568
        %v4601 = vadd.f32 %v4122, %v4569
        %v4602 = vadd.f32 %v4123, %v4570
        %v4603 = vadd.f32 %v4124, %v4571
        %v4604 = vadd.f32 %v4125, %v4572
        %v4605 = vadd.f32 %v4126, %v4573
        %v4606 = vadd.f32 %v4127, %v4574
        %v4607 = vadd.f32 %v4128, %v4575
        %v4608 = vadd.f32 %v4129, %v4576
        %v4609 = vadd.f32 %v4130, %v4577
        %v4610 = vadd.f32 %v4131, %v4578
        %v4611 = vadd.f32 %v4132, %v4579
        %v4612 = vadd.f32 %v4133, %v4580
        %v4613 = vadd.f32 %v4134, %v4581
        %v4614 = vadd.f32 %v4135, %v4582
        %v4615 = vadd.f32 %v4136, %v4583
        %v4616 = vadd.f32 %v4137, %v4584
        %v4617 = vadd.f32 %v4138, %v4585
        %v4618 = vadd.f32 %v4139, %v4586
        %v4619 = vadd.f32 %v4140, %v4587
        %v4620 = vadd.f32 %v4141, %v4588
        %v4621 = vadd.f32 %v4142, %v4589
        %v4622 = vadd.f32 %v4143, %v4590
        %v4623 = vadd.f32 %v4144, %v4591
        %v4624 = vadd.f32 %v4145, %v4592
        %v4625 = vadd.f32 %v4146, %v4593
        %v4626 = vadd.f32 %v4147, %v4594
        %v4627 = vadd.f32 %v4148, %v4595
        %v4628 = vadd.f32 %v4149, %v4596
        %v4629 = vadd.f32 %v4150, %v4597
        %v4630 = vadd.f32 %v4151, %v4598
        %v4631 = vmax.f32 %v4599, 0.0
        %v4632 = vmax.f32 %v4600, 0.0
        %v4633 = vmax.f32 %v4601, 0.0
        %v4634 = vmax.f32 %v4602, 0.0
        %v4635 = vmax.f32 %v4603, 0.0
        %v4636 = vmax.f32 %v4604, 0.0
        %v4637 = vmax.f32 %v4605, 0.0
        %v4638 = vmax.f32 %v4606, 0.0
        %v4639 = vmax.f32 %v4607, 0.0
        %v4640 = vmax.f32 %v4608, 0.0
        %v4641 = vmax.f32 %v4609, 0.0
        %v4642 = vmax.f32 %v4610, 0.0
        %v4643 = vmax.f32 %v4611, 0.0
        %v4644 = vmax.f32 %v4612, 0.0
        %v4645 = vmax.f32 %v4613, 0.0
        %v4646 = vmax.f32 %v4614, 0.0
        %v4647 = vmax.f32 %v4615, 0.0
        %v4648 = vmax.f32 %v4616, 0.0
        %v4649 = vmax.f32 %v4617, 0.0
        %v4650 = vmax.f32 %v4618, 0.0
        %v4651 = vmax.f32 %v4619, 0.0
        %v4652 = vmax.f32 %v4620, 0.0
        %v4653 = vmax.f32 %v4621, 0.0
        %v4654 = vmax.f32 %v4622, 0.0
        %v4655 = vmax.f32 %v4623, 0.0
        %v4656 = vmax.f32 %v4624, 0.0
        %v4657 = vmax.f32 %v4625, 0.0
        %v4658 = vmax.f32 %v4626, 0.0
        %v4659 = vmax.f32 %v4627, 0.0
        %v4660 = vmax.f32 %v4628, 0.0
        %v4661 = vmax.f32 %v4629, 0.0
        %v4662 = vmax.f32 %v4630, 0.0
        %4663 = vst [vmem:[%s300] sm:$0xff] %v4631
        %4664 = vst [vmem:[%s300 + $0x8] sm:$0xff] %v4632
        %4665 = vst [vmem:[%s300 + $0x10] sm:$0xff] %v4633
        %4666 = vst [vmem:[%s300 + $0x18] sm:$0xff] %v4634
        %4667 = vst [vmem:[%s300 + $0x20] sm:$0xff] %v4635
        %4668 = vst [vmem:[%s300 + $0x28] sm:$0xff] %v4636
        %4669 = vst [vmem:[%s300 + $0x30] sm:$0xff] %v4637
        %4670 = vst [vmem:[%s300 + $0x38] sm:$0xff] %v4638
        %4671 = vst [vmem:[%s300 + $0x40] sm:$0xff] %v4639
        %4672 = vst [vmem:[%s300 + $0x48] sm:$0xff] %v4640
        %4673 = vst [vmem:[%s300 + $0x50] sm:$0xff] %v4641
        %4674 = vst [vmem:[%s300 + $0x58] sm:$0xff] %v4642
        %4675 = vst [vmem:[%s300 + $0x60] sm:$0xff] %v4643
        %4676 = vst [vmem:[%s300 + $0x68] sm:$0xff] %v4644
        %4677 = vst [vmem:[%s300 + $0x70] sm:$0xff] %v4645
        %4678 = vst [vmem:[%s300 + $0x78] sm:$0xff] %v4646
        %4679 = vst [vmem:[%s300 + $0x80] sm:$0xff] %v4647
        %4680 = vst [vmem:[%s300 + $0x88] sm:$0xff] %v4648
        %4681 = vst [vmem:[%s300 + $0x90] sm:$0xff] %v4649
        %4682 = vst [vmem:[%s300 + $0x98] sm:$0xff] %v4650
        %4683 = vst [vmem:[%s300 + $0xa0] sm:$0xff] %v4651
        %4684 = vst [vmem:[%s300 + $0xa8] sm:$0xff] %v4652
        %4685 = vst [vmem:[%s300 + $0xb0] sm:$0xff] %v4653
        %4686 = vst [vmem:[%s300 + $0xb8] sm:$0xff] %v4654
        %4687 = vst [vmem:[%s300 + $0xc0] sm:$0xff] %v4655
        %4688 = vst [vmem:[%s300 + $0xc8] sm:$0xff] %v4656
        %4689 = vst [vmem:[%s300 + $0xd0] sm:$0xff] %v4657
        %4690 = vst [vmem:[%s300 + $0xd8] sm:$0xff] %v4658
        %4691 = vst [vmem:[%s300 + $0xe0] sm:$0xff] %v4659
        %4692 = vst [vmem:[%s300 + $0xe8] sm:$0xff] %v4660
        %4693 = vst [vmem:[%s300 + $0xf0] sm:$0xff] %v4661
        %4694 = vst [vmem:[%s300 + $0xf8] sm:$0xff] %v4662
        %s4695 = sand.u32 %s142, 1
        %s4696 = scalar_lea.sflag [#allocation5], %s4695
        %s4697 = sand.u32 %s142, 1
        %s4698 = smul.addr %s4697, 256
        %s4699 = scalar_lea.vmem [#allocation12], %s4698
        // Predicated region
        $region61: #{tpu_custom_call.1} parent=39 // pred_check
          %p4700 = pneg %p152
        $region62: #{tpu_custom_call.1} parent=39 // pred_check_branch
          %4702 = sbr.rel (%p4700) target = $region64
        $region63: #{tpu_custom_call.1} parent=39 // pred_region
          %s4704 = ssub.s32 4096, 4096
          %4705 = vsyncadd %s4696, %s4704
          %s4706 = smul.addr %s24, 32
          %s4707 = smul.addr %s4706, 128
          %s4708 = scalar_lea.hbm %s5, %s4707
          %s4709 = sshll.u32 %s4699, 4
          %s4710 = int_to_ptr.vmem [resolvable:$true] %s4709
          %4715 = dma.vmem_to_hbm [thread:$0]  %s4710, 4096, %s4708, %s4696, 128, 128, 8
        $region64: #{tpu_custom_call.1} parent=39 // pred_fallthru
          _
      $region40: #{tpu_custom_call.1} parent=5 // pred_fallthru
        _
      %p4716 = scmp.le.s32.totalorder 2, %s19
      // Predicated region
      $region65: #{tpu_custom_call.1} parent=5 // pred_check
        %p4717 = pneg %p4716
      $region66: #{tpu_custom_call.1} parent=5 // pred_check_branch
        %4719 = sbr.rel (%p4717) target = $region68
      $region67: #{tpu_custom_call.1} parent=5 // pred_region
        %s4720 = ssub.s32 %s19, 2
        // Predicated region
        $region69: #{tpu_custom_call.1} parent=67 // pred_check
          %p4721 = pneg %p158
        $region70: #{tpu_custom_call.1} parent=67 // pred_check_branch
          %4723 = sbr.rel (%p4721) target = $region72
        $region71: #{tpu_custom_call.1} parent=67 // pred_region
          %s4724 = sand.u32 %s143, 1
          %s4725 = scalar_lea.sflag [#allocation5], %s4724
          %s4726 = sand.u32 %s143, 1
          %s4727 = smul.addr %s4726, 256
          %s4728 = scalar_lea.vmem [#allocation12], %s4727
          %4729 = dma.done %s4725, 4096
        $region72: #{tpu_custom_call.1} parent=67 // pred_fallthru
          _
      $region68: #{tpu_custom_call.1} parent=5 // pred_fallthru
        _
    $region6: #{tpu_custom_call.1} parent=1 // loop_footer
      %s23 = sadd.s32 1, %s19
    $region7: #{tpu_custom_call.1} parent=1 // loop_footer_branch
      %18 = sbr.rel target = $region3
    $region8: #{tpu_custom_call.1} parent=1 // loop_exit
      _
    %4730 = vsyncpa [#allocation4], 1
    %s4731 = scalar_lea.sflag [#allocation4], 1
    %4732 = vsyncpa %s4731, 1
    %4733 = vsyncpa [#allocation7], 1
    %4734 = vsyncpa [#allocation10], 1
    %4735 = vsyncpa [#allocation5], 1
    %s4736 = scalar_lea.sflag [#allocation5], 1
    %4737 = vsyncpa %s4736, 1

</llo_original>
